<compile_context>
chip_gen: v7x
topology: tpu7x:2x2x1
jax: 0.10.0
libtpu: 0.0.40
codegen_flags: <defaults>
</compile_context>

<pallas_src>
import math

import jax
import jax.numpy as jnp
from jax.experimental import pallas as pl
from jax.experimental.pallas import tpu as pltpu


# ----------------------------------------------------------------------------
# Fused forward pass
# ----------------------------------------------------------------------------
@jax.jit
def convnet_nopool_forward(x_nchw, params):
    """params: tuple per block of (w_fold (9*Cin, Cout) bf16, b_fold (1, Cout) f32)."""
    depth = len(params)
    N, Cin, H, W = x_nchw.shape
    cout = params[0][0].shape[1]
    cins = [p[0].shape[0] // 9 for p in params]
    cin_pad = cins[0]

    # --- Static block geometry (mirrors ConvNetNopool.__init__) -------------
    pads = [0 if i in (0, 1) else 1 for i in range(depth)]
    pools = [i in (0, 1) for i in range(depth)]
    Hin, Win, Hc, Wc, Hn, Wn = [], [], [], [], [], []
    h_cur, w_cur = H, W
    for i in range(depth):
        hin, win = h_cur + 2 * pads[i], w_cur + 2 * pads[i]   # padded input size
        hc, wc = hin - 2, win - 2                             # conv output size
        hn, wn = (hc // 2, wc // 2) if pools[i] else (hc, wc) # block output size
        Hin.append(hin); Win.append(win)
        Hc.append(hc); Wc.append(wc)
        Hn.append(hn); Wn.append(wn)
        h_cur, w_cur = hn, wn

    # Flat "conv domain" length per block (row stride = padded input width).
    Ms = [(Hc[i] - 1) * Win[i] + Wc[i] for i in range(depth)]
    m_max = max(Ms)

    # --- Cheap XLA prologue: NCHW -> flat NHWC, channel pad, bf16 ------------
    x = jnp.transpose(x_nchw, (0, 2, 3, 1))
    if cin_pad > Cin:
        x = jnp.pad(x, ((0, 0), (0, 0), (0, 0), (0, cin_pad - Cin)))
    x = x.reshape(N, H * W, cin_pad).astype(jnp.bfloat16)

    CH = 256   # flat-row chunk for the f32 accumulator (bounds register pressure)

    # --- Fused kernel: all conv blocks + both maxpools, VMEM resident --------
    def kernel(*refs):
        x_ref = refs[0]
        w_refs = refs[1:1 + 2 * depth]
        o_ref = refs[1 + 2 * depth]
        act_refs = refs[2 + 2 * depth:2 + 2 * depth + (depth - 1)]
        convb = refs[2 + 2 * depth + (depth - 1)]

        # Zero the spatially padded activation buffers: their untouched
        # borders realize the zero padding of the conv that reads them.
        for i in range(depth - 1):
            if pads[i + 1] > 0:
                act_refs[i][...] = jnp.zeros_like(act_refs[i])

        src = x_ref
        for i in range(depth):
            w_ref = w_refs[2 * i]                 # (9*Cin_i, Cout) bf16, BN folded
            bvec = w_refs[2 * i + 1][...]         # (1, Cout) f32
            cin = cins[i]
            win = Win[i]
            hn, wn = Hn[i], Wn[i]
            m = Ms[i]

            # ---- Phase A: conv + bias + ReLU for the whole block.
            # out[p] = sum_k src[p + kh*win + kw] @ W_k  -> 9 shifted-slab MXU
            # matmuls per chunk.  Columns wc..win-1 of each conv row are
            # wrap-around garbage and are simply never read back.
            for c0 in range(0, m, CH):
                ch = min(CH, m - c0)
                acc = jnp.zeros((ch, cout), jnp.float32)
                for k in range(9):
                    kh, kw = divmod(k, 3)
                    s0 = kh * win + kw + c0
                    a = src[s0:s0 + ch, :]                      # (ch, cin) bf16
                    wk = w_ref[k * cin:(k + 1) * cin, :]        # (cin, Cout) bf16
                    acc = acc + jnp.dot(a, wk,
                                        preferred_element_type=jnp.float32)
                convb[c0:c0 + ch, :] = jnp.maximum(acc + bvec, 0.0)

            # ---- Phase B: (fused MaxPool2d(2)) + scatter rows into the next
            # block's zero-padded flat activation buffer / the final output.
            if i < depth - 1:
                dst, off, wnxt = act_refs[i], pads[i + 1], Win[i + 1]
            else:
                dst, off, wnxt = o_ref, 0, Wn[i]
            for p in range(hn):
                if pools[i]:
                    # 2x2 max-pool: 4 strided sublane reads from the conv
                    # scratch (floor semantics: trailing odd row/col dropped).
                    r0 = 2 * p * win
                    r1 = (2 * p + 1) * win
                    row = jnp.maximum(
                        jnp.maximum(convb[pl.ds(r0, wn, stride=2), :],
                                    convb[pl.ds(r0 + 1, wn, stride=2), :]),
                        jnp.maximum(convb[pl.ds(r1, wn, stride=2), :],
                                    convb[pl.ds(r1 + 1, wn, stride=2), :]))
                else:
                    row = convb[p * win:p * win + wn, :]
                d0 = (off + p) * wnxt + off
                dst[d0:d0 + wn, :] = row.astype(dst.dtype)

            if i < depth - 1:
                src = act_refs[i]

    # --- pallas_call plumbing -------------------------------------------------
    in_specs = [pl.BlockSpec((None, H * W, cin_pad), lambda n: (n, 0, 0))]
    flat_params = []
    for (wf, bf) in params:
        in_specs.append(pl.BlockSpec(wf.shape, lambda n: (0, 0)))
        in_specs.append(pl.BlockSpec(bf.shape, lambda n: (0, 0)))
        flat_params.extend([wf, bf])
    out_spec = pl.BlockSpec((None, Hn[-1] * Wn[-1], cout), lambda n: (n, 0, 0))

    scratch = [pltpu.VMEM((Hin[i + 1] * Win[i + 1], cout), jnp.bfloat16)
               for i in range(depth - 1)]                     # padded act slabs
    scratch.append(pltpu.VMEM((m_max, cout), jnp.float32))    # conv output slab

    out_flat = pl.pallas_call(
        kernel,
        out_shape=jax.ShapeDtypeStruct((N, Hn[-1] * Wn[-1], cout), jnp.float32),
        grid=(N,),
        in_specs=in_specs,
        out_specs=out_spec,
        scratch_shapes=scratch,
        compiler_params=pltpu.CompilerParams(
            dimension_semantics=("parallel",)),
    )(x, *flat_params)

    out_nhwc = out_flat.reshape(N, Hn[-1], Wn[-1], cout)
    return jnp.transpose(out_nhwc, (0, 3, 1, 2))   # NHWC -> NCHW


# ----------------------------------------------------------------------------
# Parameter construction (deterministic, mirrors ConvNetNopool.__init__)
# ----------------------------------------------------------------------------
def make_params(depth, key):
    eps = 1e-5
    params = []
    for i in range(depth):
        indim = 3 if i == 0 else 64
        outdim = 64
        key, kw_, kb_ = jax.random.split(key, 3)
        # init_layer: weight ~ N(0, sqrt(2 / (kH*kW*out_channels)))
        n = 3 * 3 * outdim
        w = jax.random.normal(kw_, (outdim, indim, 3, 3), jnp.float32) * math.sqrt(
            2.0 / float(n))
        # Conv2d default bias init: U(-1/sqrt(fan_in), 1/sqrt(fan_in))
        fan_in = indim * 9
        bound = 1.0 / math.sqrt(fan_in)
        b = jax.random.uniform(kb_, (outdim,), jnp.float32, minval=-bound,
                               maxval=bound)
        # BatchNorm2d (eval): gamma=1, beta=0, running_mean=0, running_var=1.
        gamma = jnp.ones((outdim,), jnp.float32)
        beta = jnp.zeros((outdim,), jnp.float32)
        run_mean = jnp.zeros((outdim,), jnp.float32)
        run_var = jnp.ones((outdim,), jnp.float32)
        scale = gamma / jnp.sqrt(run_var + eps)
        shift = beta - run_mean * scale
        params.append(dict(w=w, b=b, scale=scale, shift=shift,
                           padding=0 if i in (0, 1) else 1, pool=i in (0, 1)))
    return params


def fold_params(raw_params, cin0_pad=8):
    """Fold eval-mode BN into conv weight/bias; flatten to (9*Cin, Cout) bf16."""
    folded = []
    for i, p in enumerate(raw_params):
        w = p["w"]                                  # (cout, cin, 3, 3)
        cout, cin = w.shape[0], w.shape[1]
        cin_p = cin0_pad if i == 0 else cin
        if cin_p > cin:                             # zero-pad block-0 input chans
            w = jnp.pad(w, ((0, 0), (0, cin_p - cin), (0, 0), (0, 0)))
        # (cout, cin, kh, kw) -> (kh, kw, cin, cout) -> (9*cin, cout); first-axis
        # ordering (kh slow, kw, cin fast) matches the in-kernel weight slices.
        w_flat = jnp.transpose(w, (2, 3, 1, 0)).reshape(9 * cin_p, cout)
        w_fold = (w_flat * p["scale"][None, :]).astype(jnp.bfloat16)
        b_fold = (p["b"] * p["scale"] + p["shift"]).reshape(1, cout).astype(
            jnp.float32)
        folded.append((w_fold, b_fold))
    return tuple(folded)


def reference_forward(x_nchw, raw_params):
    """Pure-JAX (XLA) reference of ConvNetNopool.forward (eval mode)."""
    x = x_nchw
    for p in raw_params:
        pad = int(p["padding"])
        x = jax.lax.conv_general_dilated(
            x, p["w"], window_strides=(1, 1),
            padding=[(pad, pad), (pad, pad)],
            dimension_numbers=("NCHW", "OIHW", "NCHW"))
        x = x + p["b"][None, :, None, None]
        x = x * p["scale"][None, :, None, None] + p["shift"][None, :, None, None]
        x = jnp.maximum(x, 0.0)
        if p["pool"]:
            x = jax.lax.reduce_window(x, -jnp.inf, jax.lax.max,
                                      (1, 1, 2, 2), (1, 1, 2, 2), "VALID")
    return x


if __name__ == "__main__":
    depth = 4
    key = jax.random.PRNGKey(0)
    key, kx = jax.random.split(key)

    # NCHW input: 20x20 -> conv 18 -> pool 9 -> conv 7 -> pool 3 -> 3 -> 3.
    x = jax.random.normal(kx, (2, 3, 20, 20), jnp.float32)

    raw_params = make_params(depth, key)
    kparams = fold_params(raw_params)

    out = convnet_nopool_forward(x, kparams)
    out = jax.block_until_ready(out)
    assert out.shape == (2, 64, 3, 3), out.shape
    assert bool(jnp.all(jnp.isfinite(out)))

    # Numerical check against an XLA reference (bf16 matmul operands => loose tol).
    ref = reference_forward(x, raw_params)
    max_abs_err = float(jnp.max(jnp.abs(out - ref)))
    assert max_abs_err < 0.15, f"max |err| = {max_abs_err}"

    print("KERNEL_OK")
</pallas_src>

<mosaic_0001>
module attributes {stable_mosaic.version = 11 : i64} {
  func.func @kernel(%arg0: i32, %arg1: memref<1x400x8xbf16, #tpu.memory_space<vmem>>, %arg2: memref<72x64xbf16, #tpu.memory_space<vmem>>, %arg3: memref<1x64xf32, #tpu.memory_space<vmem>>, %arg4: memref<576x64xbf16, #tpu.memory_space<vmem>>, %arg5: memref<1x64xf32, #tpu.memory_space<vmem>>, %arg6: memref<576x64xbf16, #tpu.memory_space<vmem>>, %arg7: memref<1x64xf32, #tpu.memory_space<vmem>>, %arg8: memref<576x64xbf16, #tpu.memory_space<vmem>>, %arg9: memref<1x64xf32, #tpu.memory_space<vmem>>, %arg10: memref<1x9x64xf32, #tpu.memory_space<vmem>>, %arg11: memref<81x64xbf16, #tpu.memory_space<vmem>>, %arg12: memref<25x64xbf16, #tpu.memory_space<vmem>>, %arg13: memref<25x64xbf16, #tpu.memory_space<vmem>>, %arg14: memref<358x64xf32, #tpu.memory_space<vmem>>) attributes {dimension_semantics = [#tpu.dimension_semantics<parallel>], iteration_bounds = array<i64: 2>, scalar_prefetch = 0 : i64, scratch_operands = 4 : i64, tpu.core_type = #tpu.core_type<tc>, window_params = [{transform_indices = @transform_0, window_bounds = array<i64: 1, 400, 8>}, {pipeline_mode = #tpu.pipeline_mode<synchronous>, transform_indices = @transform_1, window_bounds = array<i64: 72, 64>}, {pipeline_mode = #tpu.pipeline_mode<synchronous>, transform_indices = @transform_2, window_bounds = array<i64: 1, 64>}, {pipeline_mode = #tpu.pipeline_mode<synchronous>, transform_indices = @transform_3, window_bounds = array<i64: 576, 64>}, {pipeline_mode = #tpu.pipeline_mode<synchronous>, transform_indices = @transform_4, window_bounds = array<i64: 1, 64>}, {pipeline_mode = #tpu.pipeline_mode<synchronous>, transform_indices = @transform_5, window_bounds = array<i64: 576, 64>}, {pipeline_mode = #tpu.pipeline_mode<synchronous>, transform_indices = @transform_6, window_bounds = array<i64: 1, 64>}, {pipeline_mode = #tpu.pipeline_mode<synchronous>, transform_indices = @transform_7, window_bounds = array<i64: 576, 64>}, {pipeline_mode = #tpu.pipeline_mode<synchronous>, transform_indices = @transform_8, window_bounds = array<i64: 1, 64>}, {transform_indices = @transform_9, window_bounds = array<i64: 1, 9, 64>}]} {
    %cst = arith.constant 0.000000e+00 : bf16
    %0 = vector.broadcast %cst : bf16 to vector<25x64xbf16>
    %c0 = arith.constant 0 : index
    %c0_0 = arith.constant 0 : index
    %1 = vector.load %arg12[%c0, %c0_0] : memref<25x64xbf16, #tpu.memory_space<vmem>>, vector<25x64xbf16>
    tpu.vector_store %arg12[%c0, %c0_0], %0 {strides = array<i32>} : memref<25x64xbf16, #tpu.memory_space<vmem>>, vector<25x64xbf16>,
    %cst_1 = arith.constant 0.000000e+00 : bf16
    %2 = vector.broadcast %cst_1 : bf16 to vector<25x64xbf16>
    %c0_2 = arith.constant 0 : index
    %c0_3 = arith.constant 0 : index
    %3 = vector.load %arg13[%c0_2, %c0_3] : memref<25x64xbf16, #tpu.memory_space<vmem>>, vector<25x64xbf16>
    tpu.vector_store %arg13[%c0_2, %c0_3], %2 {strides = array<i32>} : memref<25x64xbf16, #tpu.memory_space<vmem>>, vector<25x64xbf16>,
    %c0_4 = arith.constant 0 : index
    %c0_5 = arith.constant 0 : index
    %4 = vector.load %arg3[%c0_4, %c0_5] : memref<1x64xf32, #tpu.memory_space<vmem>>, vector<1x64xf32>
    %cst_6 = arith.constant 0.000000e+00 : f32
    %5 = vector.broadcast %cst_6 : f32 to vector<256x64xf32>
    %c0_7 = arith.constant 0 : index
    %c0_8 = arith.constant 0 : index
    %c0_9 = arith.constant 0 : index
    %6 = vector.load %arg1[%c0_7, %c0_8, %c0_9] : memref<1x400x8xbf16, #tpu.memory_space<vmem>>, vector<1x256x8xbf16>
    %7 = vector.shape_cast %6 : vector<1x256x8xbf16> to vector<256x8xbf16>
    %c0_10 = arith.constant 0 : index
    %c0_11 = arith.constant 0 : index
    %8 = vector.load %arg2[%c0_10, %c0_11] : memref<72x64xbf16, #tpu.memory_space<vmem>>, vector<8x64xbf16>
    %cst_12 = arith.constant dense<0.000000e+00> : vector<256x64xf32>
    %9 = tpu.matmul %7, %8, %cst_12 {dimension_numbers = #tpu.dot_dimension_numbers<[1], [0], [0], [1], [0, 0, 1, 1], [], []>} : vector<256x8xbf16>, vector<8x64xbf16>, vector<256x64xf32> -> vector<256x64xf32>
    %10 = arith.addf %5, %9 : vector<256x64xf32>
    %c0_13 = arith.constant 0 : index
    %c1 = arith.constant 1 : index
    %c0_14 = arith.constant 0 : index
    %11 = vector.load %arg1[%c0_13, %c1, %c0_14] : memref<1x400x8xbf16, #tpu.memory_space<vmem>>, vector<1x256x8xbf16>
    %12 = vector.shape_cast %11 : vector<1x256x8xbf16> to vector<256x8xbf16>
    %c8 = arith.constant 8 : index
    %c0_15 = arith.constant 0 : index
    %13 = vector.load %arg2[%c8, %c0_15] : memref<72x64xbf16, #tpu.memory_space<vmem>>, vector<8x64xbf16>
    %cst_16 = arith.constant dense<0.000000e+00> : vector<256x64xf32>
    %14 = tpu.matmul %12, %13, %cst_16 {dimension_numbers = #tpu.dot_dimension_numbers<[1], [0], [0], [1], [0, 0, 1, 1], [], []>} : vector<256x8xbf16>, vector<8x64xbf16>, vector<256x64xf32> -> vector<256x64xf32>
    %15 = arith.addf %10, %14 : vector<256x64xf32>
    %c0_17 = arith.constant 0 : index
    %c2 = arith.constant 2 : index
    %c0_18 = arith.constant 0 : index
    %16 = vector.load %arg1[%c0_17, %c2, %c0_18] : memref<1x400x8xbf16, #tpu.memory_space<vmem>>, vector<1x256x8xbf16>
    %17 = vector.shape_cast %16 : vector<1x256x8xbf16> to vector<256x8xbf16>
    %c16 = arith.constant 16 : index
    %c0_19 = arith.constant 0 : index
    %18 = vector.load %arg2[%c16, %c0_19] : memref<72x64xbf16, #tpu.memory_space<vmem>>, vector<8x64xbf16>
    %cst_20 = arith.constant dense<0.000000e+00> : vector<256x64xf32>
    %19 = tpu.matmul %17, %18, %cst_20 {dimension_numbers = #tpu.dot_dimension_numbers<[1], [0], [0], [1], [0, 0, 1, 1], [], []>} : vector<256x8xbf16>, vector<8x64xbf16>, vector<256x64xf32> -> vector<256x64xf32>
    %20 = arith.addf %15, %19 : vector<256x64xf32>
    %c0_21 = arith.constant 0 : index
    %c20 = arith.constant 20 : index
    %c0_22 = arith.constant 0 : index
    %21 = vector.load %arg1[%c0_21, %c20, %c0_22] : memref<1x400x8xbf16, #tpu.memory_space<vmem>>, vector<1x256x8xbf16>
    %22 = vector.shape_cast %21 : vector<1x256x8xbf16> to vector<256x8xbf16>
    %c24 = arith.constant 24 : index
    %c0_23 = arith.constant 0 : index
    %23 = vector.load %arg2[%c24, %c0_23] : memref<72x64xbf16, #tpu.memory_space<vmem>>, vector<8x64xbf16>
    %cst_24 = arith.constant dense<0.000000e+00> : vector<256x64xf32>
    %24 = tpu.matmul %22, %23, %cst_24 {dimension_numbers = #tpu.dot_dimension_numbers<[1], [0], [0], [1], [0, 0, 1, 1], [], []>} : vector<256x8xbf16>, vector<8x64xbf16>, vector<256x64xf32> -> vector<256x64xf32>
    %25 = arith.addf %20, %24 : vector<256x64xf32>
    %c0_25 = arith.constant 0 : index
    %c21 = arith.constant 21 : index
    %c0_26 = arith.constant 0 : index
    %26 = vector.load %arg1[%c0_25, %c21, %c0_26] : memref<1x400x8xbf16, #tpu.memory_space<vmem>>, vector<1x256x8xbf16>
    %27 = vector.shape_cast %26 : vector<1x256x8xbf16> to vector<256x8xbf16>
    %c32 = arith.constant 32 : index
    %c0_27 = arith.constant 0 : index
    %28 = vector.load %arg2[%c32, %c0_27] : memref<72x64xbf16, #tpu.memory_space<vmem>>, vector<8x64xbf16>
    %cst_28 = arith.constant dense<0.000000e+00> : vector<256x64xf32>
    %29 = tpu.matmul %27, %28, %cst_28 {dimension_numbers = #tpu.dot_dimension_numbers<[1], [0], [0], [1], [0, 0, 1, 1], [], []>} : vector<256x8xbf16>, vector<8x64xbf16>, vector<256x64xf32> -> vector<256x64xf32>
    %30 = arith.addf %25, %29 : vector<256x64xf32>
    %c0_29 = arith.constant 0 : index
    %c22 = arith.constant 22 : index
    %c0_30 = arith.constant 0 : index
    %31 = vector.load %arg1[%c0_29, %c22, %c0_30] : memref<1x400x8xbf16, #tpu.memory_space<vmem>>, vector<1x256x8xbf16>
    %32 = vector.shape_cast %31 : vector<1x256x8xbf16> to vector<256x8xbf16>
    %c40 = arith.constant 40 : index
    %c0_31 = arith.constant 0 : index
    %33 = vector.load %arg2[%c40, %c0_31] : memref<72x64xbf16, #tpu.memory_space<vmem>>, vector<8x64xbf16>
    %cst_32 = arith.constant dense<0.000000e+00> : vector<256x64xf32>
    %34 = tpu.matmul %32, %33, %cst_32 {dimension_numbers = #tpu.dot_dimension_numbers<[1], [0], [0], [1], [0, 0, 1, 1], [], []>} : vector<256x8xbf16>, vector<8x64xbf16>, vector<256x64xf32> -> vector<256x64xf32>
    %35 = arith.addf %30, %34 : vector<256x64xf32>
    %c0_33 = arith.constant 0 : index
    %c40_34 = arith.constant 40 : index
    %c0_35 = arith.constant 0 : index
    %36 = vector.load %arg1[%c0_33, %c40_34, %c0_35] : memref<1x400x8xbf16, #tpu.memory_space<vmem>>, vector<1x256x8xbf16>
    %37 = vector.shape_cast %36 : vector<1x256x8xbf16> to vector<256x8xbf16>
    %c48 = arith.constant 48 : index
    %c0_36 = arith.constant 0 : index
    %38 = vector.load %arg2[%c48, %c0_36] : memref<72x64xbf16, #tpu.memory_space<vmem>>, vector<8x64xbf16>
    %cst_37 = arith.constant dense<0.000000e+00> : vector<256x64xf32>
    %39 = tpu.matmul %37, %38, %cst_37 {dimension_numbers = #tpu.dot_dimension_numbers<[1], [0], [0], [1], [0, 0, 1, 1], [], []>} : vector<256x8xbf16>, vector<8x64xbf16>, vector<256x64xf32> -> vector<256x64xf32>
    %40 = arith.addf %35, %39 : vector<256x64xf32>
    %c0_38 = arith.constant 0 : index
    %c41 = arith.constant 41 : index
    %c0_39 = arith.constant 0 : index
    %41 = vector.load %arg1[%c0_38, %c41, %c0_39] : memref<1x400x8xbf16, #tpu.memory_space<vmem>>, vector<1x256x8xbf16>
    %42 = vector.shape_cast %41 : vector<1x256x8xbf16> to vector<256x8xbf16>
    %c56 = arith.constant 56 : index
    %c0_40 = arith.constant 0 : index
    %43 = vector.load %arg2[%c56, %c0_40] : memref<72x64xbf16, #tpu.memory_space<vmem>>, vector<8x64xbf16>
    %cst_41 = arith.constant dense<0.000000e+00> : vector<256x64xf32>
    %44 = tpu.matmul %42, %43, %cst_41 {dimension_numbers = #tpu.dot_dimension_numbers<[1], [0], [0], [1], [0, 0, 1, 1], [], []>} : vector<256x8xbf16>, vector<8x64xbf16>, vector<256x64xf32> -> vector<256x64xf32>
    %45 = arith.addf %40, %44 : vector<256x64xf32>
    %c0_42 = arith.constant 0 : index
    %c42 = arith.constant 42 : index
    %c0_43 = arith.constant 0 : index
    %46 = vector.load %arg1[%c0_42, %c42, %c0_43] : memref<1x400x8xbf16, #tpu.memory_space<vmem>>, vector<1x256x8xbf16>
    %47 = vector.shape_cast %46 : vector<1x256x8xbf16> to vector<256x8xbf16>
    %c64 = arith.constant 64 : index
    %c0_44 = arith.constant 0 : index
    %48 = vector.load %arg2[%c64, %c0_44] : memref<72x64xbf16, #tpu.memory_space<vmem>>, vector<8x64xbf16>
    %cst_45 = arith.constant dense<0.000000e+00> : vector<256x64xf32>
    %49 = tpu.matmul %47, %48, %cst_45 {dimension_numbers = #tpu.dot_dimension_numbers<[1], [0], [0], [1], [0, 0, 1, 1], [], []>} : vector<256x8xbf16>, vector<8x64xbf16>, vector<256x64xf32> -> vector<256x64xf32>
    %50 = arith.addf %45, %49 : vector<256x64xf32>
    %51 = vector.broadcast %4 : vector<1x64xf32> to vector<256x64xf32>
    %52 = arith.addf %50, %51 : vector<256x64xf32>
    %cst_46 = arith.constant 0.000000e+00 : f32
    %53 = vector.broadcast %cst_46 : f32 to vector<256x64xf32>
    %54 = arith.maximumf %52, %53 : vector<256x64xf32>
    %c0_47 = arith.constant 0 : index
    %c0_48 = arith.constant 0 : index
    %55 = vector.load %arg14[%c0_47, %c0_48] : memref<358x64xf32, #tpu.memory_space<vmem>>, vector<256x64xf32>
    tpu.vector_store %arg14[%c0_47, %c0_48], %54 {strides = array<i32>} : memref<358x64xf32, #tpu.memory_space<vmem>>, vector<256x64xf32>,
    %cst_49 = arith.constant 0.000000e+00 : f32
    %56 = vector.broadcast %cst_49 : f32 to vector<102x64xf32>
    %c0_50 = arith.constant 0 : index
    %c256 = arith.constant 256 : index
    %c0_51 = arith.constant 0 : index
    %57 = vector.load %arg1[%c0_50, %c256, %c0_51] : memref<1x400x8xbf16, #tpu.memory_space<vmem>>, vector<1x102x8xbf16>
    %58 = vector.shape_cast %57 : vector<1x102x8xbf16> to vector<102x8xbf16>
    %c0_52 = arith.constant 0 : index
    %c0_53 = arith.constant 0 : index
    %59 = vector.load %arg2[%c0_52, %c0_53] : memref<72x64xbf16, #tpu.memory_space<vmem>>, vector<8x64xbf16>
    %cst_54 = arith.constant dense<0.000000e+00> : vector<102x64xf32>
    %60 = tpu.matmul %58, %59, %cst_54 {dimension_numbers = #tpu.dot_dimension_numbers<[1], [0], [0], [1], [0, 0, 1, 1], [], []>} : vector<102x8xbf16>, vector<8x64xbf16>, vector<102x64xf32> -> vector<102x64xf32>
    %61 = arith.addf %56, %60 : vector<102x64xf32>
    %c0_55 = arith.constant 0 : index
    %c257 = arith.constant 257 : index
    %c0_56 = arith.constant 0 : index
    %62 = vector.load %arg1[%c0_55, %c257, %c0_56] : memref<1x400x8xbf16, #tpu.memory_space<vmem>>, vector<1x102x8xbf16>
    %63 = vector.shape_cast %62 : vector<1x102x8xbf16> to vector<102x8xbf16>
    %c8_57 = arith.constant 8 : index
    %c0_58 = arith.constant 0 : index
    %64 = vector.load %arg2[%c8_57, %c0_58] : memref<72x64xbf16, #tpu.memory_space<vmem>>, vector<8x64xbf16>
    %cst_59 = arith.constant dense<0.000000e+00> : vector<102x64xf32>
    %65 = tpu.matmul %63, %64, %cst_59 {dimension_numbers = #tpu.dot_dimension_numbers<[1], [0], [0], [1], [0, 0, 1, 1], [], []>} : vector<102x8xbf16>, vector<8x64xbf16>, vector<102x64xf32> -> vector<102x64xf32>
    %66 = arith.addf %61, %65 : vector<102x64xf32>
    %c0_60 = arith.constant 0 : index
    %c258 = arith.constant 258 : index
    %c0_61 = arith.constant 0 : index
    %67 = vector.load %arg1[%c0_60, %c258, %c0_61] : memref<1x400x8xbf16, #tpu.memory_space<vmem>>, vector<1x102x8xbf16>
    %68 = vector.shape_cast %67 : vector<1x102x8xbf16> to vector<102x8xbf16>
    %c16_62 = arith.constant 16 : index
    %c0_63 = arith.constant 0 : index
    %69 = vector.load %arg2[%c16_62, %c0_63] : memref<72x64xbf16, #tpu.memory_space<vmem>>, vector<8x64xbf16>
    %cst_64 = arith.constant dense<0.000000e+00> : vector<102x64xf32>
    %70 = tpu.matmul %68, %69, %cst_64 {dimension_numbers = #tpu.dot_dimension_numbers<[1], [0], [0], [1], [0, 0, 1, 1], [], []>} : vector<102x8xbf16>, vector<8x64xbf16>, vector<102x64xf32> -> vector<102x64xf32>
    %71 = arith.addf %66, %70 : vector<102x64xf32>
    %c0_65 = arith.constant 0 : index
    %c276 = arith.constant 276 : index
    %c0_66 = arith.constant 0 : index
    %72 = vector.load %arg1[%c0_65, %c276, %c0_66] : memref<1x400x8xbf16, #tpu.memory_space<vmem>>, vector<1x102x8xbf16>
    %73 = vector.shape_cast %72 : vector<1x102x8xbf16> to vector<102x8xbf16>
    %c24_67 = arith.constant 24 : index
    %c0_68 = arith.constant 0 : index
    %74 = vector.load %arg2[%c24_67, %c0_68] : memref<72x64xbf16, #tpu.memory_space<vmem>>, vector<8x64xbf16>
    %cst_69 = arith.constant dense<0.000000e+00> : vector<102x64xf32>
    %75 = tpu.matmul %73, %74, %cst_69 {dimension_numbers = #tpu.dot_dimension_numbers<[1], [0], [0], [1], [0, 0, 1, 1], [], []>} : vector<102x8xbf16>, vector<8x64xbf16>, vector<102x64xf32> -> vector<102x64xf32>
    %76 = arith.addf %71, %75 : vector<102x64xf32>
    %c0_70 = arith.constant 0 : index
    %c277 = arith.constant 277 : index
    %c0_71 = arith.constant 0 : index
    %77 = vector.load %arg1[%c0_70, %c277, %c0_71] : memref<1x400x8xbf16, #tpu.memory_space<vmem>>, vector<1x102x8xbf16>
    %78 = vector.shape_cast %77 : vector<1x102x8xbf16> to vector<102x8xbf16>
    %c32_72 = arith.constant 32 : index
    %c0_73 = arith.constant 0 : index
    %79 = vector.load %arg2[%c32_72, %c0_73] : memref<72x64xbf16, #tpu.memory_space<vmem>>, vector<8x64xbf16>
    %cst_74 = arith.constant dense<0.000000e+00> : vector<102x64xf32>
    %80 = tpu.matmul %78, %79, %cst_74 {dimension_numbers = #tpu.dot_dimension_numbers<[1], [0], [0], [1], [0, 0, 1, 1], [], []>} : vector<102x8xbf16>, vector<8x64xbf16>, vector<102x64xf32> -> vector<102x64xf32>
    %81 = arith.addf %76, %80 : vector<102x64xf32>
    %c0_75 = arith.constant 0 : index
    %c278 = arith.constant 278 : index
    %c0_76 = arith.constant 0 : index
    %82 = vector.load %arg1[%c0_75, %c278, %c0_76] : memref<1x400x8xbf16, #tpu.memory_space<vmem>>, vector<1x102x8xbf16>
    %83 = vector.shape_cast %82 : vector<1x102x8xbf16> to vector<102x8xbf16>
    %c40_77 = arith.constant 40 : index
    %c0_78 = arith.constant 0 : index
    %84 = vector.load %arg2[%c40_77, %c0_78] : memref<72x64xbf16, #tpu.memory_space<vmem>>, vector<8x64xbf16>
    %cst_79 = arith.constant dense<0.000000e+00> : vector<102x64xf32>
    %85 = tpu.matmul %83, %84, %cst_79 {dimension_numbers = #tpu.dot_dimension_numbers<[1], [0], [0], [1], [0, 0, 1, 1], [], []>} : vector<102x8xbf16>, vector<8x64xbf16>, vector<102x64xf32> -> vector<102x64xf32>
    %86 = arith.addf %81, %85 : vector<102x64xf32>
    %c0_80 = arith.constant 0 : index
    %c296 = arith.constant 296 : index
    %c0_81 = arith.constant 0 : index
    %87 = vector.load %arg1[%c0_80, %c296, %c0_81] : memref<1x400x8xbf16, #tpu.memory_space<vmem>>, vector<1x102x8xbf16>
    %88 = vector.shape_cast %87 : vector<1x102x8xbf16> to vector<102x8xbf16>
    %c48_82 = arith.constant 48 : index
    %c0_83 = arith.constant 0 : index
    %89 = vector.load %arg2[%c48_82, %c0_83] : memref<72x64xbf16, #tpu.memory_space<vmem>>, vector<8x64xbf16>
    %cst_84 = arith.constant dense<0.000000e+00> : vector<102x64xf32>
    %90 = tpu.matmul %88, %89, %cst_84 {dimension_numbers = #tpu.dot_dimension_numbers<[1], [0], [0], [1], [0, 0, 1, 1], [], []>} : vector<102x8xbf16>, vector<8x64xbf16>, vector<102x64xf32> -> vector<102x64xf32>
    %91 = arith.addf %86, %90 : vector<102x64xf32>
    %c0_85 = arith.constant 0 : index
    %c297 = arith.constant 297 : index
    %c0_86 = arith.constant 0 : index
    %92 = vector.load %arg1[%c0_85, %c297, %c0_86] : memref<1x400x8xbf16, #tpu.memory_space<vmem>>, vector<1x102x8xbf16>
    %93 = vector.shape_cast %92 : vector<1x102x8xbf16> to vector<102x8xbf16>
    %c56_87 = arith.constant 56 : index
    %c0_88 = arith.constant 0 : index
    %94 = vector.load %arg2[%c56_87, %c0_88] : memref<72x64xbf16, #tpu.memory_space<vmem>>, vector<8x64xbf16>
    %cst_89 = arith.constant dense<0.000000e+00> : vector<102x64xf32>
    %95 = tpu.matmul %93, %94, %cst_89 {dimension_numbers = #tpu.dot_dimension_numbers<[1], [0], [0], [1], [0, 0, 1, 1], [], []>} : vector<102x8xbf16>, vector<8x64xbf16>, vector<102x64xf32> -> vector<102x64xf32>
    %96 = arith.addf %91, %95 : vector<102x64xf32>
    %c0_90 = arith.constant 0 : index
    %c298 = arith.constant 298 : index
    %c0_91 = arith.constant 0 : index
    %97 = vector.load %arg1[%c0_90, %c298, %c0_91] : memref<1x400x8xbf16, #tpu.memory_space<vmem>>, vector<1x102x8xbf16>
    %98 = vector.shape_cast %97 : vector<1x102x8xbf16> to vector<102x8xbf16>
    %c64_92 = arith.constant 64 : index
    %c0_93 = arith.constant 0 : index
    %99 = vector.load %arg2[%c64_92, %c0_93] : memref<72x64xbf16, #tpu.memory_space<vmem>>, vector<8x64xbf16>
    %cst_94 = arith.constant dense<0.000000e+00> : vector<102x64xf32>
    %100 = tpu.matmul %98, %99, %cst_94 {dimension_numbers = #tpu.dot_dimension_numbers<[1], [0], [0], [1], [0, 0, 1, 1], [], []>} : vector<102x8xbf16>, vector<8x64xbf16>, vector<102x64xf32> -> vector<102x64xf32>
    %101 = arith.addf %96, %100 : vector<102x64xf32>
    %102 = vector.broadcast %4 : vector<1x64xf32> to vector<102x64xf32>
    %103 = arith.addf %101, %102 : vector<102x64xf32>
    %cst_95 = arith.constant 0.000000e+00 : f32
    %104 = vector.broadcast %cst_95 : f32 to vector<102x64xf32>
    %105 = arith.maximumf %103, %104 : vector<102x64xf32>
    %c256_96 = arith.constant 256 : index
    %c0_97 = arith.constant 0 : index
    %106 = vector.load %arg14[%c256_96, %c0_97] : memref<358x64xf32, #tpu.memory_space<vmem>>, vector<102x64xf32>
    tpu.vector_store %arg14[%c256_96, %c0_97], %105 {strides = array<i32>} : memref<358x64xf32, #tpu.memory_space<vmem>>, vector<102x64xf32>,
    %c0_98 = arith.constant 0 : index
    %c0_99 = arith.constant 0 : index
    %107 = tpu.strided_load %arg14[%c0_98, %c0_99] {strides = array<i32: 2, 1>} : memref<358x64xf32, #tpu.memory_space<vmem>>, vector<9x64xf32>
    %c1_100 = arith.constant 1 : index
    %c0_101 = arith.constant 0 : index
    %108 = tpu.strided_load %arg14[%c1_100, %c0_101] {strides = array<i32: 2, 1>} : memref<358x64xf32, #tpu.memory_space<vmem>>, vector<9x64xf32>
    %109 = arith.maximumf %107, %108 : vector<9x64xf32>
    %c20_102 = arith.constant 20 : index
    %c0_103 = arith.constant 0 : index
    %110 = tpu.strided_load %arg14[%c20_102, %c0_103] {strides = array<i32: 2, 1>} : memref<358x64xf32, #tpu.memory_space<vmem>>, vector<9x64xf32>
    %c21_104 = arith.constant 21 : index
    %c0_105 = arith.constant 0 : index
    %111 = tpu.strided_load %arg14[%c21_104, %c0_105] {strides = array<i32: 2, 1>} : memref<358x64xf32, #tpu.memory_space<vmem>>, vector<9x64xf32>
    %112 = arith.maximumf %110, %111 : vector<9x64xf32>
    %113 = arith.maximumf %109, %112 : vector<9x64xf32>
    %114 = arith.truncf %113 : vector<9x64xf32> to vector<9x64xbf16>
    %c0_106 = arith.constant 0 : index
    %c0_107 = arith.constant 0 : index
    %115 = vector.load %arg11[%c0_106, %c0_107] : memref<81x64xbf16, #tpu.memory_space<vmem>>, vector<9x64xbf16>
    tpu.vector_store %arg11[%c0_106, %c0_107], %114 {strides = array<i32>} : memref<81x64xbf16, #tpu.memory_space<vmem>>, vector<9x64xbf16>,
    %c40_108 = arith.constant 40 : index
    %c0_109 = arith.constant 0 : index
    %116 = tpu.strided_load %arg14[%c40_108, %c0_109] {strides = array<i32: 2, 1>} : memref<358x64xf32, #tpu.memory_space<vmem>>, vector<9x64xf32>
    %c41_110 = arith.constant 41 : index
    %c0_111 = arith.constant 0 : index
    %117 = tpu.strided_load %arg14[%c41_110, %c0_111] {strides = array<i32: 2, 1>} : memref<358x64xf32, #tpu.memory_space<vmem>>, vector<9x64xf32>
    %118 = arith.maximumf %116, %117 : vector<9x64xf32>
    %c60 = arith.constant 60 : index
    %c0_112 = arith.constant 0 : index
    %119 = tpu.strided_load %arg14[%c60, %c0_112] {strides = array<i32: 2, 1>} : memref<358x64xf32, #tpu.memory_space<vmem>>, vector<9x64xf32>
    %c61 = arith.constant 61 : index
    %c0_113 = arith.constant 0 : index
    %120 = tpu.strided_load %arg14[%c61, %c0_113] {strides = array<i32: 2, 1>} : memref<358x64xf32, #tpu.memory_space<vmem>>, vector<9x64xf32>
    %121 = arith.maximumf %119, %120 : vector<9x64xf32>
    %122 = arith.maximumf %118, %121 : vector<9x64xf32>
    %123 = arith.truncf %122 : vector<9x64xf32> to vector<9x64xbf16>
    %c9 = arith.constant 9 : index
    %c0_114 = arith.constant 0 : index
    %124 = vector.load %arg11[%c9, %c0_114] : memref<81x64xbf16, #tpu.memory_space<vmem>>, vector<9x64xbf16>
    tpu.vector_store %arg11[%c9, %c0_114], %123 {strides = array<i32>} : memref<81x64xbf16, #tpu.memory_space<vmem>>, vector<9x64xbf16>,
    %c80 = arith.constant 80 : index
    %c0_115 = arith.constant 0 : index
    %125 = tpu.strided_load %arg14[%c80, %c0_115] {strides = array<i32: 2, 1>} : memref<358x64xf32, #tpu.memory_space<vmem>>, vector<9x64xf32>
    %c81 = arith.constant 81 : index
    %c0_116 = arith.constant 0 : index
    %126 = tpu.strided_load %arg14[%c81, %c0_116] {strides = array<i32: 2, 1>} : memref<358x64xf32, #tpu.memory_space<vmem>>, vector<9x64xf32>
    %127 = arith.maximumf %125, %126 : vector<9x64xf32>
    %c100 = arith.constant 100 : index
    %c0_117 = arith.constant 0 : index
    %128 = tpu.strided_load %arg14[%c100, %c0_117] {strides = array<i32: 2, 1>} : memref<358x64xf32, #tpu.memory_space<vmem>>, vector<9x64xf32>
    %c101 = arith.constant 101 : index
    %c0_118 = arith.constant 0 : index
    %129 = tpu.strided_load %arg14[%c101, %c0_118] {strides = array<i32: 2, 1>} : memref<358x64xf32, #tpu.memory_space<vmem>>, vector<9x64xf32>
    %130 = arith.maximumf %128, %129 : vector<9x64xf32>
    %131 = arith.maximumf %127, %130 : vector<9x64xf32>
    %132 = arith.truncf %131 : vector<9x64xf32> to vector<9x64xbf16>
    %c18 = arith.constant 18 : index
    %c0_119 = arith.constant 0 : index
    %133 = vector.load %arg11[%c18, %c0_119] : memref<81x64xbf16, #tpu.memory_space<vmem>>, vector<9x64xbf16>
    tpu.vector_store %arg11[%c18, %c0_119], %132 {strides = array<i32>} : memref<81x64xbf16, #tpu.memory_space<vmem>>, vector<9x64xbf16>,
    %c120 = arith.constant 120 : index
    %c0_120 = arith.constant 0 : index
    %134 = tpu.strided_load %arg14[%c120, %c0_120] {strides = array<i32: 2, 1>} : memref<358x64xf32, #tpu.memory_space<vmem>>, vector<9x64xf32>
    %c121 = arith.constant 121 : index
    %c0_121 = arith.constant 0 : index
    %135 = tpu.strided_load %arg14[%c121, %c0_121] {strides = array<i32: 2, 1>} : memref<358x64xf32, #tpu.memory_space<vmem>>, vector<9x64xf32>
    %136 = arith.maximumf %134, %135 : vector<9x64xf32>
    %c140 = arith.constant 140 : index
    %c0_122 = arith.constant 0 : index
    %137 = tpu.strided_load %arg14[%c140, %c0_122] {strides = array<i32: 2, 1>} : memref<358x64xf32, #tpu.memory_space<vmem>>, vector<9x64xf32>
    %c141 = arith.constant 141 : index
    %c0_123 = arith.constant 0 : index
    %138 = tpu.strided_load %arg14[%c141, %c0_123] {strides = array<i32: 2, 1>} : memref<358x64xf32, #tpu.memory_space<vmem>>, vector<9x64xf32>
    %139 = arith.maximumf %137, %138 : vector<9x64xf32>
    %140 = arith.maximumf %136, %139 : vector<9x64xf32>
    %141 = arith.truncf %140 : vector<9x64xf32> to vector<9x64xbf16>
    %c27 = arith.constant 27 : index
    %c0_124 = arith.constant 0 : index
    %142 = vector.load %arg11[%c27, %c0_124] : memref<81x64xbf16, #tpu.memory_space<vmem>>, vector<9x64xbf16>
    tpu.vector_store %arg11[%c27, %c0_124], %141 {strides = array<i32>} : memref<81x64xbf16, #tpu.memory_space<vmem>>, vector<9x64xbf16>,
    %c160 = arith.constant 160 : index
    %c0_125 = arith.constant 0 : index
    %143 = tpu.strided_load %arg14[%c160, %c0_125] {strides = array<i32: 2, 1>} : memref<358x64xf32, #tpu.memory_space<vmem>>, vector<9x64xf32>
    %c161 = arith.constant 161 : index
    %c0_126 = arith.constant 0 : index
    %144 = tpu.strided_load %arg14[%c161, %c0_126] {strides = array<i32: 2, 1>} : memref<358x64xf32, #tpu.memory_space<vmem>>, vector<9x64xf32>
    %145 = arith.maximumf %143, %144 : vector<9x64xf32>
    %c180 = arith.constant 180 : index
    %c0_127 = arith.constant 0 : index
    %146 = tpu.strided_load %arg14[%c180, %c0_127] {strides = array<i32: 2, 1>} : memref<358x64xf32, #tpu.memory_space<vmem>>, vector<9x64xf32>
    %c181 = arith.constant 181 : index
    %c0_128 = arith.constant 0 : index
    %147 = tpu.strided_load %arg14[%c181, %c0_128] {strides = array<i32: 2, 1>} : memref<358x64xf32, #tpu.memory_space<vmem>>, vector<9x64xf32>
    %148 = arith.maximumf %146, %147 : vector<9x64xf32>
    %149 = arith.maximumf %145, %148 : vector<9x64xf32>
    %150 = arith.truncf %149 : vector<9x64xf32> to vector<9x64xbf16>
    %c36 = arith.constant 36 : index
    %c0_129 = arith.constant 0 : index
    %151 = vector.load %arg11[%c36, %c0_129] : memref<81x64xbf16, #tpu.memory_space<vmem>>, vector<9x64xbf16>
    tpu.vector_store %arg11[%c36, %c0_129], %150 {strides = array<i32>} : memref<81x64xbf16, #tpu.memory_space<vmem>>, vector<9x64xbf16>,
    %c200 = arith.constant 200 : index
    %c0_130 = arith.constant 0 : index
    %152 = tpu.strided_load %arg14[%c200, %c0_130] {strides = array<i32: 2, 1>} : memref<358x64xf32, #tpu.memory_space<vmem>>, vector<9x64xf32>
    %c201 = arith.constant 201 : index
    %c0_131 = arith.constant 0 : index
    %153 = tpu.strided_load %arg14[%c201, %c0_131] {strides = array<i32: 2, 1>} : memref<358x64xf32, #tpu.memory_space<vmem>>, vector<9x64xf32>
    %154 = arith.maximumf %152, %153 : vector<9x64xf32>
    %c220 = arith.constant 220 : index
    %c0_132 = arith.constant 0 : index
    %155 = tpu.strided_load %arg14[%c220, %c0_132] {strides = array<i32: 2, 1>} : memref<358x64xf32, #tpu.memory_space<vmem>>, vector<9x64xf32>
    %c221 = arith.constant 221 : index
    %c0_133 = arith.constant 0 : index
    %156 = tpu.strided_load %arg14[%c221, %c0_133] {strides = array<i32: 2, 1>} : memref<358x64xf32, #tpu.memory_space<vmem>>, vector<9x64xf32>
    %157 = arith.maximumf %155, %156 : vector<9x64xf32>
    %158 = arith.maximumf %154, %157 : vector<9x64xf32>
    %159 = arith.truncf %158 : vector<9x64xf32> to vector<9x64xbf16>
    %c45 = arith.constant 45 : index
    %c0_134 = arith.constant 0 : index
    %160 = vector.load %arg11[%c45, %c0_134] : memref<81x64xbf16, #tpu.memory_space<vmem>>, vector<9x64xbf16>
    tpu.vector_store %arg11[%c45, %c0_134], %159 {strides = array<i32>} : memref<81x64xbf16, #tpu.memory_space<vmem>>, vector<9x64xbf16>,
    %c240 = arith.constant 240 : index
    %c0_135 = arith.constant 0 : index
    %161 = tpu.strided_load %arg14[%c240, %c0_135] {strides = array<i32: 2, 1>} : memref<358x64xf32, #tpu.memory_space<vmem>>, vector<9x64xf32>
    %c241 = arith.constant 241 : index
    %c0_136 = arith.constant 0 : index
    %162 = tpu.strided_load %arg14[%c241, %c0_136] {strides = array<i32: 2, 1>} : memref<358x64xf32, #tpu.memory_space<vmem>>, vector<9x64xf32>
    %163 = arith.maximumf %161, %162 : vector<9x64xf32>
    %c260 = arith.constant 260 : index
    %c0_137 = arith.constant 0 : index
    %164 = tpu.strided_load %arg14[%c260, %c0_137] {strides = array<i32: 2, 1>} : memref<358x64xf32, #tpu.memory_space<vmem>>, vector<9x64xf32>
    %c261 = arith.constant 261 : index
    %c0_138 = arith.constant 0 : index
    %165 = tpu.strided_load %arg14[%c261, %c0_138] {strides = array<i32: 2, 1>} : memref<358x64xf32, #tpu.memory_space<vmem>>, vector<9x64xf32>
    %166 = arith.maximumf %164, %165 : vector<9x64xf32>
    %167 = arith.maximumf %163, %166 : vector<9x64xf32>
    %168 = arith.truncf %167 : vector<9x64xf32> to vector<9x64xbf16>
    %c54 = arith.constant 54 : index
    %c0_139 = arith.constant 0 : index
    %169 = vector.load %arg11[%c54, %c0_139] : memref<81x64xbf16, #tpu.memory_space<vmem>>, vector<9x64xbf16>
    tpu.vector_store %arg11[%c54, %c0_139], %168 {strides = array<i32>} : memref<81x64xbf16, #tpu.memory_space<vmem>>, vector<9x64xbf16>,
    %c280 = arith.constant 280 : index
    %c0_140 = arith.constant 0 : index
    %170 = tpu.strided_load %arg14[%c280, %c0_140] {strides = array<i32: 2, 1>} : memref<358x64xf32, #tpu.memory_space<vmem>>, vector<9x64xf32>
    %c281 = arith.constant 281 : index
    %c0_141 = arith.constant 0 : index
    %171 = tpu.strided_load %arg14[%c281, %c0_141] {strides = array<i32: 2, 1>} : memref<358x64xf32, #tpu.memory_space<vmem>>, vector<9x64xf32>
    %172 = arith.maximumf %170, %171 : vector<9x64xf32>
    %c300 = arith.constant 300 : index
    %c0_142 = arith.constant 0 : index
    %173 = tpu.strided_load %arg14[%c300, %c0_142] {strides = array<i32: 2, 1>} : memref<358x64xf32, #tpu.memory_space<vmem>>, vector<9x64xf32>
    %c301 = arith.constant 301 : index
    %c0_143 = arith.constant 0 : index
    %174 = tpu.strided_load %arg14[%c301, %c0_143] {strides = array<i32: 2, 1>} : memref<358x64xf32, #tpu.memory_space<vmem>>, vector<9x64xf32>
    %175 = arith.maximumf %173, %174 : vector<9x64xf32>
    %176 = arith.maximumf %172, %175 : vector<9x64xf32>
    %177 = arith.truncf %176 : vector<9x64xf32> to vector<9x64xbf16>
    %c63 = arith.constant 63 : index
    %c0_144 = arith.constant 0 : index
    %178 = vector.load %arg11[%c63, %c0_144] : memref<81x64xbf16, #tpu.memory_space<vmem>>, vector<9x64xbf16>
    tpu.vector_store %arg11[%c63, %c0_144], %177 {strides = array<i32>} : memref<81x64xbf16, #tpu.memory_space<vmem>>, vector<9x64xbf16>,
    %c320 = arith.constant 320 : index
    %c0_145 = arith.constant 0 : index
    %179 = tpu.strided_load %arg14[%c320, %c0_145] {strides = array<i32: 2, 1>} : memref<358x64xf32, #tpu.memory_space<vmem>>, vector<9x64xf32>
    %c321 = arith.constant 321 : index
    %c0_146 = arith.constant 0 : index
    %180 = tpu.strided_load %arg14[%c321, %c0_146] {strides = array<i32: 2, 1>} : memref<358x64xf32, #tpu.memory_space<vmem>>, vector<9x64xf32>
    %181 = arith.maximumf %179, %180 : vector<9x64xf32>
    %c340 = arith.constant 340 : index
    %c0_147 = arith.constant 0 : index
    %182 = tpu.strided_load %arg14[%c340, %c0_147] {strides = array<i32: 2, 1>} : memref<358x64xf32, #tpu.memory_space<vmem>>, vector<9x64xf32>
    %c341 = arith.constant 341 : index
    %c0_148 = arith.constant 0 : index
    %183 = tpu.strided_load %arg14[%c341, %c0_148] {strides = array<i32: 2, 1>} : memref<358x64xf32, #tpu.memory_space<vmem>>, vector<9x64xf32>
    %184 = arith.maximumf %182, %183 : vector<9x64xf32>
    %185 = arith.maximumf %181, %184 : vector<9x64xf32>
    %186 = arith.truncf %185 : vector<9x64xf32> to vector<9x64xbf16>
    %c72 = arith.constant 72 : index
    %c0_149 = arith.constant 0 : index
    %187 = vector.load %arg11[%c72, %c0_149] : memref<81x64xbf16, #tpu.memory_space<vmem>>, vector<9x64xbf16>
    tpu.vector_store %arg11[%c72, %c0_149], %186 {strides = array<i32>} : memref<81x64xbf16, #tpu.memory_space<vmem>>, vector<9x64xbf16>,
    %c0_150 = arith.constant 0 : index
    %c0_151 = arith.constant 0 : index
    %188 = vector.load %arg5[%c0_150, %c0_151] : memref<1x64xf32, #tpu.memory_space<vmem>>, vector<1x64xf32>
    %cst_152 = arith.constant 0.000000e+00 : f32
    %189 = vector.broadcast %cst_152 : f32 to vector<61x64xf32>
    %c0_153 = arith.constant 0 : index
    %c0_154 = arith.constant 0 : index
    %190 = vector.load %arg11[%c0_153, %c0_154] : memref<81x64xbf16, #tpu.memory_space<vmem>>, vector<61x64xbf16>
    %c0_155 = arith.constant 0 : index
    %c0_156 = arith.constant 0 : index
    %191 = vector.load %arg4[%c0_155, %c0_156] : memref<576x64xbf16, #tpu.memory_space<vmem>>, vector<64x64xbf16>
    %cst_157 = arith.constant dense<0.000000e+00> : vector<61x64xf32>
    %192 = tpu.matmul %190, %191, %cst_157 {dimension_numbers = #tpu.dot_dimension_numbers<[1], [0], [0], [1], [0, 0, 1, 1], [], []>} : vector<61x64xbf16>, vector<64x64xbf16>, vector<61x64xf32> -> vector<61x64xf32>
    %193 = arith.addf %189, %192 : vector<61x64xf32>
    %c1_158 = arith.constant 1 : index
    %c0_159 = arith.constant 0 : index
    %194 = vector.load %arg11[%c1_158, %c0_159] : memref<81x64xbf16, #tpu.memory_space<vmem>>, vector<61x64xbf16>
    %c64_160 = arith.constant 64 : index
    %c0_161 = arith.constant 0 : index
    %195 = vector.load %arg4[%c64_160, %c0_161] : memref<576x64xbf16, #tpu.memory_space<vmem>>, vector<64x64xbf16>
    %cst_162 = arith.constant dense<0.000000e+00> : vector<61x64xf32>
    %196 = tpu.matmul %194, %195, %cst_162 {dimension_numbers = #tpu.dot_dimension_numbers<[1], [0], [0], [1], [0, 0, 1, 1], [], []>} : vector<61x64xbf16>, vector<64x64xbf16>, vector<61x64xf32> -> vector<61x64xf32>
    %197 = arith.addf %193, %196 : vector<61x64xf32>
    %c2_163 = arith.constant 2 : index
    %c0_164 = arith.constant 0 : index
    %198 = vector.load %arg11[%c2_163, %c0_164] : memref<81x64xbf16, #tpu.memory_space<vmem>>, vector<61x64xbf16>
    %c128 = arith.constant 128 : index
    %c0_165 = arith.constant 0 : index
    %199 = vector.load %arg4[%c128, %c0_165] : memref<576x64xbf16, #tpu.memory_space<vmem>>, vector<64x64xbf16>
    %cst_166 = arith.constant dense<0.000000e+00> : vector<61x64xf32>
    %200 = tpu.matmul %198, %199, %cst_166 {dimension_numbers = #tpu.dot_dimension_numbers<[1], [0], [0], [1], [0, 0, 1, 1], [], []>} : vector<61x64xbf16>, vector<64x64xbf16>, vector<61x64xf32> -> vector<61x64xf32>
    %201 = arith.addf %197, %200 : vector<61x64xf32>
    %c9_167 = arith.constant 9 : index
    %c0_168 = arith.constant 0 : index
    %202 = vector.load %arg11[%c9_167, %c0_168] : memref<81x64xbf16, #tpu.memory_space<vmem>>, vector<61x64xbf16>
    %c192 = arith.constant 192 : index
    %c0_169 = arith.constant 0 : index
    %203 = vector.load %arg4[%c192, %c0_169] : memref<576x64xbf16, #tpu.memory_space<vmem>>, vector<64x64xbf16>
    %cst_170 = arith.constant dense<0.000000e+00> : vector<61x64xf32>
    %204 = tpu.matmul %202, %203, %cst_170 {dimension_numbers = #tpu.dot_dimension_numbers<[1], [0], [0], [1], [0, 0, 1, 1], [], []>} : vector<61x64xbf16>, vector<64x64xbf16>, vector<61x64xf32> -> vector<61x64xf32>
    %205 = arith.addf %201, %204 : vector<61x64xf32>
    %c10 = arith.constant 10 : index
    %c0_171 = arith.constant 0 : index
    %206 = vector.load %arg11[%c10, %c0_171] : memref<81x64xbf16, #tpu.memory_space<vmem>>, vector<61x64xbf16>
    %c256_172 = arith.constant 256 : index
    %c0_173 = arith.constant 0 : index
    %207 = vector.load %arg4[%c256_172, %c0_173] : memref<576x64xbf16, #tpu.memory_space<vmem>>, vector<64x64xbf16>
    %cst_174 = arith.constant dense<0.000000e+00> : vector<61x64xf32>
    %208 = tpu.matmul %206, %207, %cst_174 {dimension_numbers = #tpu.dot_dimension_numbers<[1], [0], [0], [1], [0, 0, 1, 1], [], []>} : vector<61x64xbf16>, vector<64x64xbf16>, vector<61x64xf32> -> vector<61x64xf32>
    %209 = arith.addf %205, %208 : vector<61x64xf32>
    %c11 = arith.constant 11 : index
    %c0_175 = arith.constant 0 : index
    %210 = vector.load %arg11[%c11, %c0_175] : memref<81x64xbf16, #tpu.memory_space<vmem>>, vector<61x64xbf16>
    %c320_176 = arith.constant 320 : index
    %c0_177 = arith.constant 0 : index
    %211 = vector.load %arg4[%c320_176, %c0_177] : memref<576x64xbf16, #tpu.memory_space<vmem>>, vector<64x64xbf16>
    %cst_178 = arith.constant dense<0.000000e+00> : vector<61x64xf32>
    %212 = tpu.matmul %210, %211, %cst_178 {dimension_numbers = #tpu.dot_dimension_numbers<[1], [0], [0], [1], [0, 0, 1, 1], [], []>} : vector<61x64xbf16>, vector<64x64xbf16>, vector<61x64xf32> -> vector<61x64xf32>
    %213 = arith.addf %209, %212 : vector<61x64xf32>
    %c18_179 = arith.constant 18 : index
    %c0_180 = arith.constant 0 : index
    %214 = vector.load %arg11[%c18_179, %c0_180] : memref<81x64xbf16, #tpu.memory_space<vmem>>, vector<61x64xbf16>
    %c384 = arith.constant 384 : index
    %c0_181 = arith.constant 0 : index
    %215 = vector.load %arg4[%c384, %c0_181] : memref<576x64xbf16, #tpu.memory_space<vmem>>, vector<64x64xbf16>
    %cst_182 = arith.constant dense<0.000000e+00> : vector<61x64xf32>
    %216 = tpu.matmul %214, %215, %cst_182 {dimension_numbers = #tpu.dot_dimension_numbers<[1], [0], [0], [1], [0, 0, 1, 1], [], []>} : vector<61x64xbf16>, vector<64x64xbf16>, vector<61x64xf32> -> vector<61x64xf32>
    %217 = arith.addf %213, %216 : vector<61x64xf32>
    %c19 = arith.constant 19 : index
    %c0_183 = arith.constant 0 : index
    %218 = vector.load %arg11[%c19, %c0_183] : memref<81x64xbf16, #tpu.memory_space<vmem>>, vector<61x64xbf16>
    %c448 = arith.constant 448 : index
    %c0_184 = arith.constant 0 : index
    %219 = vector.load %arg4[%c448, %c0_184] : memref<576x64xbf16, #tpu.memory_space<vmem>>, vector<64x64xbf16>
    %cst_185 = arith.constant dense<0.000000e+00> : vector<61x64xf32>
    %220 = tpu.matmul %218, %219, %cst_185 {dimension_numbers = #tpu.dot_dimension_numbers<[1], [0], [0], [1], [0, 0, 1, 1], [], []>} : vector<61x64xbf16>, vector<64x64xbf16>, vector<61x64xf32> -> vector<61x64xf32>
    %221 = arith.addf %217, %220 : vector<61x64xf32>
    %c20_186 = arith.constant 20 : index
    %c0_187 = arith.constant 0 : index
    %222 = vector.load %arg11[%c20_186, %c0_187] : memref<81x64xbf16, #tpu.memory_space<vmem>>, vector<61x64xbf16>
    %c512 = arith.constant 512 : index
    %c0_188 = arith.constant 0 : index
    %223 = vector.load %arg4[%c512, %c0_188] : memref<576x64xbf16, #tpu.memory_space<vmem>>, vector<64x64xbf16>
    %cst_189 = arith.constant dense<0.000000e+00> : vector<61x64xf32>
    %224 = tpu.matmul %222, %223, %cst_189 {dimension_numbers = #tpu.dot_dimension_numbers<[1], [0], [0], [1], [0, 0, 1, 1], [], []>} : vector<61x64xbf16>, vector<64x64xbf16>, vector<61x64xf32> -> vector<61x64xf32>
    %225 = arith.addf %221, %224 : vector<61x64xf32>
    %226 = vector.broadcast %188 : vector<1x64xf32> to vector<61x64xf32>
    %227 = arith.addf %225, %226 : vector<61x64xf32>
    %cst_190 = arith.constant 0.000000e+00 : f32
    %228 = vector.broadcast %cst_190 : f32 to vector<61x64xf32>
    %229 = arith.maximumf %227, %228 : vector<61x64xf32>
    %c0_191 = arith.constant 0 : index
    %c0_192 = arith.constant 0 : index
    %230 = vector.load %arg14[%c0_191, %c0_192] : memref<358x64xf32, #tpu.memory_space<vmem>>, vector<61x64xf32>
    tpu.vector_store %arg14[%c0_191, %c0_192], %229 {strides = array<i32>} : memref<358x64xf32, #tpu.memory_space<vmem>>, vector<61x64xf32>,
    %c0_193 = arith.constant 0 : index
    %c0_194 = arith.constant 0 : index
    %231 = tpu.strided_load %arg14[%c0_193, %c0_194] {strides = array<i32: 2, 1>} : memref<358x64xf32, #tpu.memory_space<vmem>>, vector<3x64xf32>
    %c1_195 = arith.constant 1 : index
    %c0_196 = arith.constant 0 : index
    %232 = tpu.strided_load %arg14[%c1_195, %c0_196] {strides = array<i32: 2, 1>} : memref<358x64xf32, #tpu.memory_space<vmem>>, vector<3x64xf32>
    %233 = arith.maximumf %231, %232 : vector<3x64xf32>
    %c9_197 = arith.constant 9 : index
    %c0_198 = arith.constant 0 : index
    %234 = tpu.strided_load %arg14[%c9_197, %c0_198] {strides = array<i32: 2, 1>} : memref<358x64xf32, #tpu.memory_space<vmem>>, vector<3x64xf32>
    %c10_199 = arith.constant 10 : index
    %c0_200 = arith.constant 0 : index
    %235 = tpu.strided_load %arg14[%c10_199, %c0_200] {strides = array<i32: 2, 1>} : memref<358x64xf32, #tpu.memory_space<vmem>>, vector<3x64xf32>
    %236 = arith.maximumf %234, %235 : vector<3x64xf32>
    %237 = arith.maximumf %233, %236 : vector<3x64xf32>
    %238 = arith.truncf %237 : vector<3x64xf32> to vector<3x64xbf16>
    %c6 = arith.constant 6 : index
    %c0_201 = arith.constant 0 : index
    %239 = vector.load %arg12[%c6, %c0_201] : memref<25x64xbf16, #tpu.memory_space<vmem>>, vector<3x64xbf16>
    tpu.vector_store %arg12[%c6, %c0_201], %238 {strides = array<i32>} : memref<25x64xbf16, #tpu.memory_space<vmem>>, vector<3x64xbf16>,
    %c18_202 = arith.constant 18 : index
    %c0_203 = arith.constant 0 : index
    %240 = tpu.strided_load %arg14[%c18_202, %c0_203] {strides = array<i32: 2, 1>} : memref<358x64xf32, #tpu.memory_space<vmem>>, vector<3x64xf32>
    %c19_204 = arith.constant 19 : index
    %c0_205 = arith.constant 0 : index
    %241 = tpu.strided_load %arg14[%c19_204, %c0_205] {strides = array<i32: 2, 1>} : memref<358x64xf32, #tpu.memory_space<vmem>>, vector<3x64xf32>
    %242 = arith.maximumf %240, %241 : vector<3x64xf32>
    %c27_206 = arith.constant 27 : index
    %c0_207 = arith.constant 0 : index
    %243 = tpu.strided_load %arg14[%c27_206, %c0_207] {strides = array<i32: 2, 1>} : memref<358x64xf32, #tpu.memory_space<vmem>>, vector<3x64xf32>
    %c28 = arith.constant 28 : index
    %c0_208 = arith.constant 0 : index
    %244 = tpu.strided_load %arg14[%c28, %c0_208] {strides = array<i32: 2, 1>} : memref<358x64xf32, #tpu.memory_space<vmem>>, vector<3x64xf32>
    %245 = arith.maximumf %243, %244 : vector<3x64xf32>
    %246 = arith.maximumf %242, %245 : vector<3x64xf32>
    %247 = arith.truncf %246 : vector<3x64xf32> to vector<3x64xbf16>
    %c11_209 = arith.constant 11 : index
    %c0_210 = arith.constant 0 : index
    %248 = vector.load %arg12[%c11_209, %c0_210] : memref<25x64xbf16, #tpu.memory_space<vmem>>, vector<3x64xbf16>
    tpu.vector_store %arg12[%c11_209, %c0_210], %247 {strides = array<i32>} : memref<25x64xbf16, #tpu.memory_space<vmem>>, vector<3x64xbf16>,
    %c36_211 = arith.constant 36 : index
    %c0_212 = arith.constant 0 : index
    %249 = tpu.strided_load %arg14[%c36_211, %c0_212] {strides = array<i32: 2, 1>} : memref<358x64xf32, #tpu.memory_space<vmem>>, vector<3x64xf32>
    %c37 = arith.constant 37 : index
    %c0_213 = arith.constant 0 : index
    %250 = tpu.strided_load %arg14[%c37, %c0_213] {strides = array<i32: 2, 1>} : memref<358x64xf32, #tpu.memory_space<vmem>>, vector<3x64xf32>
    %251 = arith.maximumf %249, %250 : vector<3x64xf32>
    %c45_214 = arith.constant 45 : index
    %c0_215 = arith.constant 0 : index
    %252 = tpu.strided_load %arg14[%c45_214, %c0_215] {strides = array<i32: 2, 1>} : memref<358x64xf32, #tpu.memory_space<vmem>>, vector<3x64xf32>
    %c46 = arith.constant 46 : index
    %c0_216 = arith.constant 0 : index
    %253 = tpu.strided_load %arg14[%c46, %c0_216] {strides = array<i32: 2, 1>} : memref<358x64xf32, #tpu.memory_space<vmem>>, vector<3x64xf32>
    %254 = arith.maximumf %252, %253 : vector<3x64xf32>
    %255 = arith.maximumf %251, %254 : vector<3x64xf32>
    %256 = arith.truncf %255 : vector<3x64xf32> to vector<3x64xbf16>
    %c16_217 = arith.constant 16 : index
    %c0_218 = arith.constant 0 : index
    %257 = vector.load %arg12[%c16_217, %c0_218] : memref<25x64xbf16, #tpu.memory_space<vmem>>, vector<3x64xbf16>
    tpu.vector_store %arg12[%c16_217, %c0_218], %256 {strides = array<i32>} : memref<25x64xbf16, #tpu.memory_space<vmem>>, vector<3x64xbf16>,
    %c0_219 = arith.constant 0 : index
    %c0_220 = arith.constant 0 : index
    %258 = vector.load %arg7[%c0_219, %c0_220] : memref<1x64xf32, #tpu.memory_space<vmem>>, vector<1x64xf32>
    %cst_221 = arith.constant 0.000000e+00 : f32
    %259 = vector.broadcast %cst_221 : f32 to vector<13x64xf32>
    %c0_222 = arith.constant 0 : index
    %c0_223 = arith.constant 0 : index
    %260 = vector.load %arg12[%c0_222, %c0_223] : memref<25x64xbf16, #tpu.memory_space<vmem>>, vector<13x64xbf16>
    %c0_224 = arith.constant 0 : index
    %c0_225 = arith.constant 0 : index
    %261 = vector.load %arg6[%c0_224, %c0_225] : memref<576x64xbf16, #tpu.memory_space<vmem>>, vector<64x64xbf16>
    %cst_226 = arith.constant dense<0.000000e+00> : vector<13x64xf32>
    %262 = tpu.matmul %260, %261, %cst_226 {dimension_numbers = #tpu.dot_dimension_numbers<[1], [0], [0], [1], [0, 0, 1, 1], [], []>} : vector<13x64xbf16>, vector<64x64xbf16>, vector<13x64xf32> -> vector<13x64xf32>
    %263 = arith.addf %259, %262 : vector<13x64xf32>
    %c1_227 = arith.constant 1 : index
    %c0_228 = arith.constant 0 : index
    %264 = vector.load %arg12[%c1_227, %c0_228] : memref<25x64xbf16, #tpu.memory_space<vmem>>, vector<13x64xbf16>
    %c64_229 = arith.constant 64 : index
    %c0_230 = arith.constant 0 : index
    %265 = vector.load %arg6[%c64_229, %c0_230] : memref<576x64xbf16, #tpu.memory_space<vmem>>, vector<64x64xbf16>
    %cst_231 = arith.constant dense<0.000000e+00> : vector<13x64xf32>
    %266 = tpu.matmul %264, %265, %cst_231 {dimension_numbers = #tpu.dot_dimension_numbers<[1], [0], [0], [1], [0, 0, 1, 1], [], []>} : vector<13x64xbf16>, vector<64x64xbf16>, vector<13x64xf32> -> vector<13x64xf32>
    %267 = arith.addf %263, %266 : vector<13x64xf32>
    %c2_232 = arith.constant 2 : index
    %c0_233 = arith.constant 0 : index
    %268 = vector.load %arg12[%c2_232, %c0_233] : memref<25x64xbf16, #tpu.memory_space<vmem>>, vector<13x64xbf16>
    %c128_234 = arith.constant 128 : index
    %c0_235 = arith.constant 0 : index
    %269 = vector.load %arg6[%c128_234, %c0_235] : memref<576x64xbf16, #tpu.memory_space<vmem>>, vector<64x64xbf16>
    %cst_236 = arith.constant dense<0.000000e+00> : vector<13x64xf32>
    %270 = tpu.matmul %268, %269, %cst_236 {dimension_numbers = #tpu.dot_dimension_numbers<[1], [0], [0], [1], [0, 0, 1, 1], [], []>} : vector<13x64xbf16>, vector<64x64xbf16>, vector<13x64xf32> -> vector<13x64xf32>
    %271 = arith.addf %267, %270 : vector<13x64xf32>
    %c5 = arith.constant 5 : index
    %c0_237 = arith.constant 0 : index
    %272 = vector.load %arg12[%c5, %c0_237] : memref<25x64xbf16, #tpu.memory_space<vmem>>, vector<13x64xbf16>
    %c192_238 = arith.constant 192 : index
    %c0_239 = arith.constant 0 : index
    %273 = vector.load %arg6[%c192_238, %c0_239] : memref<576x64xbf16, #tpu.memory_space<vmem>>, vector<64x64xbf16>
    %cst_240 = arith.constant dense<0.000000e+00> : vector<13x64xf32>
    %274 = tpu.matmul %272, %273, %cst_240 {dimension_numbers = #tpu.dot_dimension_numbers<[1], [0], [0], [1], [0, 0, 1, 1], [], []>} : vector<13x64xbf16>, vector<64x64xbf16>, vector<13x64xf32> -> vector<13x64xf32>
    %275 = arith.addf %271, %274 : vector<13x64xf32>
    %c6_241 = arith.constant 6 : index
    %c0_242 = arith.constant 0 : index
    %276 = vector.load %arg12[%c6_241, %c0_242] : memref<25x64xbf16, #tpu.memory_space<vmem>>, vector<13x64xbf16>
    %c256_243 = arith.constant 256 : index
    %c0_244 = arith.constant 0 : index
    %277 = vector.load %arg6[%c256_243, %c0_244] : memref<576x64xbf16, #tpu.memory_space<vmem>>, vector<64x64xbf16>
    %cst_245 = arith.constant dense<0.000000e+00> : vector<13x64xf32>
    %278 = tpu.matmul %276, %277, %cst_245 {dimension_numbers = #tpu.dot_dimension_numbers<[1], [0], [0], [1], [0, 0, 1, 1], [], []>} : vector<13x64xbf16>, vector<64x64xbf16>, vector<13x64xf32> -> vector<13x64xf32>
    %279 = arith.addf %275, %278 : vector<13x64xf32>
    %c7 = arith.constant 7 : index
    %c0_246 = arith.constant 0 : index
    %280 = vector.load %arg12[%c7, %c0_246] : memref<25x64xbf16, #tpu.memory_space<vmem>>, vector<13x64xbf16>
    %c320_247 = arith.constant 320 : index
    %c0_248 = arith.constant 0 : index
    %281 = vector.load %arg6[%c320_247, %c0_248] : memref<576x64xbf16, #tpu.memory_space<vmem>>, vector<64x64xbf16>
    %cst_249 = arith.constant dense<0.000000e+00> : vector<13x64xf32>
    %282 = tpu.matmul %280, %281, %cst_249 {dimension_numbers = #tpu.dot_dimension_numbers<[1], [0], [0], [1], [0, 0, 1, 1], [], []>} : vector<13x64xbf16>, vector<64x64xbf16>, vector<13x64xf32> -> vector<13x64xf32>
    %283 = arith.addf %279, %282 : vector<13x64xf32>
    %c10_250 = arith.constant 10 : index
    %c0_251 = arith.constant 0 : index
    %284 = vector.load %arg12[%c10_250, %c0_251] : memref<25x64xbf16, #tpu.memory_space<vmem>>, vector<13x64xbf16>
    %c384_252 = arith.constant 384 : index
    %c0_253 = arith.constant 0 : index
    %285 = vector.load %arg6[%c384_252, %c0_253] : memref<576x64xbf16, #tpu.memory_space<vmem>>, vector<64x64xbf16>
    %cst_254 = arith.constant dense<0.000000e+00> : vector<13x64xf32>
    %286 = tpu.matmul %284, %285, %cst_254 {dimension_numbers = #tpu.dot_dimension_numbers<[1], [0], [0], [1], [0, 0, 1, 1], [], []>} : vector<13x64xbf16>, vector<64x64xbf16>, vector<13x64xf32> -> vector<13x64xf32>
    %287 = arith.addf %283, %286 : vector<13x64xf32>
    %c11_255 = arith.constant 11 : index
    %c0_256 = arith.constant 0 : index
    %288 = vector.load %arg12[%c11_255, %c0_256] : memref<25x64xbf16, #tpu.memory_space<vmem>>, vector<13x64xbf16>
    %c448_257 = arith.constant 448 : index
    %c0_258 = arith.constant 0 : index
    %289 = vector.load %arg6[%c448_257, %c0_258] : memref<576x64xbf16, #tpu.memory_space<vmem>>, vector<64x64xbf16>
    %cst_259 = arith.constant dense<0.000000e+00> : vector<13x64xf32>
    %290 = tpu.matmul %288, %289, %cst_259 {dimension_numbers = #tpu.dot_dimension_numbers<[1], [0], [0], [1], [0, 0, 1, 1], [], []>} : vector<13x64xbf16>, vector<64x64xbf16>, vector<13x64xf32> -> vector<13x64xf32>
    %291 = arith.addf %287, %290 : vector<13x64xf32>
    %c12 = arith.constant 12 : index
    %c0_260 = arith.constant 0 : index
    %292 = vector.load %arg12[%c12, %c0_260] : memref<25x64xbf16, #tpu.memory_space<vmem>>, vector<13x64xbf16>
    %c512_261 = arith.constant 512 : index
    %c0_262 = arith.constant 0 : index
    %293 = vector.load %arg6[%c512_261, %c0_262] : memref<576x64xbf16, #tpu.memory_space<vmem>>, vector<64x64xbf16>
    %cst_263 = arith.constant dense<0.000000e+00> : vector<13x64xf32>
    %294 = tpu.matmul %292, %293, %cst_263 {dimension_numbers = #tpu.dot_dimension_numbers<[1], [0], [0], [1], [0, 0, 1, 1], [], []>} : vector<13x64xbf16>, vector<64x64xbf16>, vector<13x64xf32> -> vector<13x64xf32>
    %295 = arith.addf %291, %294 : vector<13x64xf32>
    %296 = vector.broadcast %258 : vector<1x64xf32> to vector<13x64xf32>
    %297 = arith.addf %295, %296 : vector<13x64xf32>
    %cst_264 = arith.constant 0.000000e+00 : f32
    %298 = vector.broadcast %cst_264 : f32 to vector<13x64xf32>
    %299 = arith.maximumf %297, %298 : vector<13x64xf32>
    %c0_265 = arith.constant 0 : index
    %c0_266 = arith.constant 0 : index
    %300 = vector.load %arg14[%c0_265, %c0_266] : memref<358x64xf32, #tpu.memory_space<vmem>>, vector<13x64xf32>
    tpu.vector_store %arg14[%c0_265, %c0_266], %299 {strides = array<i32>} : memref<358x64xf32, #tpu.memory_space<vmem>>, vector<13x64xf32>,
    %c0_267 = arith.constant 0 : index
    %c0_268 = arith.constant 0 : index
    %301 = vector.load %arg14[%c0_267, %c0_268] : memref<358x64xf32, #tpu.memory_space<vmem>>, vector<3x64xf32>
    %302 = arith.truncf %301 : vector<3x64xf32> to vector<3x64xbf16>
    %c6_269 = arith.constant 6 : index
    %c0_270 = arith.constant 0 : index
    %303 = vector.load %arg13[%c6_269, %c0_270] : memref<25x64xbf16, #tpu.memory_space<vmem>>, vector<3x64xbf16>
    tpu.vector_store %arg13[%c6_269, %c0_270], %302 {strides = array<i32>} : memref<25x64xbf16, #tpu.memory_space<vmem>>, vector<3x64xbf16>,
    %c5_271 = arith.constant 5 : index
    %c0_272 = arith.constant 0 : index
    %304 = vector.load %arg14[%c5_271, %c0_272] : memref<358x64xf32, #tpu.memory_space<vmem>>, vector<3x64xf32>
    %305 = arith.truncf %304 : vector<3x64xf32> to vector<3x64xbf16>
    %c11_273 = arith.constant 11 : index
    %c0_274 = arith.constant 0 : index
    %306 = vector.load %arg13[%c11_273, %c0_274] : memref<25x64xbf16, #tpu.memory_space<vmem>>, vector<3x64xbf16>
    tpu.vector_store %arg13[%c11_273, %c0_274], %305 {strides = array<i32>} : memref<25x64xbf16, #tpu.memory_space<vmem>>, vector<3x64xbf16>,
    %c10_275 = arith.constant 10 : index
    %c0_276 = arith.constant 0 : index
    %307 = vector.load %arg14[%c10_275, %c0_276] : memref<358x64xf32, #tpu.memory_space<vmem>>, vector<3x64xf32>
    %308 = arith.truncf %307 : vector<3x64xf32> to vector<3x64xbf16>
    %c16_277 = arith.constant 16 : index
    %c0_278 = arith.constant 0 : index
    %309 = vector.load %arg13[%c16_277, %c0_278] : memref<25x64xbf16, #tpu.memory_space<vmem>>, vector<3x64xbf16>
    tpu.vector_store %arg13[%c16_277, %c0_278], %308 {strides = array<i32>} : memref<25x64xbf16, #tpu.memory_space<vmem>>, vector<3x64xbf16>,
    %c0_279 = arith.constant 0 : index
    %c0_280 = arith.constant 0 : index
    %310 = vector.load %arg9[%c0_279, %c0_280] : memref<1x64xf32, #tpu.memory_space<vmem>>, vector<1x64xf32>
    %cst_281 = arith.constant 0.000000e+00 : f32
    %311 = vector.broadcast %cst_281 : f32 to vector<13x64xf32>
    %c0_282 = arith.constant 0 : index
    %c0_283 = arith.constant 0 : index
    %312 = vector.load %arg13[%c0_282, %c0_283] : memref<25x64xbf16, #tpu.memory_space<vmem>>, vector<13x64xbf16>
    %c0_284 = arith.constant 0 : index
    %c0_285 = arith.constant 0 : index
    %313 = vector.load %arg8[%c0_284, %c0_285] : memref<576x64xbf16, #tpu.memory_space<vmem>>, vector<64x64xbf16>
    %cst_286 = arith.constant dense<0.000000e+00> : vector<13x64xf32>
    %314 = tpu.matmul %312, %313, %cst_286 {dimension_numbers = #tpu.dot_dimension_numbers<[1], [0], [0], [1], [0, 0, 1, 1], [], []>} : vector<13x64xbf16>, vector<64x64xbf16>, vector<13x64xf32> -> vector<13x64xf32>
    %315 = arith.addf %311, %314 : vector<13x64xf32>
    %c1_287 = arith.constant 1 : index
    %c0_288 = arith.constant 0 : index
    %316 = vector.load %arg13[%c1_287, %c0_288] : memref<25x64xbf16, #tpu.memory_space<vmem>>, vector<13x64xbf16>
    %c64_289 = arith.constant 64 : index
    %c0_290 = arith.constant 0 : index
    %317 = vector.load %arg8[%c64_289, %c0_290] : memref<576x64xbf16, #tpu.memory_space<vmem>>, vector<64x64xbf16>
    %cst_291 = arith.constant dense<0.000000e+00> : vector<13x64xf32>
    %318 = tpu.matmul %316, %317, %cst_291 {dimension_numbers = #tpu.dot_dimension_numbers<[1], [0], [0], [1], [0, 0, 1, 1], [], []>} : vector<13x64xbf16>, vector<64x64xbf16>, vector<13x64xf32> -> vector<13x64xf32>
    %319 = arith.addf %315, %318 : vector<13x64xf32>
    %c2_292 = arith.constant 2 : index
    %c0_293 = arith.constant 0 : index
    %320 = vector.load %arg13[%c2_292, %c0_293] : memref<25x64xbf16, #tpu.memory_space<vmem>>, vector<13x64xbf16>
    %c128_294 = arith.constant 128 : index
    %c0_295 = arith.constant 0 : index
    %321 = vector.load %arg8[%c128_294, %c0_295] : memref<576x64xbf16, #tpu.memory_space<vmem>>, vector<64x64xbf16>
    %cst_296 = arith.constant dense<0.000000e+00> : vector<13x64xf32>
    %322 = tpu.matmul %320, %321, %cst_296 {dimension_numbers = #tpu.dot_dimension_numbers<[1], [0], [0], [1], [0, 0, 1, 1], [], []>} : vector<13x64xbf16>, vector<64x64xbf16>, vector<13x64xf32> -> vector<13x64xf32>
    %323 = arith.addf %319, %322 : vector<13x64xf32>
    %c5_297 = arith.constant 5 : index
    %c0_298 = arith.constant 0 : index
    %324 = vector.load %arg13[%c5_297, %c0_298] : memref<25x64xbf16, #tpu.memory_space<vmem>>, vector<13x64xbf16>
    %c192_299 = arith.constant 192 : index
    %c0_300 = arith.constant 0 : index
    %325 = vector.load %arg8[%c192_299, %c0_300] : memref<576x64xbf16, #tpu.memory_space<vmem>>, vector<64x64xbf16>
    %cst_301 = arith.constant dense<0.000000e+00> : vector<13x64xf32>
    %326 = tpu.matmul %324, %325, %cst_301 {dimension_numbers = #tpu.dot_dimension_numbers<[1], [0], [0], [1], [0, 0, 1, 1], [], []>} : vector<13x64xbf16>, vector<64x64xbf16>, vector<13x64xf32> -> vector<13x64xf32>
    %327 = arith.addf %323, %326 : vector<13x64xf32>
    %c6_302 = arith.constant 6 : index
    %c0_303 = arith.constant 0 : index
    %328 = vector.load %arg13[%c6_302, %c0_303] : memref<25x64xbf16, #tpu.memory_space<vmem>>, vector<13x64xbf16>
    %c256_304 = arith.constant 256 : index
    %c0_305 = arith.constant 0 : index
    %329 = vector.load %arg8[%c256_304, %c0_305] : memref<576x64xbf16, #tpu.memory_space<vmem>>, vector<64x64xbf16>
    %cst_306 = arith.constant dense<0.000000e+00> : vector<13x64xf32>
    %330 = tpu.matmul %328, %329, %cst_306 {dimension_numbers = #tpu.dot_dimension_numbers<[1], [0], [0], [1], [0, 0, 1, 1], [], []>} : vector<13x64xbf16>, vector<64x64xbf16>, vector<13x64xf32> -> vector<13x64xf32>
    %331 = arith.addf %327, %330 : vector<13x64xf32>
    %c7_307 = arith.constant 7 : index
    %c0_308 = arith.constant 0 : index
    %332 = vector.load %arg13[%c7_307, %c0_308] : memref<25x64xbf16, #tpu.memory_space<vmem>>, vector<13x64xbf16>
    %c320_309 = arith.constant 320 : index
    %c0_310 = arith.constant 0 : index
    %333 = vector.load %arg8[%c320_309, %c0_310] : memref<576x64xbf16, #tpu.memory_space<vmem>>, vector<64x64xbf16>
    %cst_311 = arith.constant dense<0.000000e+00> : vector<13x64xf32>
    %334 = tpu.matmul %332, %333, %cst_311 {dimension_numbers = #tpu.dot_dimension_numbers<[1], [0], [0], [1], [0, 0, 1, 1], [], []>} : vector<13x64xbf16>, vector<64x64xbf16>, vector<13x64xf32> -> vector<13x64xf32>
    %335 = arith.addf %331, %334 : vector<13x64xf32>
    %c10_312 = arith.constant 10 : index
    %c0_313 = arith.constant 0 : index
    %336 = vector.load %arg13[%c10_312, %c0_313] : memref<25x64xbf16, #tpu.memory_space<vmem>>, vector<13x64xbf16>
    %c384_314 = arith.constant 384 : index
    %c0_315 = arith.constant 0 : index
    %337 = vector.load %arg8[%c384_314, %c0_315] : memref<576x64xbf16, #tpu.memory_space<vmem>>, vector<64x64xbf16>
    %cst_316 = arith.constant dense<0.000000e+00> : vector<13x64xf32>
    %338 = tpu.matmul %336, %337, %cst_316 {dimension_numbers = #tpu.dot_dimension_numbers<[1], [0], [0], [1], [0, 0, 1, 1], [], []>} : vector<13x64xbf16>, vector<64x64xbf16>, vector<13x64xf32> -> vector<13x64xf32>
    %339 = arith.addf %335, %338 : vector<13x64xf32>
    %c11_317 = arith.constant 11 : index
    %c0_318 = arith.constant 0 : index
    %340 = vector.load %arg13[%c11_317, %c0_318] : memref<25x64xbf16, #tpu.memory_space<vmem>>, vector<13x64xbf16>
    %c448_319 = arith.constant 448 : index
    %c0_320 = arith.constant 0 : index
    %341 = vector.load %arg8[%c448_319, %c0_320] : memref<576x64xbf16, #tpu.memory_space<vmem>>, vector<64x64xbf16>
    %cst_321 = arith.constant dense<0.000000e+00> : vector<13x64xf32>
    %342 = tpu.matmul %340, %341, %cst_321 {dimension_numbers = #tpu.dot_dimension_numbers<[1], [0], [0], [1], [0, 0, 1, 1], [], []>} : vector<13x64xbf16>, vector<64x64xbf16>, vector<13x64xf32> -> vector<13x64xf32>
    %343 = arith.addf %339, %342 : vector<13x64xf32>
    %c12_322 = arith.constant 12 : index
    %c0_323 = arith.constant 0 : index
    %344 = vector.load %arg13[%c12_322, %c0_323] : memref<25x64xbf16, #tpu.memory_space<vmem>>, vector<13x64xbf16>
    %c512_324 = arith.constant 512 : index
    %c0_325 = arith.constant 0 : index
    %345 = vector.load %arg8[%c512_324, %c0_325] : memref<576x64xbf16, #tpu.memory_space<vmem>>, vector<64x64xbf16>
    %cst_326 = arith.constant dense<0.000000e+00> : vector<13x64xf32>
    %346 = tpu.matmul %344, %345, %cst_326 {dimension_numbers = #tpu.dot_dimension_numbers<[1], [0], [0], [1], [0, 0, 1, 1], [], []>} : vector<13x64xbf16>, vector<64x64xbf16>, vector<13x64xf32> -> vector<13x64xf32>
    %347 = arith.addf %343, %346 : vector<13x64xf32>
    %348 = vector.broadcast %310 : vector<1x64xf32> to vector<13x64xf32>
    %349 = arith.addf %347, %348 : vector<13x64xf32>
    %cst_327 = arith.constant 0.000000e+00 : f32
    %350 = vector.broadcast %cst_327 : f32 to vector<13x64xf32>
    %351 = arith.maximumf %349, %350 : vector<13x64xf32>
    %c0_328 = arith.constant 0 : index
    %c0_329 = arith.constant 0 : index
    %352 = vector.load %arg14[%c0_328, %c0_329] : memref<358x64xf32, #tpu.memory_space<vmem>>, vector<13x64xf32>
    tpu.vector_store %arg14[%c0_328, %c0_329], %351 {strides = array<i32>} : memref<358x64xf32, #tpu.memory_space<vmem>>, vector<13x64xf32>,
    %c0_330 = arith.constant 0 : index
    %c0_331 = arith.constant 0 : index
    %353 = vector.load %arg14[%c0_330, %c0_331] : memref<358x64xf32, #tpu.memory_space<vmem>>, vector<3x64xf32>
    %c0_332 = arith.constant 0 : index
    %c0_333 = arith.constant 0 : index
    %c0_334 = arith.constant 0 : index
    %354 = vector.load %arg10[%c0_332, %c0_333, %c0_334] : memref<1x9x64xf32, #tpu.memory_space<vmem>>, vector<1x3x64xf32>
    %355 = vector.shape_cast %354 : vector<1x3x64xf32> to vector<3x64xf32>
    %356 = vector.shape_cast %353 : vector<3x64xf32> to vector<1x3x64xf32>
    tpu.vector_store %arg10[%c0_332, %c0_333, %c0_334], %356 {strides = array<i32>} : memref<1x9x64xf32, #tpu.memory_space<vmem>>, vector<1x3x64xf32>,
    %c5_335 = arith.constant 5 : index
    %c0_336 = arith.constant 0 : index
    %357 = vector.load %arg14[%c5_335, %c0_336] : memref<358x64xf32, #tpu.memory_space<vmem>>, vector<3x64xf32>
    %c0_337 = arith.constant 0 : index
    %c3 = arith.constant 3 : index
    %c0_338 = arith.constant 0 : index
    %358 = vector.load %arg10[%c0_337, %c3, %c0_338] : memref<1x9x64xf32, #tpu.memory_space<vmem>>, vector<1x3x64xf32>
    %359 = vector.shape_cast %358 : vector<1x3x64xf32> to vector<3x64xf32>
    %360 = vector.shape_cast %357 : vector<3x64xf32> to vector<1x3x64xf32>
    tpu.vector_store %arg10[%c0_337, %c3, %c0_338], %360 {strides = array<i32>} : memref<1x9x64xf32, #tpu.memory_space<vmem>>, vector<1x3x64xf32>,
    %c10_339 = arith.constant 10 : index
    %c0_340 = arith.constant 0 : index
    %361 = vector.load %arg14[%c10_339, %c0_340] : memref<358x64xf32, #tpu.memory_space<vmem>>, vector<3x64xf32>
    %c0_341 = arith.constant 0 : index
    %c6_342 = arith.constant 6 : index
    %c0_343 = arith.constant 0 : index
    %362 = vector.load %arg10[%c0_341, %c6_342, %c0_343] : memref<1x9x64xf32, #tpu.memory_space<vmem>>, vector<1x3x64xf32>
    %363 = vector.shape_cast %362 : vector<1x3x64xf32> to vector<3x64xf32>
    %364 = vector.shape_cast %361 : vector<3x64xf32> to vector<1x3x64xf32>
    tpu.vector_store %arg10[%c0_341, %c6_342, %c0_343], %364 {strides = array<i32>} : memref<1x9x64xf32, #tpu.memory_space<vmem>>, vector<1x3x64xf32>,
    return
  }
  func.func @transform_0(%arg0: i32) -> (i32, i32, i32) {
    %c0_i32 = arith.constant 0 : i32
    %c0_i32_0 = arith.constant 0 : i32
    %c0_i32_1 = arith.constant 0 : i32
    return %arg0, %c0_i32, %c0_i32_0 : i32, i32, i32
  }
  func.func @transform_1(%arg0: i32) -> (i32, i32) {
    %c0_i32 = arith.constant 0 : i32
    %c0_i32_0 = arith.constant 0 : i32
    %c0_i32_1 = arith.constant 0 : i32
    return %c0_i32, %c0_i32_0 : i32, i32
  }
  func.func @transform_2(%arg0: i32) -> (i32, i32) {
    %c0_i32 = arith.constant 0 : i32
    %c0_i32_0 = arith.constant 0 : i32
    %c0_i32_1 = arith.constant 0 : i32
    return %c0_i32, %c0_i32_0 : i32, i32
  }
  func.func @transform_3(%arg0: i32) -> (i32, i32) {
    %c0_i32 = arith.constant 0 : i32
    %c0_i32_0 = arith.constant 0 : i32
    %c0_i32_1 = arith.constant 0 : i32
    return %c0_i32, %c0_i32_0 : i32, i32
  }
  func.func @transform_4(%arg0: i32) -> (i32, i32) {
    %c0_i32 = arith.constant 0 : i32
    %c0_i32_0 = arith.constant 0 : i32
    %c0_i32_1 = arith.constant 0 : i32
    return %c0_i32, %c0_i32_0 : i32, i32
  }
  func.func @transform_5(%arg0: i32) -> (i32, i32) {
    %c0_i32 = arith.constant 0 : i32
    %c0_i32_0 = arith.constant 0 : i32
    %c0_i32_1 = arith.constant 0 : i32
    return %c0_i32, %c0_i32_0 : i32, i32
  }
  func.func @transform_6(%arg0: i32) -> (i32, i32) {
    %c0_i32 = arith.constant 0 : i32
    %c0_i32_0 = arith.constant 0 : i32
    %c0_i32_1 = arith.constant 0 : i32
    return %c0_i32, %c0_i32_0 : i32, i32
  }
  func.func @transform_7(%arg0: i32) -> (i32, i32) {
    %c0_i32 = arith.constant 0 : i32
    %c0_i32_0 = arith.constant 0 : i32
    %c0_i32_1 = arith.constant 0 : i32
    return %c0_i32, %c0_i32_0 : i32, i32
  }
  func.func @transform_8(%arg0: i32) -> (i32, i32) {
    %c0_i32 = arith.constant 0 : i32
    %c0_i32_0 = arith.constant 0 : i32
    %c0_i32_1 = arith.constant 0 : i32
    return %c0_i32, %c0_i32_0 : i32, i32
  }
  func.func @transform_9(%arg0: i32) -> (i32, i32, i32) {
    %c0_i32 = arith.constant 0 : i32
    %c0_i32_0 = arith.constant 0 : i32
    %c0_i32_1 = arith.constant 0 : i32
    return %arg0, %c0_i32, %c0_i32_0 : i32, i32, i32
  }
}

</mosaic_0001>

<llo_original>
// kernel: convnet_nopool_forward.1
$region0: #{convnet_nopool_forward.1}
  #allocation0 [shape = 'u32[]', space=smem, size = 0x4, offset = 0x4, fixed_abs, tag = 'smem constant byte address 0x4 - core index']
  #allocation1 [shape = 'u32[144,128]{1,0:T(1,128)}', space=vmem, size = 0x12000, scoped, tag = 'internal scratch']
  #allocation2 [shape = 'bf16[81,64]{1,0:T(8,128)(2,1)}', space=vmem, size = 0x5800, scoped, tag = 'scratch operand']
  #allocation3 [shape = 'bf16[25,64]{1,0:T(8,128)(2,1)}', space=vmem, size = 0x2000, scoped, tag = 'scratch operand']
  #allocation4 [shape = 'bf16[25,64]{1,0:T(8,128)(2,1)}', space=vmem, size = 0x2000, scoped, tag = 'scratch operand']
  #allocation5 [shape = 'f32[358,64]{1,0:T(8,128)}', space=vmem, size = 0x2d000, scoped, tag = 'scratch operand']
  %s0 = inlined_call_operand.vmem [shape: bf16[2,400,8], index: 0, kind: input, shape index: {}]
  %s1 = inlined_call_operand.vmem [shape: bf16[72,64], index: 1, kind: input, shape index: {}]
  %s2 = inlined_call_operand.vmem [shape: f32[1,64], index: 2, kind: input, shape index: {}]
  %s3 = inlined_call_operand.vmem [shape: bf16[576,64], index: 3, kind: input, shape index: {}]
  %s4 = inlined_call_operand.vmem [shape: f32[1,64], index: 4, kind: input, shape index: {}]
  %s5 = inlined_call_operand.vmem [shape: bf16[576,64], index: 5, kind: input, shape index: {}]
  %s6 = inlined_call_operand.vmem [shape: f32[1,64], index: 6, kind: input, shape index: {}]
  %s7 = inlined_call_operand.vmem [shape: bf16[576,64], index: 7, kind: input, shape index: {}]
  %s8 = inlined_call_operand.vmem [shape: f32[1,64], index: 8, kind: input, shape index: {}]
  %s9 = inlined_call_operand.vmem [shape: f32[2,9,64], index: 9, kind: output, shape index: {}]
  %s10 = sld [smem:[#allocation0]]
  $region69: #{convnet_nopool_forward.1} parent=0
    _
  %s12 = ssub.s32 1, %s10
  %s13 = scalar_select 0, %s12, %s10
  loop: start=0, step=1, limit=4
  $region2: #{convnet_nopool_forward.1} parent=0 // loop_pre_header
    _
  $region3: #{convnet_nopool_forward.1} parent=0 // loop_header
    %s15 = sphi 0, %s19
    %p16 = scmp.ge.s32.totalorder %s15, 4
    %s25 = sphi 0, %s27
    %s28 = sphi 0, %s25
    %s29 = sphi 0, %s28
    %s45 = sphi 0, %s29
    %s49 = sphi 0, %s49
    %s51 = sphi 0, %s49
    %s52 = sphi 0, %s51
    %s66 = sphi 0, %s52
    %s70 = sphi 0, %s70
    %s72 = sphi 0, %s70
    %s73 = sphi 0, %s72
    %s87 = sphi 0, %s73
    %s91 = sphi 0, %s91
    %s93 = sphi 0, %s91
    %s94 = sphi 0, %s93
    %s108 = sphi 0, %s94
    %s112 = sphi 0, %s112
    %s114 = sphi 0, %s112
    %s115 = sphi 0, %s114
    %s129 = sphi 0, %s115
    %s133 = sphi 0, %s133
    %s135 = sphi 0, %s133
    %s136 = sphi 0, %s135
    %s150 = sphi 0, %s136
    %s154 = sphi 0, %s154
    %s156 = sphi 0, %s154
    %s157 = sphi 0, %s156
    %s171 = sphi 0, %s157
    %s175 = sphi 0, %s175
    %s177 = sphi 0, %s175
    %s178 = sphi 0, %s177
    %s192 = sphi 0, %s178
    %s196 = sphi 0, %s196
    %s198 = sphi 0, %s196
    %s199 = sphi 0, %s198
    %s213 = sphi 0, %s199
    %s219 = sphi 0, %s221
    %s222 = sphi 0, %s219
    %s223 = sphi 0, %s222
    %s239 = sphi 0, %s223
  $region4: #{convnet_nopool_forward.1} parent=0 // loop_header_branch
    %18 = sbr.rel (%p16) target = $region8
  $region5: #{convnet_nopool_forward.1} parent=0 // loop_body
    %s20 = ssub.s32 %s15, 1
    %s21 = ssub.s32 %s15, 2
    %s22 = sadd.s32 %s15, 1
    %s23 = ssub.s32 %s15, %s22
    %p24 = scmp.eq.s32.totalorder %s23, 0
    %s26 = sadd.s32 %s25, 1
    %s27 = scalar_select %p24, %s25, %s26
    %p30 = pneg %p24
    %p31 = scmp.eq.s32.totalorder %s15, 1
    %p32 = por %p30, %p31
    %p33 = scmp.ne.s32.totalorder %s25, %s28
    %p34 = scmp.eq.s32.totalorder %s15, 0
    %p35 = por %p33, %p34
    %p36 = scmp.ne.s32.totalorder %s25, %s28
    %p37 = scmp.eq.s32.totalorder %s20, 1
    %p38 = por %p36, %p37
    %p39 = scmp.ne.s32.totalorder %s28, %s29
    %p40 = scmp.eq.s32.totalorder %s20, 0
    %p41 = por %p39, %p40
    %p42 = scmp.ne.s32.totalorder %s28, %s29
    %p43 = scmp.eq.s32.totalorder %s21, 1
    %p44 = por %p42, %p43
    %p46 = scmp.ne.s32.totalorder %s29, %s45
    %p47 = scmp.eq.s32.totalorder %s21, 0
    %p48 = por %p46, %p47
    %s50 = sadd.s32 %s49, 1
    %p53 = scmp.eq.s32.totalorder %s15, 1
    %p54 = scmp.ne.s32.totalorder %s49, %s51
    %p55 = scmp.eq.s32.totalorder %s15, 0
    %p56 = por %p54, %p55
    %p57 = scmp.ne.s32.totalorder %s49, %s51
    %p58 = scmp.eq.s32.totalorder %s20, 1
    %p59 = por %p57, %p58
    %p60 = scmp.ne.s32.totalorder %s51, %s52
    %p61 = scmp.eq.s32.totalorder %s20, 0
    %p62 = por %p60, %p61
    %p63 = scmp.ne.s32.totalorder %s51, %s52
    %p64 = scmp.eq.s32.totalorder %s21, 1
    %p65 = por %p63, %p64
    %p67 = scmp.ne.s32.totalorder %s52, %s66
    %p68 = scmp.eq.s32.totalorder %s21, 0
    %p69 = por %p67, %p68
    %s71 = sadd.s32 %s70, 1
    %p74 = scmp.eq.s32.totalorder %s15, 1
    %p75 = scmp.ne.s32.totalorder %s70, %s72
    %p76 = scmp.eq.s32.totalorder %s15, 0
    %p77 = por %p75, %p76
    %p78 = scmp.ne.s32.totalorder %s70, %s72
    %p79 = scmp.eq.s32.totalorder %s20, 1
    %p80 = por %p78, %p79
    %p81 = scmp.ne.s32.totalorder %s72, %s73
    %p82 = scmp.eq.s32.totalorder %s20, 0
    %p83 = por %p81, %p82
    %p84 = scmp.ne.s32.totalorder %s72, %s73
    %p85 = scmp.eq.s32.totalorder %s21, 1
    %p86 = por %p84, %p85
    %p88 = scmp.ne.s32.totalorder %s73, %s87
    %p89 = scmp.eq.s32.totalorder %s21, 0
    %p90 = por %p88, %p89
    %s92 = sadd.s32 %s91, 1
    %p95 = scmp.eq.s32.totalorder %s15, 1
    %p96 = scmp.ne.s32.totalorder %s91, %s93
    %p97 = scmp.eq.s32.totalorder %s15, 0
    %p98 = por %p96, %p97
    %p99 = scmp.ne.s32.totalorder %s91, %s93
    %p100 = scmp.eq.s32.totalorder %s20, 1
    %p101 = por %p99, %p100
    %p102 = scmp.ne.s32.totalorder %s93, %s94
    %p103 = scmp.eq.s32.totalorder %s20, 0
    %p104 = por %p102, %p103
    %p105 = scmp.ne.s32.totalorder %s93, %s94
    %p106 = scmp.eq.s32.totalorder %s21, 1
    %p107 = por %p105, %p106
    %p109 = scmp.ne.s32.totalorder %s94, %s108
    %p110 = scmp.eq.s32.totalorder %s21, 0
    %p111 = por %p109, %p110
    %s113 = sadd.s32 %s112, 1
    %p116 = scmp.eq.s32.totalorder %s15, 1
    %p117 = scmp.ne.s32.totalorder %s112, %s114
    %p118 = scmp.eq.s32.totalorder %s15, 0
    %p119 = por %p117, %p118
    %p120 = scmp.ne.s32.totalorder %s112, %s114
    %p121 = scmp.eq.s32.totalorder %s20, 1
    %p122 = por %p120, %p121
    %p123 = scmp.ne.s32.totalorder %s114, %s115
    %p124 = scmp.eq.s32.totalorder %s20, 0
    %p125 = por %p123, %p124
    %p126 = scmp.ne.s32.totalorder %s114, %s115
    %p127 = scmp.eq.s32.totalorder %s21, 1
    %p128 = por %p126, %p127
    %p130 = scmp.ne.s32.totalorder %s115, %s129
    %p131 = scmp.eq.s32.totalorder %s21, 0
    %p132 = por %p130, %p131
    %s134 = sadd.s32 %s133, 1
    %p137 = scmp.eq.s32.totalorder %s15, 1
    %p138 = scmp.ne.s32.totalorder %s133, %s135
    %p139 = scmp.eq.s32.totalorder %s15, 0
    %p140 = por %p138, %p139
    %p141 = scmp.ne.s32.totalorder %s133, %s135
    %p142 = scmp.eq.s32.totalorder %s20, 1
    %p143 = por %p141, %p142
    %p144 = scmp.ne.s32.totalorder %s135, %s136
    %p145 = scmp.eq.s32.totalorder %s20, 0
    %p146 = por %p144, %p145
    %p147 = scmp.ne.s32.totalorder %s135, %s136
    %p148 = scmp.eq.s32.totalorder %s21, 1
    %p149 = por %p147, %p148
    %p151 = scmp.ne.s32.totalorder %s136, %s150
    %p152 = scmp.eq.s32.totalorder %s21, 0
    %p153 = por %p151, %p152
    %s155 = sadd.s32 %s154, 1
    %p158 = scmp.eq.s32.totalorder %s15, 1
    %p159 = scmp.ne.s32.totalorder %s154, %s156
    %p160 = scmp.eq.s32.totalorder %s15, 0
    %p161 = por %p159, %p160
    %p162 = scmp.ne.s32.totalorder %s154, %s156
    %p163 = scmp.eq.s32.totalorder %s20, 1
    %p164 = por %p162, %p163
    %p165 = scmp.ne.s32.totalorder %s156, %s157
    %p166 = scmp.eq.s32.totalorder %s20, 0
    %p167 = por %p165, %p166
    %p168 = scmp.ne.s32.totalorder %s156, %s157
    %p169 = scmp.eq.s32.totalorder %s21, 1
    %p170 = por %p168, %p169
    %p172 = scmp.ne.s32.totalorder %s157, %s171
    %p173 = scmp.eq.s32.totalorder %s21, 0
    %p174 = por %p172, %p173
    %s176 = sadd.s32 %s175, 1
    %p179 = scmp.eq.s32.totalorder %s15, 1
    %p180 = scmp.ne.s32.totalorder %s175, %s177
    %p181 = scmp.eq.s32.totalorder %s15, 0
    %p182 = por %p180, %p181
    %p183 = scmp.ne.s32.totalorder %s175, %s177
    %p184 = scmp.eq.s32.totalorder %s20, 1
    %p185 = por %p183, %p184
    %p186 = scmp.ne.s32.totalorder %s177, %s178
    %p187 = scmp.eq.s32.totalorder %s20, 0
    %p188 = por %p186, %p187
    %p189 = scmp.ne.s32.totalorder %s177, %s178
    %p190 = scmp.eq.s32.totalorder %s21, 1
    %p191 = por %p189, %p190
    %p193 = scmp.ne.s32.totalorder %s178, %s192
    %p194 = scmp.eq.s32.totalorder %s21, 0
    %p195 = por %p193, %p194
    %s197 = sadd.s32 %s196, 1
    %p200 = scmp.eq.s32.totalorder %s15, 1
    %p201 = scmp.ne.s32.totalorder %s196, %s198
    %p202 = scmp.eq.s32.totalorder %s15, 0
    %p203 = por %p201, %p202
    %p204 = scmp.ne.s32.totalorder %s196, %s198
    %p205 = scmp.eq.s32.totalorder %s20, 1
    %p206 = por %p204, %p205
    %p207 = scmp.ne.s32.totalorder %s198, %s199
    %p208 = scmp.eq.s32.totalorder %s20, 0
    %p209 = por %p207, %p208
    %p210 = scmp.ne.s32.totalorder %s198, %s199
    %p211 = scmp.eq.s32.totalorder %s21, 1
    %p212 = por %p210, %p211
    %p214 = scmp.ne.s32.totalorder %s199, %s213
    %p215 = scmp.eq.s32.totalorder %s21, 0
    %p216 = por %p214, %p215
    %s217 = ssub.s32 %s15, %s22
    %p218 = scmp.eq.s32.totalorder %s217, 0
    %s220 = sadd.s32 %s219, 1
    %s221 = scalar_select %p218, %s219, %s220
    %p224 = pneg %p218
    %p225 = scmp.eq.s32.totalorder %s15, 1
    %p226 = por %p224, %p225
    %p227 = scmp.ne.s32.totalorder %s219, %s222
    %p228 = scmp.eq.s32.totalorder %s15, 0
    %p229 = por %p227, %p228
    %p230 = scmp.ne.s32.totalorder %s219, %s222
    %p231 = scmp.eq.s32.totalorder %s20, 1
    %p232 = por %p230, %p231
    %p233 = scmp.ne.s32.totalorder %s222, %s223
    %p234 = scmp.eq.s32.totalorder %s20, 0
    %p235 = por %p233, %p234
    %p236 = scmp.ne.s32.totalorder %s222, %s223
    %p237 = scmp.eq.s32.totalorder %s21, 1
    %p238 = por %p236, %p237
    %p240 = scmp.ne.s32.totalorder %s223, %s239
    %p241 = scmp.eq.s32.totalorder %s21, 0
    %p242 = por %p240, %p241
    %p243 = scmp.le.s32.totalorder 1, %s15
    %p244 = scmp.lt.s32.totalorder %s15, 3
    %p245 = pnand %p243, %p244
    %p246 = pneg %p245
    // Predicated region
    $region9: #{convnet_nopool_forward.1} parent=5 // pred_check
      _
    $region10: #{convnet_nopool_forward.1} parent=5 // pred_check_branch
      %248 = sbr.rel (%p245) target = $region12
    $region11: #{convnet_nopool_forward.1} parent=5 // pred_region
      %s249 = ssub.s32 %s15, 1
      // Predicated region
      $region13: #{convnet_nopool_forward.1} parent=11 // pred_check
        %p250 = pneg %p62
      $region14: #{convnet_nopool_forward.1} parent=11 // pred_check_branch
        %252 = sbr.rel (%p250) target = $region16
      $region15: #{convnet_nopool_forward.1} parent=11 // pred_region
        _
      $region16: #{convnet_nopool_forward.1} parent=11 // pred_fallthru
        _
      // Predicated region
      $region17: #{convnet_nopool_forward.1} parent=11 // pred_check
        %p253 = pneg %p83
      $region18: #{convnet_nopool_forward.1} parent=11 // pred_check_branch
        %255 = sbr.rel (%p253) target = $region20
      $region19: #{convnet_nopool_forward.1} parent=11 // pred_region
        _
      $region20: #{convnet_nopool_forward.1} parent=11 // pred_fallthru
        _
      // Predicated region
      $region21: #{convnet_nopool_forward.1} parent=11 // pred_check
        %p256 = pneg %p104
      $region22: #{convnet_nopool_forward.1} parent=11 // pred_check_branch
        %258 = sbr.rel (%p256) target = $region24
      $region23: #{convnet_nopool_forward.1} parent=11 // pred_region
        _
      $region24: #{convnet_nopool_forward.1} parent=11 // pred_fallthru
        _
      // Predicated region
      $region25: #{convnet_nopool_forward.1} parent=11 // pred_check
        %p259 = pneg %p125
      $region26: #{convnet_nopool_forward.1} parent=11 // pred_check_branch
        %261 = sbr.rel (%p259) target = $region28
      $region27: #{convnet_nopool_forward.1} parent=11 // pred_region
        _
      $region28: #{convnet_nopool_forward.1} parent=11 // pred_fallthru
        _
      // Predicated region
      $region29: #{convnet_nopool_forward.1} parent=11 // pred_check
        %p262 = pneg %p146
      $region30: #{convnet_nopool_forward.1} parent=11 // pred_check_branch
        %264 = sbr.rel (%p262) target = $region32
      $region31: #{convnet_nopool_forward.1} parent=11 // pred_region
        _
      $region32: #{convnet_nopool_forward.1} parent=11 // pred_fallthru
        _
      // Predicated region
      $region33: #{convnet_nopool_forward.1} parent=11 // pred_check
        %p265 = pneg %p167
      $region34: #{convnet_nopool_forward.1} parent=11 // pred_check_branch
        %267 = sbr.rel (%p265) target = $region36
      $region35: #{convnet_nopool_forward.1} parent=11 // pred_region
        _
      $region36: #{convnet_nopool_forward.1} parent=11 // pred_fallthru
        _
      // Predicated region
      $region37: #{convnet_nopool_forward.1} parent=11 // pred_check
        %p268 = pneg %p188
      $region38: #{convnet_nopool_forward.1} parent=11 // pred_check_branch
        %270 = sbr.rel (%p268) target = $region40
      $region39: #{convnet_nopool_forward.1} parent=11 // pred_region
        _
      $region40: #{convnet_nopool_forward.1} parent=11 // pred_fallthru
        _
      // Predicated region
      $region41: #{convnet_nopool_forward.1} parent=11 // pred_check
        %p271 = pneg %p209
      $region42: #{convnet_nopool_forward.1} parent=11 // pred_check_branch
        %273 = sbr.rel (%p271) target = $region44
      $region43: #{convnet_nopool_forward.1} parent=11 // pred_region
        _
      $region44: #{convnet_nopool_forward.1} parent=11 // pred_fallthru
        _
    $region12: #{convnet_nopool_forward.1} parent=5 // pred_fallthru
      _
    %p274 = scmp.lt.s32.totalorder %s15, 2
    // Predicated region
    $region45: #{convnet_nopool_forward.1} parent=5 // pred_check
      %p275 = pneg %p274
    $region46: #{convnet_nopool_forward.1} parent=5 // pred_check_branch
      %277 = sbr.rel (%p275) target = $region48
    $region47: #{convnet_nopool_forward.1} parent=5 // pred_region
      // Predicated region
      $region49: #{convnet_nopool_forward.1} parent=47 // pred_check
        %p278 = pneg %p35
      $region50: #{convnet_nopool_forward.1} parent=47 // pred_check_branch
        %280 = sbr.rel (%p278) target = $region52
      $region51: #{convnet_nopool_forward.1} parent=47 // pred_region
        %p281 = scmp.lt.s32.totalorder %s15, 1
        %s282 = scalar_select %p281, %s15, 1
        %s283 = smul.addr %s282, 50
        %s284 = smul.addr %s283, 4
        %s285 = scalar_lea.vmem %s0, %s284
      $region52: #{convnet_nopool_forward.1} parent=47 // pred_fallthru
        _
    $region48: #{convnet_nopool_forward.1} parent=5 // pred_fallthru
      _
    %p286 = scmp.le.s32.totalorder 1, %s15
    %p287 = scmp.lt.s32.totalorder %s15, 3
    %p288 = pnand %p286, %p287
    %p289 = pneg %p288
    // Predicated region
    $region53: #{convnet_nopool_forward.1} parent=5 // pred_check
      _
    $region54: #{convnet_nopool_forward.1} parent=5 // pred_check_branch
      %291 = sbr.rel (%p288) target = $region56
    $region55: #{convnet_nopool_forward.1} parent=5 // pred_region
      %s292 = ssub.s32 %s15, 1
      %p293 = scmp.lt.s32.totalorder %s20, 1
      %s294 = scalar_select %p293, %s20, 1
      %s295 = smul.addr %s294, 50
      %s296 = smul.addr %s295, 4
      %s297 = scalar_lea.vmem %s0, %s296
      %p298 = pneg %p41
      %p299 = pneg %p38
      %p300 = pneg %p62
      %p301 = pneg %p59
      %p302 = pneg %p83
      %p303 = pneg %p80
      %p304 = pneg %p104
      %p305 = pneg %p101
      %p306 = pneg %p125
      %p307 = pneg %p122
      %p308 = pneg %p146
      %p309 = pneg %p143
      %p310 = pneg %p167
      %p311 = pneg %p164
      %p312 = pneg %p188
      %p313 = pneg %p185
      %p314 = pneg %p209
      %p315 = pneg %p206
      %p316 = pneg %p235
      %p317 = pneg %p232
      %p318 = scmp.lt.s32.totalorder %s20, 1
      %s319 = scalar_select %p318, %s20, 1
      %s320 = smul.addr %s319, 2
      %s321 = smul.addr %s320, 8
      %s322 = scalar_lea.vmem %s9, %s321
      %p323 = scmp.lt.s32.totalorder %s20, 1
      %s324 = scalar_select %p323, %s20, 1
      %s325 = smul.addr %s324, 50
      %s326 = smul.addr %s325, 4
      %s327 = scalar_lea.vmem %s0, %s326
      %p328 = scmp.lt.s32.totalorder %s20, 1
      %s329 = scalar_select %p328, %s20, 1
      %s330 = smul.addr %s329, 2
      %s331 = smul.addr %s330, 8
      %s332 = scalar_lea.vmem %s9, %s331
      %vm334 = vcmask 519168
      %335 = vst.msk [vmem:[#allocation3] sm:$0xf] %vm334, 0
      %336 = vst.msk [vmem:[#allocation3 + $0x4] sm:$0xf] %vm334, 0
      %337 = vst.msk [vmem:[#allocation3 + $0x8] sm:$0xf] %vm334, 0
      %vm338 = vcmask 516096
      %vm339 = vsmask.f32 256
      %vm340 = vmand %vm338, %vm339
      %v341 = vld [vmem:[#allocation3 + $0xc] sm:$0x1]
      %v342 = vsel %vm340, 0, %v341
      %343 = vst [vmem:[#allocation3 + $0xc] sm:$0x1] %v342
      %344 = vst.msk [vmem:[#allocation4] sm:$0xf] %vm334, 0
      %345 = vst.msk [vmem:[#allocation4 + $0x4] sm:$0xf] %vm334, 0
      %346 = vst.msk [vmem:[#allocation4 + $0x8] sm:$0xf] %vm334, 0
      %v347 = vld [vmem:[#allocation4 + $0xc] sm:$0x1]
      %v348 = vsel %vm340, 0, %v347
      %349 = vst [vmem:[#allocation4 + $0xc] sm:$0x1] %v348
      %v350 = vld [vmem:[%s2] sm:$0x1]
      %v351 = vld [vmem:[%s327] sm:$0xf]
      %v352 = vld [vmem:[%s327 + $0x4] sm:$0xf]
      %v353 = vld [vmem:[%s327 + $0x8] sm:$0xf]
      %v354 = vld [vmem:[%s327 + $0xc] sm:$0xf]
      %v355 = vld [vmem:[%s327 + $0x10] sm:$0xf]
      %v356 = vld [vmem:[%s327 + $0x14] sm:$0xf]
      %v357 = vld [vmem:[%s327 + $0x18] sm:$0xf]
      %v358 = vld [vmem:[%s327 + $0x1c] sm:$0xf]
      %v359 = vld [vmem:[%s327 + $0x20] sm:$0xf]
      %v360 = vld [vmem:[%s327 + $0x24] sm:$0xf]
      %v361 = vld [vmem:[%s327 + $0x28] sm:$0xf]
      %v362 = vld [vmem:[%s327 + $0x2c] sm:$0xf]
      %v363 = vld [vmem:[%s327 + $0x30] sm:$0xf]
      %v364 = vld [vmem:[%s327 + $0x34] sm:$0xf]
      %v365 = vld [vmem:[%s327 + $0x38] sm:$0xf]
      %v366 = vld [vmem:[%s327 + $0x3c] sm:$0xf]
      %v367 = vld [vmem:[%s327 + $0x40] sm:$0xf]
      %v368 = vld [vmem:[%s327 + $0x44] sm:$0xf]
      %v369 = vld [vmem:[%s327 + $0x48] sm:$0xf]
      %v370 = vld [vmem:[%s327 + $0x4c] sm:$0xf]
      %v371 = vld [vmem:[%s327 + $0x50] sm:$0xf]
      %v372 = vld [vmem:[%s327 + $0x54] sm:$0xf]
      %v373 = vld [vmem:[%s327 + $0x58] sm:$0xf]
      %v374 = vld [vmem:[%s327 + $0x5c] sm:$0xf]
      %v375 = vld [vmem:[%s327 + $0x60] sm:$0xf]
      %v376 = vld [vmem:[%s327 + $0x64] sm:$0xf]
      %v377 = vld [vmem:[%s327 + $0x68] sm:$0xf]
      %v378 = vld [vmem:[%s327 + $0x6c] sm:$0xf]
      %v379 = vld [vmem:[%s327 + $0x70] sm:$0xf]
      %v380 = vld [vmem:[%s327 + $0x74] sm:$0xf]
      %v381 = vld [vmem:[%s327 + $0x78] sm:$0xf]
      %v382 = vld [vmem:[%s327 + $0x7c] sm:$0xf]
      %v383 = vld [vmem:[%s1] sm:$0xf]
      %v384 = vld [vmem:[%s327 + $0x80] sm:$0x1]
      %v385 = vld [vmem:[%s1 + $0x4] sm:$0xf]
      %v419 = vunpack.c.l.b16 %v351
      %v420 = vunpack.c.l.b16 %v352
      %v421 = vunpack.c.l.b16 %v353
      %v422 = vunpack.c.l.b16 %v354
      %v423 = vunpack.c.l.b16 %v355
      %v424 = vunpack.c.l.b16 %v356
      %v425 = vunpack.c.l.b16 %v357
      %v426 = vunpack.c.l.b16 %v358
      %v427 = vunpack.c.l.b16 %v359
      %v428 = vunpack.c.l.b16 %v360
      %v429 = vunpack.c.l.b16 %v361
      %v430 = vunpack.c.l.b16 %v362
      %v431 = vunpack.c.l.b16 %v363
      %v432 = vunpack.c.l.b16 %v364
      %v433 = vunpack.c.l.b16 %v365
      %v434 = vunpack.c.l.b16 %v366
      %v435 = vunpack.c.l.b16 %v367
      %v436 = vunpack.c.l.b16 %v368
      %v437 = vunpack.c.l.b16 %v369
      %v438 = vunpack.c.l.b16 %v370
      %v439 = vunpack.c.l.b16 %v371
      %v440 = vunpack.c.l.b16 %v372
      %v441 = vunpack.c.l.b16 %v373
      %v442 = vunpack.c.l.b16 %v374
      %v443 = vunpack.c.l.b16 %v375
      %v444 = vunpack.c.l.b16 %v376
      %v445 = vunpack.c.l.b16 %v377
      %v446 = vunpack.c.l.b16 %v378
      %v447 = vunpack.c.l.b16 %v379
      %v448 = vunpack.c.l.b16 %v380
      %v449 = vunpack.c.l.b16 %v381
      %v450 = vunpack.c.l.b16 %v382
      %v451 = vunpack.c.l.b16 %v384
      %v452 = vpack.c.b16 %v420, %v419
      %v453 = vpack.c.b16 %v422, %v421
      %v454 = vpack.c.b16 %v424, %v423
      %v455 = vpack.c.b16 %v426, %v425
      %v456 = vpack.c.b16 %v428, %v427
      %v457 = vpack.c.b16 %v430, %v429
      %v458 = vpack.c.b16 %v432, %v431
      %v459 = vpack.c.b16 %v434, %v433
      %v460 = vpack.c.b16 %v436, %v435
      %v461 = vpack.c.b16 %v438, %v437
      %v462 = vpack.c.b16 %v440, %v439
      %v463 = vpack.c.b16 %v442, %v441
      %v464 = vpack.c.b16 %v444, %v443
      %v465 = vpack.c.b16 %v446, %v445
      %v466 = vpack.c.b16 %v448, %v447
      %v467 = vpack.c.b16 %v450, %v449
      %v468 = vpack.c.b16 %v451, %v451
      %vm469 = vsmask.f32 7424
      %v471 = vshrl.u32 %v452, 16
      %v473 = vshll.u32 %v452, 16
      %v475 = vrot.slane %v473, 1
      %v476 = vor.u32 %v471, %v475
      %v478 = vshll.u32 %v453, 16
      %v480 = vrot.slane %v478, 1
      %v481 = vsel %vm469, %v476, %v480
      %v482 = vshrl.u32 %v453, 16
      %v484 = vor.u32 %v482, %v480
      %v486 = vshll.u32 %v454, 16
      %v488 = vrot.slane %v486, 1
      %v489 = vsel %vm469, %v484, %v488
      %v490 = vshrl.u32 %v454, 16
      %v492 = vor.u32 %v490, %v488
      %v494 = vshll.u32 %v455, 16
      %v496 = vrot.slane %v494, 1
      %v497 = vsel %vm469, %v492, %v496
      %v498 = vshrl.u32 %v455, 16
      %v500 = vor.u32 %v498, %v496
      %v502 = vshll.u32 %v456, 16
      %v504 = vrot.slane %v502, 1
      %v505 = vsel %vm469, %v500, %v504
      %v506 = vshrl.u32 %v456, 16
      %v508 = vor.u32 %v506, %v504
      %v510 = vshll.u32 %v457, 16
      %v512 = vrot.slane %v510, 1
      %v513 = vsel %vm469, %v508, %v512
      %v514 = vshrl.u32 %v457, 16
      %v516 = vor.u32 %v514, %v512
      %v518 = vshll.u32 %v458, 16
      %v520 = vrot.slane %v518, 1
      %v521 = vsel %vm469, %v516, %v520
      %v522 = vshrl.u32 %v458, 16
      %v524 = vor.u32 %v522, %v520
      %v526 = vshll.u32 %v459, 16
      %v528 = vrot.slane %v526, 1
      %v529 = vsel %vm469, %v524, %v528
      %v530 = vshrl.u32 %v459, 16
      %v532 = vor.u32 %v530, %v528
      %v534 = vshll.u32 %v460, 16
      %v536 = vrot.slane %v534, 1
      %v537 = vsel %vm469, %v532, %v536
      %v538 = vshrl.u32 %v460, 16
      %v540 = vor.u32 %v538, %v536
      %v542 = vshll.u32 %v461, 16
      %v544 = vrot.slane %v542, 1
      %v545 = vsel %vm469, %v540, %v544
      %v546 = vshrl.u32 %v461, 16
      %v548 = vor.u32 %v546, %v544
      %v550 = vshll.u32 %v462, 16
      %v552 = vrot.slane %v550, 1
      %v553 = vsel %vm469, %v548, %v552
      %v554 = vshrl.u32 %v462, 16
      %v556 = vor.u32 %v554, %v552
      %v558 = vshll.u32 %v463, 16
      %v560 = vrot.slane %v558, 1
      %v561 = vsel %vm469, %v556, %v560
      %v562 = vshrl.u32 %v463, 16
      %v564 = vor.u32 %v562, %v560
      %v566 = vshll.u32 %v464, 16
      %v568 = vrot.slane %v566, 1
      %v569 = vsel %vm469, %v564, %v568
      %v570 = vshrl.u32 %v464, 16
      %v572 = vor.u32 %v570, %v568
      %v574 = vshll.u32 %v465, 16
      %v576 = vrot.slane %v574, 1
      %v577 = vsel %vm469, %v572, %v576
      %v578 = vshrl.u32 %v465, 16
      %v580 = vor.u32 %v578, %v576
      %v582 = vshll.u32 %v466, 16
      %v584 = vrot.slane %v582, 1
      %v585 = vsel %vm469, %v580, %v584
      %v586 = vshrl.u32 %v466, 16
      %v588 = vor.u32 %v586, %v584
      %v590 = vshll.u32 %v467, 16
      %v592 = vrot.slane %v590, 1
      %v593 = vsel %vm469, %v588, %v592
      %v594 = vshrl.u32 %v467, 16
      %v596 = vor.u32 %v594, %v592
      %v598 = vshll.u32 %v468, 16
      %v600 = vrot.slane %v598, 1
      %v601 = vsel %vm469, %v596, %v600
      %vm602 = vcmask 64512
      %v604 = vsel %vm602, %v481, 0
      %v607 = vsel %vm602, %v489, 0
      %v610 = vsel %vm602, %v497, 0
      %v613 = vsel %vm602, %v505, 0
      %v616 = vsel %vm602, %v513, 0
      %v619 = vsel %vm602, %v521, 0
      %v622 = vsel %vm602, %v529, 0
      %v625 = vsel %vm602, %v537, 0
      %v628 = vsel %vm602, %v545, 0
      %v631 = vsel %vm602, %v553, 0
      %v634 = vsel %vm602, %v561, 0
      %v637 = vsel %vm602, %v569, 0
      %v640 = vsel %vm602, %v577, 0
      %v643 = vsel %vm602, %v585, 0
      %v646 = vsel %vm602, %v593, 0
      %v649 = vsel %vm602, %v601, 0
      %vm651 = vcmask 1043456
      %v653 = vsel %vm651, %v385, 0
      %655 = vmatprep.subr.bf16.mxu0 0
      %656 = vmatpush1.bf16.msra.mxu0 %v653
      %657 = vmatprep.subr.bf16.mxu0 0
      %658 = vmatpush1.bf16.msra.mxu0 0
      %659 = vmatprep.subr.bf16.mxu0 0
      %660 = vmatpush1.bf16.msra.mxu0 0
      %661 = vmatprep.subr.bf16.mxu0 0
      %662 = vmatpush1.bf16.msra.mxu0 0
      %663 = vmatprep.subr.bf16.mxu0 0
      %664 = vmatpush1.bf16.msra.mxu0 0
      %665 = vmatprep.subr.bf16.mxu0 0
      %666 = vmatpush1.bf16.msra.mxu0 0
      %667 = vmatprep.subr.bf16.mxu0 0
      %668 = vmatpush1.bf16.msra.mxu0 0
      %669 = vmatprep.subr.bf16.mxu0 0
      %670 = vmatpush1.bf16.msra.mxu0 0
      %671 = vmatprep.subr.bf16.mxu0 0
      %672 = vmatpush1.bf16.msra.mxu0 0
      %673 = vmatprep.subr.bf16.mxu0 0
      %674 = vmatpush1.bf16.msra.mxu0 0
      %675 = vmatprep.subr.bf16.mxu0 0
      %676 = vmatpush1.bf16.msra.mxu0 0
      %677 = vmatprep.subr.bf16.mxu0 0
      %678 = vmatpush1.bf16.msra.mxu0 0
      %679 = vmatprep.subr.bf16.mxu0 0
      %680 = vmatpush1.bf16.msra.mxu0 0
      %681 = vmatprep.subr.bf16.mxu0 0
      %682 = vmatpush1.bf16.msra.mxu0 0
      %683 = vmatprep.subr.bf16.mxu0 0
      %684 = vmatpush1.bf16.msra.mxu0 0
      %685 = vmatprep.subr.bf16.mxu0 0
      %686 = vmatpush1.bf16.msra.mxu0 0
      %687 = vmatprep.mubr.bf16.mxu0 0
      %688 = vmatmul.mubr.bf16.gmra.mrb[0].mxu0 %v604
      %v689 = vpop.f32.mrb[0].mxu0
      %v690 = vadd.f32 0.0, %v689
      %v691 = vpop.f32.mrb[0].mxu0
      %v692 = vpop.f32.mrb[0].mxu0
      %v693 = vadd.f32 0.0, %v692
      %v694 = vpop.f32.mrb[0].mxu0
      %695 = vmatprep.mubr.bf16.mxu0 0
      %696 = vmatmul.mubr.bf16.gmra.mrb[0].mxu0 %v607
      %v697 = vpop.f32.mrb[0].mxu0
      %v698 = vadd.f32 0.0, %v697
      %v699 = vpop.f32.mrb[0].mxu0
      %v700 = vpop.f32.mrb[0].mxu0
      %v701 = vadd.f32 0.0, %v700
      %v702 = vpop.f32.mrb[0].mxu0
      %703 = vmatprep.mubr.bf16.mxu0 0
      %704 = vmatmul.mubr.bf16.gmra.mrb[0].mxu0 %v610
      %v705 = vpop.f32.mrb[0].mxu0
      %v706 = vadd.f32 0.0, %v705
      %v707 = vpop.f32.mrb[0].mxu0
      %v708 = vpop.f32.mrb[0].mxu0
      %v709 = vadd.f32 0.0, %v708
      %v710 = vpop.f32.mrb[0].mxu0
      %711 = vmatprep.mubr.bf16.mxu0 0
      %712 = vmatmul.mubr.bf16.gmra.mrb[0].mxu0 %v613
      %v713 = vpop.f32.mrb[0].mxu0
      %v714 = vadd.f32 0.0, %v713
      %v715 = vpop.f32.mrb[0].mxu0
      %v716 = vpop.f32.mrb[0].mxu0
      %v717 = vadd.f32 0.0, %v716
      %v718 = vpop.f32.mrb[0].mxu0
      %719 = vmatprep.mubr.bf16.mxu0 0
      %720 = vmatmul.mubr.bf16.gmra.mrb[0].mxu0 %v616
      %v721 = vpop.f32.mrb[0].mxu0
      %v722 = vadd.f32 0.0, %v721
      %v723 = vpop.f32.mrb[0].mxu0
      %v724 = vpop.f32.mrb[0].mxu0
      %v725 = vadd.f32 0.0, %v724
      %v726 = vpop.f32.mrb[0].mxu0
      %727 = vmatprep.mubr.bf16.mxu0 0
      %728 = vmatmul.mubr.bf16.gmra.mrb[0].mxu0 %v619
      %v729 = vpop.f32.mrb[0].mxu0
      %v730 = vadd.f32 0.0, %v729
      %v731 = vpop.f32.mrb[0].mxu0
      %v732 = vpop.f32.mrb[0].mxu0
      %v733 = vadd.f32 0.0, %v732
      %v734 = vpop.f32.mrb[0].mxu0
      %735 = vmatprep.mubr.bf16.mxu0 0
      %736 = vmatmul.mubr.bf16.gmra.mrb[0].mxu0 %v622
      %v737 = vpop.f32.mrb[0].mxu0
      %v738 = vadd.f32 0.0, %v737
      %v739 = vpop.f32.mrb[0].mxu0
      %v740 = vpop.f32.mrb[0].mxu0
      %v741 = vadd.f32 0.0, %v740
      %v742 = vpop.f32.mrb[0].mxu0
      %743 = vmatprep.mubr.bf16.mxu0 0
      %744 = vmatmul.mubr.bf16.gmra.mrb[0].mxu0 %v625
      %v745 = vpop.f32.mrb[0].mxu0
      %v746 = vadd.f32 0.0, %v745
      %v747 = vpop.f32.mrb[0].mxu0
      %v748 = vpop.f32.mrb[0].mxu0
      %v749 = vadd.f32 0.0, %v748
      %v750 = vpop.f32.mrb[0].mxu0
      %751 = vmatprep.mubr.bf16.mxu0 0
      %752 = vmatmul.mubr.bf16.gmra.mrb[0].mxu0 %v628
      %v753 = vpop.f32.mrb[0].mxu0
      %v754 = vadd.f32 0.0, %v753
      %v755 = vpop.f32.mrb[0].mxu0
      %v756 = vpop.f32.mrb[0].mxu0
      %v757 = vadd.f32 0.0, %v756
      %v758 = vpop.f32.mrb[0].mxu0
      %759 = vmatprep.mubr.bf16.mxu0 0
      %760 = vmatmul.mubr.bf16.gmra.mrb[0].mxu0 %v631
      %v761 = vpop.f32.mrb[0].mxu0
      %v762 = vadd.f32 0.0, %v761
      %v763 = vpop.f32.mrb[0].mxu0
      %v764 = vpop.f32.mrb[0].mxu0
      %v765 = vadd.f32 0.0, %v764
      %v766 = vpop.f32.mrb[0].mxu0
      %767 = vmatprep.mubr.bf16.mxu0 0
      %768 = vmatmul.mubr.bf16.gmra.mrb[0].mxu0 %v634
      %v769 = vpop.f32.mrb[0].mxu0
      %v770 = vadd.f32 0.0, %v769
      %v771 = vpop.f32.mrb[0].mxu0
      %v772 = vpop.f32.mrb[0].mxu0
      %v773 = vadd.f32 0.0, %v772
      %v774 = vpop.f32.mrb[0].mxu0
      %775 = vmatprep.mubr.bf16.mxu0 0
      %776 = vmatmul.mubr.bf16.gmra.mrb[0].mxu0 %v637
      %v777 = vpop.f32.mrb[0].mxu0
      %v778 = vadd.f32 0.0, %v777
      %v779 = vpop.f32.mrb[0].mxu0
      %v780 = vpop.f32.mrb[0].mxu0
      %v781 = vadd.f32 0.0, %v780
      %v782 = vpop.f32.mrb[0].mxu0
      %783 = vmatprep.mubr.bf16.mxu0 0
      %784 = vmatmul.mubr.bf16.gmra.mrb[0].mxu0 %v640
      %v785 = vpop.f32.mrb[0].mxu0
      %v786 = vadd.f32 0.0, %v785
      %v787 = vpop.f32.mrb[0].mxu0
      %v788 = vpop.f32.mrb[0].mxu0
      %v789 = vadd.f32 0.0, %v788
      %v790 = vpop.f32.mrb[0].mxu0
      %791 = vmatprep.mubr.bf16.mxu0 0
      %792 = vmatmul.mubr.bf16.gmra.mrb[0].mxu0 %v643
      %v793 = vpop.f32.mrb[0].mxu0
      %v794 = vadd.f32 0.0, %v793
      %v795 = vpop.f32.mrb[0].mxu0
      %v796 = vpop.f32.mrb[0].mxu0
      %v797 = vadd.f32 0.0, %v796
      %v798 = vpop.f32.mrb[0].mxu0
      %799 = vmatprep.mubr.bf16.mxu0 0
      %800 = vmatmul.mubr.bf16.gmra.mrb[0].mxu0 %v646
      %v801 = vpop.f32.mrb[0].mxu0
      %v802 = vadd.f32 0.0, %v801
      %v803 = vpop.f32.mrb[0].mxu0
      %v804 = vpop.f32.mrb[0].mxu0
      %v805 = vadd.f32 0.0, %v804
      %v806 = vpop.f32.mrb[0].mxu0
      %807 = vmatprep.mubr.bf16.mxu0 0
      %808 = vmatmul.mubr.bf16.gmra.mrb[0].mxu0 %v649
      %v809 = vpop.f32.mrb[0].mxu0
      %v810 = vadd.f32 0.0, %v809
      %v811 = vpop.f32.mrb[0].mxu0
      %v812 = vpop.f32.mrb[0].mxu0
      %v813 = vadd.f32 0.0, %v812
      %v814 = vpop.f32.mrb[0].mxu0
      %815 = vdwg.mxu0
      %v816 = vsel %vm602, %v452, 0
      %v818 = vsel %vm602, %v453, 0
      %v820 = vsel %vm602, %v454, 0
      %v822 = vsel %vm602, %v455, 0
      %v824 = vsel %vm602, %v456, 0
      %v826 = vsel %vm602, %v457, 0
      %v828 = vsel %vm602, %v458, 0
      %v830 = vsel %vm602, %v459, 0
      %v832 = vsel %vm602, %v460, 0
      %v834 = vsel %vm602, %v461, 0
      %v836 = vsel %vm602, %v462, 0
      %v838 = vsel %vm602, %v463, 0
      %v840 = vsel %vm602, %v464, 0
      %v842 = vsel %vm602, %v465, 0
      %v844 = vsel %vm602, %v466, 0
      %v846 = vsel %vm602, %v467, 0
      %v849 = vsel %vm651, %v383, 0
      %851 = vmatprep.subr.bf16.mxu0 0
      %852 = vmatpush1.bf16.msra.mxu0 %v849
      %853 = vmatprep.subr.bf16.mxu0 0
      %854 = vmatpush1.bf16.msra.mxu0 0
      %855 = vmatprep.subr.bf16.mxu0 0
      %856 = vmatpush1.bf16.msra.mxu0 0
      %857 = vmatprep.subr.bf16.mxu0 0
      %858 = vmatpush1.bf16.msra.mxu0 0
      %859 = vmatprep.subr.bf16.mxu0 0
      %860 = vmatpush1.bf16.msra.mxu0 0
      %861 = vmatprep.subr.bf16.mxu0 0
      %862 = vmatpush1.bf16.msra.mxu0 0
      %863 = vmatprep.subr.bf16.mxu0 0
      %864 = vmatpush1.bf16.msra.mxu0 0
      %865 = vmatprep.subr.bf16.mxu0 0
      %866 = vmatpush1.bf16.msra.mxu0 0
      %867 = vmatprep.subr.bf16.mxu0 0
      %868 = vmatpush1.bf16.msra.mxu0 0
      %869 = vmatprep.subr.bf16.mxu0 0
      %870 = vmatpush1.bf16.msra.mxu0 0
      %871 = vmatprep.subr.bf16.mxu0 0
      %872 = vmatpush1.bf16.msra.mxu0 0
      %873 = vmatprep.subr.bf16.mxu0 0
      %874 = vmatpush1.bf16.msra.mxu0 0
      %875 = vmatprep.subr.bf16.mxu0 0
      %876 = vmatpush1.bf16.msra.mxu0 0
      %877 = vmatprep.subr.bf16.mxu0 0
      %878 = vmatpush1.bf16.msra.mxu0 0
      %879 = vmatprep.subr.bf16.mxu0 0
      %880 = vmatpush1.bf16.msra.mxu0 0
      %881 = vmatprep.subr.bf16.mxu0 0
      %882 = vmatpush1.bf16.msra.mxu0 0
      %883 = vmatprep.mubr.bf16.mxu0 0
      %884 = vmatmul.mubr.bf16.gmra.mrb[0].mxu0 %v816
      %v885 = vpop.f32.mrb[0].mxu0
      %v886 = vadd.f32 %v690, %v885
      %v887 = vpop.f32.mrb[0].mxu0
      %v888 = vpop.f32.mrb[0].mxu0
      %v889 = vadd.f32 %v693, %v888
      %v890 = vpop.f32.mrb[0].mxu0
      %891 = vmatprep.mubr.bf16.mxu0 0
      %892 = vmatmul.mubr.bf16.gmra.mrb[0].mxu0 %v818
      %v893 = vpop.f32.mrb[0].mxu0
      %v894 = vadd.f32 %v698, %v893
      %v895 = vpop.f32.mrb[0].mxu0
      %v896 = vpop.f32.mrb[0].mxu0
      %v897 = vadd.f32 %v701, %v896
      %v898 = vpop.f32.mrb[0].mxu0
      %899 = vmatprep.mubr.bf16.mxu0 0
      %900 = vmatmul.mubr.bf16.gmra.mrb[0].mxu0 %v820
      %v901 = vpop.f32.mrb[0].mxu0
      %v902 = vadd.f32 %v706, %v901
      %v903 = vpop.f32.mrb[0].mxu0
      %v904 = vpop.f32.mrb[0].mxu0
      %v905 = vadd.f32 %v709, %v904
      %v906 = vpop.f32.mrb[0].mxu0
      %907 = vmatprep.mubr.bf16.mxu0 0
      %908 = vmatmul.mubr.bf16.gmra.mrb[0].mxu0 %v822
      %v909 = vpop.f32.mrb[0].mxu0
      %v910 = vadd.f32 %v714, %v909
      %v911 = vpop.f32.mrb[0].mxu0
      %v912 = vpop.f32.mrb[0].mxu0
      %v913 = vadd.f32 %v717, %v912
      %v914 = vpop.f32.mrb[0].mxu0
      %915 = vmatprep.mubr.bf16.mxu0 0
      %916 = vmatmul.mubr.bf16.gmra.mrb[0].mxu0 %v824
      %v917 = vpop.f32.mrb[0].mxu0
      %v918 = vadd.f32 %v722, %v917
      %v919 = vpop.f32.mrb[0].mxu0
      %v920 = vpop.f32.mrb[0].mxu0
      %v921 = vadd.f32 %v725, %v920
      %v922 = vpop.f32.mrb[0].mxu0
      %923 = vmatprep.mubr.bf16.mxu0 0
      %924 = vmatmul.mubr.bf16.gmra.mrb[0].mxu0 %v826
      %v925 = vpop.f32.mrb[0].mxu0
      %v926 = vadd.f32 %v730, %v925
      %v927 = vpop.f32.mrb[0].mxu0
      %v928 = vpop.f32.mrb[0].mxu0
      %v929 = vadd.f32 %v733, %v928
      %v930 = vpop.f32.mrb[0].mxu0
      %931 = vmatprep.mubr.bf16.mxu0 0
      %932 = vmatmul.mubr.bf16.gmra.mrb[0].mxu0 %v828
      %v933 = vpop.f32.mrb[0].mxu0
      %v934 = vadd.f32 %v738, %v933
      %v935 = vpop.f32.mrb[0].mxu0
      %v936 = vpop.f32.mrb[0].mxu0
      %v937 = vadd.f32 %v741, %v936
      %v938 = vpop.f32.mrb[0].mxu0
      %939 = vmatprep.mubr.bf16.mxu0 0
      %940 = vmatmul.mubr.bf16.gmra.mrb[0].mxu0 %v830
      %v941 = vpop.f32.mrb[0].mxu0
      %v942 = vadd.f32 %v746, %v941
      %v943 = vpop.f32.mrb[0].mxu0
      %v944 = vpop.f32.mrb[0].mxu0
      %v945 = vadd.f32 %v749, %v944
      %v946 = vpop.f32.mrb[0].mxu0
      %947 = vmatprep.mubr.bf16.mxu0 0
      %948 = vmatmul.mubr.bf16.gmra.mrb[0].mxu0 %v832
      %v949 = vpop.f32.mrb[0].mxu0
      %v950 = vadd.f32 %v754, %v949
      %v951 = vpop.f32.mrb[0].mxu0
      %v952 = vpop.f32.mrb[0].mxu0
      %v953 = vadd.f32 %v757, %v952
      %v954 = vpop.f32.mrb[0].mxu0
      %955 = vmatprep.mubr.bf16.mxu0 0
      %956 = vmatmul.mubr.bf16.gmra.mrb[0].mxu0 %v834
      %v957 = vpop.f32.mrb[0].mxu0
      %v958 = vadd.f32 %v762, %v957
      %v959 = vpop.f32.mrb[0].mxu0
      %v960 = vpop.f32.mrb[0].mxu0
      %v961 = vadd.f32 %v765, %v960
      %v962 = vpop.f32.mrb[0].mxu0
      %963 = vmatprep.mubr.bf16.mxu0 0
      %964 = vmatmul.mubr.bf16.gmra.mrb[0].mxu0 %v836
      %v965 = vpop.f32.mrb[0].mxu0
      %v966 = vadd.f32 %v770, %v965
      %v967 = vpop.f32.mrb[0].mxu0
      %v968 = vpop.f32.mrb[0].mxu0
      %v969 = vadd.f32 %v773, %v968
      %v970 = vpop.f32.mrb[0].mxu0
      %971 = vmatprep.mubr.bf16.mxu0 0
      %972 = vmatmul.mubr.bf16.gmra.mrb[0].mxu0 %v838
      %v973 = vpop.f32.mrb[0].mxu0
      %v974 = vadd.f32 %v778, %v973
      %v975 = vpop.f32.mrb[0].mxu0
      %v976 = vpop.f32.mrb[0].mxu0
      %v977 = vadd.f32 %v781, %v976
      %v978 = vpop.f32.mrb[0].mxu0
      %979 = vmatprep.mubr.bf16.mxu0 0
      %980 = vmatmul.mubr.bf16.gmra.mrb[0].mxu0 %v840
      %v981 = vpop.f32.mrb[0].mxu0
      %v982 = vadd.f32 %v786, %v981
      %v983 = vpop.f32.mrb[0].mxu0
      %v984 = vpop.f32.mrb[0].mxu0
      %v985 = vadd.f32 %v789, %v984
      %v986 = vpop.f32.mrb[0].mxu0
      %987 = vmatprep.mubr.bf16.mxu0 0
      %988 = vmatmul.mubr.bf16.gmra.mrb[0].mxu0 %v842
      %v989 = vpop.f32.mrb[0].mxu0
      %v990 = vadd.f32 %v794, %v989
      %v991 = vpop.f32.mrb[0].mxu0
      %v992 = vpop.f32.mrb[0].mxu0
      %v993 = vadd.f32 %v797, %v992
      %v994 = vpop.f32.mrb[0].mxu0
      %995 = vmatprep.mubr.bf16.mxu0 0
      %996 = vmatmul.mubr.bf16.gmra.mrb[0].mxu0 %v844
      %v997 = vpop.f32.mrb[0].mxu0
      %v998 = vadd.f32 %v802, %v997
      %v999 = vpop.f32.mrb[0].mxu0
      %v1000 = vpop.f32.mrb[0].mxu0
      %v1001 = vadd.f32 %v805, %v1000
      %v1002 = vpop.f32.mrb[0].mxu0
      %1003 = vmatprep.mubr.bf16.mxu0 0
      %1004 = vmatmul.mubr.bf16.gmra.mrb[0].mxu0 %v846
      %v1005 = vpop.f32.mrb[0].mxu0
      %v1006 = vadd.f32 %v810, %v1005
      %v1007 = vpop.f32.mrb[0].mxu0
      %v1008 = vpop.f32.mrb[0].mxu0
      %v1009 = vadd.f32 %v813, %v1008
      %v1010 = vpop.f32.mrb[0].mxu0
      %1011 = vdwg.mxu0
      %v1012 = vld [vmem:[%s327] sm:$0xe]
      %v1013 = vld [vmem:[%s1 + $0x8] sm:$0xf]
      %v1015 = vunpack.c.l.b16 %v1012
      %v1016 = vpack.c.b16 %v420, %v1015
      %vm1017 = vcmask 1046528
      %v1018 = vrot.slane %v1016, 1
      %v1019 = vrot.slane %v453, 1
      %v1020 = vsel %vm1017, %v1018, %v1019
      %v1021 = vrot.slane %v454, 1
      %v1022 = vsel %vm1017, %v1019, %v1021
      %v1023 = vrot.slane %v455, 1
      %v1024 = vsel %vm1017, %v1021, %v1023
      %v1025 = vrot.slane %v456, 1
      %v1026 = vsel %vm1017, %v1023, %v1025
      %v1027 = vrot.slane %v457, 1
      %v1028 = vsel %vm1017, %v1025, %v1027
      %v1029 = vrot.slane %v458, 1
      %v1030 = vsel %vm1017, %v1027, %v1029
      %v1031 = vrot.slane %v459, 1
      %v1032 = vsel %vm1017, %v1029, %v1031
      %v1033 = vrot.slane %v460, 1
      %v1034 = vsel %vm1017, %v1031, %v1033
      %v1035 = vrot.slane %v461, 1
      %v1036 = vsel %vm1017, %v1033, %v1035
      %v1037 = vrot.slane %v462, 1
      %v1038 = vsel %vm1017, %v1035, %v1037
      %v1039 = vrot.slane %v463, 1
      %v1040 = vsel %vm1017, %v1037, %v1039
      %v1041 = vrot.slane %v464, 1
      %v1042 = vsel %vm1017, %v1039, %v1041
      %v1043 = vrot.slane %v465, 1
      %v1044 = vsel %vm1017, %v1041, %v1043
      %v1045 = vrot.slane %v466, 1
      %v1046 = vsel %vm1017, %v1043, %v1045
      %v1047 = vrot.slane %v467, 1
      %v1048 = vsel %vm1017, %v1045, %v1047
      %v1049 = vrot.slane %v468, 1
      %v1050 = vsel %vm1017, %v1047, %v1049
      %v1052 = vsel %vm602, %v1020, 0
      %v1055 = vsel %vm602, %v1022, 0
      %v1058 = vsel %vm602, %v1024, 0
      %v1061 = vsel %vm602, %v1026, 0
      %v1064 = vsel %vm602, %v1028, 0
      %v1067 = vsel %vm602, %v1030, 0
      %v1070 = vsel %vm602, %v1032, 0
      %v1073 = vsel %vm602, %v1034, 0
      %v1076 = vsel %vm602, %v1036, 0
      %v1079 = vsel %vm602, %v1038, 0
      %v1082 = vsel %vm602, %v1040, 0
      %v1085 = vsel %vm602, %v1042, 0
      %v1088 = vsel %vm602, %v1044, 0
      %v1091 = vsel %vm602, %v1046, 0
      %v1094 = vsel %vm602, %v1048, 0
      %v1097 = vsel %vm602, %v1050, 0
      %v1100 = vsel %vm651, %v1013, 0
      %1102 = vmatprep.subr.bf16.mxu0 0
      %1103 = vmatpush1.bf16.msra.mxu0 %v1100
      %1104 = vmatprep.subr.bf16.mxu0 0
      %1105 = vmatpush1.bf16.msra.mxu0 0
      %1106 = vmatprep.subr.bf16.mxu0 0
      %1107 = vmatpush1.bf16.msra.mxu0 0
      %1108 = vmatprep.subr.bf16.mxu0 0
      %1109 = vmatpush1.bf16.msra.mxu0 0
      %1110 = vmatprep.subr.bf16.mxu0 0
      %1111 = vmatpush1.bf16.msra.mxu0 0
      %1112 = vmatprep.subr.bf16.mxu0 0
      %1113 = vmatpush1.bf16.msra.mxu0 0
      %1114 = vmatprep.subr.bf16.mxu0 0
      %1115 = vmatpush1.bf16.msra.mxu0 0
      %1116 = vmatprep.subr.bf16.mxu0 0
      %1117 = vmatpush1.bf16.msra.mxu0 0
      %1118 = vmatprep.subr.bf16.mxu0 0
      %1119 = vmatpush1.bf16.msra.mxu0 0
      %1120 = vmatprep.subr.bf16.mxu0 0
      %1121 = vmatpush1.bf16.msra.mxu0 0
      %1122 = vmatprep.subr.bf16.mxu0 0
      %1123 = vmatpush1.bf16.msra.mxu0 0
      %1124 = vmatprep.subr.bf16.mxu0 0
      %1125 = vmatpush1.bf16.msra.mxu0 0
      %1126 = vmatprep.subr.bf16.mxu0 0
      %1127 = vmatpush1.bf16.msra.mxu0 0
      %1128 = vmatprep.subr.bf16.mxu0 0
      %1129 = vmatpush1.bf16.msra.mxu0 0
      %1130 = vmatprep.subr.bf16.mxu0 0
      %1131 = vmatpush1.bf16.msra.mxu0 0
      %1132 = vmatprep.subr.bf16.mxu0 0
      %1133 = vmatpush1.bf16.msra.mxu0 0
      %1134 = vmatprep.mubr.bf16.mxu0 0
      %1135 = vmatmul.mubr.bf16.gmra.mrb[0].mxu0 %v1052
      %v1136 = vpop.f32.mrb[0].mxu0
      %v1137 = vadd.f32 0.0, %v1136
      %v1138 = vpop.f32.mrb[0].mxu0
      %v1139 = vpop.f32.mrb[0].mxu0
      %v1140 = vadd.f32 0.0, %v1139
      %v1141 = vpop.f32.mrb[0].mxu0
      %1142 = vmatprep.mubr.bf16.mxu0 0
      %1143 = vmatmul.mubr.bf16.gmra.mrb[0].mxu0 %v1055
      %v1144 = vpop.f32.mrb[0].mxu0
      %v1145 = vadd.f32 0.0, %v1144
      %v1146 = vpop.f32.mrb[0].mxu0
      %v1147 = vpop.f32.mrb[0].mxu0
      %v1148 = vadd.f32 0.0, %v1147
      %v1149 = vpop.f32.mrb[0].mxu0
      %1150 = vmatprep.mubr.bf16.mxu0 0
      %1151 = vmatmul.mubr.bf16.gmra.mrb[0].mxu0 %v1058
      %v1152 = vpop.f32.mrb[0].mxu0
      %v1153 = vadd.f32 0.0, %v1152
      %v1154 = vpop.f32.mrb[0].mxu0
      %v1155 = vpop.f32.mrb[0].mxu0
      %v1156 = vadd.f32 0.0, %v1155
      %v1157 = vpop.f32.mrb[0].mxu0
      %1158 = vmatprep.mubr.bf16.mxu0 0
      %1159 = vmatmul.mubr.bf16.gmra.mrb[0].mxu0 %v1061
      %v1160 = vpop.f32.mrb[0].mxu0
      %v1161 = vadd.f32 0.0, %v1160
      %v1162 = vpop.f32.mrb[0].mxu0
      %v1163 = vpop.f32.mrb[0].mxu0
      %v1164 = vadd.f32 0.0, %v1163
      %v1165 = vpop.f32.mrb[0].mxu0
      %1166 = vmatprep.mubr.bf16.mxu0 0
      %1167 = vmatmul.mubr.bf16.gmra.mrb[0].mxu0 %v1064
      %v1168 = vpop.f32.mrb[0].mxu0
      %v1169 = vadd.f32 0.0, %v1168
      %v1170 = vpop.f32.mrb[0].mxu0
      %v1171 = vpop.f32.mrb[0].mxu0
      %v1172 = vadd.f32 0.0, %v1171
      %v1173 = vpop.f32.mrb[0].mxu0
      %1174 = vmatprep.mubr.bf16.mxu0 0
      %1175 = vmatmul.mubr.bf16.gmra.mrb[0].mxu0 %v1067
      %v1176 = vpop.f32.mrb[0].mxu0
      %v1177 = vadd.f32 0.0, %v1176
      %v1178 = vpop.f32.mrb[0].mxu0
      %v1179 = vpop.f32.mrb[0].mxu0
      %v1180 = vadd.f32 0.0, %v1179
      %v1181 = vpop.f32.mrb[0].mxu0
      %1182 = vmatprep.mubr.bf16.mxu0 0
      %1183 = vmatmul.mubr.bf16.gmra.mrb[0].mxu0 %v1070
      %v1184 = vpop.f32.mrb[0].mxu0
      %v1185 = vadd.f32 0.0, %v1184
      %v1186 = vpop.f32.mrb[0].mxu0
      %v1187 = vpop.f32.mrb[0].mxu0
      %v1188 = vadd.f32 0.0, %v1187
      %v1189 = vpop.f32.mrb[0].mxu0
      %1190 = vmatprep.mubr.bf16.mxu0 0
      %1191 = vmatmul.mubr.bf16.gmra.mrb[0].mxu0 %v1073
      %v1192 = vpop.f32.mrb[0].mxu0
      %v1193 = vadd.f32 0.0, %v1192
      %v1194 = vpop.f32.mrb[0].mxu0
      %v1195 = vpop.f32.mrb[0].mxu0
      %v1196 = vadd.f32 0.0, %v1195
      %v1197 = vpop.f32.mrb[0].mxu0
      %1198 = vmatprep.mubr.bf16.mxu0 0
      %1199 = vmatmul.mubr.bf16.gmra.mrb[0].mxu0 %v1076
      %v1200 = vpop.f32.mrb[0].mxu0
      %v1201 = vadd.f32 0.0, %v1200
      %v1202 = vpop.f32.mrb[0].mxu0
      %v1203 = vpop.f32.mrb[0].mxu0
      %v1204 = vadd.f32 0.0, %v1203
      %v1205 = vpop.f32.mrb[0].mxu0
      %1206 = vmatprep.mubr.bf16.mxu0 0
      %1207 = vmatmul.mubr.bf16.gmra.mrb[0].mxu0 %v1079
      %v1208 = vpop.f32.mrb[0].mxu0
      %v1209 = vadd.f32 0.0, %v1208
      %v1210 = vpop.f32.mrb[0].mxu0
      %v1211 = vpop.f32.mrb[0].mxu0
      %v1212 = vadd.f32 0.0, %v1211
      %v1213 = vpop.f32.mrb[0].mxu0
      %1214 = vmatprep.mubr.bf16.mxu0 0
      %1215 = vmatmul.mubr.bf16.gmra.mrb[0].mxu0 %v1082
      %v1216 = vpop.f32.mrb[0].mxu0
      %v1217 = vadd.f32 0.0, %v1216
      %v1218 = vpop.f32.mrb[0].mxu0
      %v1219 = vpop.f32.mrb[0].mxu0
      %v1220 = vadd.f32 0.0, %v1219
      %v1221 = vpop.f32.mrb[0].mxu0
      %1222 = vmatprep.mubr.bf16.mxu0 0
      %1223 = vmatmul.mubr.bf16.gmra.mrb[0].mxu0 %v1085
      %v1224 = vpop.f32.mrb[0].mxu0
      %v1225 = vadd.f32 0.0, %v1224
      %v1226 = vpop.f32.mrb[0].mxu0
      %v1227 = vpop.f32.mrb[0].mxu0
      %v1228 = vadd.f32 0.0, %v1227
      %v1229 = vpop.f32.mrb[0].mxu0
      %1230 = vmatprep.mubr.bf16.mxu0 0
      %1231 = vmatmul.mubr.bf16.gmra.mrb[0].mxu0 %v1088
      %v1232 = vpop.f32.mrb[0].mxu0
      %v1233 = vadd.f32 0.0, %v1232
      %v1234 = vpop.f32.mrb[0].mxu0
      %v1235 = vpop.f32.mrb[0].mxu0
      %v1236 = vadd.f32 0.0, %v1235
      %v1237 = vpop.f32.mrb[0].mxu0
      %1238 = vmatprep.mubr.bf16.mxu0 0
      %1239 = vmatmul.mubr.bf16.gmra.mrb[0].mxu0 %v1091
      %v1240 = vpop.f32.mrb[0].mxu0
      %v1241 = vadd.f32 0.0, %v1240
      %v1242 = vpop.f32.mrb[0].mxu0
      %v1243 = vpop.f32.mrb[0].mxu0
      %v1244 = vadd.f32 0.0, %v1243
      %v1245 = vpop.f32.mrb[0].mxu0
      %1246 = vmatprep.mubr.bf16.mxu0 0
      %1247 = vmatmul.mubr.bf16.gmra.mrb[0].mxu0 %v1094
      %v1248 = vpop.f32.mrb[0].mxu0
      %v1249 = vadd.f32 0.0, %v1248
      %v1250 = vpop.f32.mrb[0].mxu0
      %v1251 = vpop.f32.mrb[0].mxu0
      %v1252 = vadd.f32 0.0, %v1251
      %v1253 = vpop.f32.mrb[0].mxu0
      %1254 = vmatprep.mubr.bf16.mxu0 0
      %1255 = vmatmul.mubr.bf16.gmra.mrb[0].mxu0 %v1097
      %v1256 = vpop.f32.mrb[0].mxu0
      %v1257 = vadd.f32 0.0, %v1256
      %v1258 = vpop.f32.mrb[0].mxu0
      %v1259 = vpop.f32.mrb[0].mxu0
      %v1260 = vadd.f32 0.0, %v1259
      %v1261 = vpop.f32.mrb[0].mxu0
      %1262 = vdwg.mxu0
      %v1263 = vadd.f32 %v886, %v1137
      %v1264 = vadd.f32 %v889, %v1140
      %v1265 = vadd.f32 %v894, %v1145
      %v1266 = vadd.f32 %v897, %v1148
      %v1267 = vadd.f32 %v902, %v1153
      %v1268 = vadd.f32 %v905, %v1156
      %v1269 = vadd.f32 %v910, %v1161
      %v1270 = vadd.f32 %v913, %v1164
      %v1271 = vadd.f32 %v918, %v1169
      %v1272 = vadd.f32 %v921, %v1172
      %v1273 = vadd.f32 %v926, %v1177
      %v1274 = vadd.f32 %v929, %v1180
      %v1275 = vadd.f32 %v934, %v1185
      %v1276 = vadd.f32 %v937, %v1188
      %v1277 = vadd.f32 %v942, %v1193
      %v1278 = vadd.f32 %v945, %v1196
      %v1279 = vadd.f32 %v950, %v1201
      %v1280 = vadd.f32 %v953, %v1204
      %v1281 = vadd.f32 %v958, %v1209
      %v1282 = vadd.f32 %v961, %v1212
      %v1283 = vadd.f32 %v966, %v1217
      %v1284 = vadd.f32 %v969, %v1220
      %v1285 = vadd.f32 %v974, %v1225
      %v1286 = vadd.f32 %v977, %v1228
      %v1287 = vadd.f32 %v982, %v1233
      %v1288 = vadd.f32 %v985, %v1236
      %v1289 = vadd.f32 %v990, %v1241
      %v1290 = vadd.f32 %v993, %v1244
      %v1291 = vadd.f32 %v998, %v1249
      %v1292 = vadd.f32 %v1001, %v1252
      %v1293 = vadd.f32 %v1006, %v1257
      %v1294 = vadd.f32 %v1009, %v1260
      %v1295 = vld [vmem:[%s327 + $0x8] sm:$0xc]
      %v1296 = vld [vmem:[%s327 + $0xc] sm:$0xf]
      %v1297 = vld [vmem:[%s327 + $0x10] sm:$0xf]
      %v1298 = vld [vmem:[%s327 + $0x14] sm:$0xf]
      %v1299 = vld [vmem:[%s327 + $0x18] sm:$0xf]
      %v1300 = vld [vmem:[%s327 + $0x1c] sm:$0xf]
      %v1301 = vld [vmem:[%s327 + $0x20] sm:$0xf]
      %v1302 = vld [vmem:[%s327 + $0x24] sm:$0xf]
      %v1303 = vld [vmem:[%s327 + $0x28] sm:$0xf]
      %v1304 = vld [vmem:[%s327 + $0x2c] sm:$0xf]
      %v1305 = vld [vmem:[%s327 + $0x30] sm:$0xf]
      %v1306 = vld [vmem:[%s327 + $0x34] sm:$0xf]
      %v1307 = vld [vmem:[%s327 + $0x38] sm:$0xf]
      %v1308 = vld [vmem:[%s327 + $0x3c] sm:$0xf]
      %v1309 = vld [vmem:[%s327 + $0x40] sm:$0xf]
      %v1310 = vld [vmem:[%s327 + $0x44] sm:$0xf]
      %v1311 = vld [vmem:[%s327 + $0x48] sm:$0xf]
      %v1312 = vld [vmem:[%s327 + $0x4c] sm:$0xf]
      %v1313 = vld [vmem:[%s327 + $0x50] sm:$0xf]
      %v1314 = vld [vmem:[%s327 + $0x54] sm:$0xf]
      %v1315 = vld [vmem:[%s327 + $0x58] sm:$0xf]
      %v1316 = vld [vmem:[%s327 + $0x5c] sm:$0xf]
      %v1317 = vld [vmem:[%s327 + $0x60] sm:$0xf]
      %v1318 = vld [vmem:[%s327 + $0x64] sm:$0xf]
      %v1319 = vld [vmem:[%s327 + $0x68] sm:$0xf]
      %v1320 = vld [vmem:[%s327 + $0x6c] sm:$0xf]
      %v1321 = vld [vmem:[%s327 + $0x70] sm:$0xf]
      %v1322 = vld [vmem:[%s327 + $0x74] sm:$0xf]
      %v1323 = vld [vmem:[%s327 + $0x78] sm:$0xf]
      %v1324 = vld [vmem:[%s327 + $0x7c] sm:$0xf]
      %v1325 = vld [vmem:[%s327 + $0x80] sm:$0xf]
      %v1326 = vld [vmem:[%s327 + $0x84] sm:$0xf]
      %v1327 = vld [vmem:[%s327 + $0x88] sm:$0x3]
      %v1328 = vld [vmem:[%s1 + $0xc] sm:$0xf]
      %v1362 = vunpack.c.l.b16 %v1295
      %v1363 = vunpack.c.l.b16 %v1296
      %v1364 = vunpack.c.l.b16 %v1297
      %v1365 = vunpack.c.l.b16 %v1298
      %v1366 = vunpack.c.l.b16 %v1299
      %v1367 = vunpack.c.l.b16 %v1300
      %v1368 = vunpack.c.l.b16 %v1301
      %v1369 = vunpack.c.l.b16 %v1302
      %v1370 = vunpack.c.l.b16 %v1303
      %v1371 = vunpack.c.l.b16 %v1304
      %v1372 = vunpack.c.l.b16 %v1305
      %v1373 = vunpack.c.l.b16 %v1306
      %v1374 = vunpack.c.l.b16 %v1307
      %v1375 = vunpack.c.l.b16 %v1308
      %v1376 = vunpack.c.l.b16 %v1309
      %v1377 = vunpack.c.l.b16 %v1310
      %v1378 = vunpack.c.l.b16 %v1311
      %v1379 = vunpack.c.l.b16 %v1312
      %v1380 = vunpack.c.l.b16 %v1313
      %v1381 = vunpack.c.l.b16 %v1314
      %v1382 = vunpack.c.l.b16 %v1315
      %v1383 = vunpack.c.l.b16 %v1316
      %v1384 = vunpack.c.l.b16 %v1317
      %v1385 = vunpack.c.l.b16 %v1318
      %v1386 = vunpack.c.l.b16 %v1319
      %v1387 = vunpack.c.l.b16 %v1320
      %v1388 = vunpack.c.l.b16 %v1321
      %v1389 = vunpack.c.l.b16 %v1322
      %v1390 = vunpack.c.l.b16 %v1323
      %v1391 = vunpack.c.l.b16 %v1324
      %v1392 = vunpack.c.l.b16 %v1325
      %v1393 = vunpack.c.l.b16 %v1326
      %v1394 = vunpack.c.l.b16 %v1327
      %v1395 = vpack.c.b16 %v1363, %v1362
      %v1396 = vpack.c.b16 %v1365, %v1364
      %v1397 = vpack.c.b16 %v1367, %v1366
      %v1398 = vpack.c.b16 %v1369, %v1368
      %v1399 = vpack.c.b16 %v1371, %v1370
      %v1400 = vpack.c.b16 %v1373, %v1372
      %v1401 = vpack.c.b16 %v1375, %v1374
      %v1402 = vpack.c.b16 %v1377, %v1376
      %v1403 = vpack.c.b16 %v1379, %v1378
      %v1404 = vpack.c.b16 %v1381, %v1380
      %v1405 = vpack.c.b16 %v1383, %v1382
      %v1406 = vpack.c.b16 %v1385, %v1384
      %v1407 = vpack.c.b16 %v1387, %v1386
      %v1408 = vpack.c.b16 %v1389, %v1388
      %v1409 = vpack.c.b16 %v1391, %v1390
      %v1410 = vpack.c.b16 %v1393, %v1392
      %v1411 = vpack.c.b16 %v1394, %v1394
      %vm1412 = vcmask 1045504
      %v1413 = vrot.slane %v1395, 2
      %v1414 = vrot.slane %v1396, 2
      %v1415 = vsel %vm1412, %v1413, %v1414
      %v1416 = vrot.slane %v1397, 2
      %v1417 = vsel %vm1412, %v1414, %v1416
      %v1418 = vrot.slane %v1398, 2
      %v1419 = vsel %vm1412, %v1416, %v1418
      %v1420 = vrot.slane %v1399, 2
      %v1421 = vsel %vm1412, %v1418, %v1420
      %v1422 = vrot.slane %v1400, 2
      %v1423 = vsel %vm1412, %v1420, %v1422
      %v1424 = vrot.slane %v1401, 2
      %v1425 = vsel %vm1412, %v1422, %v1424
      %v1426 = vrot.slane %v1402, 2
      %v1427 = vsel %vm1412, %v1424, %v1426
      %v1428 = vrot.slane %v1403, 2
      %v1429 = vsel %vm1412, %v1426, %v1428
      %v1430 = vrot.slane %v1404, 2
      %v1431 = vsel %vm1412, %v1428, %v1430
      %v1432 = vrot.slane %v1405, 2
      %v1433 = vsel %vm1412, %v1430, %v1432
      %v1434 = vrot.slane %v1406, 2
      %v1435 = vsel %vm1412, %v1432, %v1434
      %v1436 = vrot.slane %v1407, 2
      %v1437 = vsel %vm1412, %v1434, %v1436
      %v1438 = vrot.slane %v1408, 2
      %v1439 = vsel %vm1412, %v1436, %v1438
      %v1440 = vrot.slane %v1409, 2
      %v1441 = vsel %vm1412, %v1438, %v1440
      %v1442 = vrot.slane %v1410, 2
      %v1443 = vsel %vm1412, %v1440, %v1442
      %v1444 = vrot.slane %v1411, 2
      %v1445 = vsel %vm1412, %v1442, %v1444
      %v1447 = vsel %vm602, %v1415, 0
      %v1450 = vsel %vm602, %v1417, 0
      %v1453 = vsel %vm602, %v1419, 0
      %v1456 = vsel %vm602, %v1421, 0
      %v1459 = vsel %vm602, %v1423, 0
      %v1462 = vsel %vm602, %v1425, 0
      %v1465 = vsel %vm602, %v1427, 0
      %v1468 = vsel %vm602, %v1429, 0
      %v1471 = vsel %vm602, %v1431, 0
      %v1474 = vsel %vm602, %v1433, 0
      %v1477 = vsel %vm602, %v1435, 0
      %v1480 = vsel %vm602, %v1437, 0
      %v1483 = vsel %vm602, %v1439, 0
      %v1486 = vsel %vm602, %v1441, 0
      %v1489 = vsel %vm602, %v1443, 0
      %v1492 = vsel %vm602, %v1445, 0
      %v1495 = vsel %vm651, %v1328, 0
      %1497 = vmatprep.subr.bf16.mxu0 0
      %1498 = vmatpush1.bf16.msra.mxu0 %v1495
      %1499 = vmatprep.subr.bf16.mxu0 0
      %1500 = vmatpush1.bf16.msra.mxu0 0
      %1501 = vmatprep.subr.bf16.mxu0 0
      %1502 = vmatpush1.bf16.msra.mxu0 0
      %1503 = vmatprep.subr.bf16.mxu0 0
      %1504 = vmatpush1.bf16.msra.mxu0 0
      %1505 = vmatprep.subr.bf16.mxu0 0
      %1506 = vmatpush1.bf16.msra.mxu0 0
      %1507 = vmatprep.subr.bf16.mxu0 0
      %1508 = vmatpush1.bf16.msra.mxu0 0
      %1509 = vmatprep.subr.bf16.mxu0 0
      %1510 = vmatpush1.bf16.msra.mxu0 0
      %1511 = vmatprep.subr.bf16.mxu0 0
      %1512 = vmatpush1.bf16.msra.mxu0 0
      %1513 = vmatprep.subr.bf16.mxu0 0
      %1514 = vmatpush1.bf16.msra.mxu0 0
      %1515 = vmatprep.subr.bf16.mxu0 0
      %1516 = vmatpush1.bf16.msra.mxu0 0
      %1517 = vmatprep.subr.bf16.mxu0 0
      %1518 = vmatpush1.bf16.msra.mxu0 0
      %1519 = vmatprep.subr.bf16.mxu0 0
      %1520 = vmatpush1.bf16.msra.mxu0 0
      %1521 = vmatprep.subr.bf16.mxu0 0
      %1522 = vmatpush1.bf16.msra.mxu0 0
      %1523 = vmatprep.subr.bf16.mxu0 0
      %1524 = vmatpush1.bf16.msra.mxu0 0
      %1525 = vmatprep.subr.bf16.mxu0 0
      %1526 = vmatpush1.bf16.msra.mxu0 0
      %1527 = vmatprep.subr.bf16.mxu0 0
      %1528 = vmatpush1.bf16.msra.mxu0 0
      %1529 = vmatprep.mubr.bf16.mxu0 0
      %1530 = vmatmul.mubr.bf16.gmra.mrb[0].mxu0 %v1447
      %v1531 = vpop.f32.mrb[0].mxu0
      %v1532 = vadd.f32 0.0, %v1531
      %v1533 = vpop.f32.mrb[0].mxu0
      %v1534 = vpop.f32.mrb[0].mxu0
      %v1535 = vadd.f32 0.0, %v1534
      %v1536 = vpop.f32.mrb[0].mxu0
      %1537 = vmatprep.mubr.bf16.mxu0 0
      %1538 = vmatmul.mubr.bf16.gmra.mrb[0].mxu0 %v1450
      %v1539 = vpop.f32.mrb[0].mxu0
      %v1540 = vadd.f32 0.0, %v1539
      %v1541 = vpop.f32.mrb[0].mxu0
      %v1542 = vpop.f32.mrb[0].mxu0
      %v1543 = vadd.f32 0.0, %v1542
      %v1544 = vpop.f32.mrb[0].mxu0
      %1545 = vmatprep.mubr.bf16.mxu0 0
      %1546 = vmatmul.mubr.bf16.gmra.mrb[0].mxu0 %v1453
      %v1547 = vpop.f32.mrb[0].mxu0
      %v1548 = vadd.f32 0.0, %v1547
      %v1549 = vpop.f32.mrb[0].mxu0
      %v1550 = vpop.f32.mrb[0].mxu0
      %v1551 = vadd.f32 0.0, %v1550
      %v1552 = vpop.f32.mrb[0].mxu0
      %1553 = vmatprep.mubr.bf16.mxu0 0
      %1554 = vmatmul.mubr.bf16.gmra.mrb[0].mxu0 %v1456
      %v1555 = vpop.f32.mrb[0].mxu0
      %v1556 = vadd.f32 0.0, %v1555
      %v1557 = vpop.f32.mrb[0].mxu0
      %v1558 = vpop.f32.mrb[0].mxu0
      %v1559 = vadd.f32 0.0, %v1558
      %v1560 = vpop.f32.mrb[0].mxu0
      %1561 = vmatprep.mubr.bf16.mxu0 0
      %1562 = vmatmul.mubr.bf16.gmra.mrb[0].mxu0 %v1459
      %v1563 = vpop.f32.mrb[0].mxu0
      %v1564 = vadd.f32 0.0, %v1563
      %v1565 = vpop.f32.mrb[0].mxu0
      %v1566 = vpop.f32.mrb[0].mxu0
      %v1567 = vadd.f32 0.0, %v1566
      %v1568 = vpop.f32.mrb[0].mxu0
      %1569 = vmatprep.mubr.bf16.mxu0 0
      %1570 = vmatmul.mubr.bf16.gmra.mrb[0].mxu0 %v1462
      %v1571 = vpop.f32.mrb[0].mxu0
      %v1572 = vadd.f32 0.0, %v1571
      %v1573 = vpop.f32.mrb[0].mxu0
      %v1574 = vpop.f32.mrb[0].mxu0
      %v1575 = vadd.f32 0.0, %v1574
      %v1576 = vpop.f32.mrb[0].mxu0
      %1577 = vmatprep.mubr.bf16.mxu0 0
      %1578 = vmatmul.mubr.bf16.gmra.mrb[0].mxu0 %v1465
      %v1579 = vpop.f32.mrb[0].mxu0
      %v1580 = vadd.f32 0.0, %v1579
      %v1581 = vpop.f32.mrb[0].mxu0
      %v1582 = vpop.f32.mrb[0].mxu0
      %v1583 = vadd.f32 0.0, %v1582
      %v1584 = vpop.f32.mrb[0].mxu0
      %1585 = vmatprep.mubr.bf16.mxu0 0
      %1586 = vmatmul.mubr.bf16.gmra.mrb[0].mxu0 %v1468
      %v1587 = vpop.f32.mrb[0].mxu0
      %v1588 = vadd.f32 0.0, %v1587
      %v1589 = vpop.f32.mrb[0].mxu0
      %v1590 = vpop.f32.mrb[0].mxu0
      %v1591 = vadd.f32 0.0, %v1590
      %v1592 = vpop.f32.mrb[0].mxu0
      %1593 = vmatprep.mubr.bf16.mxu0 0
      %1594 = vmatmul.mubr.bf16.gmra.mrb[0].mxu0 %v1471
      %v1595 = vpop.f32.mrb[0].mxu0
      %v1596 = vadd.f32 0.0, %v1595
      %v1597 = vpop.f32.mrb[0].mxu0
      %v1598 = vpop.f32.mrb[0].mxu0
      %v1599 = vadd.f32 0.0, %v1598
      %v1600 = vpop.f32.mrb[0].mxu0
      %1601 = vmatprep.mubr.bf16.mxu0 0
      %1602 = vmatmul.mubr.bf16.gmra.mrb[0].mxu0 %v1474
      %v1603 = vpop.f32.mrb[0].mxu0
      %v1604 = vadd.f32 0.0, %v1603
      %v1605 = vpop.f32.mrb[0].mxu0
      %v1606 = vpop.f32.mrb[0].mxu0
      %v1607 = vadd.f32 0.0, %v1606
      %v1608 = vpop.f32.mrb[0].mxu0
      %1609 = vmatprep.mubr.bf16.mxu0 0
      %1610 = vmatmul.mubr.bf16.gmra.mrb[0].mxu0 %v1477
      %v1611 = vpop.f32.mrb[0].mxu0
      %v1612 = vadd.f32 0.0, %v1611
      %v1613 = vpop.f32.mrb[0].mxu0
      %v1614 = vpop.f32.mrb[0].mxu0
      %v1615 = vadd.f32 0.0, %v1614
      %v1616 = vpop.f32.mrb[0].mxu0
      %1617 = vmatprep.mubr.bf16.mxu0 0
      %1618 = vmatmul.mubr.bf16.gmra.mrb[0].mxu0 %v1480
      %v1619 = vpop.f32.mrb[0].mxu0
      %v1620 = vadd.f32 0.0, %v1619
      %v1621 = vpop.f32.mrb[0].mxu0
      %v1622 = vpop.f32.mrb[0].mxu0
      %v1623 = vadd.f32 0.0, %v1622
      %v1624 = vpop.f32.mrb[0].mxu0
      %1625 = vmatprep.mubr.bf16.mxu0 0
      %1626 = vmatmul.mubr.bf16.gmra.mrb[0].mxu0 %v1483
      %v1627 = vpop.f32.mrb[0].mxu0
      %v1628 = vadd.f32 0.0, %v1627
      %v1629 = vpop.f32.mrb[0].mxu0
      %v1630 = vpop.f32.mrb[0].mxu0
      %v1631 = vadd.f32 0.0, %v1630
      %v1632 = vpop.f32.mrb[0].mxu0
      %1633 = vmatprep.mubr.bf16.mxu0 0
      %1634 = vmatmul.mubr.bf16.gmra.mrb[0].mxu0 %v1486
      %v1635 = vpop.f32.mrb[0].mxu0
      %v1636 = vadd.f32 0.0, %v1635
      %v1637 = vpop.f32.mrb[0].mxu0
      %v1638 = vpop.f32.mrb[0].mxu0
      %v1639 = vadd.f32 0.0, %v1638
      %v1640 = vpop.f32.mrb[0].mxu0
      %1641 = vmatprep.mubr.bf16.mxu0 0
      %1642 = vmatmul.mubr.bf16.gmra.mrb[0].mxu0 %v1489
      %v1643 = vpop.f32.mrb[0].mxu0
      %v1644 = vadd.f32 0.0, %v1643
      %v1645 = vpop.f32.mrb[0].mxu0
      %v1646 = vpop.f32.mrb[0].mxu0
      %v1647 = vadd.f32 0.0, %v1646
      %v1648 = vpop.f32.mrb[0].mxu0
      %1649 = vmatprep.mubr.bf16.mxu0 0
      %1650 = vmatmul.mubr.bf16.gmra.mrb[0].mxu0 %v1492
      %v1651 = vpop.f32.mrb[0].mxu0
      %v1652 = vadd.f32 0.0, %v1651
      %v1653 = vpop.f32.mrb[0].mxu0
      %v1654 = vpop.f32.mrb[0].mxu0
      %v1655 = vadd.f32 0.0, %v1654
      %v1656 = vpop.f32.mrb[0].mxu0
      %1657 = vdwg.mxu0
      %v1658 = vadd.f32 %v1263, %v1532
      %v1659 = vadd.f32 %v1264, %v1535
      %v1660 = vadd.f32 %v1265, %v1540
      %v1661 = vadd.f32 %v1266, %v1543
      %v1662 = vadd.f32 %v1267, %v1548
      %v1663 = vadd.f32 %v1268, %v1551
      %v1664 = vadd.f32 %v1269, %v1556
      %v1665 = vadd.f32 %v1270, %v1559
      %v1666 = vadd.f32 %v1271, %v1564
      %v1667 = vadd.f32 %v1272, %v1567
      %v1668 = vadd.f32 %v1273, %v1572
      %v1669 = vadd.f32 %v1274, %v1575
      %v1670 = vadd.f32 %v1275, %v1580
      %v1671 = vadd.f32 %v1276, %v1583
      %v1672 = vadd.f32 %v1277, %v1588
      %v1673 = vadd.f32 %v1278, %v1591
      %v1674 = vadd.f32 %v1279, %v1596
      %v1675 = vadd.f32 %v1280, %v1599
      %v1676 = vadd.f32 %v1281, %v1604
      %v1677 = vadd.f32 %v1282, %v1607
      %v1678 = vadd.f32 %v1283, %v1612
      %v1679 = vadd.f32 %v1284, %v1615
      %v1680 = vadd.f32 %v1285, %v1620
      %v1681 = vadd.f32 %v1286, %v1623
      %v1682 = vadd.f32 %v1287, %v1628
      %v1683 = vadd.f32 %v1288, %v1631
      %v1684 = vadd.f32 %v1289, %v1636
      %v1685 = vadd.f32 %v1290, %v1639
      %v1686 = vadd.f32 %v1291, %v1644
      %v1687 = vadd.f32 %v1292, %v1647
      %v1688 = vadd.f32 %v1293, %v1652
      %v1689 = vadd.f32 %v1294, %v1655
      %v1690 = vld [vmem:[%s327 + $0x88] sm:$0x7]
      %v1691 = vld [vmem:[%s1 + $0x10] sm:$0xf]
      %v1693 = vunpack.c.l.b16 %v1690
      %v1694 = vpack.c.b16 %v1693, %v1693
      %vm1695 = vsmask.f32 5376
      %v1697 = vshrl.u32 %v1395, 16
      %v1699 = vrot.slane %v1697, 2
      %v1700 = vshll.u32 %v1395, 16
      %v1702 = vrot.slane %v1700, 3
      %v1703 = vor.u32 %v1699, %v1702
      %v1705 = vshrl.u32 %v1396, 16
      %v1707 = vrot.slane %v1705, 2
      %v1708 = vshll.u32 %v1396, 16
      %v1710 = vrot.slane %v1708, 3
      %v1711 = vor.u32 %v1707, %v1710
      %v1712 = vsel %vm1695, %v1703, %v1711
      %v1714 = vshrl.u32 %v1397, 16
      %v1716 = vrot.slane %v1714, 2
      %v1717 = vshll.u32 %v1397, 16
      %v1719 = vrot.slane %v1717, 3
      %v1720 = vor.u32 %v1716, %v1719
      %v1721 = vsel %vm1695, %v1711, %v1720
      %v1723 = vshrl.u32 %v1398, 16
      %v1725 = vrot.slane %v1723, 2
      %v1726 = vshll.u32 %v1398, 16
      %v1728 = vrot.slane %v1726, 3
      %v1729 = vor.u32 %v1725, %v1728
      %v1730 = vsel %vm1695, %v1720, %v1729
      %v1732 = vshrl.u32 %v1399, 16
      %v1734 = vrot.slane %v1732, 2
      %v1735 = vshll.u32 %v1399, 16
      %v1737 = vrot.slane %v1735, 3
      %v1738 = vor.u32 %v1734, %v1737
      %v1739 = vsel %vm1695, %v1729, %v1738
      %v1741 = vshrl.u32 %v1400, 16
      %v1743 = vrot.slane %v1741, 2
      %v1744 = vshll.u32 %v1400, 16
      %v1746 = vrot.slane %v1744, 3
      %v1747 = vor.u32 %v1743, %v1746
      %v1748 = vsel %vm1695, %v1738, %v1747
      %v1750 = vshrl.u32 %v1401, 16
      %v1752 = vrot.slane %v1750, 2
      %v1753 = vshll.u32 %v1401, 16
      %v1755 = vrot.slane %v1753, 3
      %v1756 = vor.u32 %v1752, %v1755
      %v1757 = vsel %vm1695, %v1747, %v1756
      %v1759 = vshrl.u32 %v1402, 16
      %v1761 = vrot.slane %v1759, 2
      %v1762 = vshll.u32 %v1402, 16
      %v1764 = vrot.slane %v1762, 3
      %v1765 = vor.u32 %v1761, %v1764
      %v1766 = vsel %vm1695, %v1756, %v1765
      %v1768 = vshrl.u32 %v1403, 16
      %v1770 = vrot.slane %v1768, 2
      %v1771 = vshll.u32 %v1403, 16
      %v1773 = vrot.slane %v1771, 3
      %v1774 = vor.u32 %v1770, %v1773
      %v1775 = vsel %vm1695, %v1765, %v1774
      %v1777 = vshrl.u32 %v1404, 16
      %v1779 = vrot.slane %v1777, 2
      %v1780 = vshll.u32 %v1404, 16
      %v1782 = vrot.slane %v1780, 3
      %v1783 = vor.u32 %v1779, %v1782
      %v1784 = vsel %vm1695, %v1774, %v1783
      %v1786 = vshrl.u32 %v1405, 16
      %v1788 = vrot.slane %v1786, 2
      %v1789 = vshll.u32 %v1405, 16
      %v1791 = vrot.slane %v1789, 3
      %v1792 = vor.u32 %v1788, %v1791
      %v1793 = vsel %vm1695, %v1783, %v1792
      %v1795 = vshrl.u32 %v1406, 16
      %v1797 = vrot.slane %v1795, 2
      %v1798 = vshll.u32 %v1406, 16
      %v1800 = vrot.slane %v1798, 3
      %v1801 = vor.u32 %v1797, %v1800
      %v1802 = vsel %vm1695, %v1792, %v1801
      %v1804 = vshrl.u32 %v1407, 16
      %v1806 = vrot.slane %v1804, 2
      %v1807 = vshll.u32 %v1407, 16
      %v1809 = vrot.slane %v1807, 3
      %v1810 = vor.u32 %v1806, %v1809
      %v1811 = vsel %vm1695, %v1801, %v1810
      %v1813 = vshrl.u32 %v1408, 16
      %v1815 = vrot.slane %v1813, 2
      %v1816 = vshll.u32 %v1408, 16
      %v1818 = vrot.slane %v1816, 3
      %v1819 = vor.u32 %v1815, %v1818
      %v1820 = vsel %vm1695, %v1810, %v1819
      %v1822 = vshrl.u32 %v1409, 16
      %v1824 = vrot.slane %v1822, 2
      %v1825 = vshll.u32 %v1409, 16
      %v1827 = vrot.slane %v1825, 3
      %v1828 = vor.u32 %v1824, %v1827
      %v1829 = vsel %vm1695, %v1819, %v1828
      %v1831 = vshrl.u32 %v1410, 16
      %v1833 = vrot.slane %v1831, 2
      %v1834 = vshll.u32 %v1410, 16
      %v1836 = vrot.slane %v1834, 3
      %v1837 = vor.u32 %v1833, %v1836
      %v1838 = vsel %vm1695, %v1828, %v1837
      %v1840 = vshrl.u32 %v1694, 16
      %v1842 = vrot.slane %v1840, 2
      %v1843 = vshll.u32 %v1694, 16
      %v1845 = vrot.slane %v1843, 3
      %v1846 = vor.u32 %v1842, %v1845
      %v1847 = vsel %vm1695, %v1837, %v1846
      %v1849 = vsel %vm602, %v1712, 0
      %v1852 = vsel %vm602, %v1721, 0
      %v1855 = vsel %vm602, %v1730, 0
      %v1858 = vsel %vm602, %v1739, 0
      %v1861 = vsel %vm602, %v1748, 0
      %v1864 = vsel %vm602, %v1757, 0
      %v1867 = vsel %vm602, %v1766, 0
      %v1870 = vsel %vm602, %v1775, 0
      %v1873 = vsel %vm602, %v1784, 0
      %v1876 = vsel %vm602, %v1793, 0
      %v1879 = vsel %vm602, %v1802, 0
      %v1882 = vsel %vm602, %v1811, 0
      %v1885 = vsel %vm602, %v1820, 0
      %v1888 = vsel %vm602, %v1829, 0
      %v1891 = vsel %vm602, %v1838, 0
      %v1894 = vsel %vm602, %v1847, 0
      %v1897 = vsel %vm651, %v1691, 0
      %1899 = vmatprep.subr.bf16.mxu0 0
      %1900 = vmatpush1.bf16.msra.mxu0 %v1897
      %1901 = vmatprep.subr.bf16.mxu0 0
      %1902 = vmatpush1.bf16.msra.mxu0 0
      %1903 = vmatprep.subr.bf16.mxu0 0
      %1904 = vmatpush1.bf16.msra.mxu0 0
      %1905 = vmatprep.subr.bf16.mxu0 0
      %1906 = vmatpush1.bf16.msra.mxu0 0
      %1907 = vmatprep.subr.bf16.mxu0 0
      %1908 = vmatpush1.bf16.msra.mxu0 0
      %1909 = vmatprep.subr.bf16.mxu0 0
      %1910 = vmatpush1.bf16.msra.mxu0 0
      %1911 = vmatprep.subr.bf16.mxu0 0
      %1912 = vmatpush1.bf16.msra.mxu0 0
      %1913 = vmatprep.subr.bf16.mxu0 0
      %1914 = vmatpush1.bf16.msra.mxu0 0
      %1915 = vmatprep.subr.bf16.mxu0 0
      %1916 = vmatpush1.bf16.msra.mxu0 0
      %1917 = vmatprep.subr.bf16.mxu0 0
      %1918 = vmatpush1.bf16.msra.mxu0 0
      %1919 = vmatprep.subr.bf16.mxu0 0
      %1920 = vmatpush1.bf16.msra.mxu0 0
      %1921 = vmatprep.subr.bf16.mxu0 0
      %1922 = vmatpush1.bf16.msra.mxu0 0
      %1923 = vmatprep.subr.bf16.mxu0 0
      %1924 = vmatpush1.bf16.msra.mxu0 0
      %1925 = vmatprep.subr.bf16.mxu0 0
      %1926 = vmatpush1.bf16.msra.mxu0 0
      %1927 = vmatprep.subr.bf16.mxu0 0
      %1928 = vmatpush1.bf16.msra.mxu0 0
      %1929 = vmatprep.subr.bf16.mxu0 0
      %1930 = vmatpush1.bf16.msra.mxu0 0
      %1931 = vmatprep.mubr.bf16.mxu0 0
      %1932 = vmatmul.mubr.bf16.gmra.mrb[0].mxu0 %v1849
      %v1933 = vpop.f32.mrb[0].mxu0
      %v1934 = vadd.f32 0.0, %v1933
      %v1935 = vpop.f32.mrb[0].mxu0
      %v1936 = vpop.f32.mrb[0].mxu0
      %v1937 = vadd.f32 0.0, %v1936
      %v1938 = vpop.f32.mrb[0].mxu0
      %1939 = vmatprep.mubr.bf16.mxu0 0
      %1940 = vmatmul.mubr.bf16.gmra.mrb[0].mxu0 %v1852
      %v1941 = vpop.f32.mrb[0].mxu0
      %v1942 = vadd.f32 0.0, %v1941
      %v1943 = vpop.f32.mrb[0].mxu0
      %v1944 = vpop.f32.mrb[0].mxu0
      %v1945 = vadd.f32 0.0, %v1944
      %v1946 = vpop.f32.mrb[0].mxu0
      %1947 = vmatprep.mubr.bf16.mxu0 0
      %1948 = vmatmul.mubr.bf16.gmra.mrb[0].mxu0 %v1855
      %v1949 = vpop.f32.mrb[0].mxu0
      %v1950 = vadd.f32 0.0, %v1949
      %v1951 = vpop.f32.mrb[0].mxu0
      %v1952 = vpop.f32.mrb[0].mxu0
      %v1953 = vadd.f32 0.0, %v1952
      %v1954 = vpop.f32.mrb[0].mxu0
      %1955 = vmatprep.mubr.bf16.mxu0 0
      %1956 = vmatmul.mubr.bf16.gmra.mrb[0].mxu0 %v1858
      %v1957 = vpop.f32.mrb[0].mxu0
      %v1958 = vadd.f32 0.0, %v1957
      %v1959 = vpop.f32.mrb[0].mxu0
      %v1960 = vpop.f32.mrb[0].mxu0
      %v1961 = vadd.f32 0.0, %v1960
      %v1962 = vpop.f32.mrb[0].mxu0
      %1963 = vmatprep.mubr.bf16.mxu0 0
      %1964 = vmatmul.mubr.bf16.gmra.mrb[0].mxu0 %v1861
      %v1965 = vpop.f32.mrb[0].mxu0
      %v1966 = vadd.f32 0.0, %v1965
      %v1967 = vpop.f32.mrb[0].mxu0
      %v1968 = vpop.f32.mrb[0].mxu0
      %v1969 = vadd.f32 0.0, %v1968
      %v1970 = vpop.f32.mrb[0].mxu0
      %1971 = vmatprep.mubr.bf16.mxu0 0
      %1972 = vmatmul.mubr.bf16.gmra.mrb[0].mxu0 %v1864
      %v1973 = vpop.f32.mrb[0].mxu0
      %v1974 = vadd.f32 0.0, %v1973
      %v1975 = vpop.f32.mrb[0].mxu0
      %v1976 = vpop.f32.mrb[0].mxu0
      %v1977 = vadd.f32 0.0, %v1976
      %v1978 = vpop.f32.mrb[0].mxu0
      %1979 = vmatprep.mubr.bf16.mxu0 0
      %1980 = vmatmul.mubr.bf16.gmra.mrb[0].mxu0 %v1867
      %v1981 = vpop.f32.mrb[0].mxu0
      %v1982 = vadd.f32 0.0, %v1981
      %v1983 = vpop.f32.mrb[0].mxu0
      %v1984 = vpop.f32.mrb[0].mxu0
      %v1985 = vadd.f32 0.0, %v1984
      %v1986 = vpop.f32.mrb[0].mxu0
      %1987 = vmatprep.mubr.bf16.mxu0 0
      %1988 = vmatmul.mubr.bf16.gmra.mrb[0].mxu0 %v1870
      %v1989 = vpop.f32.mrb[0].mxu0
      %v1990 = vadd.f32 0.0, %v1989
      %v1991 = vpop.f32.mrb[0].mxu0
      %v1992 = vpop.f32.mrb[0].mxu0
      %v1993 = vadd.f32 0.0, %v1992
      %v1994 = vpop.f32.mrb[0].mxu0
      %1995 = vmatprep.mubr.bf16.mxu0 0
      %1996 = vmatmul.mubr.bf16.gmra.mrb[0].mxu0 %v1873
      %v1997 = vpop.f32.mrb[0].mxu0
      %v1998 = vadd.f32 0.0, %v1997
      %v1999 = vpop.f32.mrb[0].mxu0
      %v2000 = vpop.f32.mrb[0].mxu0
      %v2001 = vadd.f32 0.0, %v2000
      %v2002 = vpop.f32.mrb[0].mxu0
      %2003 = vmatprep.mubr.bf16.mxu0 0
      %2004 = vmatmul.mubr.bf16.gmra.mrb[0].mxu0 %v1876
      %v2005 = vpop.f32.mrb[0].mxu0
      %v2006 = vadd.f32 0.0, %v2005
      %v2007 = vpop.f32.mrb[0].mxu0
      %v2008 = vpop.f32.mrb[0].mxu0
      %v2009 = vadd.f32 0.0, %v2008
      %v2010 = vpop.f32.mrb[0].mxu0
      %2011 = vmatprep.mubr.bf16.mxu0 0
      %2012 = vmatmul.mubr.bf16.gmra.mrb[0].mxu0 %v1879
      %v2013 = vpop.f32.mrb[0].mxu0
      %v2014 = vadd.f32 0.0, %v2013
      %v2015 = vpop.f32.mrb[0].mxu0
      %v2016 = vpop.f32.mrb[0].mxu0
      %v2017 = vadd.f32 0.0, %v2016
      %v2018 = vpop.f32.mrb[0].mxu0
      %2019 = vmatprep.mubr.bf16.mxu0 0
      %2020 = vmatmul.mubr.bf16.gmra.mrb[0].mxu0 %v1882
      %v2021 = vpop.f32.mrb[0].mxu0
      %v2022 = vadd.f32 0.0, %v2021
      %v2023 = vpop.f32.mrb[0].mxu0
      %v2024 = vpop.f32.mrb[0].mxu0
      %v2025 = vadd.f32 0.0, %v2024
      %v2026 = vpop.f32.mrb[0].mxu0
      %2027 = vmatprep.mubr.bf16.mxu0 0
      %2028 = vmatmul.mubr.bf16.gmra.mrb[0].mxu0 %v1885
      %v2029 = vpop.f32.mrb[0].mxu0
      %v2030 = vadd.f32 0.0, %v2029
      %v2031 = vpop.f32.mrb[0].mxu0
      %v2032 = vpop.f32.mrb[0].mxu0
      %v2033 = vadd.f32 0.0, %v2032
      %v2034 = vpop.f32.mrb[0].mxu0
      %2035 = vmatprep.mubr.bf16.mxu0 0
      %2036 = vmatmul.mubr.bf16.gmra.mrb[0].mxu0 %v1888
      %v2037 = vpop.f32.mrb[0].mxu0
      %v2038 = vadd.f32 0.0, %v2037
      %v2039 = vpop.f32.mrb[0].mxu0
      %v2040 = vpop.f32.mrb[0].mxu0
      %v2041 = vadd.f32 0.0, %v2040
      %v2042 = vpop.f32.mrb[0].mxu0
      %2043 = vmatprep.mubr.bf16.mxu0 0
      %2044 = vmatmul.mubr.bf16.gmra.mrb[0].mxu0 %v1891
      %v2045 = vpop.f32.mrb[0].mxu0
      %v2046 = vadd.f32 0.0, %v2045
      %v2047 = vpop.f32.mrb[0].mxu0
      %v2048 = vpop.f32.mrb[0].mxu0
      %v2049 = vadd.f32 0.0, %v2048
      %v2050 = vpop.f32.mrb[0].mxu0
      %2051 = vmatprep.mubr.bf16.mxu0 0
      %2052 = vmatmul.mubr.bf16.gmra.mrb[0].mxu0 %v1894
      %v2053 = vpop.f32.mrb[0].mxu0
      %v2054 = vadd.f32 0.0, %v2053
      %v2055 = vpop.f32.mrb[0].mxu0
      %v2056 = vpop.f32.mrb[0].mxu0
      %v2057 = vadd.f32 0.0, %v2056
      %v2058 = vpop.f32.mrb[0].mxu0
      %2059 = vdwg.mxu0
      %v2060 = vadd.f32 %v1658, %v1934
      %v2061 = vadd.f32 %v1659, %v1937
      %v2062 = vadd.f32 %v1660, %v1942
      %v2063 = vadd.f32 %v1661, %v1945
      %v2064 = vadd.f32 %v1662, %v1950
      %v2065 = vadd.f32 %v1663, %v1953
      %v2066 = vadd.f32 %v1664, %v1958
      %v2067 = vadd.f32 %v1665, %v1961
      %v2068 = vadd.f32 %v1666, %v1966
      %v2069 = vadd.f32 %v1667, %v1969
      %v2070 = vadd.f32 %v1668, %v1974
      %v2071 = vadd.f32 %v1669, %v1977
      %v2072 = vadd.f32 %v1670, %v1982
      %v2073 = vadd.f32 %v1671, %v1985
      %v2074 = vadd.f32 %v1672, %v1990
      %v2075 = vadd.f32 %v1673, %v1993
      %v2076 = vadd.f32 %v1674, %v1998
      %v2077 = vadd.f32 %v1675, %v2001
      %v2078 = vadd.f32 %v1676, %v2006
      %v2079 = vadd.f32 %v1677, %v2009
      %v2080 = vadd.f32 %v1678, %v2014
      %v2081 = vadd.f32 %v1679, %v2017
      %v2082 = vadd.f32 %v1680, %v2022
      %v2083 = vadd.f32 %v1681, %v2025
      %v2084 = vadd.f32 %v1682, %v2030
      %v2085 = vadd.f32 %v1683, %v2033
      %v2086 = vadd.f32 %v1684, %v2038
      %v2087 = vadd.f32 %v1685, %v2041
      %v2088 = vadd.f32 %v1686, %v2046
      %v2089 = vadd.f32 %v1687, %v2049
      %v2090 = vadd.f32 %v1688, %v2054
      %v2091 = vadd.f32 %v1689, %v2057
      %v2092 = vld [vmem:[%s327 + $0x8] sm:$0x8]
      %v2093 = vld [vmem:[%s1 + $0x14] sm:$0xf]
      %v2095 = vunpack.c.l.b16 %v2092
      %v2096 = vpack.c.b16 %v1363, %v2095
      %vm2097 = vcmask 1044480
      %v2098 = vrot.slane %v2096, 3
      %v2099 = vrot.slane %v1396, 3
      %v2100 = vsel %vm2097, %v2098, %v2099
      %v2101 = vrot.slane %v1397, 3
      %v2102 = vsel %vm2097, %v2099, %v2101
      %v2103 = vrot.slane %v1398, 3
      %v2104 = vsel %vm2097, %v2101, %v2103
      %v2105 = vrot.slane %v1399, 3
      %v2106 = vsel %vm2097, %v2103, %v2105
      %v2107 = vrot.slane %v1400, 3
      %v2108 = vsel %vm2097, %v2105, %v2107
      %v2109 = vrot.slane %v1401, 3
      %v2110 = vsel %vm2097, %v2107, %v2109
      %v2111 = vrot.slane %v1402, 3
      %v2112 = vsel %vm2097, %v2109, %v2111
      %v2113 = vrot.slane %v1403, 3
      %v2114 = vsel %vm2097, %v2111, %v2113
      %v2115 = vrot.slane %v1404, 3
      %v2116 = vsel %vm2097, %v2113, %v2115
      %v2117 = vrot.slane %v1405, 3
      %v2118 = vsel %vm2097, %v2115, %v2117
      %v2119 = vrot.slane %v1406, 3
      %v2120 = vsel %vm2097, %v2117, %v2119
      %v2121 = vrot.slane %v1407, 3
      %v2122 = vsel %vm2097, %v2119, %v2121
      %v2123 = vrot.slane %v1408, 3
      %v2124 = vsel %vm2097, %v2121, %v2123
      %v2125 = vrot.slane %v1409, 3
      %v2126 = vsel %vm2097, %v2123, %v2125
      %v2127 = vrot.slane %v1410, 3
      %v2128 = vsel %vm2097, %v2125, %v2127
      %v2129 = vrot.slane %v1694, 3
      %v2130 = vsel %vm2097, %v2127, %v2129
      %v2132 = vsel %vm602, %v2100, 0
      %v2135 = vsel %vm602, %v2102, 0
      %v2138 = vsel %vm602, %v2104, 0
      %v2141 = vsel %vm602, %v2106, 0
      %v2144 = vsel %vm602, %v2108, 0
      %v2147 = vsel %vm602, %v2110, 0
      %v2150 = vsel %vm602, %v2112, 0
      %v2153 = vsel %vm602, %v2114, 0
      %v2156 = vsel %vm602, %v2116, 0
      %v2159 = vsel %vm602, %v2118, 0
      %v2162 = vsel %vm602, %v2120, 0
      %v2165 = vsel %vm602, %v2122, 0
      %v2168 = vsel %vm602, %v2124, 0
      %v2171 = vsel %vm602, %v2126, 0
      %v2174 = vsel %vm602, %v2128, 0
      %v2177 = vsel %vm602, %v2130, 0
      %v2180 = vsel %vm651, %v2093, 0
      %2182 = vmatprep.subr.bf16.mxu0 0
      %2183 = vmatpush1.bf16.msra.mxu0 %v2180
      %2184 = vmatprep.subr.bf16.mxu0 0
      %2185 = vmatpush1.bf16.msra.mxu0 0
      %2186 = vmatprep.subr.bf16.mxu0 0
      %2187 = vmatpush1.bf16.msra.mxu0 0
      %2188 = vmatprep.subr.bf16.mxu0 0
      %2189 = vmatpush1.bf16.msra.mxu0 0
      %2190 = vmatprep.subr.bf16.mxu0 0
      %2191 = vmatpush1.bf16.msra.mxu0 0
      %2192 = vmatprep.subr.bf16.mxu0 0
      %2193 = vmatpush1.bf16.msra.mxu0 0
      %2194 = vmatprep.subr.bf16.mxu0 0
      %2195 = vmatpush1.bf16.msra.mxu0 0
      %2196 = vmatprep.subr.bf16.mxu0 0
      %2197 = vmatpush1.bf16.msra.mxu0 0
      %2198 = vmatprep.subr.bf16.mxu0 0
      %2199 = vmatpush1.bf16.msra.mxu0 0
      %2200 = vmatprep.subr.bf16.mxu0 0
      %2201 = vmatpush1.bf16.msra.mxu0 0
      %2202 = vmatprep.subr.bf16.mxu0 0
      %2203 = vmatpush1.bf16.msra.mxu0 0
      %2204 = vmatprep.subr.bf16.mxu0 0
      %2205 = vmatpush1.bf16.msra.mxu0 0
      %2206 = vmatprep.subr.bf16.mxu0 0
      %2207 = vmatpush1.bf16.msra.mxu0 0
      %2208 = vmatprep.subr.bf16.mxu0 0
      %2209 = vmatpush1.bf16.msra.mxu0 0
      %2210 = vmatprep.subr.bf16.mxu0 0
      %2211 = vmatpush1.bf16.msra.mxu0 0
      %2212 = vmatprep.subr.bf16.mxu0 0
      %2213 = vmatpush1.bf16.msra.mxu0 0
      %2214 = vmatprep.mubr.bf16.mxu0 0
      %2215 = vmatmul.mubr.bf16.gmra.mrb[0].mxu0 %v2132
      %v2216 = vpop.f32.mrb[0].mxu0
      %v2217 = vadd.f32 0.0, %v2216
      %v2218 = vpop.f32.mrb[0].mxu0
      %v2219 = vpop.f32.mrb[0].mxu0
      %v2220 = vadd.f32 0.0, %v2219
      %v2221 = vpop.f32.mrb[0].mxu0
      %2222 = vmatprep.mubr.bf16.mxu0 0
      %2223 = vmatmul.mubr.bf16.gmra.mrb[0].mxu0 %v2135
      %v2224 = vpop.f32.mrb[0].mxu0
      %v2225 = vadd.f32 0.0, %v2224
      %v2226 = vpop.f32.mrb[0].mxu0
      %v2227 = vpop.f32.mrb[0].mxu0
      %v2228 = vadd.f32 0.0, %v2227
      %v2229 = vpop.f32.mrb[0].mxu0
      %2230 = vmatprep.mubr.bf16.mxu0 0
      %2231 = vmatmul.mubr.bf16.gmra.mrb[0].mxu0 %v2138
      %v2232 = vpop.f32.mrb[0].mxu0
      %v2233 = vadd.f32 0.0, %v2232
      %v2234 = vpop.f32.mrb[0].mxu0
      %v2235 = vpop.f32.mrb[0].mxu0
      %v2236 = vadd.f32 0.0, %v2235
      %v2237 = vpop.f32.mrb[0].mxu0
      %2238 = vmatprep.mubr.bf16.mxu0 0
      %2239 = vmatmul.mubr.bf16.gmra.mrb[0].mxu0 %v2141
      %v2240 = vpop.f32.mrb[0].mxu0
      %v2241 = vadd.f32 0.0, %v2240
      %v2242 = vpop.f32.mrb[0].mxu0
      %v2243 = vpop.f32.mrb[0].mxu0
      %v2244 = vadd.f32 0.0, %v2243
      %v2245 = vpop.f32.mrb[0].mxu0
      %2246 = vmatprep.mubr.bf16.mxu0 0
      %2247 = vmatmul.mubr.bf16.gmra.mrb[0].mxu0 %v2144
      %v2248 = vpop.f32.mrb[0].mxu0
      %v2249 = vadd.f32 0.0, %v2248
      %v2250 = vpop.f32.mrb[0].mxu0
      %v2251 = vpop.f32.mrb[0].mxu0
      %v2252 = vadd.f32 0.0, %v2251
      %v2253 = vpop.f32.mrb[0].mxu0
      %2254 = vmatprep.mubr.bf16.mxu0 0
      %2255 = vmatmul.mubr.bf16.gmra.mrb[0].mxu0 %v2147
      %v2256 = vpop.f32.mrb[0].mxu0
      %v2257 = vadd.f32 0.0, %v2256
      %v2258 = vpop.f32.mrb[0].mxu0
      %v2259 = vpop.f32.mrb[0].mxu0
      %v2260 = vadd.f32 0.0, %v2259
      %v2261 = vpop.f32.mrb[0].mxu0
      %2262 = vmatprep.mubr.bf16.mxu0 0
      %2263 = vmatmul.mubr.bf16.gmra.mrb[0].mxu0 %v2150
      %v2264 = vpop.f32.mrb[0].mxu0
      %v2265 = vadd.f32 0.0, %v2264
      %v2266 = vpop.f32.mrb[0].mxu0
      %v2267 = vpop.f32.mrb[0].mxu0
      %v2268 = vadd.f32 0.0, %v2267
      %v2269 = vpop.f32.mrb[0].mxu0
      %2270 = vmatprep.mubr.bf16.mxu0 0
      %2271 = vmatmul.mubr.bf16.gmra.mrb[0].mxu0 %v2153
      %v2272 = vpop.f32.mrb[0].mxu0
      %v2273 = vadd.f32 0.0, %v2272
      %v2274 = vpop.f32.mrb[0].mxu0
      %v2275 = vpop.f32.mrb[0].mxu0
      %v2276 = vadd.f32 0.0, %v2275
      %v2277 = vpop.f32.mrb[0].mxu0
      %2278 = vmatprep.mubr.bf16.mxu0 0
      %2279 = vmatmul.mubr.bf16.gmra.mrb[0].mxu0 %v2156
      %v2280 = vpop.f32.mrb[0].mxu0
      %v2281 = vadd.f32 0.0, %v2280
      %v2282 = vpop.f32.mrb[0].mxu0
      %v2283 = vpop.f32.mrb[0].mxu0
      %v2284 = vadd.f32 0.0, %v2283
      %v2285 = vpop.f32.mrb[0].mxu0
      %2286 = vmatprep.mubr.bf16.mxu0 0
      %2287 = vmatmul.mubr.bf16.gmra.mrb[0].mxu0 %v2159
      %v2288 = vpop.f32.mrb[0].mxu0
      %v2289 = vadd.f32 0.0, %v2288
      %v2290 = vpop.f32.mrb[0].mxu0
      %v2291 = vpop.f32.mrb[0].mxu0
      %v2292 = vadd.f32 0.0, %v2291
      %v2293 = vpop.f32.mrb[0].mxu0
      %2294 = vmatprep.mubr.bf16.mxu0 0
      %2295 = vmatmul.mubr.bf16.gmra.mrb[0].mxu0 %v2162
      %v2296 = vpop.f32.mrb[0].mxu0
      %v2297 = vadd.f32 0.0, %v2296
      %v2298 = vpop.f32.mrb[0].mxu0
      %v2299 = vpop.f32.mrb[0].mxu0
      %v2300 = vadd.f32 0.0, %v2299
      %v2301 = vpop.f32.mrb[0].mxu0
      %2302 = vmatprep.mubr.bf16.mxu0 0
      %2303 = vmatmul.mubr.bf16.gmra.mrb[0].mxu0 %v2165
      %v2304 = vpop.f32.mrb[0].mxu0
      %v2305 = vadd.f32 0.0, %v2304
      %v2306 = vpop.f32.mrb[0].mxu0
      %v2307 = vpop.f32.mrb[0].mxu0
      %v2308 = vadd.f32 0.0, %v2307
      %v2309 = vpop.f32.mrb[0].mxu0
      %2310 = vmatprep.mubr.bf16.mxu0 0
      %2311 = vmatmul.mubr.bf16.gmra.mrb[0].mxu0 %v2168
      %v2312 = vpop.f32.mrb[0].mxu0
      %v2313 = vadd.f32 0.0, %v2312
      %v2314 = vpop.f32.mrb[0].mxu0
      %v2315 = vpop.f32.mrb[0].mxu0
      %v2316 = vadd.f32 0.0, %v2315
      %v2317 = vpop.f32.mrb[0].mxu0
      %2318 = vmatprep.mubr.bf16.mxu0 0
      %2319 = vmatmul.mubr.bf16.gmra.mrb[0].mxu0 %v2171
      %v2320 = vpop.f32.mrb[0].mxu0
      %v2321 = vadd.f32 0.0, %v2320
      %v2322 = vpop.f32.mrb[0].mxu0
      %v2323 = vpop.f32.mrb[0].mxu0
      %v2324 = vadd.f32 0.0, %v2323
      %v2325 = vpop.f32.mrb[0].mxu0
      %2326 = vmatprep.mubr.bf16.mxu0 0
      %2327 = vmatmul.mubr.bf16.gmra.mrb[0].mxu0 %v2174
      %v2328 = vpop.f32.mrb[0].mxu0
      %v2329 = vadd.f32 0.0, %v2328
      %v2330 = vpop.f32.mrb[0].mxu0
      %v2331 = vpop.f32.mrb[0].mxu0
      %v2332 = vadd.f32 0.0, %v2331
      %v2333 = vpop.f32.mrb[0].mxu0
      %2334 = vmatprep.mubr.bf16.mxu0 0
      %2335 = vmatmul.mubr.bf16.gmra.mrb[0].mxu0 %v2177
      %v2336 = vpop.f32.mrb[0].mxu0
      %v2337 = vadd.f32 0.0, %v2336
      %v2338 = vpop.f32.mrb[0].mxu0
      %v2339 = vpop.f32.mrb[0].mxu0
      %v2340 = vadd.f32 0.0, %v2339
      %v2341 = vpop.f32.mrb[0].mxu0
      %2342 = vdwg.mxu0
      %v2343 = vadd.f32 %v2060, %v2217
      %v2344 = vadd.f32 %v2061, %v2220
      %v2345 = vadd.f32 %v2062, %v2225
      %v2346 = vadd.f32 %v2063, %v2228
      %v2347 = vadd.f32 %v2064, %v2233
      %v2348 = vadd.f32 %v2065, %v2236
      %v2349 = vadd.f32 %v2066, %v2241
      %v2350 = vadd.f32 %v2067, %v2244
      %v2351 = vadd.f32 %v2068, %v2249
      %v2352 = vadd.f32 %v2069, %v2252
      %v2353 = vadd.f32 %v2070, %v2257
      %v2354 = vadd.f32 %v2071, %v2260
      %v2355 = vadd.f32 %v2072, %v2265
      %v2356 = vadd.f32 %v2073, %v2268
      %v2357 = vadd.f32 %v2074, %v2273
      %v2358 = vadd.f32 %v2075, %v2276
      %v2359 = vadd.f32 %v2076, %v2281
      %v2360 = vadd.f32 %v2077, %v2284
      %v2361 = vadd.f32 %v2078, %v2289
      %v2362 = vadd.f32 %v2079, %v2292
      %v2363 = vadd.f32 %v2080, %v2297
      %v2364 = vadd.f32 %v2081, %v2300
      %v2365 = vadd.f32 %v2082, %v2305
      %v2366 = vadd.f32 %v2083, %v2308
      %v2367 = vadd.f32 %v2084, %v2313
      %v2368 = vadd.f32 %v2085, %v2316
      %v2369 = vadd.f32 %v2086, %v2321
      %v2370 = vadd.f32 %v2087, %v2324
      %v2371 = vadd.f32 %v2088, %v2329
      %v2372 = vadd.f32 %v2089, %v2332
      %v2373 = vadd.f32 %v2090, %v2337
      %v2374 = vadd.f32 %v2091, %v2340
      %v2375 = vld [vmem:[%s327 + $0x14] sm:$0xf]
      %v2376 = vld [vmem:[%s327 + $0x18] sm:$0xf]
      %v2377 = vld [vmem:[%s327 + $0x1c] sm:$0xf]
      %v2378 = vld [vmem:[%s327 + $0x20] sm:$0xf]
      %v2379 = vld [vmem:[%s327 + $0x24] sm:$0xf]
      %v2380 = vld [vmem:[%s327 + $0x28] sm:$0xf]
      %v2381 = vld [vmem:[%s327 + $0x2c] sm:$0xf]
      %v2382 = vld [vmem:[%s327 + $0x30] sm:$0xf]
      %v2383 = vld [vmem:[%s327 + $0x34] sm:$0xf]
      %v2384 = vld [vmem:[%s327 + $0x38] sm:$0xf]
      %v2385 = vld [vmem:[%s327 + $0x3c] sm:$0xf]
      %v2386 = vld [vmem:[%s327 + $0x40] sm:$0xf]
      %v2387 = vld [vmem:[%s327 + $0x44] sm:$0xf]
      %v2388 = vld [vmem:[%s327 + $0x48] sm:$0xf]
      %v2389 = vld [vmem:[%s327 + $0x4c] sm:$0xf]
      %v2390 = vld [vmem:[%s327 + $0x50] sm:$0xf]
      %v2391 = vld [vmem:[%s327 + $0x54] sm:$0xf]
      %v2392 = vld [vmem:[%s327 + $0x58] sm:$0xf]
      %v2393 = vld [vmem:[%s327 + $0x5c] sm:$0xf]
      %v2394 = vld [vmem:[%s327 + $0x60] sm:$0xf]
      %v2395 = vld [vmem:[%s327 + $0x64] sm:$0xf]
      %v2396 = vld [vmem:[%s327 + $0x68] sm:$0xf]
      %v2397 = vld [vmem:[%s327 + $0x6c] sm:$0xf]
      %v2398 = vld [vmem:[%s327 + $0x70] sm:$0xf]
      %v2399 = vld [vmem:[%s327 + $0x74] sm:$0xf]
      %v2400 = vld [vmem:[%s327 + $0x78] sm:$0xf]
      %v2401 = vld [vmem:[%s327 + $0x7c] sm:$0xf]
      %v2402 = vld [vmem:[%s327 + $0x80] sm:$0xf]
      %v2403 = vld [vmem:[%s327 + $0x84] sm:$0xf]
      %v2404 = vld [vmem:[%s327 + $0x88] sm:$0xf]
      %v2405 = vld [vmem:[%s327 + $0x8c] sm:$0xf]
      %v2406 = vld [vmem:[%s327 + $0x90] sm:$0xf]
      %v2407 = vld [vmem:[%s1 + $0x18] sm:$0xf]
      %v2440 = vunpack.c.l.b16 %v2375
      %v2441 = vunpack.c.l.b16 %v2376
      %v2442 = vunpack.c.l.b16 %v2377
      %v2443 = vunpack.c.l.b16 %v2378
      %v2444 = vunpack.c.l.b16 %v2379
      %v2445 = vunpack.c.l.b16 %v2380
      %v2446 = vunpack.c.l.b16 %v2381
      %v2447 = vunpack.c.l.b16 %v2382
      %v2448 = vunpack.c.l.b16 %v2383
      %v2449 = vunpack.c.l.b16 %v2384
      %v2450 = vunpack.c.l.b16 %v2385
      %v2451 = vunpack.c.l.b16 %v2386
      %v2452 = vunpack.c.l.b16 %v2387
      %v2453 = vunpack.c.l.b16 %v2388
      %v2454 = vunpack.c.l.b16 %v2389
      %v2455 = vunpack.c.l.b16 %v2390
      %v2456 = vunpack.c.l.b16 %v2391
      %v2457 = vunpack.c.l.b16 %v2392
      %v2458 = vunpack.c.l.b16 %v2393
      %v2459 = vunpack.c.l.b16 %v2394
      %v2460 = vunpack.c.l.b16 %v2395
      %v2461 = vunpack.c.l.b16 %v2396
      %v2462 = vunpack.c.l.b16 %v2397
      %v2463 = vunpack.c.l.b16 %v2398
      %v2464 = vunpack.c.l.b16 %v2399
      %v2465 = vunpack.c.l.b16 %v2400
      %v2466 = vunpack.c.l.b16 %v2401
      %v2467 = vunpack.c.l.b16 %v2402
      %v2468 = vunpack.c.l.b16 %v2403
      %v2469 = vunpack.c.l.b16 %v2404
      %v2470 = vunpack.c.l.b16 %v2405
      %v2471 = vunpack.c.l.b16 %v2406
      %v2472 = vpack.c.b16 %v2441, %v2440
      %v2473 = vpack.c.b16 %v2443, %v2442
      %v2474 = vpack.c.b16 %v2445, %v2444
      %v2475 = vpack.c.b16 %v2447, %v2446
      %v2476 = vpack.c.b16 %v2449, %v2448
      %v2477 = vpack.c.b16 %v2451, %v2450
      %v2478 = vpack.c.b16 %v2453, %v2452
      %v2479 = vpack.c.b16 %v2455, %v2454
      %v2480 = vpack.c.b16 %v2457, %v2456
      %v2481 = vpack.c.b16 %v2459, %v2458
      %v2482 = vpack.c.b16 %v2461, %v2460
      %v2483 = vpack.c.b16 %v2463, %v2462
      %v2484 = vpack.c.b16 %v2465, %v2464
      %v2485 = vpack.c.b16 %v2467, %v2466
      %v2486 = vpack.c.b16 %v2469, %v2468
      %v2487 = vpack.c.b16 %v2471, %v2470
      %v2489 = vsel %vm602, %v2472, 0
      %v2492 = vsel %vm602, %v2473, 0
      %v2495 = vsel %vm602, %v2474, 0
      %v2498 = vsel %vm602, %v2475, 0
      %v2501 = vsel %vm602, %v2476, 0
      %v2504 = vsel %vm602, %v2477, 0
      %v2507 = vsel %vm602, %v2478, 0
      %v2510 = vsel %vm602, %v2479, 0
      %v2513 = vsel %vm602, %v2480, 0
      %v2516 = vsel %vm602, %v2481, 0
      %v2519 = vsel %vm602, %v2482, 0
      %v2522 = vsel %vm602, %v2483, 0
      %v2525 = vsel %vm602, %v2484, 0
      %v2528 = vsel %vm602, %v2485, 0
      %v2531 = vsel %vm602, %v2486, 0
      %v2534 = vsel %vm602, %v2487, 0
      %v2537 = vsel %vm651, %v2407, 0
      %2539 = vmatprep.subr.bf16.mxu0 0
      %2540 = vmatpush1.bf16.msra.mxu0 %v2537
      %2541 = vmatprep.subr.bf16.mxu0 0
      %2542 = vmatpush1.bf16.msra.mxu0 0
      %2543 = vmatprep.subr.bf16.mxu0 0
      %2544 = vmatpush1.bf16.msra.mxu0 0
      %2545 = vmatprep.subr.bf16.mxu0 0
      %2546 = vmatpush1.bf16.msra.mxu0 0
      %2547 = vmatprep.subr.bf16.mxu0 0
      %2548 = vmatpush1.bf16.msra.mxu0 0
      %2549 = vmatprep.subr.bf16.mxu0 0
      %2550 = vmatpush1.bf16.msra.mxu0 0
      %2551 = vmatprep.subr.bf16.mxu0 0
      %2552 = vmatpush1.bf16.msra.mxu0 0
      %2553 = vmatprep.subr.bf16.mxu0 0
      %2554 = vmatpush1.bf16.msra.mxu0 0
      %2555 = vmatprep.subr.bf16.mxu0 0
      %2556 = vmatpush1.bf16.msra.mxu0 0
      %2557 = vmatprep.subr.bf16.mxu0 0
      %2558 = vmatpush1.bf16.msra.mxu0 0
      %2559 = vmatprep.subr.bf16.mxu0 0
      %2560 = vmatpush1.bf16.msra.mxu0 0
      %2561 = vmatprep.subr.bf16.mxu0 0
      %2562 = vmatpush1.bf16.msra.mxu0 0
      %2563 = vmatprep.subr.bf16.mxu0 0
      %2564 = vmatpush1.bf16.msra.mxu0 0
      %2565 = vmatprep.subr.bf16.mxu0 0
      %2566 = vmatpush1.bf16.msra.mxu0 0
      %2567 = vmatprep.subr.bf16.mxu0 0
      %2568 = vmatpush1.bf16.msra.mxu0 0
      %2569 = vmatprep.subr.bf16.mxu0 0
      %2570 = vmatpush1.bf16.msra.mxu0 0
      %2571 = vmatprep.mubr.bf16.mxu0 0
      %2572 = vmatmul.mubr.bf16.gmra.mrb[0].mxu0 %v2489
      %v2573 = vpop.f32.mrb[0].mxu0
      %v2574 = vadd.f32 0.0, %v2573
      %v2575 = vpop.f32.mrb[0].mxu0
      %v2576 = vpop.f32.mrb[0].mxu0
      %v2577 = vadd.f32 0.0, %v2576
      %v2578 = vpop.f32.mrb[0].mxu0
      %2579 = vmatprep.mubr.bf16.mxu0 0
      %2580 = vmatmul.mubr.bf16.gmra.mrb[0].mxu0 %v2492
      %v2581 = vpop.f32.mrb[0].mxu0
      %v2582 = vadd.f32 0.0, %v2581
      %v2583 = vpop.f32.mrb[0].mxu0
      %v2584 = vpop.f32.mrb[0].mxu0
      %v2585 = vadd.f32 0.0, %v2584
      %v2586 = vpop.f32.mrb[0].mxu0
      %2587 = vmatprep.mubr.bf16.mxu0 0
      %2588 = vmatmul.mubr.bf16.gmra.mrb[0].mxu0 %v2495
      %v2589 = vpop.f32.mrb[0].mxu0
      %v2590 = vadd.f32 0.0, %v2589
      %v2591 = vpop.f32.mrb[0].mxu0
      %v2592 = vpop.f32.mrb[0].mxu0
      %v2593 = vadd.f32 0.0, %v2592
      %v2594 = vpop.f32.mrb[0].mxu0
      %2595 = vmatprep.mubr.bf16.mxu0 0
      %2596 = vmatmul.mubr.bf16.gmra.mrb[0].mxu0 %v2498
      %v2597 = vpop.f32.mrb[0].mxu0
      %v2598 = vadd.f32 0.0, %v2597
      %v2599 = vpop.f32.mrb[0].mxu0
      %v2600 = vpop.f32.mrb[0].mxu0
      %v2601 = vadd.f32 0.0, %v2600
      %v2602 = vpop.f32.mrb[0].mxu0
      %2603 = vmatprep.mubr.bf16.mxu0 0
      %2604 = vmatmul.mubr.bf16.gmra.mrb[0].mxu0 %v2501
      %v2605 = vpop.f32.mrb[0].mxu0
      %v2606 = vadd.f32 0.0, %v2605
      %v2607 = vpop.f32.mrb[0].mxu0
      %v2608 = vpop.f32.mrb[0].mxu0
      %v2609 = vadd.f32 0.0, %v2608
      %v2610 = vpop.f32.mrb[0].mxu0
      %2611 = vmatprep.mubr.bf16.mxu0 0
      %2612 = vmatmul.mubr.bf16.gmra.mrb[0].mxu0 %v2504
      %v2613 = vpop.f32.mrb[0].mxu0
      %v2614 = vadd.f32 0.0, %v2613
      %v2615 = vpop.f32.mrb[0].mxu0
      %v2616 = vpop.f32.mrb[0].mxu0
      %v2617 = vadd.f32 0.0, %v2616
      %v2618 = vpop.f32.mrb[0].mxu0
      %2619 = vmatprep.mubr.bf16.mxu0 0
      %2620 = vmatmul.mubr.bf16.gmra.mrb[0].mxu0 %v2507
      %v2621 = vpop.f32.mrb[0].mxu0
      %v2622 = vadd.f32 0.0, %v2621
      %v2623 = vpop.f32.mrb[0].mxu0
      %v2624 = vpop.f32.mrb[0].mxu0
      %v2625 = vadd.f32 0.0, %v2624
      %v2626 = vpop.f32.mrb[0].mxu0
      %2627 = vmatprep.mubr.bf16.mxu0 0
      %2628 = vmatmul.mubr.bf16.gmra.mrb[0].mxu0 %v2510
      %v2629 = vpop.f32.mrb[0].mxu0
      %v2630 = vadd.f32 0.0, %v2629
      %v2631 = vpop.f32.mrb[0].mxu0
      %v2632 = vpop.f32.mrb[0].mxu0
      %v2633 = vadd.f32 0.0, %v2632
      %v2634 = vpop.f32.mrb[0].mxu0
      %2635 = vmatprep.mubr.bf16.mxu0 0
      %2636 = vmatmul.mubr.bf16.gmra.mrb[0].mxu0 %v2513
      %v2637 = vpop.f32.mrb[0].mxu0
      %v2638 = vadd.f32 0.0, %v2637
      %v2639 = vpop.f32.mrb[0].mxu0
      %v2640 = vpop.f32.mrb[0].mxu0
      %v2641 = vadd.f32 0.0, %v2640
      %v2642 = vpop.f32.mrb[0].mxu0
      %2643 = vmatprep.mubr.bf16.mxu0 0
      %2644 = vmatmul.mubr.bf16.gmra.mrb[0].mxu0 %v2516
      %v2645 = vpop.f32.mrb[0].mxu0
      %v2646 = vadd.f32 0.0, %v2645
      %v2647 = vpop.f32.mrb[0].mxu0
      %v2648 = vpop.f32.mrb[0].mxu0
      %v2649 = vadd.f32 0.0, %v2648
      %v2650 = vpop.f32.mrb[0].mxu0
      %2651 = vmatprep.mubr.bf16.mxu0 0
      %2652 = vmatmul.mubr.bf16.gmra.mrb[0].mxu0 %v2519
      %v2653 = vpop.f32.mrb[0].mxu0
      %v2654 = vadd.f32 0.0, %v2653
      %v2655 = vpop.f32.mrb[0].mxu0
      %v2656 = vpop.f32.mrb[0].mxu0
      %v2657 = vadd.f32 0.0, %v2656
      %v2658 = vpop.f32.mrb[0].mxu0
      %2659 = vmatprep.mubr.bf16.mxu0 0
      %2660 = vmatmul.mubr.bf16.gmra.mrb[0].mxu0 %v2522
      %v2661 = vpop.f32.mrb[0].mxu0
      %v2662 = vadd.f32 0.0, %v2661
      %v2663 = vpop.f32.mrb[0].mxu0
      %v2664 = vpop.f32.mrb[0].mxu0
      %v2665 = vadd.f32 0.0, %v2664
      %v2666 = vpop.f32.mrb[0].mxu0
      %2667 = vmatprep.mubr.bf16.mxu0 0
      %2668 = vmatmul.mubr.bf16.gmra.mrb[0].mxu0 %v2525
      %v2669 = vpop.f32.mrb[0].mxu0
      %v2670 = vadd.f32 0.0, %v2669
      %v2671 = vpop.f32.mrb[0].mxu0
      %v2672 = vpop.f32.mrb[0].mxu0
      %v2673 = vadd.f32 0.0, %v2672
      %v2674 = vpop.f32.mrb[0].mxu0
      %2675 = vmatprep.mubr.bf16.mxu0 0
      %2676 = vmatmul.mubr.bf16.gmra.mrb[0].mxu0 %v2528
      %v2677 = vpop.f32.mrb[0].mxu0
      %v2678 = vadd.f32 0.0, %v2677
      %v2679 = vpop.f32.mrb[0].mxu0
      %v2680 = vpop.f32.mrb[0].mxu0
      %v2681 = vadd.f32 0.0, %v2680
      %v2682 = vpop.f32.mrb[0].mxu0
      %2683 = vmatprep.mubr.bf16.mxu0 0
      %2684 = vmatmul.mubr.bf16.gmra.mrb[0].mxu0 %v2531
      %v2685 = vpop.f32.mrb[0].mxu0
      %v2686 = vadd.f32 0.0, %v2685
      %v2687 = vpop.f32.mrb[0].mxu0
      %v2688 = vpop.f32.mrb[0].mxu0
      %v2689 = vadd.f32 0.0, %v2688
      %v2690 = vpop.f32.mrb[0].mxu0
      %2691 = vmatprep.mubr.bf16.mxu0 0
      %2692 = vmatmul.mubr.bf16.gmra.mrb[0].mxu0 %v2534
      %v2693 = vpop.f32.mrb[0].mxu0
      %v2694 = vadd.f32 0.0, %v2693
      %v2695 = vpop.f32.mrb[0].mxu0
      %v2696 = vpop.f32.mrb[0].mxu0
      %v2697 = vadd.f32 0.0, %v2696
      %v2698 = vpop.f32.mrb[0].mxu0
      %2699 = vdwg.mxu0
      %v2700 = vadd.f32 %v2343, %v2574
      %v2701 = vadd.f32 %v2344, %v2577
      %v2702 = vadd.f32 %v2345, %v2582
      %v2703 = vadd.f32 %v2346, %v2585
      %v2704 = vadd.f32 %v2347, %v2590
      %v2705 = vadd.f32 %v2348, %v2593
      %v2706 = vadd.f32 %v2349, %v2598
      %v2707 = vadd.f32 %v2350, %v2601
      %v2708 = vadd.f32 %v2351, %v2606
      %v2709 = vadd.f32 %v2352, %v2609
      %v2710 = vadd.f32 %v2353, %v2614
      %v2711 = vadd.f32 %v2354, %v2617
      %v2712 = vadd.f32 %v2355, %v2622
      %v2713 = vadd.f32 %v2356, %v2625
      %v2714 = vadd.f32 %v2357, %v2630
      %v2715 = vadd.f32 %v2358, %v2633
      %v2716 = vadd.f32 %v2359, %v2638
      %v2717 = vadd.f32 %v2360, %v2641
      %v2718 = vadd.f32 %v2361, %v2646
      %v2719 = vadd.f32 %v2362, %v2649
      %v2720 = vadd.f32 %v2363, %v2654
      %v2721 = vadd.f32 %v2364, %v2657
      %v2722 = vadd.f32 %v2365, %v2662
      %v2723 = vadd.f32 %v2366, %v2665
      %v2724 = vadd.f32 %v2367, %v2670
      %v2725 = vadd.f32 %v2368, %v2673
      %v2726 = vadd.f32 %v2369, %v2678
      %v2727 = vadd.f32 %v2370, %v2681
      %v2728 = vadd.f32 %v2371, %v2686
      %v2729 = vadd.f32 %v2372, %v2689
      %v2730 = vadd.f32 %v2373, %v2694
      %v2731 = vadd.f32 %v2374, %v2697
      %v2732 = vld [vmem:[%s327 + $0x14] sm:$0xf]
      %v2733 = vld [vmem:[%s327 + $0x18] sm:$0xf]
      %v2734 = vld [vmem:[%s327 + $0x1c] sm:$0xf]
      %v2735 = vld [vmem:[%s327 + $0x20] sm:$0xf]
      %v2736 = vld [vmem:[%s327 + $0x24] sm:$0xf]
      %v2737 = vld [vmem:[%s327 + $0x28] sm:$0xf]
      %v2738 = vld [vmem:[%s327 + $0x2c] sm:$0xf]
      %v2739 = vld [vmem:[%s327 + $0x30] sm:$0xf]
      %v2740 = vld [vmem:[%s327 + $0x34] sm:$0xf]
      %v2741 = vld [vmem:[%s327 + $0x38] sm:$0xf]
      %v2742 = vld [vmem:[%s327 + $0x3c] sm:$0xf]
      %v2743 = vld [vmem:[%s327 + $0x40] sm:$0xf]
      %v2744 = vld [vmem:[%s327 + $0x44] sm:$0xf]
      %v2745 = vld [vmem:[%s327 + $0x48] sm:$0xf]
      %v2746 = vld [vmem:[%s327 + $0x4c] sm:$0xf]
      %v2747 = vld [vmem:[%s327 + $0x50] sm:$0xf]
      %v2748 = vld [vmem:[%s327 + $0x54] sm:$0xf]
      %v2749 = vld [vmem:[%s327 + $0x58] sm:$0xf]
      %v2750 = vld [vmem:[%s327 + $0x5c] sm:$0xf]
      %v2751 = vld [vmem:[%s327 + $0x60] sm:$0xf]
      %v2752 = vld [vmem:[%s327 + $0x64] sm:$0xf]
      %v2753 = vld [vmem:[%s327 + $0x68] sm:$0xf]
      %v2754 = vld [vmem:[%s327 + $0x6c] sm:$0xf]
      %v2755 = vld [vmem:[%s327 + $0x70] sm:$0xf]
      %v2756 = vld [vmem:[%s327 + $0x74] sm:$0xf]
      %v2757 = vld [vmem:[%s327 + $0x78] sm:$0xf]
      %v2758 = vld [vmem:[%s327 + $0x7c] sm:$0xf]
      %v2759 = vld [vmem:[%s327 + $0x80] sm:$0xf]
      %v2760 = vld [vmem:[%s327 + $0x84] sm:$0xf]
      %v2761 = vld [vmem:[%s327 + $0x88] sm:$0xf]
      %v2762 = vld [vmem:[%s327 + $0x8c] sm:$0xf]
      %v2763 = vld [vmem:[%s327 + $0x90] sm:$0xf]
      %v2764 = vld [vmem:[%s327 + $0x94] sm:$0x1]
      %v2765 = vld [vmem:[%s1 + $0x1c] sm:$0xf]
      %v2799 = vunpack.c.l.b16 %v2732
      %v2800 = vunpack.c.l.b16 %v2733
      %v2801 = vunpack.c.l.b16 %v2734
      %v2802 = vunpack.c.l.b16 %v2735
      %v2803 = vunpack.c.l.b16 %v2736
      %v2804 = vunpack.c.l.b16 %v2737
      %v2805 = vunpack.c.l.b16 %v2738
      %v2806 = vunpack.c.l.b16 %v2739
      %v2807 = vunpack.c.l.b16 %v2740
      %v2808 = vunpack.c.l.b16 %v2741
      %v2809 = vunpack.c.l.b16 %v2742
      %v2810 = vunpack.c.l.b16 %v2743
      %v2811 = vunpack.c.l.b16 %v2744
      %v2812 = vunpack.c.l.b16 %v2745
      %v2813 = vunpack.c.l.b16 %v2746
      %v2814 = vunpack.c.l.b16 %v2747
      %v2815 = vunpack.c.l.b16 %v2748
      %v2816 = vunpack.c.l.b16 %v2749
      %v2817 = vunpack.c.l.b16 %v2750
      %v2818 = vunpack.c.l.b16 %v2751
      %v2819 = vunpack.c.l.b16 %v2752
      %v2820 = vunpack.c.l.b16 %v2753
      %v2821 = vunpack.c.l.b16 %v2754
      %v2822 = vunpack.c.l.b16 %v2755
      %v2823 = vunpack.c.l.b16 %v2756
      %v2824 = vunpack.c.l.b16 %v2757
      %v2825 = vunpack.c.l.b16 %v2758
      %v2826 = vunpack.c.l.b16 %v2759
      %v2827 = vunpack.c.l.b16 %v2760
      %v2828 = vunpack.c.l.b16 %v2761
      %v2829 = vunpack.c.l.b16 %v2762
      %v2830 = vunpack.c.l.b16 %v2763
      %v2831 = vunpack.c.l.b16 %v2764
      %v2832 = vpack.c.b16 %v2800, %v2799
      %v2833 = vpack.c.b16 %v2802, %v2801
      %v2834 = vpack.c.b16 %v2804, %v2803
      %v2835 = vpack.c.b16 %v2806, %v2805
      %v2836 = vpack.c.b16 %v2808, %v2807
      %v2837 = vpack.c.b16 %v2810, %v2809
      %v2838 = vpack.c.b16 %v2812, %v2811
      %v2839 = vpack.c.b16 %v2814, %v2813
      %v2840 = vpack.c.b16 %v2816, %v2815
      %v2841 = vpack.c.b16 %v2818, %v2817
      %v2842 = vpack.c.b16 %v2820, %v2819
      %v2843 = vpack.c.b16 %v2822, %v2821
      %v2844 = vpack.c.b16 %v2824, %v2823
      %v2845 = vpack.c.b16 %v2826, %v2825
      %v2846 = vpack.c.b16 %v2828, %v2827
      %v2847 = vpack.c.b16 %v2830, %v2829
      %v2848 = vpack.c.b16 %v2831, %v2831
      %v2850 = vshrl.u32 %v2832, 16
      %v2852 = vshll.u32 %v2832, 16
      %v2854 = vrot.slane %v2852, 1
      %v2855 = vor.u32 %v2850, %v2854
      %v2857 = vshll.u32 %v2833, 16
      %v2859 = vrot.slane %v2857, 1
      %v2860 = vsel %vm469, %v2855, %v2859
      %v2861 = vshrl.u32 %v2833, 16
      %v2863 = vor.u32 %v2861, %v2859
      %v2865 = vshll.u32 %v2834, 16
      %v2867 = vrot.slane %v2865, 1
      %v2868 = vsel %vm469, %v2863, %v2867
      %v2869 = vshrl.u32 %v2834, 16
      %v2871 = vor.u32 %v2869, %v2867
      %v2873 = vshll.u32 %v2835, 16
      %v2875 = vrot.slane %v2873, 1
      %v2876 = vsel %vm469, %v2871, %v2875
      %v2877 = vshrl.u32 %v2835, 16
      %v2879 = vor.u32 %v2877, %v2875
      %v2881 = vshll.u32 %v2836, 16
      %v2883 = vrot.slane %v2881, 1
      %v2884 = vsel %vm469, %v2879, %v2883
      %v2885 = vshrl.u32 %v2836, 16
      %v2887 = vor.u32 %v2885, %v2883
      %v2889 = vshll.u32 %v2837, 16
      %v2891 = vrot.slane %v2889, 1
      %v2892 = vsel %vm469, %v2887, %v2891
      %v2893 = vshrl.u32 %v2837, 16
      %v2895 = vor.u32 %v2893, %v2891
      %v2897 = vshll.u32 %v2838, 16
      %v2899 = vrot.slane %v2897, 1
      %v2900 = vsel %vm469, %v2895, %v2899
      %v2901 = vshrl.u32 %v2838, 16
      %v2903 = vor.u32 %v2901, %v2899
      %v2905 = vshll.u32 %v2839, 16
      %v2907 = vrot.slane %v2905, 1
      %v2908 = vsel %vm469, %v2903, %v2907
      %v2909 = vshrl.u32 %v2839, 16
      %v2911 = vor.u32 %v2909, %v2907
      %v2913 = vshll.u32 %v2840, 16
      %v2915 = vrot.slane %v2913, 1
      %v2916 = vsel %vm469, %v2911, %v2915
      %v2917 = vshrl.u32 %v2840, 16
      %v2919 = vor.u32 %v2917, %v2915
      %v2921 = vshll.u32 %v2841, 16
      %v2923 = vrot.slane %v2921, 1
      %v2924 = vsel %vm469, %v2919, %v2923
      %v2925 = vshrl.u32 %v2841, 16
      %v2927 = vor.u32 %v2925, %v2923
      %v2929 = vshll.u32 %v2842, 16
      %v2931 = vrot.slane %v2929, 1
      %v2932 = vsel %vm469, %v2927, %v2931
      %v2933 = vshrl.u32 %v2842, 16
      %v2935 = vor.u32 %v2933, %v2931
      %v2937 = vshll.u32 %v2843, 16
      %v2939 = vrot.slane %v2937, 1
      %v2940 = vsel %vm469, %v2935, %v2939
      %v2941 = vshrl.u32 %v2843, 16
      %v2943 = vor.u32 %v2941, %v2939
      %v2945 = vshll.u32 %v2844, 16
      %v2947 = vrot.slane %v2945, 1
      %v2948 = vsel %vm469, %v2943, %v2947
      %v2949 = vshrl.u32 %v2844, 16
      %v2951 = vor.u32 %v2949, %v2947
      %v2953 = vshll.u32 %v2845, 16
      %v2955 = vrot.slane %v2953, 1
      %v2956 = vsel %vm469, %v2951, %v2955
      %v2957 = vshrl.u32 %v2845, 16
      %v2959 = vor.u32 %v2957, %v2955
      %v2961 = vshll.u32 %v2846, 16
      %v2963 = vrot.slane %v2961, 1
      %v2964 = vsel %vm469, %v2959, %v2963
      %v2965 = vshrl.u32 %v2846, 16
      %v2967 = vor.u32 %v2965, %v2963
      %v2969 = vshll.u32 %v2847, 16
      %v2971 = vrot.slane %v2969, 1
      %v2972 = vsel %vm469, %v2967, %v2971
      %v2973 = vshrl.u32 %v2847, 16
      %v2975 = vor.u32 %v2973, %v2971
      %v2977 = vshll.u32 %v2848, 16
      %v2979 = vrot.slane %v2977, 1
      %v2980 = vsel %vm469, %v2975, %v2979
      %v2982 = vsel %vm602, %v2860, 0
      %v2985 = vsel %vm602, %v2868, 0
      %v2988 = vsel %vm602, %v2876, 0
      %v2991 = vsel %vm602, %v2884, 0
      %v2994 = vsel %vm602, %v2892, 0
      %v2997 = vsel %vm602, %v2900, 0
      %v3000 = vsel %vm602, %v2908, 0
      %v3003 = vsel %vm602, %v2916, 0
      %v3006 = vsel %vm602, %v2924, 0
      %v3009 = vsel %vm602, %v2932, 0
      %v3012 = vsel %vm602, %v2940, 0
      %v3015 = vsel %vm602, %v2948, 0
      %v3018 = vsel %vm602, %v2956, 0
      %v3021 = vsel %vm602, %v2964, 0
      %v3024 = vsel %vm602, %v2972, 0
      %v3027 = vsel %vm602, %v2980, 0
      %v3030 = vsel %vm651, %v2765, 0
      %3032 = vmatprep.subr.bf16.mxu0 0
      %3033 = vmatpush1.bf16.msra.mxu0 %v3030
      %3034 = vmatprep.subr.bf16.mxu0 0
      %3035 = vmatpush1.bf16.msra.mxu0 0
      %3036 = vmatprep.subr.bf16.mxu0 0
      %3037 = vmatpush1.bf16.msra.mxu0 0
      %3038 = vmatprep.subr.bf16.mxu0 0
      %3039 = vmatpush1.bf16.msra.mxu0 0
      %3040 = vmatprep.subr.bf16.mxu0 0
      %3041 = vmatpush1.bf16.msra.mxu0 0
      %3042 = vmatprep.subr.bf16.mxu0 0
      %3043 = vmatpush1.bf16.msra.mxu0 0
      %3044 = vmatprep.subr.bf16.mxu0 0
      %3045 = vmatpush1.bf16.msra.mxu0 0
      %3046 = vmatprep.subr.bf16.mxu0 0
      %3047 = vmatpush1.bf16.msra.mxu0 0
      %3048 = vmatprep.subr.bf16.mxu0 0
      %3049 = vmatpush1.bf16.msra.mxu0 0
      %3050 = vmatprep.subr.bf16.mxu0 0
      %3051 = vmatpush1.bf16.msra.mxu0 0
      %3052 = vmatprep.subr.bf16.mxu0 0
      %3053 = vmatpush1.bf16.msra.mxu0 0
      %3054 = vmatprep.subr.bf16.mxu0 0
      %3055 = vmatpush1.bf16.msra.mxu0 0
      %3056 = vmatprep.subr.bf16.mxu0 0
      %3057 = vmatpush1.bf16.msra.mxu0 0
      %3058 = vmatprep.subr.bf16.mxu0 0
      %3059 = vmatpush1.bf16.msra.mxu0 0
      %3060 = vmatprep.subr.bf16.mxu0 0
      %3061 = vmatpush1.bf16.msra.mxu0 0
      %3062 = vmatprep.subr.bf16.mxu0 0
      %3063 = vmatpush1.bf16.msra.mxu0 0
      %3064 = vmatprep.mubr.bf16.mxu0 0
      %3065 = vmatmul.mubr.bf16.gmra.mrb[0].mxu0 %v2982
      %v3066 = vpop.f32.mrb[0].mxu0
      %v3067 = vadd.f32 0.0, %v3066
      %v3068 = vpop.f32.mrb[0].mxu0
      %v3069 = vpop.f32.mrb[0].mxu0
      %v3070 = vadd.f32 0.0, %v3069
      %v3071 = vpop.f32.mrb[0].mxu0
      %3072 = vmatprep.mubr.bf16.mxu0 0
      %3073 = vmatmul.mubr.bf16.gmra.mrb[0].mxu0 %v2985
      %v3074 = vpop.f32.mrb[0].mxu0
      %v3075 = vadd.f32 0.0, %v3074
      %v3076 = vpop.f32.mrb[0].mxu0
      %v3077 = vpop.f32.mrb[0].mxu0
      %v3078 = vadd.f32 0.0, %v3077
      %v3079 = vpop.f32.mrb[0].mxu0
      %3080 = vmatprep.mubr.bf16.mxu0 0
      %3081 = vmatmul.mubr.bf16.gmra.mrb[0].mxu0 %v2988
      %v3082 = vpop.f32.mrb[0].mxu0
      %v3083 = vadd.f32 0.0, %v3082
      %v3084 = vpop.f32.mrb[0].mxu0
      %v3085 = vpop.f32.mrb[0].mxu0
      %v3086 = vadd.f32 0.0, %v3085
      %v3087 = vpop.f32.mrb[0].mxu0
      %3088 = vmatprep.mubr.bf16.mxu0 0
      %3089 = vmatmul.mubr.bf16.gmra.mrb[0].mxu0 %v2991
      %v3090 = vpop.f32.mrb[0].mxu0
      %v3091 = vadd.f32 0.0, %v3090
      %v3092 = vpop.f32.mrb[0].mxu0
      %v3093 = vpop.f32.mrb[0].mxu0
      %v3094 = vadd.f32 0.0, %v3093
      %v3095 = vpop.f32.mrb[0].mxu0
      %3096 = vmatprep.mubr.bf16.mxu0 0
      %3097 = vmatmul.mubr.bf16.gmra.mrb[0].mxu0 %v2994
      %v3098 = vpop.f32.mrb[0].mxu0
      %v3099 = vadd.f32 0.0, %v3098
      %v3100 = vpop.f32.mrb[0].mxu0
      %v3101 = vpop.f32.mrb[0].mxu0
      %v3102 = vadd.f32 0.0, %v3101
      %v3103 = vpop.f32.mrb[0].mxu0
      %3104 = vmatprep.mubr.bf16.mxu0 0
      %3105 = vmatmul.mubr.bf16.gmra.mrb[0].mxu0 %v2997
      %v3106 = vpop.f32.mrb[0].mxu0
      %v3107 = vadd.f32 0.0, %v3106
      %v3108 = vpop.f32.mrb[0].mxu0
      %v3109 = vpop.f32.mrb[0].mxu0
      %v3110 = vadd.f32 0.0, %v3109
      %v3111 = vpop.f32.mrb[0].mxu0
      %3112 = vmatprep.mubr.bf16.mxu0 0
      %3113 = vmatmul.mubr.bf16.gmra.mrb[0].mxu0 %v3000
      %v3114 = vpop.f32.mrb[0].mxu0
      %v3115 = vadd.f32 0.0, %v3114
      %v3116 = vpop.f32.mrb[0].mxu0
      %v3117 = vpop.f32.mrb[0].mxu0
      %v3118 = vadd.f32 0.0, %v3117
      %v3119 = vpop.f32.mrb[0].mxu0
      %3120 = vmatprep.mubr.bf16.mxu0 0
      %3121 = vmatmul.mubr.bf16.gmra.mrb[0].mxu0 %v3003
      %v3122 = vpop.f32.mrb[0].mxu0
      %v3123 = vadd.f32 0.0, %v3122
      %v3124 = vpop.f32.mrb[0].mxu0
      %v3125 = vpop.f32.mrb[0].mxu0
      %v3126 = vadd.f32 0.0, %v3125
      %v3127 = vpop.f32.mrb[0].mxu0
      %3128 = vmatprep.mubr.bf16.mxu0 0
      %3129 = vmatmul.mubr.bf16.gmra.mrb[0].mxu0 %v3006
      %v3130 = vpop.f32.mrb[0].mxu0
      %v3131 = vadd.f32 0.0, %v3130
      %v3132 = vpop.f32.mrb[0].mxu0
      %v3133 = vpop.f32.mrb[0].mxu0
      %v3134 = vadd.f32 0.0, %v3133
      %v3135 = vpop.f32.mrb[0].mxu0
      %3136 = vmatprep.mubr.bf16.mxu0 0
      %3137 = vmatmul.mubr.bf16.gmra.mrb[0].mxu0 %v3009
      %v3138 = vpop.f32.mrb[0].mxu0
      %v3139 = vadd.f32 0.0, %v3138
      %v3140 = vpop.f32.mrb[0].mxu0
      %v3141 = vpop.f32.mrb[0].mxu0
      %v3142 = vadd.f32 0.0, %v3141
      %v3143 = vpop.f32.mrb[0].mxu0
      %3144 = vmatprep.mubr.bf16.mxu0 0
      %3145 = vmatmul.mubr.bf16.gmra.mrb[0].mxu0 %v3012
      %v3146 = vpop.f32.mrb[0].mxu0
      %v3147 = vadd.f32 0.0, %v3146
      %v3148 = vpop.f32.mrb[0].mxu0
      %v3149 = vpop.f32.mrb[0].mxu0
      %v3150 = vadd.f32 0.0, %v3149
      %v3151 = vpop.f32.mrb[0].mxu0
      %3152 = vmatprep.mubr.bf16.mxu0 0
      %3153 = vmatmul.mubr.bf16.gmra.mrb[0].mxu0 %v3015
      %v3154 = vpop.f32.mrb[0].mxu0
      %v3155 = vadd.f32 0.0, %v3154
      %v3156 = vpop.f32.mrb[0].mxu0
      %v3157 = vpop.f32.mrb[0].mxu0
      %v3158 = vadd.f32 0.0, %v3157
      %v3159 = vpop.f32.mrb[0].mxu0
      %3160 = vmatprep.mubr.bf16.mxu0 0
      %3161 = vmatmul.mubr.bf16.gmra.mrb[0].mxu0 %v3018
      %v3162 = vpop.f32.mrb[0].mxu0
      %v3163 = vadd.f32 0.0, %v3162
      %v3164 = vpop.f32.mrb[0].mxu0
      %v3165 = vpop.f32.mrb[0].mxu0
      %v3166 = vadd.f32 0.0, %v3165
      %v3167 = vpop.f32.mrb[0].mxu0
      %3168 = vmatprep.mubr.bf16.mxu0 0
      %3169 = vmatmul.mubr.bf16.gmra.mrb[0].mxu0 %v3021
      %v3170 = vpop.f32.mrb[0].mxu0
      %v3171 = vadd.f32 0.0, %v3170
      %v3172 = vpop.f32.mrb[0].mxu0
      %v3173 = vpop.f32.mrb[0].mxu0
      %v3174 = vadd.f32 0.0, %v3173
      %v3175 = vpop.f32.mrb[0].mxu0
      %3176 = vmatprep.mubr.bf16.mxu0 0
      %3177 = vmatmul.mubr.bf16.gmra.mrb[0].mxu0 %v3024
      %v3178 = vpop.f32.mrb[0].mxu0
      %v3179 = vadd.f32 0.0, %v3178
      %v3180 = vpop.f32.mrb[0].mxu0
      %v3181 = vpop.f32.mrb[0].mxu0
      %v3182 = vadd.f32 0.0, %v3181
      %v3183 = vpop.f32.mrb[0].mxu0
      %3184 = vmatprep.mubr.bf16.mxu0 0
      %3185 = vmatmul.mubr.bf16.gmra.mrb[0].mxu0 %v3027
      %v3186 = vpop.f32.mrb[0].mxu0
      %v3187 = vadd.f32 0.0, %v3186
      %v3188 = vpop.f32.mrb[0].mxu0
      %v3189 = vpop.f32.mrb[0].mxu0
      %v3190 = vadd.f32 0.0, %v3189
      %v3191 = vpop.f32.mrb[0].mxu0
      %3192 = vdwg.mxu0
      %v3193 = vadd.f32 %v2700, %v3067
      %v3194 = vadd.f32 %v2701, %v3070
      %v3195 = vadd.f32 %v2702, %v3075
      %v3196 = vadd.f32 %v2703, %v3078
      %v3197 = vadd.f32 %v2704, %v3083
      %v3198 = vadd.f32 %v2705, %v3086
      %v3199 = vadd.f32 %v2706, %v3091
      %v3200 = vadd.f32 %v2707, %v3094
      %v3201 = vadd.f32 %v2708, %v3099
      %v3202 = vadd.f32 %v2709, %v3102
      %v3203 = vadd.f32 %v2710, %v3107
      %v3204 = vadd.f32 %v2711, %v3110
      %v3205 = vadd.f32 %v2712, %v3115
      %v3206 = vadd.f32 %v2713, %v3118
      %v3207 = vadd.f32 %v2714, %v3123
      %v3208 = vadd.f32 %v2715, %v3126
      %v3209 = vadd.f32 %v2716, %v3131
      %v3210 = vadd.f32 %v2717, %v3134
      %v3211 = vadd.f32 %v2718, %v3139
      %v3212 = vadd.f32 %v2719, %v3142
      %v3213 = vadd.f32 %v2720, %v3147
      %v3214 = vadd.f32 %v2721, %v3150
      %v3215 = vadd.f32 %v2722, %v3155
      %v3216 = vadd.f32 %v2723, %v3158
      %v3217 = vadd.f32 %v2724, %v3163
      %v3218 = vadd.f32 %v2725, %v3166
      %v3219 = vadd.f32 %v2726, %v3171
      %v3220 = vadd.f32 %v2727, %v3174
      %v3221 = vadd.f32 %v2728, %v3179
      %v3222 = vadd.f32 %v2729, %v3182
      %v3223 = vadd.f32 %v2730, %v3187
      %v3224 = vadd.f32 %v2731, %v3190
      %v3225 = vld [vmem:[%s327 + $0x14] sm:$0xe]
      %v3226 = vld [vmem:[%s1 + $0x20] sm:$0xf]
      %v3228 = vunpack.c.l.b16 %v3225
      %v3229 = vpack.c.b16 %v2800, %v3228
      %v3230 = vrot.slane %v3229, 1
      %v3231 = vrot.slane %v2833, 1
      %v3232 = vsel %vm1017, %v3230, %v3231
      %v3233 = vrot.slane %v2834, 1
      %v3234 = vsel %vm1017, %v3231, %v3233
      %v3235 = vrot.slane %v2835, 1
      %v3236 = vsel %vm1017, %v3233, %v3235
      %v3237 = vrot.slane %v2836, 1
      %v3238 = vsel %vm1017, %v3235, %v3237
      %v3239 = vrot.slane %v2837, 1
      %v3240 = vsel %vm1017, %v3237, %v3239
      %v3241 = vrot.slane %v2838, 1
      %v3242 = vsel %vm1017, %v3239, %v3241
      %v3243 = vrot.slane %v2839, 1
      %v3244 = vsel %vm1017, %v3241, %v3243
      %v3245 = vrot.slane %v2840, 1
      %v3246 = vsel %vm1017, %v3243, %v3245
      %v3247 = vrot.slane %v2841, 1
      %v3248 = vsel %vm1017, %v3245, %v3247
      %v3249 = vrot.slane %v2842, 1
      %v3250 = vsel %vm1017, %v3247, %v3249
      %v3251 = vrot.slane %v2843, 1
      %v3252 = vsel %vm1017, %v3249, %v3251
      %v3253 = vrot.slane %v2844, 1
      %v3254 = vsel %vm1017, %v3251, %v3253
      %v3255 = vrot.slane %v2845, 1
      %v3256 = vsel %vm1017, %v3253, %v3255
      %v3257 = vrot.slane %v2846, 1
      %v3258 = vsel %vm1017, %v3255, %v3257
      %v3259 = vrot.slane %v2847, 1
      %v3260 = vsel %vm1017, %v3257, %v3259
      %v3261 = vrot.slane %v2848, 1
      %v3262 = vsel %vm1017, %v3259, %v3261
      %v3264 = vsel %vm602, %v3232, 0
      %v3267 = vsel %vm602, %v3234, 0
      %v3270 = vsel %vm602, %v3236, 0
      %v3273 = vsel %vm602, %v3238, 0
      %v3276 = vsel %vm602, %v3240, 0
      %v3279 = vsel %vm602, %v3242, 0
      %v3282 = vsel %vm602, %v3244, 0
      %v3285 = vsel %vm602, %v3246, 0
      %v3288 = vsel %vm602, %v3248, 0
      %v3291 = vsel %vm602, %v3250, 0
      %v3294 = vsel %vm602, %v3252, 0
      %v3297 = vsel %vm602, %v3254, 0
      %v3300 = vsel %vm602, %v3256, 0
      %v3303 = vsel %vm602, %v3258, 0
      %v3306 = vsel %vm602, %v3260, 0
      %v3309 = vsel %vm602, %v3262, 0
      %v3312 = vsel %vm651, %v3226, 0
      %3314 = vmatprep.subr.bf16.mxu0 0
      %3315 = vmatpush1.bf16.msra.mxu0 %v3312
      %3316 = vmatprep.subr.bf16.mxu0 0
      %3317 = vmatpush1.bf16.msra.mxu0 0
      %3318 = vmatprep.subr.bf16.mxu0 0
      %3319 = vmatpush1.bf16.msra.mxu0 0
      %3320 = vmatprep.subr.bf16.mxu0 0
      %3321 = vmatpush1.bf16.msra.mxu0 0
      %3322 = vmatprep.subr.bf16.mxu0 0
      %3323 = vmatpush1.bf16.msra.mxu0 0
      %3324 = vmatprep.subr.bf16.mxu0 0
      %3325 = vmatpush1.bf16.msra.mxu0 0
      %3326 = vmatprep.subr.bf16.mxu0 0
      %3327 = vmatpush1.bf16.msra.mxu0 0
      %3328 = vmatprep.subr.bf16.mxu0 0
      %3329 = vmatpush1.bf16.msra.mxu0 0
      %3330 = vmatprep.subr.bf16.mxu0 0
      %3331 = vmatpush1.bf16.msra.mxu0 0
      %3332 = vmatprep.subr.bf16.mxu0 0
      %3333 = vmatpush1.bf16.msra.mxu0 0
      %3334 = vmatprep.subr.bf16.mxu0 0
      %3335 = vmatpush1.bf16.msra.mxu0 0
      %3336 = vmatprep.subr.bf16.mxu0 0
      %3337 = vmatpush1.bf16.msra.mxu0 0
      %3338 = vmatprep.subr.bf16.mxu0 0
      %3339 = vmatpush1.bf16.msra.mxu0 0
      %3340 = vmatprep.subr.bf16.mxu0 0
      %3341 = vmatpush1.bf16.msra.mxu0 0
      %3342 = vmatprep.subr.bf16.mxu0 0
      %3343 = vmatpush1.bf16.msra.mxu0 0
      %3344 = vmatprep.subr.bf16.mxu0 0
      %3345 = vmatpush1.bf16.msra.mxu0 0
      %3346 = vmatprep.mubr.bf16.mxu0 0
      %3347 = vmatmul.mubr.bf16.gmra.mrb[0].mxu0 %v3264
      %v3348 = vpop.f32.mrb[0].mxu0
      %v3349 = vadd.f32 0.0, %v3348
      %v3350 = vpop.f32.mrb[0].mxu0
      %v3351 = vpop.f32.mrb[0].mxu0
      %v3352 = vadd.f32 0.0, %v3351
      %v3353 = vpop.f32.mrb[0].mxu0
      %3354 = vmatprep.mubr.bf16.mxu0 0
      %3355 = vmatmul.mubr.bf16.gmra.mrb[0].mxu0 %v3267
      %v3356 = vpop.f32.mrb[0].mxu0
      %v3357 = vadd.f32 0.0, %v3356
      %v3358 = vpop.f32.mrb[0].mxu0
      %v3359 = vpop.f32.mrb[0].mxu0
      %v3360 = vadd.f32 0.0, %v3359
      %v3361 = vpop.f32.mrb[0].mxu0
      %3362 = vmatprep.mubr.bf16.mxu0 0
      %3363 = vmatmul.mubr.bf16.gmra.mrb[0].mxu0 %v3270
      %v3364 = vpop.f32.mrb[0].mxu0
      %v3365 = vadd.f32 0.0, %v3364
      %v3366 = vpop.f32.mrb[0].mxu0
      %v3367 = vpop.f32.mrb[0].mxu0
      %v3368 = vadd.f32 0.0, %v3367
      %v3369 = vpop.f32.mrb[0].mxu0
      %3370 = vmatprep.mubr.bf16.mxu0 0
      %3371 = vmatmul.mubr.bf16.gmra.mrb[0].mxu0 %v3273
      %v3372 = vpop.f32.mrb[0].mxu0
      %v3373 = vadd.f32 0.0, %v3372
      %v3374 = vpop.f32.mrb[0].mxu0
      %v3375 = vpop.f32.mrb[0].mxu0
      %v3376 = vadd.f32 0.0, %v3375
      %v3377 = vpop.f32.mrb[0].mxu0
      %3378 = vmatprep.mubr.bf16.mxu0 0
      %3379 = vmatmul.mubr.bf16.gmra.mrb[0].mxu0 %v3276
      %v3380 = vpop.f32.mrb[0].mxu0
      %v3381 = vadd.f32 0.0, %v3380
      %v3382 = vpop.f32.mrb[0].mxu0
      %v3383 = vpop.f32.mrb[0].mxu0
      %v3384 = vadd.f32 0.0, %v3383
      %v3385 = vpop.f32.mrb[0].mxu0
      %3386 = vmatprep.mubr.bf16.mxu0 0
      %3387 = vmatmul.mubr.bf16.gmra.mrb[0].mxu0 %v3279
      %v3388 = vpop.f32.mrb[0].mxu0
      %v3389 = vadd.f32 0.0, %v3388
      %v3390 = vpop.f32.mrb[0].mxu0
      %v3391 = vpop.f32.mrb[0].mxu0
      %v3392 = vadd.f32 0.0, %v3391
      %v3393 = vpop.f32.mrb[0].mxu0
      %3394 = vmatprep.mubr.bf16.mxu0 0
      %3395 = vmatmul.mubr.bf16.gmra.mrb[0].mxu0 %v3282
      %v3396 = vpop.f32.mrb[0].mxu0
      %v3397 = vadd.f32 0.0, %v3396
      %v3398 = vpop.f32.mrb[0].mxu0
      %v3399 = vpop.f32.mrb[0].mxu0
      %v3400 = vadd.f32 0.0, %v3399
      %v3401 = vpop.f32.mrb[0].mxu0
      %3402 = vmatprep.mubr.bf16.mxu0 0
      %3403 = vmatmul.mubr.bf16.gmra.mrb[0].mxu0 %v3285
      %v3404 = vpop.f32.mrb[0].mxu0
      %v3405 = vadd.f32 0.0, %v3404
      %v3406 = vpop.f32.mrb[0].mxu0
      %v3407 = vpop.f32.mrb[0].mxu0
      %v3408 = vadd.f32 0.0, %v3407
      %v3409 = vpop.f32.mrb[0].mxu0
      %3410 = vmatprep.mubr.bf16.mxu0 0
      %3411 = vmatmul.mubr.bf16.gmra.mrb[0].mxu0 %v3288
      %v3412 = vpop.f32.mrb[0].mxu0
      %v3413 = vadd.f32 0.0, %v3412
      %v3414 = vpop.f32.mrb[0].mxu0
      %v3415 = vpop.f32.mrb[0].mxu0
      %v3416 = vadd.f32 0.0, %v3415
      %v3417 = vpop.f32.mrb[0].mxu0
      %3418 = vmatprep.mubr.bf16.mxu0 0
      %3419 = vmatmul.mubr.bf16.gmra.mrb[0].mxu0 %v3291
      %v3420 = vpop.f32.mrb[0].mxu0
      %v3421 = vadd.f32 0.0, %v3420
      %v3422 = vpop.f32.mrb[0].mxu0
      %v3423 = vpop.f32.mrb[0].mxu0
      %v3424 = vadd.f32 0.0, %v3423
      %v3425 = vpop.f32.mrb[0].mxu0
      %3426 = vmatprep.mubr.bf16.mxu0 0
      %3427 = vmatmul.mubr.bf16.gmra.mrb[0].mxu0 %v3294
      %v3428 = vpop.f32.mrb[0].mxu0
      %v3429 = vadd.f32 0.0, %v3428
      %v3430 = vpop.f32.mrb[0].mxu0
      %v3431 = vpop.f32.mrb[0].mxu0
      %v3432 = vadd.f32 0.0, %v3431
      %v3433 = vpop.f32.mrb[0].mxu0
      %3434 = vmatprep.mubr.bf16.mxu0 0
      %3435 = vmatmul.mubr.bf16.gmra.mrb[0].mxu0 %v3297
      %v3436 = vpop.f32.mrb[0].mxu0
      %v3437 = vadd.f32 0.0, %v3436
      %v3438 = vpop.f32.mrb[0].mxu0
      %v3439 = vpop.f32.mrb[0].mxu0
      %v3440 = vadd.f32 0.0, %v3439
      %v3441 = vpop.f32.mrb[0].mxu0
      %3442 = vmatprep.mubr.bf16.mxu0 0
      %3443 = vmatmul.mubr.bf16.gmra.mrb[0].mxu0 %v3300
      %v3444 = vpop.f32.mrb[0].mxu0
      %v3445 = vadd.f32 0.0, %v3444
      %v3446 = vpop.f32.mrb[0].mxu0
      %v3447 = vpop.f32.mrb[0].mxu0
      %v3448 = vadd.f32 0.0, %v3447
      %v3449 = vpop.f32.mrb[0].mxu0
      %3450 = vmatprep.mubr.bf16.mxu0 0
      %3451 = vmatmul.mubr.bf16.gmra.mrb[0].mxu0 %v3303
      %v3452 = vpop.f32.mrb[0].mxu0
      %v3453 = vadd.f32 0.0, %v3452
      %v3454 = vpop.f32.mrb[0].mxu0
      %v3455 = vpop.f32.mrb[0].mxu0
      %v3456 = vadd.f32 0.0, %v3455
      %v3457 = vpop.f32.mrb[0].mxu0
      %3458 = vmatprep.mubr.bf16.mxu0 0
      %3459 = vmatmul.mubr.bf16.gmra.mrb[0].mxu0 %v3306
      %v3460 = vpop.f32.mrb[0].mxu0
      %v3461 = vadd.f32 0.0, %v3460
      %v3462 = vpop.f32.mrb[0].mxu0
      %v3463 = vpop.f32.mrb[0].mxu0
      %v3464 = vadd.f32 0.0, %v3463
      %v3465 = vpop.f32.mrb[0].mxu0
      %3466 = vmatprep.mubr.bf16.mxu0 0
      %3467 = vmatmul.mubr.bf16.gmra.mrb[0].mxu0 %v3309
      %v3468 = vpop.f32.mrb[0].mxu0
      %v3469 = vadd.f32 0.0, %v3468
      %v3470 = vpop.f32.mrb[0].mxu0
      %v3471 = vpop.f32.mrb[0].mxu0
      %v3472 = vadd.f32 0.0, %v3471
      %v3473 = vpop.f32.mrb[0].mxu0
      %3474 = vdwg.mxu0
      %v3475 = vadd.f32 %v3193, %v3349
      %v3476 = vadd.f32 %v3194, %v3352
      %v3477 = vadd.f32 %v3195, %v3357
      %v3478 = vadd.f32 %v3196, %v3360
      %v3479 = vadd.f32 %v3197, %v3365
      %v3480 = vadd.f32 %v3198, %v3368
      %v3481 = vadd.f32 %v3199, %v3373
      %v3482 = vadd.f32 %v3200, %v3376
      %v3483 = vadd.f32 %v3201, %v3381
      %v3484 = vadd.f32 %v3202, %v3384
      %v3485 = vadd.f32 %v3203, %v3389
      %v3486 = vadd.f32 %v3204, %v3392
      %v3487 = vadd.f32 %v3205, %v3397
      %v3488 = vadd.f32 %v3206, %v3400
      %v3489 = vadd.f32 %v3207, %v3405
      %v3490 = vadd.f32 %v3208, %v3408
      %v3491 = vadd.f32 %v3209, %v3413
      %v3492 = vadd.f32 %v3210, %v3416
      %v3493 = vadd.f32 %v3211, %v3421
      %v3494 = vadd.f32 %v3212, %v3424
      %v3495 = vadd.f32 %v3213, %v3429
      %v3496 = vadd.f32 %v3214, %v3432
      %v3497 = vadd.f32 %v3215, %v3437
      %v3498 = vadd.f32 %v3216, %v3440
      %v3499 = vadd.f32 %v3217, %v3445
      %v3500 = vadd.f32 %v3218, %v3448
      %v3501 = vadd.f32 %v3219, %v3453
      %v3502 = vadd.f32 %v3220, %v3456
      %v3503 = vadd.f32 %v3221, %v3461
      %v3504 = vadd.f32 %v3222, %v3464
      %v3505 = vadd.f32 %v3223, %v3469
      %v3506 = vadd.f32 %v3224, %v3472
      %v3508 = vlaneseq
      %v3509 = vshrl.u32 %v3508, 7
      %v3510 = vsub.s32 0, %v3509
      %v3511 = vrot.slane %v350, %v3510
      %v3513 = vadd.f32 %v3475, %v3511
      %v3514 = vadd.f32 %v3476, %v3511
      %v3515 = vadd.f32 %v3477, %v3511
      %v3516 = vadd.f32 %v3478, %v3511
      %v3517 = vadd.f32 %v3479, %v3511
      %v3518 = vadd.f32 %v3480, %v3511
      %v3519 = vadd.f32 %v3481, %v3511
      %v3520 = vadd.f32 %v3482, %v3511
      %v3521 = vadd.f32 %v3483, %v3511
      %v3522 = vadd.f32 %v3484, %v3511
      %v3523 = vadd.f32 %v3485, %v3511
      %v3524 = vadd.f32 %v3486, %v3511
      %v3525 = vadd.f32 %v3487, %v3511
      %v3526 = vadd.f32 %v3488, %v3511
      %v3527 = vadd.f32 %v3489, %v3511
      %v3528 = vadd.f32 %v3490, %v3511
      %v3529 = vadd.f32 %v3491, %v3511
      %v3530 = vadd.f32 %v3492, %v3511
      %v3531 = vadd.f32 %v3493, %v3511
      %v3532 = vadd.f32 %v3494, %v3511
      %v3533 = vadd.f32 %v3495, %v3511
      %v3534 = vadd.f32 %v3496, %v3511
      %v3535 = vadd.f32 %v3497, %v3511
      %v3536 = vadd.f32 %v3498, %v3511
      %v3537 = vadd.f32 %v3499, %v3511
      %v3538 = vadd.f32 %v3500, %v3511
      %v3539 = vadd.f32 %v3501, %v3511
      %v3540 = vadd.f32 %v3502, %v3511
      %v3541 = vadd.f32 %v3503, %v3511
      %v3542 = vadd.f32 %v3504, %v3511
      %v3543 = vadd.f32 %v3505, %v3511
      %v3544 = vadd.f32 %v3506, %v3511
      %v3545 = vmax.f32 %v3513, 0.0
      %v3546 = vmax.f32 %v3514, 0.0
      %v3547 = vmax.f32 %v3515, 0.0
      %v3548 = vmax.f32 %v3516, 0.0
      %v3549 = vmax.f32 %v3517, 0.0
      %v3550 = vmax.f32 %v3518, 0.0
      %v3551 = vmax.f32 %v3519, 0.0
      %v3552 = vmax.f32 %v3520, 0.0
      %v3553 = vmax.f32 %v3521, 0.0
      %v3554 = vmax.f32 %v3522, 0.0
      %v3555 = vmax.f32 %v3523, 0.0
      %v3556 = vmax.f32 %v3524, 0.0
      %v3557 = vmax.f32 %v3525, 0.0
      %v3558 = vmax.f32 %v3526, 0.0
      %v3559 = vmax.f32 %v3527, 0.0
      %v3560 = vmax.f32 %v3528, 0.0
      %v3561 = vmax.f32 %v3529, 0.0
      %v3562 = vmax.f32 %v3530, 0.0
      %v3563 = vmax.f32 %v3531, 0.0
      %v3564 = vmax.f32 %v3532, 0.0
      %v3565 = vmax.f32 %v3533, 0.0
      %v3566 = vmax.f32 %v3534, 0.0
      %v3567 = vmax.f32 %v3535, 0.0
      %v3568 = vmax.f32 %v3536, 0.0
      %v3569 = vmax.f32 %v3537, 0.0
      %v3570 = vmax.f32 %v3538, 0.0
      %v3571 = vmax.f32 %v3539, 0.0
      %v3572 = vmax.f32 %v3540, 0.0
      %v3573 = vmax.f32 %v3541, 0.0
      %v3574 = vmax.f32 %v3542, 0.0
      %v3575 = vmax.f32 %v3543, 0.0
      %v3576 = vmax.f32 %v3544, 0.0
      %vm3577 = vcmask 523264
      %3578 = vst.msk [vmem:[#allocation5] sm:$0xff] %vm3577, %v3545
      %3579 = vst.msk [vmem:[#allocation5 + $0x8] sm:$0xff] %vm3577, %v3546
      %3580 = vst.msk [vmem:[#allocation5 + $0x10] sm:$0xff] %vm3577, %v3547
      %3581 = vst.msk [vmem:[#allocation5 + $0x18] sm:$0xff] %vm3577, %v3548
      %3582 = vst.msk [vmem:[#allocation5 + $0x20] sm:$0xff] %vm3577, %v3549
      %3583 = vst.msk [vmem:[#allocation5 + $0x28] sm:$0xff] %vm3577, %v3550
      %3584 = vst.msk [vmem:[#allocation5 + $0x30] sm:$0xff] %vm3577, %v3551
      %3585 = vst.msk [vmem:[#allocation5 + $0x38] sm:$0xff] %vm3577, %v3552
      %3586 = vst.msk [vmem:[#allocation5 + $0x40] sm:$0xff] %vm3577, %v3553
      %3587 = vst.msk [vmem:[#allocation5 + $0x48] sm:$0xff] %vm3577, %v3554
      %3588 = vst.msk [vmem:[#allocation5 + $0x50] sm:$0xff] %vm3577, %v3555
      %3589 = vst.msk [vmem:[#allocation5 + $0x58] sm:$0xff] %vm3577, %v3556
      %3590 = vst.msk [vmem:[#allocation5 + $0x60] sm:$0xff] %vm3577, %v3557
      %3591 = vst.msk [vmem:[#allocation5 + $0x68] sm:$0xff] %vm3577, %v3558
      %3592 = vst.msk [vmem:[#allocation5 + $0x70] sm:$0xff] %vm3577, %v3559
      %3593 = vst.msk [vmem:[#allocation5 + $0x78] sm:$0xff] %vm3577, %v3560
      %3594 = vst.msk [vmem:[#allocation5 + $0x80] sm:$0xff] %vm3577, %v3561
      %3595 = vst.msk [vmem:[#allocation5 + $0x88] sm:$0xff] %vm3577, %v3562
      %3596 = vst.msk [vmem:[#allocation5 + $0x90] sm:$0xff] %vm3577, %v3563
      %3597 = vst.msk [vmem:[#allocation5 + $0x98] sm:$0xff] %vm3577, %v3564
      %3598 = vst.msk [vmem:[#allocation5 + $0xa0] sm:$0xff] %vm3577, %v3565
      %3599 = vst.msk [vmem:[#allocation5 + $0xa8] sm:$0xff] %vm3577, %v3566
      %3600 = vst.msk [vmem:[#allocation5 + $0xb0] sm:$0xff] %vm3577, %v3567
      %3601 = vst.msk [vmem:[#allocation5 + $0xb8] sm:$0xff] %vm3577, %v3568
      %3602 = vst.msk [vmem:[#allocation5 + $0xc0] sm:$0xff] %vm3577, %v3569
      %3603 = vst.msk [vmem:[#allocation5 + $0xc8] sm:$0xff] %vm3577, %v3570
      %3604 = vst.msk [vmem:[#allocation5 + $0xd0] sm:$0xff] %vm3577, %v3571
      %3605 = vst.msk [vmem:[#allocation5 + $0xd8] sm:$0xff] %vm3577, %v3572
      %3606 = vst.msk [vmem:[#allocation5 + $0xe0] sm:$0xff] %vm3577, %v3573
      %3607 = vst.msk [vmem:[#allocation5 + $0xe8] sm:$0xff] %vm3577, %v3574
      %3608 = vst.msk [vmem:[#allocation5 + $0xf0] sm:$0xff] %vm3577, %v3575
      %3609 = vst.msk [vmem:[#allocation5 + $0xf8] sm:$0xff] %vm3577, %v3576
      %v3610 = vld [vmem:[%s327 + $0x80] sm:$0xf]
      %v3611 = vld [vmem:[%s327 + $0x84] sm:$0xf]
      %v3612 = vld [vmem:[%s327 + $0x88] sm:$0xf]
      %v3613 = vld [vmem:[%s327 + $0x8c] sm:$0xf]
      %v3614 = vld [vmem:[%s327 + $0x90] sm:$0xf]
      %v3615 = vld [vmem:[%s327 + $0x94] sm:$0xf]
      %v3616 = vld [vmem:[%s327 + $0x98] sm:$0xf]
      %v3617 = vld [vmem:[%s327 + $0x9c] sm:$0xf]
      %v3618 = vld [vmem:[%s327 + $0xa0] sm:$0xf]
      %v3619 = vld [vmem:[%s327 + $0xa4] sm:$0xf]
      %v3620 = vld [vmem:[%s327 + $0xa8] sm:$0xf]
      %v3621 = vld [vmem:[%s327 + $0xac] sm:$0xf]
      %v3622 = vld [vmem:[%s327 + $0xb0] sm:$0x7]
      %v3623 = vld [vmem:[%s1] sm:$0xf]
      %v3624 = vld [vmem:[%s327 + $0xb0] sm:$0xf]
      %v3625 = vld [vmem:[%s1 + $0x4] sm:$0xf]
      %v3639 = vunpack.c.l.b16 %v3610
      %v3640 = vunpack.c.l.b16 %v3611
      %v3641 = vunpack.c.l.b16 %v3612
      %v3642 = vunpack.c.l.b16 %v3613
      %v3643 = vunpack.c.l.b16 %v3614
      %v3644 = vunpack.c.l.b16 %v3615
      %v3645 = vunpack.c.l.b16 %v3616
      %v3646 = vunpack.c.l.b16 %v3617
      %v3647 = vunpack.c.l.b16 %v3618
      %v3648 = vunpack.c.l.b16 %v3619
      %v3649 = vunpack.c.l.b16 %v3620
      %v3650 = vunpack.c.l.b16 %v3621
      %v3651 = vunpack.c.l.b16 %v3624
      %v3652 = vpack.c.b16 %v3640, %v3639
      %v3653 = vpack.c.b16 %v3642, %v3641
      %v3654 = vpack.c.b16 %v3644, %v3643
      %v3655 = vpack.c.b16 %v3646, %v3645
      %v3656 = vpack.c.b16 %v3648, %v3647
      %v3657 = vpack.c.b16 %v3650, %v3649
      %v3658 = vpack.c.b16 %v3651, %v3651
      %v3660 = vshrl.u32 %v3652, 16
      %v3662 = vshll.u32 %v3652, 16
      %v3664 = vrot.slane %v3662, 1
      %v3665 = vor.u32 %v3660, %v3664
      %v3667 = vshll.u32 %v3653, 16
      %v3669 = vrot.slane %v3667, 1
      %v3670 = vsel %vm469, %v3665, %v3669
      %v3671 = vshrl.u32 %v3653, 16
      %v3673 = vor.u32 %v3671, %v3669
      %v3675 = vshll.u32 %v3654, 16
      %v3677 = vrot.slane %v3675, 1
      %v3678 = vsel %vm469, %v3673, %v3677
      %v3679 = vshrl.u32 %v3654, 16
      %v3681 = vor.u32 %v3679, %v3677
      %v3683 = vshll.u32 %v3655, 16
      %v3685 = vrot.slane %v3683, 1
      %v3686 = vsel %vm469, %v3681, %v3685
      %v3687 = vshrl.u32 %v3655, 16
      %v3689 = vor.u32 %v3687, %v3685
      %v3691 = vshll.u32 %v3656, 16
      %v3693 = vrot.slane %v3691, 1
      %v3694 = vsel %vm469, %v3689, %v3693
      %v3695 = vshrl.u32 %v3656, 16
      %v3697 = vor.u32 %v3695, %v3693
      %v3699 = vshll.u32 %v3657, 16
      %v3701 = vrot.slane %v3699, 1
      %v3702 = vsel %vm469, %v3697, %v3701
      %v3703 = vshrl.u32 %v3657, 16
      %v3705 = vor.u32 %v3703, %v3701
      %v3707 = vshll.u32 %v3658, 16
      %v3709 = vrot.slane %v3707, 1
      %v3710 = vsel %vm469, %v3705, %v3709
      %v3711 = vshrl.u32 %v3658, 16
      %v3713 = vor.u32 %v3711, %v3709
      %v3715 = vsel %vm602, %v3670, 0
      %v3718 = vsel %vm602, %v3678, 0
      %v3721 = vsel %vm602, %v3686, 0
      %v3724 = vsel %vm602, %v3694, 0
      %v3727 = vsel %vm602, %v3702, 0
      %v3730 = vsel %vm602, %v3710, 0
      %v3733 = vsel %vm602, %v3713, 0
      %v3736 = vsel %vm651, %v3625, 0
      %3738 = vmatprep.subr.bf16.mxu0 0
      %3739 = vmatpush1.bf16.msra.mxu0 %v3736
      %3740 = vmatprep.subr.bf16.mxu0 0
      %3741 = vmatpush1.bf16.msra.mxu0 0
      %3742 = vmatprep.subr.bf16.mxu0 0
      %3743 = vmatpush1.bf16.msra.mxu0 0
      %3744 = vmatprep.subr.bf16.mxu0 0
      %3745 = vmatpush1.bf16.msra.mxu0 0
      %3746 = vmatprep.subr.bf16.mxu0 0
      %3747 = vmatpush1.bf16.msra.mxu0 0
      %3748 = vmatprep.subr.bf16.mxu0 0
      %3749 = vmatpush1.bf16.msra.mxu0 0
      %3750 = vmatprep.subr.bf16.mxu0 0
      %3751 = vmatpush1.bf16.msra.mxu0 0
      %3752 = vmatprep.subr.bf16.mxu0 0
      %3753 = vmatpush1.bf16.msra.mxu0 0
      %3754 = vmatprep.subr.bf16.mxu0 0
      %3755 = vmatpush1.bf16.msra.mxu0 0
      %3756 = vmatprep.subr.bf16.mxu0 0
      %3757 = vmatpush1.bf16.msra.mxu0 0
      %3758 = vmatprep.subr.bf16.mxu0 0
      %3759 = vmatpush1.bf16.msra.mxu0 0
      %3760 = vmatprep.subr.bf16.mxu0 0
      %3761 = vmatpush1.bf16.msra.mxu0 0
      %3762 = vmatprep.subr.bf16.mxu0 0
      %3763 = vmatpush1.bf16.msra.mxu0 0
      %3764 = vmatprep.subr.bf16.mxu0 0
      %3765 = vmatpush1.bf16.msra.mxu0 0
      %3766 = vmatprep.subr.bf16.mxu0 0
      %3767 = vmatpush1.bf16.msra.mxu0 0
      %3768 = vmatprep.subr.bf16.mxu0 0
      %3769 = vmatpush1.bf16.msra.mxu0 0
      %3770 = vmatprep.mubr.bf16.mxu0 0
      %3771 = vmatmul.mubr.bf16.gmra.mrb[0].mxu0 %v3715
      %v3772 = vpop.f32.mrb[0].mxu0
      %v3773 = vadd.f32 0.0, %v3772
      %v3774 = vpop.f32.mrb[0].mxu0
      %v3775 = vpop.f32.mrb[0].mxu0
      %v3776 = vadd.f32 0.0, %v3775
      %v3777 = vpop.f32.mrb[0].mxu0
      %3778 = vmatprep.mubr.bf16.mxu0 0
      %3779 = vmatmul.mubr.bf16.gmra.mrb[0].mxu0 %v3718
      %v3780 = vpop.f32.mrb[0].mxu0
      %v3781 = vadd.f32 0.0, %v3780
      %v3782 = vpop.f32.mrb[0].mxu0
      %v3783 = vpop.f32.mrb[0].mxu0
      %v3784 = vadd.f32 0.0, %v3783
      %v3785 = vpop.f32.mrb[0].mxu0
      %3786 = vmatprep.mubr.bf16.mxu0 0
      %3787 = vmatmul.mubr.bf16.gmra.mrb[0].mxu0 %v3721
      %v3788 = vpop.f32.mrb[0].mxu0
      %v3789 = vadd.f32 0.0, %v3788
      %v3790 = vpop.f32.mrb[0].mxu0
      %v3791 = vpop.f32.mrb[0].mxu0
      %v3792 = vadd.f32 0.0, %v3791
      %v3793 = vpop.f32.mrb[0].mxu0
      %3794 = vmatprep.mubr.bf16.mxu0 0
      %3795 = vmatmul.mubr.bf16.gmra.mrb[0].mxu0 %v3724
      %v3796 = vpop.f32.mrb[0].mxu0
      %v3797 = vadd.f32 0.0, %v3796
      %v3798 = vpop.f32.mrb[0].mxu0
      %v3799 = vpop.f32.mrb[0].mxu0
      %v3800 = vadd.f32 0.0, %v3799
      %v3801 = vpop.f32.mrb[0].mxu0
      %3802 = vmatprep.mubr.bf16.mxu0 0
      %3803 = vmatmul.mubr.bf16.gmra.mrb[0].mxu0 %v3727
      %v3804 = vpop.f32.mrb[0].mxu0
      %v3805 = vadd.f32 0.0, %v3804
      %v3806 = vpop.f32.mrb[0].mxu0
      %v3807 = vpop.f32.mrb[0].mxu0
      %v3808 = vadd.f32 0.0, %v3807
      %v3809 = vpop.f32.mrb[0].mxu0
      %3810 = vmatprep.mubr.bf16.mxu0 0
      %3811 = vmatmul.mubr.bf16.gmra.mrb[0].mxu0 %v3730
      %v3812 = vpop.f32.mrb[0].mxu0
      %v3813 = vadd.f32 0.0, %v3812
      %v3814 = vpop.f32.mrb[0].mxu0
      %v3815 = vpop.f32.mrb[0].mxu0
      %v3816 = vadd.f32 0.0, %v3815
      %v3817 = vpop.f32.mrb[0].mxu0
      %3818 = vmatprep.mubr.bf16.mxu0 0
      %3819 = vmatmul.mubr.bf16.gmra.mrb[0].mxu0 %v3733
      %v3820 = vpop.f32.mrb[0].mxu0
      %v3821 = vadd.f32 0.0, %v3820
      %v3822 = vpop.f32.mrb[0].mxu0
      %v3823 = vpop.f32.mrb[0].mxu0
      %v3824 = vpop.f32.mrb[0].mxu0
      %3825 = vdwg.mxu0
      %v3827 = vunpack.c.l.b16 %v3622
      %v3828 = vpack.c.b16 %v3827, %v3827
      %v3829 = vsel %vm602, %v3652, 0
      %v3831 = vsel %vm602, %v3653, 0
      %v3833 = vsel %vm602, %v3654, 0
      %v3835 = vsel %vm602, %v3655, 0
      %v3837 = vsel %vm602, %v3656, 0
      %v3839 = vsel %vm602, %v3657, 0
      %v3842 = vsel %vm602, %v3828, 0
      %v3845 = vsel %vm651, %v3623, 0
      %3847 = vmatprep.subr.bf16.mxu0 0
      %3848 = vmatpush1.bf16.msra.mxu0 %v3845
      %3849 = vmatprep.subr.bf16.mxu0 0
      %3850 = vmatpush1.bf16.msra.mxu0 0
      %3851 = vmatprep.subr.bf16.mxu0 0
      %3852 = vmatpush1.bf16.msra.mxu0 0
      %3853 = vmatprep.subr.bf16.mxu0 0
      %3854 = vmatpush1.bf16.msra.mxu0 0
      %3855 = vmatprep.subr.bf16.mxu0 0
      %3856 = vmatpush1.bf16.msra.mxu0 0
      %3857 = vmatprep.subr.bf16.mxu0 0
      %3858 = vmatpush1.bf16.msra.mxu0 0
      %3859 = vmatprep.subr.bf16.mxu0 0
      %3860 = vmatpush1.bf16.msra.mxu0 0
      %3861 = vmatprep.subr.bf16.mxu0 0
      %3862 = vmatpush1.bf16.msra.mxu0 0
      %3863 = vmatprep.subr.bf16.mxu0 0
      %3864 = vmatpush1.bf16.msra.mxu0 0
      %3865 = vmatprep.subr.bf16.mxu0 0
      %3866 = vmatpush1.bf16.msra.mxu0 0
      %3867 = vmatprep.subr.bf16.mxu0 0
      %3868 = vmatpush1.bf16.msra.mxu0 0
      %3869 = vmatprep.subr.bf16.mxu0 0
      %3870 = vmatpush1.bf16.msra.mxu0 0
      %3871 = vmatprep.subr.bf16.mxu0 0
      %3872 = vmatpush1.bf16.msra.mxu0 0
      %3873 = vmatprep.subr.bf16.mxu0 0
      %3874 = vmatpush1.bf16.msra.mxu0 0
      %3875 = vmatprep.subr.bf16.mxu0 0
      %3876 = vmatpush1.bf16.msra.mxu0 0
      %3877 = vmatprep.subr.bf16.mxu0 0
      %3878 = vmatpush1.bf16.msra.mxu0 0
      %3879 = vmatprep.mubr.bf16.mxu0 0
      %3880 = vmatmul.mubr.bf16.gmra.mrb[0].mxu0 %v3829
      %v3881 = vpop.f32.mrb[0].mxu0
      %v3882 = vadd.f32 %v3773, %v3881
      %v3883 = vpop.f32.mrb[0].mxu0
      %v3884 = vpop.f32.mrb[0].mxu0
      %v3885 = vadd.f32 %v3776, %v3884
      %v3886 = vpop.f32.mrb[0].mxu0
      %3887 = vmatprep.mubr.bf16.mxu0 0
      %3888 = vmatmul.mubr.bf16.gmra.mrb[0].mxu0 %v3831
      %v3889 = vpop.f32.mrb[0].mxu0
      %v3890 = vadd.f32 %v3781, %v3889
      %v3891 = vpop.f32.mrb[0].mxu0
      %v3892 = vpop.f32.mrb[0].mxu0
      %v3893 = vadd.f32 %v3784, %v3892
      %v3894 = vpop.f32.mrb[0].mxu0
      %3895 = vmatprep.mubr.bf16.mxu0 0
      %3896 = vmatmul.mubr.bf16.gmra.mrb[0].mxu0 %v3833
      %v3897 = vpop.f32.mrb[0].mxu0
      %v3898 = vadd.f32 %v3789, %v3897
      %v3899 = vpop.f32.mrb[0].mxu0
      %v3900 = vpop.f32.mrb[0].mxu0
      %v3901 = vadd.f32 %v3792, %v3900
      %v3902 = vpop.f32.mrb[0].mxu0
      %3903 = vmatprep.mubr.bf16.mxu0 0
      %3904 = vmatmul.mubr.bf16.gmra.mrb[0].mxu0 %v3835
      %v3905 = vpop.f32.mrb[0].mxu0
      %v3906 = vadd.f32 %v3797, %v3905
      %v3907 = vpop.f32.mrb[0].mxu0
      %v3908 = vpop.f32.mrb[0].mxu0
      %v3909 = vadd.f32 %v3800, %v3908
      %v3910 = vpop.f32.mrb[0].mxu0
      %3911 = vmatprep.mubr.bf16.mxu0 0
      %3912 = vmatmul.mubr.bf16.gmra.mrb[0].mxu0 %v3837
      %v3913 = vpop.f32.mrb[0].mxu0
      %v3914 = vadd.f32 %v3805, %v3913
      %v3915 = vpop.f32.mrb[0].mxu0
      %v3916 = vpop.f32.mrb[0].mxu0
      %v3917 = vadd.f32 %v3808, %v3916
      %v3918 = vpop.f32.mrb[0].mxu0
      %3919 = vmatprep.mubr.bf16.mxu0 0
      %3920 = vmatmul.mubr.bf16.gmra.mrb[0].mxu0 %v3839
      %v3921 = vpop.f32.mrb[0].mxu0
      %v3922 = vadd.f32 %v3813, %v3921
      %v3923 = vpop.f32.mrb[0].mxu0
      %v3924 = vpop.f32.mrb[0].mxu0
      %v3925 = vadd.f32 %v3816, %v3924
      %v3926 = vpop.f32.mrb[0].mxu0
      %3927 = vmatprep.mubr.bf16.mxu0 0
      %3928 = vmatmul.mubr.bf16.gmra.mrb[0].mxu0 %v3842
      %v3929 = vpop.f32.mrb[0].mxu0
      %v3930 = vadd.f32 %v3821, %v3929
      %v3931 = vpop.f32.mrb[0].mxu0
      %v3932 = vpop.f32.mrb[0].mxu0
      %v3933 = vpop.f32.mrb[0].mxu0
      %3934 = vdwg.mxu0
      %v3935 = vld [vmem:[%s327 + $0x80] sm:$0xe]
      %v3936 = vld [vmem:[%s1 + $0x8] sm:$0xf]
      %v3938 = vunpack.c.l.b16 %v3935
      %v3939 = vpack.c.b16 %v3640, %v3938
      %v3940 = vrot.slane %v3939, 1
      %v3941 = vrot.slane %v3653, 1
      %v3942 = vsel %vm1017, %v3940, %v3941
      %v3943 = vrot.slane %v3654, 1
      %v3944 = vsel %vm1017, %v3941, %v3943
      %v3945 = vrot.slane %v3655, 1
      %v3946 = vsel %vm1017, %v3943, %v3945
      %v3947 = vrot.slane %v3656, 1
      %v3948 = vsel %vm1017, %v3945, %v3947
      %v3949 = vrot.slane %v3657, 1
      %v3950 = vsel %vm1017, %v3947, %v3949
      %v3951 = vrot.slane %v3658, 1
      %v3952 = vsel %vm1017, %v3949, %v3951
      %v3954 = vsel %vm602, %v3942, 0
      %v3957 = vsel %vm602, %v3944, 0
      %v3960 = vsel %vm602, %v3946, 0
      %v3963 = vsel %vm602, %v3948, 0
      %v3966 = vsel %vm602, %v3950, 0
      %v3969 = vsel %vm602, %v3952, 0
      %v3972 = vsel %vm602, %v3951, 0
      %v3975 = vsel %vm651, %v3936, 0
      %3977 = vmatprep.subr.bf16.mxu0 0
      %3978 = vmatpush1.bf16.msra.mxu0 %v3975
      %3979 = vmatprep.subr.bf16.mxu0 0
      %3980 = vmatpush1.bf16.msra.mxu0 0
      %3981 = vmatprep.subr.bf16.mxu0 0
      %3982 = vmatpush1.bf16.msra.mxu0 0
      %3983 = vmatprep.subr.bf16.mxu0 0
      %3984 = vmatpush1.bf16.msra.mxu0 0
      %3985 = vmatprep.subr.bf16.mxu0 0
      %3986 = vmatpush1.bf16.msra.mxu0 0
      %3987 = vmatprep.subr.bf16.mxu0 0
      %3988 = vmatpush1.bf16.msra.mxu0 0
      %3989 = vmatprep.subr.bf16.mxu0 0
      %3990 = vmatpush1.bf16.msra.mxu0 0
      %3991 = vmatprep.subr.bf16.mxu0 0
      %3992 = vmatpush1.bf16.msra.mxu0 0
      %3993 = vmatprep.subr.bf16.mxu0 0
      %3994 = vmatpush1.bf16.msra.mxu0 0
      %3995 = vmatprep.subr.bf16.mxu0 0
      %3996 = vmatpush1.bf16.msra.mxu0 0
      %3997 = vmatprep.subr.bf16.mxu0 0
      %3998 = vmatpush1.bf16.msra.mxu0 0
      %3999 = vmatprep.subr.bf16.mxu0 0
      %4000 = vmatpush1.bf16.msra.mxu0 0
      %4001 = vmatprep.subr.bf16.mxu0 0
      %4002 = vmatpush1.bf16.msra.mxu0 0
      %4003 = vmatprep.subr.bf16.mxu0 0
      %4004 = vmatpush1.bf16.msra.mxu0 0
      %4005 = vmatprep.subr.bf16.mxu0 0
      %4006 = vmatpush1.bf16.msra.mxu0 0
      %4007 = vmatprep.subr.bf16.mxu0 0
      %4008 = vmatpush1.bf16.msra.mxu0 0
      %4009 = vmatprep.mubr.bf16.mxu0 0
      %4010 = vmatmul.mubr.bf16.gmra.mrb[0].mxu0 %v3954
      %v4011 = vpop.f32.mrb[0].mxu0
      %v4012 = vadd.f32 0.0, %v4011
      %v4013 = vpop.f32.mrb[0].mxu0
      %v4014 = vpop.f32.mrb[0].mxu0
      %v4015 = vadd.f32 0.0, %v4014
      %v4016 = vpop.f32.mrb[0].mxu0
      %4017 = vmatprep.mubr.bf16.mxu0 0
      %4018 = vmatmul.mubr.bf16.gmra.mrb[0].mxu0 %v3957
      %v4019 = vpop.f32.mrb[0].mxu0
      %v4020 = vadd.f32 0.0, %v4019
      %v4021 = vpop.f32.mrb[0].mxu0
      %v4022 = vpop.f32.mrb[0].mxu0
      %v4023 = vadd.f32 0.0, %v4022
      %v4024 = vpop.f32.mrb[0].mxu0
      %4025 = vmatprep.mubr.bf16.mxu0 0
      %4026 = vmatmul.mubr.bf16.gmra.mrb[0].mxu0 %v3960
      %v4027 = vpop.f32.mrb[0].mxu0
      %v4028 = vadd.f32 0.0, %v4027
      %v4029 = vpop.f32.mrb[0].mxu0
      %v4030 = vpop.f32.mrb[0].mxu0
      %v4031 = vadd.f32 0.0, %v4030
      %v4032 = vpop.f32.mrb[0].mxu0
      %4033 = vmatprep.mubr.bf16.mxu0 0
      %4034 = vmatmul.mubr.bf16.gmra.mrb[0].mxu0 %v3963
      %v4035 = vpop.f32.mrb[0].mxu0
      %v4036 = vadd.f32 0.0, %v4035
      %v4037 = vpop.f32.mrb[0].mxu0
      %v4038 = vpop.f32.mrb[0].mxu0
      %v4039 = vadd.f32 0.0, %v4038
      %v4040 = vpop.f32.mrb[0].mxu0
      %4041 = vmatprep.mubr.bf16.mxu0 0
      %4042 = vmatmul.mubr.bf16.gmra.mrb[0].mxu0 %v3966
      %v4043 = vpop.f32.mrb[0].mxu0
      %v4044 = vadd.f32 0.0, %v4043
      %v4045 = vpop.f32.mrb[0].mxu0
      %v4046 = vpop.f32.mrb[0].mxu0
      %v4047 = vadd.f32 0.0, %v4046
      %v4048 = vpop.f32.mrb[0].mxu0
      %4049 = vmatprep.mubr.bf16.mxu0 0
      %4050 = vmatmul.mubr.bf16.gmra.mrb[0].mxu0 %v3969
      %v4051 = vpop.f32.mrb[0].mxu0
      %v4052 = vadd.f32 0.0, %v4051
      %v4053 = vpop.f32.mrb[0].mxu0
      %v4054 = vpop.f32.mrb[0].mxu0
      %v4055 = vadd.f32 0.0, %v4054
      %v4056 = vpop.f32.mrb[0].mxu0
      %4057 = vmatprep.mubr.bf16.mxu0 0
      %4058 = vmatmul.mubr.bf16.gmra.mrb[0].mxu0 %v3972
      %v4059 = vpop.f32.mrb[0].mxu0
      %v4060 = vadd.f32 0.0, %v4059
      %v4061 = vpop.f32.mrb[0].mxu0
      %v4062 = vpop.f32.mrb[0].mxu0
      %v4063 = vpop.f32.mrb[0].mxu0
      %4064 = vdwg.mxu0
      %v4065 = vadd.f32 %v3882, %v4012
      %v4066 = vadd.f32 %v3885, %v4015
      %v4067 = vadd.f32 %v3890, %v4020
      %v4068 = vadd.f32 %v3893, %v4023
      %v4069 = vadd.f32 %v3898, %v4028
      %v4070 = vadd.f32 %v3901, %v4031
      %v4071 = vadd.f32 %v3906, %v4036
      %v4072 = vadd.f32 %v3909, %v4039
      %v4073 = vadd.f32 %v3914, %v4044
      %v4074 = vadd.f32 %v3917, %v4047
      %v4075 = vadd.f32 %v3922, %v4052
      %v4076 = vadd.f32 %v3925, %v4055
      %v4077 = vadd.f32 %v3930, %v4060
      %v4078 = vld [vmem:[%s327 + $0x88] sm:$0xc]
      %v4079 = vld [vmem:[%s327 + $0x8c] sm:$0xf]
      %v4080 = vld [vmem:[%s327 + $0x90] sm:$0xf]
      %v4081 = vld [vmem:[%s327 + $0x94] sm:$0xf]
      %v4082 = vld [vmem:[%s327 + $0x98] sm:$0xf]
      %v4083 = vld [vmem:[%s327 + $0x9c] sm:$0xf]
      %v4084 = vld [vmem:[%s327 + $0xa0] sm:$0xf]
      %v4085 = vld [vmem:[%s327 + $0xa4] sm:$0xf]
      %v4086 = vld [vmem:[%s327 + $0xa8] sm:$0xf]
      %v4087 = vld [vmem:[%s327 + $0xac] sm:$0xf]
      %v4088 = vld [vmem:[%s327 + $0xb0] sm:$0xf]
      %v4089 = vld [vmem:[%s327 + $0xb4] sm:$0xf]
      %v4090 = vld [vmem:[%s327 + $0xb8] sm:$0xf]
      %v4091 = vld [vmem:[%s327 + $0xbc] sm:$0x1]
      %v4092 = vld [vmem:[%s1 + $0xc] sm:$0xf]
      %v4107 = vunpack.c.l.b16 %v4078
      %v4108 = vunpack.c.l.b16 %v4079
      %v4109 = vunpack.c.l.b16 %v4080
      %v4110 = vunpack.c.l.b16 %v4081
      %v4111 = vunpack.c.l.b16 %v4082
      %v4112 = vunpack.c.l.b16 %v4083
      %v4113 = vunpack.c.l.b16 %v4084
      %v4114 = vunpack.c.l.b16 %v4085
      %v4115 = vunpack.c.l.b16 %v4086
      %v4116 = vunpack.c.l.b16 %v4087
      %v4117 = vunpack.c.l.b16 %v4088
      %v4118 = vunpack.c.l.b16 %v4089
      %v4119 = vunpack.c.l.b16 %v4090
      %v4120 = vunpack.c.l.b16 %v4091
      %v4121 = vpack.c.b16 %v4108, %v4107
      %v4122 = vpack.c.b16 %v4110, %v4109
      %v4123 = vpack.c.b16 %v4112, %v4111
      %v4124 = vpack.c.b16 %v4114, %v4113
      %v4125 = vpack.c.b16 %v4116, %v4115
      %v4126 = vpack.c.b16 %v4118, %v4117
      %v4127 = vpack.c.b16 %v4120, %v4119
      %v4128 = vrot.slane %v4121, 2
      %v4129 = vrot.slane %v4122, 2
      %v4130 = vsel %vm1412, %v4128, %v4129
      %v4131 = vrot.slane %v4123, 2
      %v4132 = vsel %vm1412, %v4129, %v4131
      %v4133 = vrot.slane %v4124, 2
      %v4134 = vsel %vm1412, %v4131, %v4133
      %v4135 = vrot.slane %v4125, 2
      %v4136 = vsel %vm1412, %v4133, %v4135
      %v4137 = vrot.slane %v4126, 2
      %v4138 = vsel %vm1412, %v4135, %v4137
      %v4139 = vrot.slane %v4127, 2
      %v4140 = vsel %vm1412, %v4137, %v4139
      %v4142 = vsel %vm602, %v4130, 0
      %v4145 = vsel %vm602, %v4132, 0
      %v4148 = vsel %vm602, %v4134, 0
      %v4151 = vsel %vm602, %v4136, 0
      %v4154 = vsel %vm602, %v4138, 0
      %v4157 = vsel %vm602, %v4140, 0
      %v4160 = vsel %vm602, %v4139, 0
      %v4163 = vsel %vm651, %v4092, 0
      %4165 = vmatprep.subr.bf16.mxu0 0
      %4166 = vmatpush1.bf16.msra.mxu0 %v4163
      %4167 = vmatprep.subr.bf16.mxu0 0
      %4168 = vmatpush1.bf16.msra.mxu0 0
      %4169 = vmatprep.subr.bf16.mxu0 0
      %4170 = vmatpush1.bf16.msra.mxu0 0
      %4171 = vmatprep.subr.bf16.mxu0 0
      %4172 = vmatpush1.bf16.msra.mxu0 0
      %4173 = vmatprep.subr.bf16.mxu0 0
      %4174 = vmatpush1.bf16.msra.mxu0 0
      %4175 = vmatprep.subr.bf16.mxu0 0
      %4176 = vmatpush1.bf16.msra.mxu0 0
      %4177 = vmatprep.subr.bf16.mxu0 0
      %4178 = vmatpush1.bf16.msra.mxu0 0
      %4179 = vmatprep.subr.bf16.mxu0 0
      %4180 = vmatpush1.bf16.msra.mxu0 0
      %4181 = vmatprep.subr.bf16.mxu0 0
      %4182 = vmatpush1.bf16.msra.mxu0 0
      %4183 = vmatprep.subr.bf16.mxu0 0
      %4184 = vmatpush1.bf16.msra.mxu0 0
      %4185 = vmatprep.subr.bf16.mxu0 0
      %4186 = vmatpush1.bf16.msra.mxu0 0
      %4187 = vmatprep.subr.bf16.mxu0 0
      %4188 = vmatpush1.bf16.msra.mxu0 0
      %4189 = vmatprep.subr.bf16.mxu0 0
      %4190 = vmatpush1.bf16.msra.mxu0 0
      %4191 = vmatprep.subr.bf16.mxu0 0
      %4192 = vmatpush1.bf16.msra.mxu0 0
      %4193 = vmatprep.subr.bf16.mxu0 0
      %4194 = vmatpush1.bf16.msra.mxu0 0
      %4195 = vmatprep.subr.bf16.mxu0 0
      %4196 = vmatpush1.bf16.msra.mxu0 0
      %4197 = vmatprep.mubr.bf16.mxu0 0
      %4198 = vmatmul.mubr.bf16.gmra.mrb[0].mxu0 %v4142
      %v4199 = vpop.f32.mrb[0].mxu0
      %v4200 = vadd.f32 0.0, %v4199
      %v4201 = vpop.f32.mrb[0].mxu0
      %v4202 = vpop.f32.mrb[0].mxu0
      %v4203 = vadd.f32 0.0, %v4202
      %v4204 = vpop.f32.mrb[0].mxu0
      %4205 = vmatprep.mubr.bf16.mxu0 0
      %4206 = vmatmul.mubr.bf16.gmra.mrb[0].mxu0 %v4145
      %v4207 = vpop.f32.mrb[0].mxu0
      %v4208 = vadd.f32 0.0, %v4207
      %v4209 = vpop.f32.mrb[0].mxu0
      %v4210 = vpop.f32.mrb[0].mxu0
      %v4211 = vadd.f32 0.0, %v4210
      %v4212 = vpop.f32.mrb[0].mxu0
      %4213 = vmatprep.mubr.bf16.mxu0 0
      %4214 = vmatmul.mubr.bf16.gmra.mrb[0].mxu0 %v4148
      %v4215 = vpop.f32.mrb[0].mxu0
      %v4216 = vadd.f32 0.0, %v4215
      %v4217 = vpop.f32.mrb[0].mxu0
      %v4218 = vpop.f32.mrb[0].mxu0
      %v4219 = vadd.f32 0.0, %v4218
      %v4220 = vpop.f32.mrb[0].mxu0
      %4221 = vmatprep.mubr.bf16.mxu0 0
      %4222 = vmatmul.mubr.bf16.gmra.mrb[0].mxu0 %v4151
      %v4223 = vpop.f32.mrb[0].mxu0
      %v4224 = vadd.f32 0.0, %v4223
      %v4225 = vpop.f32.mrb[0].mxu0
      %v4226 = vpop.f32.mrb[0].mxu0
      %v4227 = vadd.f32 0.0, %v4226
      %v4228 = vpop.f32.mrb[0].mxu0
      %4229 = vmatprep.mubr.bf16.mxu0 0
      %4230 = vmatmul.mubr.bf16.gmra.mrb[0].mxu0 %v4154
      %v4231 = vpop.f32.mrb[0].mxu0
      %v4232 = vadd.f32 0.0, %v4231
      %v4233 = vpop.f32.mrb[0].mxu0
      %v4234 = vpop.f32.mrb[0].mxu0
      %v4235 = vadd.f32 0.0, %v4234
      %v4236 = vpop.f32.mrb[0].mxu0
      %4237 = vmatprep.mubr.bf16.mxu0 0
      %4238 = vmatmul.mubr.bf16.gmra.mrb[0].mxu0 %v4157
      %v4239 = vpop.f32.mrb[0].mxu0
      %v4240 = vadd.f32 0.0, %v4239
      %v4241 = vpop.f32.mrb[0].mxu0
      %v4242 = vpop.f32.mrb[0].mxu0
      %v4243 = vadd.f32 0.0, %v4242
      %v4244 = vpop.f32.mrb[0].mxu0
      %4245 = vmatprep.mubr.bf16.mxu0 0
      %4246 = vmatmul.mubr.bf16.gmra.mrb[0].mxu0 %v4160
      %v4247 = vpop.f32.mrb[0].mxu0
      %v4248 = vadd.f32 0.0, %v4247
      %v4249 = vpop.f32.mrb[0].mxu0
      %v4250 = vpop.f32.mrb[0].mxu0
      %v4251 = vpop.f32.mrb[0].mxu0
      %4252 = vdwg.mxu0
      %v4253 = vadd.f32 %v4065, %v4200
      %v4254 = vadd.f32 %v4066, %v4203
      %v4255 = vadd.f32 %v4067, %v4208
      %v4256 = vadd.f32 %v4068, %v4211
      %v4257 = vadd.f32 %v4069, %v4216
      %v4258 = vadd.f32 %v4070, %v4219
      %v4259 = vadd.f32 %v4071, %v4224
      %v4260 = vadd.f32 %v4072, %v4227
      %v4261 = vadd.f32 %v4073, %v4232
      %v4262 = vadd.f32 %v4074, %v4235
      %v4263 = vadd.f32 %v4075, %v4240
      %v4264 = vadd.f32 %v4076, %v4243
      %v4265 = vadd.f32 %v4077, %v4248
      %v4266 = vld [vmem:[%s327 + $0xbc] sm:$0x3]
      %v4267 = vld [vmem:[%s1 + $0x10] sm:$0xf]
      %v4269 = vunpack.c.l.b16 %v4266
      %v4270 = vpack.c.b16 %v4269, %v4119
      %v4272 = vshrl.u32 %v4121, 16
      %v4274 = vrot.slane %v4272, 2
      %v4275 = vshll.u32 %v4121, 16
      %v4277 = vrot.slane %v4275, 3
      %v4278 = vor.u32 %v4274, %v4277
      %v4280 = vshrl.u32 %v4122, 16
      %v4282 = vrot.slane %v4280, 2
      %v4283 = vshll.u32 %v4122, 16
      %v4285 = vrot.slane %v4283, 3
      %v4286 = vor.u32 %v4282, %v4285
      %v4287 = vsel %vm1695, %v4278, %v4286
      %v4289 = vshrl.u32 %v4123, 16
      %v4291 = vrot.slane %v4289, 2
      %v4292 = vshll.u32 %v4123, 16
      %v4294 = vrot.slane %v4292, 3
      %v4295 = vor.u32 %v4291, %v4294
      %v4296 = vsel %vm1695, %v4286, %v4295
      %v4298 = vshrl.u32 %v4124, 16
      %v4300 = vrot.slane %v4298, 2
      %v4301 = vshll.u32 %v4124, 16
      %v4303 = vrot.slane %v4301, 3
      %v4304 = vor.u32 %v4300, %v4303
      %v4305 = vsel %vm1695, %v4295, %v4304
      %v4307 = vshrl.u32 %v4125, 16
      %v4309 = vrot.slane %v4307, 2
      %v4310 = vshll.u32 %v4125, 16
      %v4312 = vrot.slane %v4310, 3
      %v4313 = vor.u32 %v4309, %v4312
      %v4314 = vsel %vm1695, %v4304, %v4313
      %v4316 = vshrl.u32 %v4126, 16
      %v4318 = vrot.slane %v4316, 2
      %v4319 = vshll.u32 %v4126, 16
      %v4321 = vrot.slane %v4319, 3
      %v4322 = vor.u32 %v4318, %v4321
      %v4323 = vsel %vm1695, %v4313, %v4322
      %v4325 = vshrl.u32 %v4270, 16
      %v4327 = vrot.slane %v4325, 2
      %v4328 = vshll.u32 %v4270, 16
      %v4330 = vrot.slane %v4328, 3
      %v4331 = vor.u32 %v4327, %v4330
      %v4332 = vsel %vm1695, %v4322, %v4331
      %v4334 = vsel %vm602, %v4287, 0
      %v4337 = vsel %vm602, %v4296, 0
      %v4340 = vsel %vm602, %v4305, 0
      %v4343 = vsel %vm602, %v4314, 0
      %v4346 = vsel %vm602, %v4323, 0
      %v4349 = vsel %vm602, %v4332, 0
      %v4352 = vsel %vm602, %v4331, 0
      %v4355 = vsel %vm651, %v4267, 0
      %4357 = vmatprep.subr.bf16.mxu0 0
      %4358 = vmatpush1.bf16.msra.mxu0 %v4355
      %4359 = vmatprep.subr.bf16.mxu0 0
      %4360 = vmatpush1.bf16.msra.mxu0 0
      %4361 = vmatprep.subr.bf16.mxu0 0
      %4362 = vmatpush1.bf16.msra.mxu0 0
      %4363 = vmatprep.subr.bf16.mxu0 0
      %4364 = vmatpush1.bf16.msra.mxu0 0
      %4365 = vmatprep.subr.bf16.mxu0 0
      %4366 = vmatpush1.bf16.msra.mxu0 0
      %4367 = vmatprep.subr.bf16.mxu0 0
      %4368 = vmatpush1.bf16.msra.mxu0 0
      %4369 = vmatprep.subr.bf16.mxu0 0
      %4370 = vmatpush1.bf16.msra.mxu0 0
      %4371 = vmatprep.subr.bf16.mxu0 0
      %4372 = vmatpush1.bf16.msra.mxu0 0
      %4373 = vmatprep.subr.bf16.mxu0 0
      %4374 = vmatpush1.bf16.msra.mxu0 0
      %4375 = vmatprep.subr.bf16.mxu0 0
      %4376 = vmatpush1.bf16.msra.mxu0 0
      %4377 = vmatprep.subr.bf16.mxu0 0
      %4378 = vmatpush1.bf16.msra.mxu0 0
      %4379 = vmatprep.subr.bf16.mxu0 0
      %4380 = vmatpush1.bf16.msra.mxu0 0
      %4381 = vmatprep.subr.bf16.mxu0 0
      %4382 = vmatpush1.bf16.msra.mxu0 0
      %4383 = vmatprep.subr.bf16.mxu0 0
      %4384 = vmatpush1.bf16.msra.mxu0 0
      %4385 = vmatprep.subr.bf16.mxu0 0
      %4386 = vmatpush1.bf16.msra.mxu0 0
      %4387 = vmatprep.subr.bf16.mxu0 0
      %4388 = vmatpush1.bf16.msra.mxu0 0
      %4389 = vmatprep.mubr.bf16.mxu0 0
      %4390 = vmatmul.mubr.bf16.gmra.mrb[0].mxu0 %v4334
      %v4391 = vpop.f32.mrb[0].mxu0
      %v4392 = vadd.f32 0.0, %v4391
      %v4393 = vpop.f32.mrb[0].mxu0
      %v4394 = vpop.f32.mrb[0].mxu0
      %v4395 = vadd.f32 0.0, %v4394
      %v4396 = vpop.f32.mrb[0].mxu0
      %4397 = vmatprep.mubr.bf16.mxu0 0
      %4398 = vmatmul.mubr.bf16.gmra.mrb[0].mxu0 %v4337
      %v4399 = vpop.f32.mrb[0].mxu0
      %v4400 = vadd.f32 0.0, %v4399
      %v4401 = vpop.f32.mrb[0].mxu0
      %v4402 = vpop.f32.mrb[0].mxu0
      %v4403 = vadd.f32 0.0, %v4402
      %v4404 = vpop.f32.mrb[0].mxu0
      %4405 = vmatprep.mubr.bf16.mxu0 0
      %4406 = vmatmul.mubr.bf16.gmra.mrb[0].mxu0 %v4340
      %v4407 = vpop.f32.mrb[0].mxu0
      %v4408 = vadd.f32 0.0, %v4407
      %v4409 = vpop.f32.mrb[0].mxu0
      %v4410 = vpop.f32.mrb[0].mxu0
      %v4411 = vadd.f32 0.0, %v4410
      %v4412 = vpop.f32.mrb[0].mxu0
      %4413 = vmatprep.mubr.bf16.mxu0 0
      %4414 = vmatmul.mubr.bf16.gmra.mrb[0].mxu0 %v4343
      %v4415 = vpop.f32.mrb[0].mxu0
      %v4416 = vadd.f32 0.0, %v4415
      %v4417 = vpop.f32.mrb[0].mxu0
      %v4418 = vpop.f32.mrb[0].mxu0
      %v4419 = vadd.f32 0.0, %v4418
      %v4420 = vpop.f32.mrb[0].mxu0
      %4421 = vmatprep.mubr.bf16.mxu0 0
      %4422 = vmatmul.mubr.bf16.gmra.mrb[0].mxu0 %v4346
      %v4423 = vpop.f32.mrb[0].mxu0
      %v4424 = vadd.f32 0.0, %v4423
      %v4425 = vpop.f32.mrb[0].mxu0
      %v4426 = vpop.f32.mrb[0].mxu0
      %v4427 = vadd.f32 0.0, %v4426
      %v4428 = vpop.f32.mrb[0].mxu0
      %4429 = vmatprep.mubr.bf16.mxu0 0
      %4430 = vmatmul.mubr.bf16.gmra.mrb[0].mxu0 %v4349
      %v4431 = vpop.f32.mrb[0].mxu0
      %v4432 = vadd.f32 0.0, %v4431
      %v4433 = vpop.f32.mrb[0].mxu0
      %v4434 = vpop.f32.mrb[0].mxu0
      %v4435 = vadd.f32 0.0, %v4434
      %v4436 = vpop.f32.mrb[0].mxu0
      %4437 = vmatprep.mubr.bf16.mxu0 0
      %4438 = vmatmul.mubr.bf16.gmra.mrb[0].mxu0 %v4352
      %v4439 = vpop.f32.mrb[0].mxu0
      %v4440 = vadd.f32 0.0, %v4439
      %v4441 = vpop.f32.mrb[0].mxu0
      %v4442 = vpop.f32.mrb[0].mxu0
      %v4443 = vpop.f32.mrb[0].mxu0
      %4444 = vdwg.mxu0
      %v4445 = vadd.f32 %v4253, %v4392
      %v4446 = vadd.f32 %v4254, %v4395
      %v4447 = vadd.f32 %v4255, %v4400
      %v4448 = vadd.f32 %v4256, %v4403
      %v4449 = vadd.f32 %v4257, %v4408
      %v4450 = vadd.f32 %v4258, %v4411
      %v4451 = vadd.f32 %v4259, %v4416
      %v4452 = vadd.f32 %v4260, %v4419
      %v4453 = vadd.f32 %v4261, %v4424
      %v4454 = vadd.f32 %v4262, %v4427
      %v4455 = vadd.f32 %v4263, %v4432
      %v4456 = vadd.f32 %v4264, %v4435
      %v4457 = vadd.f32 %v4265, %v4440
      %v4458 = vld [vmem:[%s327 + $0x88] sm:$0x8]
      %v4459 = vld [vmem:[%s1 + $0x14] sm:$0xf]
      %v4461 = vunpack.c.l.b16 %v4458
      %v4462 = vpack.c.b16 %v4108, %v4461
      %v4463 = vrot.slane %v4462, 3
      %v4464 = vrot.slane %v4122, 3
      %v4465 = vsel %vm2097, %v4463, %v4464
      %v4466 = vrot.slane %v4123, 3
      %v4467 = vsel %vm2097, %v4464, %v4466
      %v4468 = vrot.slane %v4124, 3
      %v4469 = vsel %vm2097, %v4466, %v4468
      %v4470 = vrot.slane %v4125, 3
      %v4471 = vsel %vm2097, %v4468, %v4470
      %v4472 = vrot.slane %v4126, 3
      %v4473 = vsel %vm2097, %v4470, %v4472
      %v4474 = vrot.slane %v4270, 3
      %v4475 = vsel %vm2097, %v4472, %v4474
      %v4477 = vsel %vm602, %v4465, 0
      %v4480 = vsel %vm602, %v4467, 0
      %v4483 = vsel %vm602, %v4469, 0
      %v4486 = vsel %vm602, %v4471, 0
      %v4489 = vsel %vm602, %v4473, 0
      %v4492 = vsel %vm602, %v4475, 0
      %v4495 = vsel %vm602, %v4474, 0
      %v4498 = vsel %vm651, %v4459, 0
      %4500 = vmatprep.subr.bf16.mxu0 0
      %4501 = vmatpush1.bf16.msra.mxu0 %v4498
      %4502 = vmatprep.subr.bf16.mxu0 0
      %4503 = vmatpush1.bf16.msra.mxu0 0
      %4504 = vmatprep.subr.bf16.mxu0 0
      %4505 = vmatpush1.bf16.msra.mxu0 0
      %4506 = vmatprep.subr.bf16.mxu0 0
      %4507 = vmatpush1.bf16.msra.mxu0 0
      %4508 = vmatprep.subr.bf16.mxu0 0
      %4509 = vmatpush1.bf16.msra.mxu0 0
      %4510 = vmatprep.subr.bf16.mxu0 0
      %4511 = vmatpush1.bf16.msra.mxu0 0
      %4512 = vmatprep.subr.bf16.mxu0 0
      %4513 = vmatpush1.bf16.msra.mxu0 0
      %4514 = vmatprep.subr.bf16.mxu0 0
      %4515 = vmatpush1.bf16.msra.mxu0 0
      %4516 = vmatprep.subr.bf16.mxu0 0
      %4517 = vmatpush1.bf16.msra.mxu0 0
      %4518 = vmatprep.subr.bf16.mxu0 0
      %4519 = vmatpush1.bf16.msra.mxu0 0
      %4520 = vmatprep.subr.bf16.mxu0 0
      %4521 = vmatpush1.bf16.msra.mxu0 0
      %4522 = vmatprep.subr.bf16.mxu0 0
      %4523 = vmatpush1.bf16.msra.mxu0 0
      %4524 = vmatprep.subr.bf16.mxu0 0
      %4525 = vmatpush1.bf16.msra.mxu0 0
      %4526 = vmatprep.subr.bf16.mxu0 0
      %4527 = vmatpush1.bf16.msra.mxu0 0
      %4528 = vmatprep.subr.bf16.mxu0 0
      %4529 = vmatpush1.bf16.msra.mxu0 0
      %4530 = vmatprep.subr.bf16.mxu0 0
      %4531 = vmatpush1.bf16.msra.mxu0 0
      %4532 = vmatprep.mubr.bf16.mxu0 0
      %4533 = vmatmul.mubr.bf16.gmra.mrb[0].mxu0 %v4477
      %v4534 = vpop.f32.mrb[0].mxu0
      %v4535 = vadd.f32 0.0, %v4534
      %v4536 = vpop.f32.mrb[0].mxu0
      %v4537 = vpop.f32.mrb[0].mxu0
      %v4538 = vadd.f32 0.0, %v4537
      %v4539 = vpop.f32.mrb[0].mxu0
      %4540 = vmatprep.mubr.bf16.mxu0 0
      %4541 = vmatmul.mubr.bf16.gmra.mrb[0].mxu0 %v4480
      %v4542 = vpop.f32.mrb[0].mxu0
      %v4543 = vadd.f32 0.0, %v4542
      %v4544 = vpop.f32.mrb[0].mxu0
      %v4545 = vpop.f32.mrb[0].mxu0
      %v4546 = vadd.f32 0.0, %v4545
      %v4547 = vpop.f32.mrb[0].mxu0
      %4548 = vmatprep.mubr.bf16.mxu0 0
      %4549 = vmatmul.mubr.bf16.gmra.mrb[0].mxu0 %v4483
      %v4550 = vpop.f32.mrb[0].mxu0
      %v4551 = vadd.f32 0.0, %v4550
      %v4552 = vpop.f32.mrb[0].mxu0
      %v4553 = vpop.f32.mrb[0].mxu0
      %v4554 = vadd.f32 0.0, %v4553
      %v4555 = vpop.f32.mrb[0].mxu0
      %4556 = vmatprep.mubr.bf16.mxu0 0
      %4557 = vmatmul.mubr.bf16.gmra.mrb[0].mxu0 %v4486
      %v4558 = vpop.f32.mrb[0].mxu0
      %v4559 = vadd.f32 0.0, %v4558
      %v4560 = vpop.f32.mrb[0].mxu0
      %v4561 = vpop.f32.mrb[0].mxu0
      %v4562 = vadd.f32 0.0, %v4561
      %v4563 = vpop.f32.mrb[0].mxu0
      %4564 = vmatprep.mubr.bf16.mxu0 0
      %4565 = vmatmul.mubr.bf16.gmra.mrb[0].mxu0 %v4489
      %v4566 = vpop.f32.mrb[0].mxu0
      %v4567 = vadd.f32 0.0, %v4566
      %v4568 = vpop.f32.mrb[0].mxu0
      %v4569 = vpop.f32.mrb[0].mxu0
      %v4570 = vadd.f32 0.0, %v4569
      %v4571 = vpop.f32.mrb[0].mxu0
      %4572 = vmatprep.mubr.bf16.mxu0 0
      %4573 = vmatmul.mubr.bf16.gmra.mrb[0].mxu0 %v4492
      %v4574 = vpop.f32.mrb[0].mxu0
      %v4575 = vadd.f32 0.0, %v4574
      %v4576 = vpop.f32.mrb[0].mxu0
      %v4577 = vpop.f32.mrb[0].mxu0
      %v4578 = vadd.f32 0.0, %v4577
      %v4579 = vpop.f32.mrb[0].mxu0
      %4580 = vmatprep.mubr.bf16.mxu0 0
      %4581 = vmatmul.mubr.bf16.gmra.mrb[0].mxu0 %v4495
      %v4582 = vpop.f32.mrb[0].mxu0
      %v4583 = vadd.f32 0.0, %v4582
      %v4584 = vpop.f32.mrb[0].mxu0
      %v4585 = vpop.f32.mrb[0].mxu0
      %v4586 = vpop.f32.mrb[0].mxu0
      %4587 = vdwg.mxu0
      %v4588 = vadd.f32 %v4445, %v4535
      %v4589 = vadd.f32 %v4446, %v4538
      %v4590 = vadd.f32 %v4447, %v4543
      %v4591 = vadd.f32 %v4448, %v4546
      %v4592 = vadd.f32 %v4449, %v4551
      %v4593 = vadd.f32 %v4450, %v4554
      %v4594 = vadd.f32 %v4451, %v4559
      %v4595 = vadd.f32 %v4452, %v4562
      %v4596 = vadd.f32 %v4453, %v4567
      %v4597 = vadd.f32 %v4454, %v4570
      %v4598 = vadd.f32 %v4455, %v4575
      %v4599 = vadd.f32 %v4456, %v4578
      %v4600 = vadd.f32 %v4457, %v4583
      %v4601 = vld [vmem:[%s327 + $0x94] sm:$0xf]
      %v4602 = vld [vmem:[%s327 + $0x98] sm:$0xf]
      %v4603 = vld [vmem:[%s327 + $0x9c] sm:$0xf]
      %v4604 = vld [vmem:[%s327 + $0xa0] sm:$0xf]
      %v4605 = vld [vmem:[%s327 + $0xa4] sm:$0xf]
      %v4606 = vld [vmem:[%s327 + $0xa8] sm:$0xf]
      %v4607 = vld [vmem:[%s327 + $0xac] sm:$0xf]
      %v4608 = vld [vmem:[%s327 + $0xb0] sm:$0xf]
      %v4609 = vld [vmem:[%s327 + $0xb4] sm:$0xf]
      %v4610 = vld [vmem:[%s327 + $0xb8] sm:$0xf]
      %v4611 = vld [vmem:[%s327 + $0xbc] sm:$0xf]
      %v4612 = vld [vmem:[%s327 + $0xc0] sm:$0xf]
      %v4613 = vld [vmem:[%s327 + $0xc4] sm:$0x7]
      %v4614 = vld [vmem:[%s1 + $0x18] sm:$0xf]
      %v4628 = vunpack.c.l.b16 %v4601
      %v4629 = vunpack.c.l.b16 %v4602
      %v4630 = vunpack.c.l.b16 %v4603
      %v4631 = vunpack.c.l.b16 %v4604
      %v4632 = vunpack.c.l.b16 %v4605
      %v4633 = vunpack.c.l.b16 %v4606
      %v4634 = vunpack.c.l.b16 %v4607
      %v4635 = vunpack.c.l.b16 %v4608
      %v4636 = vunpack.c.l.b16 %v4609
      %v4637 = vunpack.c.l.b16 %v4610
      %v4638 = vunpack.c.l.b16 %v4611
      %v4639 = vunpack.c.l.b16 %v4612
      %v4640 = vunpack.c.l.b16 %v4613
      %v4641 = vpack.c.b16 %v4629, %v4628
      %v4642 = vpack.c.b16 %v4631, %v4630
      %v4643 = vpack.c.b16 %v4633, %v4632
      %v4644 = vpack.c.b16 %v4635, %v4634
      %v4645 = vpack.c.b16 %v4637, %v4636
      %v4646 = vpack.c.b16 %v4639, %v4638
      %v4647 = vpack.c.b16 %v4640, %v4640
      %v4649 = vsel %vm602, %v4641, 0
      %v4652 = vsel %vm602, %v4642, 0
      %v4655 = vsel %vm602, %v4643, 0
      %v4658 = vsel %vm602, %v4644, 0
      %v4661 = vsel %vm602, %v4645, 0
      %v4664 = vsel %vm602, %v4646, 0
      %v4667 = vsel %vm602, %v4647, 0
      %v4670 = vsel %vm651, %v4614, 0
      %4672 = vmatprep.subr.bf16.mxu0 0
      %4673 = vmatpush1.bf16.msra.mxu0 %v4670
      %4674 = vmatprep.subr.bf16.mxu0 0
      %4675 = vmatpush1.bf16.msra.mxu0 0
      %4676 = vmatprep.subr.bf16.mxu0 0
      %4677 = vmatpush1.bf16.msra.mxu0 0
      %4678 = vmatprep.subr.bf16.mxu0 0
      %4679 = vmatpush1.bf16.msra.mxu0 0
      %4680 = vmatprep.subr.bf16.mxu0 0
      %4681 = vmatpush1.bf16.msra.mxu0 0
      %4682 = vmatprep.subr.bf16.mxu0 0
      %4683 = vmatpush1.bf16.msra.mxu0 0
      %4684 = vmatprep.subr.bf16.mxu0 0
      %4685 = vmatpush1.bf16.msra.mxu0 0
      %4686 = vmatprep.subr.bf16.mxu0 0
      %4687 = vmatpush1.bf16.msra.mxu0 0
      %4688 = vmatprep.subr.bf16.mxu0 0
      %4689 = vmatpush1.bf16.msra.mxu0 0
      %4690 = vmatprep.subr.bf16.mxu0 0
      %4691 = vmatpush1.bf16.msra.mxu0 0
      %4692 = vmatprep.subr.bf16.mxu0 0
      %4693 = vmatpush1.bf16.msra.mxu0 0
      %4694 = vmatprep.subr.bf16.mxu0 0
      %4695 = vmatpush1.bf16.msra.mxu0 0
      %4696 = vmatprep.subr.bf16.mxu0 0
      %4697 = vmatpush1.bf16.msra.mxu0 0
      %4698 = vmatprep.subr.bf16.mxu0 0
      %4699 = vmatpush1.bf16.msra.mxu0 0
      %4700 = vmatprep.subr.bf16.mxu0 0
      %4701 = vmatpush1.bf16.msra.mxu0 0
      %4702 = vmatprep.subr.bf16.mxu0 0
      %4703 = vmatpush1.bf16.msra.mxu0 0
      %4704 = vmatprep.mubr.bf16.mxu0 0
      %4705 = vmatmul.mubr.bf16.gmra.mrb[0].mxu0 %v4649
      %v4706 = vpop.f32.mrb[0].mxu0
      %v4707 = vadd.f32 0.0, %v4706
      %v4708 = vpop.f32.mrb[0].mxu0
      %v4709 = vpop.f32.mrb[0].mxu0
      %v4710 = vadd.f32 0.0, %v4709
      %v4711 = vpop.f32.mrb[0].mxu0
      %4712 = vmatprep.mubr.bf16.mxu0 0
      %4713 = vmatmul.mubr.bf16.gmra.mrb[0].mxu0 %v4652
      %v4714 = vpop.f32.mrb[0].mxu0
      %v4715 = vadd.f32 0.0, %v4714
      %v4716 = vpop.f32.mrb[0].mxu0
      %v4717 = vpop.f32.mrb[0].mxu0
      %v4718 = vadd.f32 0.0, %v4717
      %v4719 = vpop.f32.mrb[0].mxu0
      %4720 = vmatprep.mubr.bf16.mxu0 0
      %4721 = vmatmul.mubr.bf16.gmra.mrb[0].mxu0 %v4655
      %v4722 = vpop.f32.mrb[0].mxu0
      %v4723 = vadd.f32 0.0, %v4722
      %v4724 = vpop.f32.mrb[0].mxu0
      %v4725 = vpop.f32.mrb[0].mxu0
      %v4726 = vadd.f32 0.0, %v4725
      %v4727 = vpop.f32.mrb[0].mxu0
      %4728 = vmatprep.mubr.bf16.mxu0 0
      %4729 = vmatmul.mubr.bf16.gmra.mrb[0].mxu0 %v4658
      %v4730 = vpop.f32.mrb[0].mxu0
      %v4731 = vadd.f32 0.0, %v4730
      %v4732 = vpop.f32.mrb[0].mxu0
      %v4733 = vpop.f32.mrb[0].mxu0
      %v4734 = vadd.f32 0.0, %v4733
      %v4735 = vpop.f32.mrb[0].mxu0
      %4736 = vmatprep.mubr.bf16.mxu0 0
      %4737 = vmatmul.mubr.bf16.gmra.mrb[0].mxu0 %v4661
      %v4738 = vpop.f32.mrb[0].mxu0
      %v4739 = vadd.f32 0.0, %v4738
      %v4740 = vpop.f32.mrb[0].mxu0
      %v4741 = vpop.f32.mrb[0].mxu0
      %v4742 = vadd.f32 0.0, %v4741
      %v4743 = vpop.f32.mrb[0].mxu0
      %4744 = vmatprep.mubr.bf16.mxu0 0
      %4745 = vmatmul.mubr.bf16.gmra.mrb[0].mxu0 %v4664
      %v4746 = vpop.f32.mrb[0].mxu0
      %v4747 = vadd.f32 0.0, %v4746
      %v4748 = vpop.f32.mrb[0].mxu0
      %v4749 = vpop.f32.mrb[0].mxu0
      %v4750 = vadd.f32 0.0, %v4749
      %v4751 = vpop.f32.mrb[0].mxu0
      %4752 = vmatprep.mubr.bf16.mxu0 0
      %4753 = vmatmul.mubr.bf16.gmra.mrb[0].mxu0 %v4667
      %v4754 = vpop.f32.mrb[0].mxu0
      %v4755 = vadd.f32 0.0, %v4754
      %v4756 = vpop.f32.mrb[0].mxu0
      %v4757 = vpop.f32.mrb[0].mxu0
      %v4758 = vpop.f32.mrb[0].mxu0
      %4759 = vdwg.mxu0
      %v4760 = vadd.f32 %v4588, %v4707
      %v4761 = vadd.f32 %v4589, %v4710
      %v4762 = vadd.f32 %v4590, %v4715
      %v4763 = vadd.f32 %v4591, %v4718
      %v4764 = vadd.f32 %v4592, %v4723
      %v4765 = vadd.f32 %v4593, %v4726
      %v4766 = vadd.f32 %v4594, %v4731
      %v4767 = vadd.f32 %v4595, %v4734
      %v4768 = vadd.f32 %v4596, %v4739
      %v4769 = vadd.f32 %v4597, %v4742
      %v4770 = vadd.f32 %v4598, %v4747
      %v4771 = vadd.f32 %v4599, %v4750
      %v4772 = vadd.f32 %v4600, %v4755
      %v4773 = vld [vmem:[%s327 + $0xc4] sm:$0xf]
      %v4774 = vld [vmem:[%s1 + $0x1c] sm:$0xf]
      %v4776 = vunpack.c.l.b16 %v4773
      %v4777 = vpack.c.b16 %v4776, %v4776
      %v4778 = vshrl.u32 %v4641, 16
      %v4780 = vshll.u32 %v4641, 16
      %v4782 = vrot.slane %v4780, 1
      %v4783 = vor.u32 %v4778, %v4782
      %v4784 = vshll.u32 %v4642, 16
      %v4786 = vrot.slane %v4784, 1
      %v4787 = vsel %vm469, %v4783, %v4786
      %v4788 = vshrl.u32 %v4642, 16
      %v4790 = vor.u32 %v4788, %v4786
      %v4791 = vshll.u32 %v4643, 16
      %v4793 = vrot.slane %v4791, 1
      %v4794 = vsel %vm469, %v4790, %v4793
      %v4795 = vshrl.u32 %v4643, 16
      %v4797 = vor.u32 %v4795, %v4793
      %v4798 = vshll.u32 %v4644, 16
      %v4800 = vrot.slane %v4798, 1
      %v4801 = vsel %vm469, %v4797, %v4800
      %v4802 = vshrl.u32 %v4644, 16
      %v4804 = vor.u32 %v4802, %v4800
      %v4805 = vshll.u32 %v4645, 16
      %v4807 = vrot.slane %v4805, 1
      %v4808 = vsel %vm469, %v4804, %v4807
      %v4809 = vshrl.u32 %v4645, 16
      %v4811 = vor.u32 %v4809, %v4807
      %v4812 = vshll.u32 %v4646, 16
      %v4814 = vrot.slane %v4812, 1
      %v4815 = vsel %vm469, %v4811, %v4814
      %v4816 = vshrl.u32 %v4646, 16
      %v4818 = vor.u32 %v4816, %v4814
      %v4820 = vshll.u32 %v4777, 16
      %v4822 = vrot.slane %v4820, 1
      %v4823 = vsel %vm469, %v4818, %v4822
      %v4824 = vshrl.u32 %v4777, 16
      %v4826 = vor.u32 %v4824, %v4822
      %v4828 = vsel %vm602, %v4787, 0
      %v4831 = vsel %vm602, %v4794, 0
      %v4834 = vsel %vm602, %v4801, 0
      %v4837 = vsel %vm602, %v4808, 0
      %v4840 = vsel %vm602, %v4815, 0
      %v4843 = vsel %vm602, %v4823, 0
      %v4846 = vsel %vm602, %v4826, 0
      %v4849 = vsel %vm651, %v4774, 0
      %4851 = vmatprep.subr.bf16.mxu0 0
      %4852 = vmatpush1.bf16.msra.mxu0 %v4849
      %4853 = vmatprep.subr.bf16.mxu0 0
      %4854 = vmatpush1.bf16.msra.mxu0 0
      %4855 = vmatprep.subr.bf16.mxu0 0
      %4856 = vmatpush1.bf16.msra.mxu0 0
      %4857 = vmatprep.subr.bf16.mxu0 0
      %4858 = vmatpush1.bf16.msra.mxu0 0
      %4859 = vmatprep.subr.bf16.mxu0 0
      %4860 = vmatpush1.bf16.msra.mxu0 0
      %4861 = vmatprep.subr.bf16.mxu0 0
      %4862 = vmatpush1.bf16.msra.mxu0 0
      %4863 = vmatprep.subr.bf16.mxu0 0
      %4864 = vmatpush1.bf16.msra.mxu0 0
      %4865 = vmatprep.subr.bf16.mxu0 0
      %4866 = vmatpush1.bf16.msra.mxu0 0
      %4867 = vmatprep.subr.bf16.mxu0 0
      %4868 = vmatpush1.bf16.msra.mxu0 0
      %4869 = vmatprep.subr.bf16.mxu0 0
      %4870 = vmatpush1.bf16.msra.mxu0 0
      %4871 = vmatprep.subr.bf16.mxu0 0
      %4872 = vmatpush1.bf16.msra.mxu0 0
      %4873 = vmatprep.subr.bf16.mxu0 0
      %4874 = vmatpush1.bf16.msra.mxu0 0
      %4875 = vmatprep.subr.bf16.mxu0 0
      %4876 = vmatpush1.bf16.msra.mxu0 0
      %4877 = vmatprep.subr.bf16.mxu0 0
      %4878 = vmatpush1.bf16.msra.mxu0 0
      %4879 = vmatprep.subr.bf16.mxu0 0
      %4880 = vmatpush1.bf16.msra.mxu0 0
      %4881 = vmatprep.subr.bf16.mxu0 0
      %4882 = vmatpush1.bf16.msra.mxu0 0
      %4883 = vmatprep.mubr.bf16.mxu0 0
      %4884 = vmatmul.mubr.bf16.gmra.mrb[0].mxu0 %v4828
      %v4885 = vpop.f32.mrb[0].mxu0
      %v4886 = vadd.f32 0.0, %v4885
      %v4887 = vpop.f32.mrb[0].mxu0
      %v4888 = vpop.f32.mrb[0].mxu0
      %v4889 = vadd.f32 0.0, %v4888
      %v4890 = vpop.f32.mrb[0].mxu0
      %4891 = vmatprep.mubr.bf16.mxu0 0
      %4892 = vmatmul.mubr.bf16.gmra.mrb[0].mxu0 %v4831
      %v4893 = vpop.f32.mrb[0].mxu0
      %v4894 = vadd.f32 0.0, %v4893
      %v4895 = vpop.f32.mrb[0].mxu0
      %v4896 = vpop.f32.mrb[0].mxu0
      %v4897 = vadd.f32 0.0, %v4896
      %v4898 = vpop.f32.mrb[0].mxu0
      %4899 = vmatprep.mubr.bf16.mxu0 0
      %4900 = vmatmul.mubr.bf16.gmra.mrb[0].mxu0 %v4834
      %v4901 = vpop.f32.mrb[0].mxu0
      %v4902 = vadd.f32 0.0, %v4901
      %v4903 = vpop.f32.mrb[0].mxu0
      %v4904 = vpop.f32.mrb[0].mxu0
      %v4905 = vadd.f32 0.0, %v4904
      %v4906 = vpop.f32.mrb[0].mxu0
      %4907 = vmatprep.mubr.bf16.mxu0 0
      %4908 = vmatmul.mubr.bf16.gmra.mrb[0].mxu0 %v4837
      %v4909 = vpop.f32.mrb[0].mxu0
      %v4910 = vadd.f32 0.0, %v4909
      %v4911 = vpop.f32.mrb[0].mxu0
      %v4912 = vpop.f32.mrb[0].mxu0
      %v4913 = vadd.f32 0.0, %v4912
      %v4914 = vpop.f32.mrb[0].mxu0
      %4915 = vmatprep.mubr.bf16.mxu0 0
      %4916 = vmatmul.mubr.bf16.gmra.mrb[0].mxu0 %v4840
      %v4917 = vpop.f32.mrb[0].mxu0
      %v4918 = vadd.f32 0.0, %v4917
      %v4919 = vpop.f32.mrb[0].mxu0
      %v4920 = vpop.f32.mrb[0].mxu0
      %v4921 = vadd.f32 0.0, %v4920
      %v4922 = vpop.f32.mrb[0].mxu0
      %4923 = vmatprep.mubr.bf16.mxu0 0
      %4924 = vmatmul.mubr.bf16.gmra.mrb[0].mxu0 %v4843
      %v4925 = vpop.f32.mrb[0].mxu0
      %v4926 = vadd.f32 0.0, %v4925
      %v4927 = vpop.f32.mrb[0].mxu0
      %v4928 = vpop.f32.mrb[0].mxu0
      %v4929 = vadd.f32 0.0, %v4928
      %v4930 = vpop.f32.mrb[0].mxu0
      %4931 = vmatprep.mubr.bf16.mxu0 0
      %4932 = vmatmul.mubr.bf16.gmra.mrb[0].mxu0 %v4846
      %v4933 = vpop.f32.mrb[0].mxu0
      %v4934 = vadd.f32 0.0, %v4933
      %v4935 = vpop.f32.mrb[0].mxu0
      %v4936 = vpop.f32.mrb[0].mxu0
      %v4937 = vpop.f32.mrb[0].mxu0
      %4938 = vdwg.mxu0
      %v4939 = vadd.f32 %v4760, %v4886
      %v4940 = vadd.f32 %v4761, %v4889
      %v4941 = vadd.f32 %v4762, %v4894
      %v4942 = vadd.f32 %v4763, %v4897
      %v4943 = vadd.f32 %v4764, %v4902
      %v4944 = vadd.f32 %v4765, %v4905
      %v4945 = vadd.f32 %v4766, %v4910
      %v4946 = vadd.f32 %v4767, %v4913
      %v4947 = vadd.f32 %v4768, %v4918
      %v4948 = vadd.f32 %v4769, %v4921
      %v4949 = vadd.f32 %v4770, %v4926
      %v4950 = vadd.f32 %v4771, %v4929
      %v4951 = vadd.f32 %v4772, %v4934
      %v4952 = vld [vmem:[%s327 + $0x94] sm:$0xe]
      %v4953 = vld [vmem:[%s1 + $0x20] sm:$0xf]
      %v4955 = vunpack.c.l.b16 %v4952
      %v4956 = vpack.c.b16 %v4629, %v4955
      %v4957 = vrot.slane %v4956, 1
      %v4958 = vrot.slane %v4642, 1
      %v4959 = vsel %vm1017, %v4957, %v4958
      %v4960 = vrot.slane %v4643, 1
      %v4961 = vsel %vm1017, %v4958, %v4960
      %v4962 = vrot.slane %v4644, 1
      %v4963 = vsel %vm1017, %v4960, %v4962
      %v4964 = vrot.slane %v4645, 1
      %v4965 = vsel %vm1017, %v4962, %v4964
      %v4966 = vrot.slane %v4646, 1
      %v4967 = vsel %vm1017, %v4964, %v4966
      %v4968 = vrot.slane %v4777, 1
      %v4969 = vsel %vm1017, %v4966, %v4968
      %v4971 = vsel %vm602, %v4959, 0
      %v4974 = vsel %vm602, %v4961, 0
      %v4977 = vsel %vm602, %v4963, 0
      %v4980 = vsel %vm602, %v4965, 0
      %v4983 = vsel %vm602, %v4967, 0
      %v4986 = vsel %vm602, %v4969, 0
      %v4989 = vsel %vm602, %v4968, 0
      %v4992 = vsel %vm651, %v4953, 0
      %4994 = vmatprep.subr.bf16.mxu0 0
      %4995 = vmatpush1.bf16.msra.mxu0 %v4992
      %4996 = vmatprep.subr.bf16.mxu0 0
      %4997 = vmatpush1.bf16.msra.mxu0 0
      %4998 = vmatprep.subr.bf16.mxu0 0
      %4999 = vmatpush1.bf16.msra.mxu0 0
      %5000 = vmatprep.subr.bf16.mxu0 0
      %5001 = vmatpush1.bf16.msra.mxu0 0
      %5002 = vmatprep.subr.bf16.mxu0 0
      %5003 = vmatpush1.bf16.msra.mxu0 0
      %5004 = vmatprep.subr.bf16.mxu0 0
      %5005 = vmatpush1.bf16.msra.mxu0 0
      %5006 = vmatprep.subr.bf16.mxu0 0
      %5007 = vmatpush1.bf16.msra.mxu0 0
      %5008 = vmatprep.subr.bf16.mxu0 0
      %5009 = vmatpush1.bf16.msra.mxu0 0
      %5010 = vmatprep.subr.bf16.mxu0 0
      %5011 = vmatpush1.bf16.msra.mxu0 0
      %5012 = vmatprep.subr.bf16.mxu0 0
      %5013 = vmatpush1.bf16.msra.mxu0 0
      %5014 = vmatprep.subr.bf16.mxu0 0
      %5015 = vmatpush1.bf16.msra.mxu0 0
      %5016 = vmatprep.subr.bf16.mxu0 0
      %5017 = vmatpush1.bf16.msra.mxu0 0
      %5018 = vmatprep.subr.bf16.mxu0 0
      %5019 = vmatpush1.bf16.msra.mxu0 0
      %5020 = vmatprep.subr.bf16.mxu0 0
      %5021 = vmatpush1.bf16.msra.mxu0 0
      %5022 = vmatprep.subr.bf16.mxu0 0
      %5023 = vmatpush1.bf16.msra.mxu0 0
      %5024 = vmatprep.subr.bf16.mxu0 0
      %5025 = vmatpush1.bf16.msra.mxu0 0
      %5026 = vmatprep.mubr.bf16.mxu0 0
      %5027 = vmatmul.mubr.bf16.gmra.mrb[0].mxu0 %v4971
      %v5028 = vpop.f32.mrb[0].mxu0
      %v5029 = vadd.f32 0.0, %v5028
      %v5030 = vpop.f32.mrb[0].mxu0
      %v5031 = vpop.f32.mrb[0].mxu0
      %v5032 = vadd.f32 0.0, %v5031
      %v5033 = vpop.f32.mrb[0].mxu0
      %5034 = vmatprep.mubr.bf16.mxu0 0
      %5035 = vmatmul.mubr.bf16.gmra.mrb[0].mxu0 %v4974
      %v5036 = vpop.f32.mrb[0].mxu0
      %v5037 = vadd.f32 0.0, %v5036
      %v5038 = vpop.f32.mrb[0].mxu0
      %v5039 = vpop.f32.mrb[0].mxu0
      %v5040 = vadd.f32 0.0, %v5039
      %v5041 = vpop.f32.mrb[0].mxu0
      %5042 = vmatprep.mubr.bf16.mxu0 0
      %5043 = vmatmul.mubr.bf16.gmra.mrb[0].mxu0 %v4977
      %v5044 = vpop.f32.mrb[0].mxu0
      %v5045 = vadd.f32 0.0, %v5044
      %v5046 = vpop.f32.mrb[0].mxu0
      %v5047 = vpop.f32.mrb[0].mxu0
      %v5048 = vadd.f32 0.0, %v5047
      %v5049 = vpop.f32.mrb[0].mxu0
      %5050 = vmatprep.mubr.bf16.mxu0 0
      %5051 = vmatmul.mubr.bf16.gmra.mrb[0].mxu0 %v4980
      %v5052 = vpop.f32.mrb[0].mxu0
      %v5053 = vadd.f32 0.0, %v5052
      %v5054 = vpop.f32.mrb[0].mxu0
      %v5055 = vpop.f32.mrb[0].mxu0
      %v5056 = vadd.f32 0.0, %v5055
      %v5057 = vpop.f32.mrb[0].mxu0
      %5058 = vmatprep.mubr.bf16.mxu0 0
      %5059 = vmatmul.mubr.bf16.gmra.mrb[0].mxu0 %v4983
      %v5060 = vpop.f32.mrb[0].mxu0
      %v5061 = vadd.f32 0.0, %v5060
      %v5062 = vpop.f32.mrb[0].mxu0
      %v5063 = vpop.f32.mrb[0].mxu0
      %v5064 = vadd.f32 0.0, %v5063
      %v5065 = vpop.f32.mrb[0].mxu0
      %5066 = vmatprep.mubr.bf16.mxu0 0
      %5067 = vmatmul.mubr.bf16.gmra.mrb[0].mxu0 %v4986
      %v5068 = vpop.f32.mrb[0].mxu0
      %v5069 = vadd.f32 0.0, %v5068
      %v5070 = vpop.f32.mrb[0].mxu0
      %v5071 = vpop.f32.mrb[0].mxu0
      %v5072 = vadd.f32 0.0, %v5071
      %v5073 = vpop.f32.mrb[0].mxu0
      %5074 = vmatprep.mubr.bf16.mxu0 0
      %5075 = vmatmul.mubr.bf16.gmra.mrb[0].mxu0 %v4989
      %v5076 = vpop.f32.mrb[0].mxu0
      %v5077 = vadd.f32 0.0, %v5076
      %v5078 = vpop.f32.mrb[0].mxu0
      %v5079 = vpop.f32.mrb[0].mxu0
      %v5080 = vpop.f32.mrb[0].mxu0
      %5081 = vdwg.mxu0
      %v5082 = vadd.f32 %v4939, %v5029
      %v5083 = vadd.f32 %v4940, %v5032
      %v5084 = vadd.f32 %v4941, %v5037
      %v5085 = vadd.f32 %v4942, %v5040
      %v5086 = vadd.f32 %v4943, %v5045
      %v5087 = vadd.f32 %v4944, %v5048
      %v5088 = vadd.f32 %v4945, %v5053
      %v5089 = vadd.f32 %v4946, %v5056
      %v5090 = vadd.f32 %v4947, %v5061
      %v5091 = vadd.f32 %v4948, %v5064
      %v5092 = vadd.f32 %v4949, %v5069
      %v5093 = vadd.f32 %v4950, %v5072
      %v5094 = vadd.f32 %v4951, %v5077
      %v5095 = vadd.f32 %v5082, %v3511
      %v5096 = vadd.f32 %v5083, %v3511
      %v5097 = vadd.f32 %v5084, %v3511
      %v5098 = vadd.f32 %v5085, %v3511
      %v5099 = vadd.f32 %v5086, %v3511
      %v5100 = vadd.f32 %v5087, %v3511
      %v5101 = vadd.f32 %v5088, %v3511
      %v5102 = vadd.f32 %v5089, %v3511
      %v5103 = vadd.f32 %v5090, %v3511
      %v5104 = vadd.f32 %v5091, %v3511
      %v5105 = vadd.f32 %v5092, %v3511
      %v5106 = vadd.f32 %v5093, %v3511
      %v5107 = vadd.f32 %v5094, %v3511
      %v5108 = vmax.f32 %v5095, 0.0
      %v5109 = vmax.f32 %v5096, 0.0
      %v5110 = vmax.f32 %v5097, 0.0
      %v5111 = vmax.f32 %v5098, 0.0
      %v5112 = vmax.f32 %v5099, 0.0
      %v5113 = vmax.f32 %v5100, 0.0
      %v5114 = vmax.f32 %v5101, 0.0
      %v5115 = vmax.f32 %v5102, 0.0
      %v5116 = vmax.f32 %v5103, 0.0
      %v5117 = vmax.f32 %v5104, 0.0
      %v5118 = vmax.f32 %v5105, 0.0
      %v5119 = vmax.f32 %v5106, 0.0
      %v5120 = vmax.f32 %v5107, 0.0
      %5121 = vst.msk [vmem:[#allocation5 + $0x100] sm:$0xff] %vm3577, %v5108
      %5122 = vst.msk [vmem:[#allocation5 + $0x108] sm:$0xff] %vm3577, %v5109
      %5123 = vst.msk [vmem:[#allocation5 + $0x110] sm:$0xff] %vm3577, %v5110
      %5124 = vst.msk [vmem:[#allocation5 + $0x118] sm:$0xff] %vm3577, %v5111
      %5125 = vst.msk [vmem:[#allocation5 + $0x120] sm:$0xff] %vm3577, %v5112
      %5126 = vst.msk [vmem:[#allocation5 + $0x128] sm:$0xff] %vm3577, %v5113
      %5127 = vst.msk [vmem:[#allocation5 + $0x130] sm:$0xff] %vm3577, %v5114
      %5128 = vst.msk [vmem:[#allocation5 + $0x138] sm:$0xff] %vm3577, %v5115
      %5129 = vst.msk [vmem:[#allocation5 + $0x140] sm:$0xff] %vm3577, %v5116
      %5130 = vst.msk [vmem:[#allocation5 + $0x148] sm:$0xff] %vm3577, %v5117
      %5131 = vst.msk [vmem:[#allocation5 + $0x150] sm:$0xff] %vm3577, %v5118
      %5132 = vst.msk [vmem:[#allocation5 + $0x158] sm:$0xff] %vm3577, %v5119
      %vm5133 = vcmask 521216
      %5134 = vst.msk [vmem:[#allocation5 + $0x160] sm:$0x3f] %vm5133, %v5120
      %v5135 = vld [vmem:[#allocation5] ss:$2 sm:$0xff]
      %s5136 = scalar_lea.vmem [#allocation5], 16
      %v5137 = vld [vmem:[%s5136] ss:$2 sm:$0x1]
      %s5138 = scalar_lea.vmem [#allocation5], 1
      %v5139 = vld [vmem:[%s5138] ss:$2 sm:$0xff]
      %s5140 = scalar_lea.vmem [#allocation5], 17
      %v5141 = vld [vmem:[%s5140] ss:$2 sm:$0x1]
      %v5142 = vmax.f32 %v5135, %v5139
      %v5143 = vmax.f32 %v5137, %v5141
      %s5144 = scalar_lea.vmem [#allocation5], 20
      %v5145 = vld [vmem:[%s5144] ss:$2 sm:$0xff]
      %s5146 = scalar_lea.vmem [#allocation5], 36
      %v5147 = vld [vmem:[%s5146] ss:$2 sm:$0x1]
      %s5148 = scalar_lea.vmem [#allocation5], 21
      %v5149 = vld [vmem:[%s5148] ss:$2 sm:$0xff]
      %s5150 = scalar_lea.vmem [#allocation5], 37
      %v5151 = vld [vmem:[%s5150] ss:$2 sm:$0x1]
      %v5152 = vmax.f32 %v5145, %v5149
      %v5153 = vmax.f32 %v5147, %v5151
      %v5154 = vmax.f32 %v5142, %v5152
      %v5155 = vmax.f32 %v5143, %v5153
      %v5156 = vpack.c.bf16 %v5155, %v5154
      %v5158 = vunpack.c.l.b16 %v5156
      %v5159 = vunpack.c.h.b16 %v5156
      %v5160 = vpack.c.b16 %v5158, %v5158
      %v5161 = vpack.c.b16 %v5159, %v5159
      %5164 = vst.msk [vmem:[#allocation2] sm:$0xf] %vm334, %v5160
      %v5165 = vld [vmem:[#allocation2 + $0x4] sm:$0x1]
      %v5166 = vsel %vm340, %v5161, %v5165
      %5167 = vst [vmem:[#allocation2 + $0x4] sm:$0x1] %v5166
      %s5168 = scalar_lea.vmem [#allocation5], 40
      %v5169 = vld [vmem:[%s5168] ss:$2 sm:$0xff]
      %s5170 = scalar_lea.vmem [#allocation5], 56
      %v5171 = vld [vmem:[%s5170] ss:$2 sm:$0x1]
      %s5172 = scalar_lea.vmem [#allocation5], 41
      %v5173 = vld [vmem:[%s5172] ss:$2 sm:$0xff]
      %s5174 = scalar_lea.vmem [#allocation5], 57
      %v5175 = vld [vmem:[%s5174] ss:$2 sm:$0x1]
      %v5176 = vmax.f32 %v5169, %v5173
      %v5177 = vmax.f32 %v5171, %v5175
      %s5178 = scalar_lea.vmem [#allocation5], 60
      %v5179 = vld [vmem:[%s5178] ss:$2 sm:$0xff]
      %s5180 = scalar_lea.vmem [#allocation5], 76
      %v5181 = vld [vmem:[%s5180] ss:$2 sm:$0x1]
      %s5182 = scalar_lea.vmem [#allocation5], 61
      %v5183 = vld [vmem:[%s5182] ss:$2 sm:$0xff]
      %s5184 = scalar_lea.vmem [#allocation5], 77
      %v5185 = vld [vmem:[%s5184] ss:$2 sm:$0x1]
      %v5186 = vmax.f32 %v5179, %v5183
      %v5187 = vmax.f32 %v5181, %v5185
      %v5188 = vmax.f32 %v5176, %v5186
      %v5189 = vmax.f32 %v5177, %v5187
      %v5190 = vpack.c.bf16 %v5189, %v5188
      %v5192 = vunpack.c.l.b16 %v5190
      %v5193 = vunpack.c.h.b16 %v5190
      %v5194 = vpack.c.b16 %v5192, %v5192
      %v5195 = vpack.c.b16 %v5193, %v5193
      %vm5196 = vsmask.f32 4368
      %vm5197 = vmor %vm339, %vm5196
      %v5199 = vshrl.u32 %v5194, 16
      %v5201 = vrot.slane %v5199, 7
      %v5202 = vshll.u32 %v5194, 16
      %v5204 = vor.u32 %v5201, %v5202
      %v5205 = vrot.slane %v5201, 4
      %v5207 = vshll.u32 %v5195, 16
      %v5209 = vsel %vm5197, %v5205, %v5207
      %vm5212 = vcmask 519168
      %vm5213 = vsmask.f32 7938
      %vm5214 = vmand %vm5212, %vm5213
      %v5215 = vld [vmem:[#allocation2 + $0x4] sm:$0xf]
      %v5216 = vsel %vm5214, %v5204, %v5215
      %5217 = vst [vmem:[#allocation2 + $0x4] sm:$0xf] %v5216
      %vm5218 = vcmask 516096
      %5219 = vst.msk [vmem:[#allocation2 + $0x8] sm:$0x1] %vm5218, %v5209
      %s5220 = scalar_lea.vmem [#allocation5], 80
      %v5221 = vld [vmem:[%s5220] ss:$2 sm:$0xff]
      %s5222 = scalar_lea.vmem [#allocation5], 96
      %v5223 = vld [vmem:[%s5222] ss:$2 sm:$0x1]
      %s5224 = scalar_lea.vmem [#allocation5], 81
      %v5225 = vld [vmem:[%s5224] ss:$2 sm:$0xff]
      %s5226 = scalar_lea.vmem [#allocation5], 97
      %v5227 = vld [vmem:[%s5226] ss:$2 sm:$0x1]
      %v5228 = vmax.f32 %v5221, %v5225
      %v5229 = vmax.f32 %v5223, %v5227
      %s5230 = scalar_lea.vmem [#allocation5], 100
      %v5231 = vld [vmem:[%s5230] ss:$2 sm:$0xff]
      %s5232 = scalar_lea.vmem [#allocation5], 116
      %v5233 = vld [vmem:[%s5232] ss:$2 sm:$0x1]
      %s5234 = scalar_lea.vmem [#allocation5], 101
      %v5235 = vld [vmem:[%s5234] ss:$2 sm:$0xff]
      %s5236 = scalar_lea.vmem [#allocation5], 117
      %v5237 = vld [vmem:[%s5236] ss:$2 sm:$0x1]
      %v5238 = vmax.f32 %v5231, %v5235
      %v5239 = vmax.f32 %v5233, %v5237
      %v5240 = vmax.f32 %v5228, %v5238
      %v5241 = vmax.f32 %v5229, %v5239
      %v5242 = vpack.c.bf16 %v5241, %v5240
      %v5244 = vunpack.c.l.b16 %v5242
      %v5245 = vunpack.c.h.b16 %v5242
      %v5246 = vpack.c.b16 %v5244, %v5244
      %v5247 = vpack.c.b16 %v5245, %v5245
      %vm5248 = vcmask 1040384
      %vm5249 = vcmask 1044484
      %vm5250 = vmor %vm5248, %vm5249
      %v5251 = vrot.slane %v5246, 7
      %v5252 = vrot.slane %v5251, 4
      %v5253 = vrot.slane %v5247, 7
      %v5254 = vsel %vm5250, %v5252, %v5253
      %vm5257 = vcmask 519169
      %5258 = vst.msk [vmem:[#allocation2 + $0x8] sm:$0xe] %vm5257, %v5251
      %vm5259 = vcmask 517120
      %vm5260 = vsmask.f32 1280
      %vm5261 = vmand %vm5259, %vm5260
      %v5262 = vld [vmem:[#allocation2 + $0xc] sm:$0x3]
      %v5263 = vsel %vm5261, %v5254, %v5262
      %5264 = vst [vmem:[#allocation2 + $0xc] sm:$0x3] %v5263
      %s5265 = scalar_lea.vmem [#allocation5], 120
      %v5266 = vld [vmem:[%s5265] ss:$2 sm:$0xff]
      %s5267 = scalar_lea.vmem [#allocation5], 136
      %v5268 = vld [vmem:[%s5267] ss:$2 sm:$0x1]
      %s5269 = scalar_lea.vmem [#allocation5], 121
      %v5270 = vld [vmem:[%s5269] ss:$2 sm:$0xff]
      %s5271 = scalar_lea.vmem [#allocation5], 137
      %v5272 = vld [vmem:[%s5271] ss:$2 sm:$0x1]
      %v5273 = vmax.f32 %v5266, %v5270
      %v5274 = vmax.f32 %v5268, %v5272
      %s5275 = scalar_lea.vmem [#allocation5], 140
      %v5276 = vld [vmem:[%s5275] ss:$2 sm:$0xff]
      %s5277 = scalar_lea.vmem [#allocation5], 156
      %v5278 = vld [vmem:[%s5277] ss:$2 sm:$0x1]
      %s5279 = scalar_lea.vmem [#allocation5], 141
      %v5280 = vld [vmem:[%s5279] ss:$2 sm:$0xff]
      %s5281 = scalar_lea.vmem [#allocation5], 157
      %v5282 = vld [vmem:[%s5281] ss:$2 sm:$0x1]
      %v5283 = vmax.f32 %v5276, %v5280
      %v5284 = vmax.f32 %v5278, %v5282
      %v5285 = vmax.f32 %v5273, %v5283
      %v5286 = vmax.f32 %v5274, %v5284
      %v5287 = vpack.c.bf16 %v5286, %v5285
      %v5289 = vunpack.c.l.b16 %v5287
      %v5290 = vunpack.c.h.b16 %v5287
      %v5291 = vpack.c.b16 %v5289, %v5289
      %v5292 = vpack.c.b16 %v5290, %v5290
      %vm5293 = vsmask.f32 5392
      %vm5294 = vmor %vm5260, %vm5293
      %v5296 = vshrl.u32 %v5291, 16
      %v5298 = vrot.slane %v5296, 6
      %v5299 = vshll.u32 %v5291, 16
      %v5301 = vrot.slane %v5299, 7
      %v5302 = vor.u32 %v5298, %v5301
      %v5303 = vrot.slane %v5302, 4
      %v5305 = vshll.u32 %v5292, 16
      %v5307 = vrot.slane %v5305, 7
      %v5308 = vsel %vm5294, %v5303, %v5307
      %vm5311 = vcmask 519169
      %vm5312 = vsmask.f32 7942
      %vm5313 = vmand %vm5311, %vm5312
      %v5314 = vld [vmem:[#allocation2 + $0xc] sm:$0xe]
      %v5315 = vsel %vm5313, %v5302, %v5314
      %5316 = vst [vmem:[#allocation2 + $0xc] sm:$0xe] %v5315
      %vm5317 = vcmask 517120
      %5318 = vst.msk [vmem:[#allocation2 + $0x10] sm:$0x3] %vm5317, %v5308
      %s5319 = scalar_lea.vmem [#allocation5], 160
      %v5320 = vld [vmem:[%s5319] ss:$2 sm:$0xff]
      %s5321 = scalar_lea.vmem [#allocation5], 176
      %v5322 = vld [vmem:[%s5321] ss:$2 sm:$0x1]
      %s5323 = scalar_lea.vmem [#allocation5], 161
      %v5324 = vld [vmem:[%s5323] ss:$2 sm:$0xff]
      %s5325 = scalar_lea.vmem [#allocation5], 177
      %v5326 = vld [vmem:[%s5325] ss:$2 sm:$0x1]
      %v5327 = vmax.f32 %v5320, %v5324
      %v5328 = vmax.f32 %v5322, %v5326
      %s5329 = scalar_lea.vmem [#allocation5], 180
      %v5330 = vld [vmem:[%s5329] ss:$2 sm:$0xff]
      %s5331 = scalar_lea.vmem [#allocation5], 196
      %v5332 = vld [vmem:[%s5331] ss:$2 sm:$0x1]
      %s5333 = scalar_lea.vmem [#allocation5], 181
      %v5334 = vld [vmem:[%s5333] ss:$2 sm:$0xff]
      %s5335 = scalar_lea.vmem [#allocation5], 197
      %v5336 = vld [vmem:[%s5335] ss:$2 sm:$0x1]
      %v5337 = vmax.f32 %v5330, %v5334
      %v5338 = vmax.f32 %v5332, %v5336
      %v5339 = vmax.f32 %v5327, %v5337
      %v5340 = vmax.f32 %v5328, %v5338
      %v5341 = vpack.c.bf16 %v5340, %v5339
      %v5343 = vunpack.c.l.b16 %v5341
      %v5344 = vunpack.c.h.b16 %v5341
      %v5345 = vpack.c.b16 %v5343, %v5343
      %v5346 = vpack.c.b16 %v5344, %v5344
      %vm5347 = vcmask 1041408
      %vm5348 = vcmask 1045508
      %vm5349 = vmor %vm5347, %vm5348
      %v5350 = vrot.slane %v5345, 6
      %v5351 = vrot.slane %v5350, 4
      %v5352 = vrot.slane %v5346, 6
      %v5353 = vsel %vm5349, %v5351, %v5352
      %vm5356 = vcmask 519170
      %5357 = vst.msk [vmem:[#allocation2 + $0x10] sm:$0xc] %vm5356, %v5350
      %vm5358 = vcmask 518144
      %vm5359 = vsmask.f32 2304
      %vm5360 = vmand %vm5358, %vm5359
      %v5361 = vld [vmem:[#allocation2 + $0x14] sm:$0x7]
      %v5362 = vsel %vm5360, %v5353, %v5361
      %5363 = vst [vmem:[#allocation2 + $0x14] sm:$0x7] %v5362
      %s5364 = scalar_lea.vmem [#allocation5], 200
      %v5365 = vld [vmem:[%s5364] ss:$2 sm:$0xff]
      %s5366 = scalar_lea.vmem [#allocation5], 216
      %v5367 = vld [vmem:[%s5366] ss:$2 sm:$0x1]
      %s5368 = scalar_lea.vmem [#allocation5], 201
      %v5369 = vld [vmem:[%s5368] ss:$2 sm:$0xff]
      %s5370 = scalar_lea.vmem [#allocation5], 217
      %v5371 = vld [vmem:[%s5370] ss:$2 sm:$0x1]
      %v5372 = vmax.f32 %v5365, %v5369
      %v5373 = vmax.f32 %v5367, %v5371
      %s5374 = scalar_lea.vmem [#allocation5], 220
      %v5375 = vld [vmem:[%s5374] ss:$2 sm:$0xff]
      %s5376 = scalar_lea.vmem [#allocation5], 236
      %v5377 = vld [vmem:[%s5376] ss:$2 sm:$0x1]
      %s5378 = scalar_lea.vmem [#allocation5], 221
      %v5379 = vld [vmem:[%s5378] ss:$2 sm:$0xff]
      %s5380 = scalar_lea.vmem [#allocation5], 237
      %v5381 = vld [vmem:[%s5380] ss:$2 sm:$0x1]
      %v5382 = vmax.f32 %v5375, %v5379
      %v5383 = vmax.f32 %v5377, %v5381
      %v5384 = vmax.f32 %v5372, %v5382
      %v5385 = vmax.f32 %v5373, %v5383
      %v5386 = vpack.c.bf16 %v5385, %v5384
      %v5388 = vunpack.c.l.b16 %v5386
      %v5389 = vunpack.c.h.b16 %v5386
      %v5390 = vpack.c.b16 %v5388, %v5388
      %v5391 = vpack.c.b16 %v5389, %v5389
      %vm5392 = vsmask.f32 6416
      %vm5393 = vmor %vm5359, %vm5392
      %v5395 = vshrl.u32 %v5390, 16
      %v5397 = vrot.slane %v5395, 5
      %v5398 = vshll.u32 %v5390, 16
      %v5400 = vrot.slane %v5398, 6
      %v5401 = vor.u32 %v5397, %v5400
      %v5402 = vrot.slane %v5401, 4
      %v5404 = vshll.u32 %v5391, 16
      %v5406 = vrot.slane %v5404, 6
      %v5407 = vsel %vm5393, %v5402, %v5406
      %vm5410 = vcmask 519170
      %vm5411 = vsmask.f32 7946
      %vm5412 = vmand %vm5410, %vm5411
      %v5413 = vld [vmem:[#allocation2 + $0x14] sm:$0xc]
      %v5414 = vsel %vm5412, %v5401, %v5413
      %5415 = vst [vmem:[#allocation2 + $0x14] sm:$0xc] %v5414
      %vm5416 = vcmask 518144
      %5417 = vst.msk [vmem:[#allocation2 + $0x18] sm:$0x7] %vm5416, %v5407
      %s5418 = scalar_lea.vmem [#allocation5], 240
      %v5419 = vld [vmem:[%s5418] ss:$2 sm:$0xff]
      %s5420 = scalar_lea.vmem [#allocation5], 256
      %v5421 = vld [vmem:[%s5420] ss:$2 sm:$0x1]
      %s5422 = scalar_lea.vmem [#allocation5], 241
      %v5423 = vld [vmem:[%s5422] ss:$2 sm:$0xff]
      %s5424 = scalar_lea.vmem [#allocation5], 257
      %v5425 = vld [vmem:[%s5424] ss:$2 sm:$0x1]
      %v5426 = vmax.f32 %v5419, %v5423
      %v5427 = vmax.f32 %v5421, %v5425
      %s5428 = scalar_lea.vmem [#allocation5], 260
      %v5429 = vld [vmem:[%s5428] ss:$2 sm:$0xff]
      %s5430 = scalar_lea.vmem [#allocation5], 276
      %v5431 = vld [vmem:[%s5430] ss:$2 sm:$0x1]
      %s5432 = scalar_lea.vmem [#allocation5], 261
      %v5433 = vld [vmem:[%s5432] ss:$2 sm:$0xff]
      %s5434 = scalar_lea.vmem [#allocation5], 277
      %v5435 = vld [vmem:[%s5434] ss:$2 sm:$0x1]
      %v5436 = vmax.f32 %v5429, %v5433
      %v5437 = vmax.f32 %v5431, %v5435
      %v5438 = vmax.f32 %v5426, %v5436
      %v5439 = vmax.f32 %v5427, %v5437
      %v5440 = vpack.c.bf16 %v5439, %v5438
      %v5442 = vunpack.c.l.b16 %v5440
      %v5443 = vunpack.c.h.b16 %v5440
      %v5444 = vpack.c.b16 %v5442, %v5442
      %v5445 = vpack.c.b16 %v5443, %v5443
      %vm5446 = vcmask 1042432
      %vm5447 = vcmask 1046532
      %vm5448 = vmor %vm5446, %vm5447
      %v5449 = vrot.slane %v5444, 5
      %v5450 = vrot.slane %v5449, 4
      %v5451 = vrot.slane %v5445, 5
      %v5452 = vsel %vm5448, %v5450, %v5451
      %vm5455 = vcmask 519171
      %5456 = vst.msk [vmem:[#allocation2 + $0x18] sm:$0x8] %vm5455, %v5449
      %vm5457 = vsmask.f32 3328
      %vm5458 = vmand %vm5212, %vm5457
      %v5459 = vld [vmem:[#allocation2 + $0x1c] sm:$0xf]
      %v5460 = vsel %vm5458, %v5452, %v5459
      %5461 = vst [vmem:[#allocation2 + $0x1c] sm:$0xf] %v5460
      %s5462 = scalar_lea.vmem [#allocation5], 280
      %v5463 = vld [vmem:[%s5462] ss:$2 sm:$0xff]
      %s5464 = scalar_lea.vmem [#allocation5], 296
      %v5465 = vld [vmem:[%s5464] ss:$2 sm:$0x1]
      %s5466 = scalar_lea.vmem [#allocation5], 281
      %v5467 = vld [vmem:[%s5466] ss:$2 sm:$0xff]
      %s5468 = scalar_lea.vmem [#allocation5], 297
      %v5469 = vld [vmem:[%s5468] ss:$2 sm:$0x1]
      %v5470 = vmax.f32 %v5463, %v5467
      %v5471 = vmax.f32 %v5465, %v5469
      %s5472 = scalar_lea.vmem [#allocation5], 300
      %v5473 = vld [vmem:[%s5472] ss:$2 sm:$0xff]
      %s5474 = scalar_lea.vmem [#allocation5], 316
      %v5475 = vld [vmem:[%s5474] ss:$2 sm:$0x1]
      %s5476 = scalar_lea.vmem [#allocation5], 301
      %v5477 = vld [vmem:[%s5476] ss:$2 sm:$0xff]
      %s5478 = scalar_lea.vmem [#allocation5], 317
      %v5479 = vld [vmem:[%s5478] ss:$2 sm:$0x1]
      %v5480 = vmax.f32 %v5473, %v5477
      %v5481 = vmax.f32 %v5475, %v5479
      %v5482 = vmax.f32 %v5470, %v5480
      %v5483 = vmax.f32 %v5471, %v5481
      %v5484 = vpack.c.bf16 %v5483, %v5482
      %v5486 = vunpack.c.l.b16 %v5484
      %v5487 = vunpack.c.h.b16 %v5484
      %v5488 = vpack.c.b16 %v5486, %v5486
      %v5489 = vpack.c.b16 %v5487, %v5487
      %vm5490 = vsmask.f32 7440
      %vm5491 = vmor %vm5457, %vm5490
      %v5493 = vshll.u32 %v5488, 16
      %v5495 = vrot.slane %v5493, 5
      %v5496 = vshrl.u32 %v5488, 16
      %v5498 = vrot.slane %v5496, 4
      %v5499 = vor.u32 %v5498, %v5495
      %v5500 = vrot.slane %v5499, 4
      %v5502 = vshll.u32 %v5489, 16
      %v5504 = vrot.slane %v5502, 5
      %v5505 = vsel %vm5491, %v5500, %v5504
      %vm5508 = vcmask 519171
      %vm5509 = vsmask.f32 7950
      %vm5510 = vmand %vm5508, %vm5509
      %v5511 = vld [vmem:[#allocation2 + $0x1c] sm:$0x8]
      %v5512 = vsel %vm5510, %v5495, %v5511
      %5513 = vst [vmem:[#allocation2 + $0x1c] sm:$0x8] %v5512
      %5514 = vst.msk [vmem:[#allocation2 + $0x20] sm:$0xf] %vm334, %v5505
      %s5515 = scalar_lea.vmem [#allocation5], 320
      %v5516 = vld [vmem:[%s5515] ss:$2 sm:$0xff]
      %s5517 = scalar_lea.vmem [#allocation5], 336
      %v5518 = vld [vmem:[%s5517] ss:$2 sm:$0x1]
      %s5519 = scalar_lea.vmem [#allocation5], 321
      %v5520 = vld [vmem:[%s5519] ss:$2 sm:$0xff]
      %s5521 = scalar_lea.vmem [#allocation5], 337
      %v5522 = vld [vmem:[%s5521] ss:$2 sm:$0x1]
      %v5523 = vmax.f32 %v5516, %v5520
      %v5524 = vmax.f32 %v5518, %v5522
      %s5525 = scalar_lea.vmem [#allocation5], 340
      %v5526 = vld [vmem:[%s5525] ss:$2 sm:$0xff]
      %s5527 = scalar_lea.vmem [#allocation5], 356
      %v5528 = vld [vmem:[%s5527] ss:$2 sm:$0x1]
      %s5529 = scalar_lea.vmem [#allocation5], 341
      %v5530 = vld [vmem:[%s5529] ss:$2 sm:$0xff]
      %s5531 = scalar_lea.vmem [#allocation5], 357
      %v5532 = vld [vmem:[%s5531] ss:$2 sm:$0x1]
      %v5533 = vmax.f32 %v5526, %v5530
      %v5534 = vmax.f32 %v5528, %v5532
      %v5535 = vmax.f32 %v5523, %v5533
      %v5536 = vmax.f32 %v5524, %v5534
      %v5537 = vpack.c.bf16 %v5536, %v5535
      %v5539 = vunpack.c.l.b16 %v5537
      %v5540 = vunpack.c.h.b16 %v5537
      %v5541 = vpack.c.b16 %v5539, %v5539
      %v5542 = vpack.c.b16 %v5540, %v5540
      %5545 = vst.msk [vmem:[#allocation2 + $0x24] sm:$0xf] %vm334, %v5541
      %v5546 = vld [vmem:[#allocation2 + $0x28] sm:$0x1]
      %v5547 = vsel %vm340, %v5542, %v5546
      %5548 = vst [vmem:[#allocation2 + $0x28] sm:$0x1] %v5547
      %v5549 = vld [vmem:[%s4] sm:$0x1]
      %v5550 = vld [vmem:[#allocation2] sm:$0xf]
      %v5551 = vld [vmem:[#allocation2 + $0x4] sm:$0xf]
      %v5552 = vld [vmem:[#allocation2 + $0x8] sm:$0xf]
      %v5553 = vld [vmem:[#allocation2 + $0xc] sm:$0xf]
      %v5554 = vld [vmem:[#allocation2 + $0x10] sm:$0xf]
      %v5555 = vld [vmem:[#allocation2 + $0x14] sm:$0xf]
      %v5556 = vld [vmem:[#allocation2 + $0x18] sm:$0xf]
      %v5557 = vld [vmem:[#allocation2 + $0x1c] sm:$0x7]
      %v5558 = vld [vmem:[%s3] sm:$0xf]
      %v5559 = vld [vmem:[%s3 + $0x4] sm:$0xf]
      %v5560 = vld [vmem:[%s3 + $0x8] sm:$0xf]
      %v5561 = vld [vmem:[%s3 + $0xc] sm:$0xf]
      %v5562 = vld [vmem:[%s3 + $0x10] sm:$0xf]
      %v5563 = vld [vmem:[%s3 + $0x14] sm:$0xf]
      %v5564 = vld [vmem:[%s3 + $0x18] sm:$0xf]
      %v5565 = vld [vmem:[%s3 + $0x1c] sm:$0xf]
      %v5566 = vld [vmem:[%s3 + $0x20] sm:$0xf]
      %v5567 = vld [vmem:[%s3 + $0x24] sm:$0xf]
      %v5568 = vld [vmem:[%s3 + $0x28] sm:$0xf]
      %v5569 = vld [vmem:[%s3 + $0x2c] sm:$0xf]
      %v5570 = vld [vmem:[%s3 + $0x30] sm:$0xf]
      %v5571 = vld [vmem:[%s3 + $0x34] sm:$0xf]
      %v5572 = vld [vmem:[%s3 + $0x38] sm:$0xf]
      %v5573 = vld [vmem:[%s3 + $0x3c] sm:$0xf]
      %v5582 = vunpack.c.l.b16 %v5550
      %v5583 = vunpack.c.l.b16 %v5551
      %v5584 = vunpack.c.l.b16 %v5552
      %v5585 = vunpack.c.l.b16 %v5553
      %v5586 = vunpack.c.l.b16 %v5554
      %v5587 = vunpack.c.l.b16 %v5555
      %v5588 = vunpack.c.l.b16 %v5556
      %v5589 = vunpack.c.l.b16 %v5557
      %v5590 = vpack.c.b16 %v5583, %v5582
      %v5591 = vpack.c.b16 %v5585, %v5584
      %v5592 = vpack.c.b16 %v5587, %v5586
      %v5593 = vpack.c.b16 %v5589, %v5588
      %v5595 = vshrl.u32 %v5590, 16
      %v5597 = vshll.u32 %v5590, 16
      %v5599 = vrot.slane %v5597, 1
      %v5600 = vor.u32 %v5595, %v5599
      %v5602 = vshll.u32 %v5591, 16
      %v5604 = vrot.slane %v5602, 1
      %v5605 = vsel %vm469, %v5600, %v5604
      %v5606 = vshrl.u32 %v5591, 16
      %v5608 = vor.u32 %v5606, %v5604
      %v5610 = vshll.u32 %v5592, 16
      %v5612 = vrot.slane %v5610, 1
      %v5613 = vsel %vm469, %v5608, %v5612
      %v5614 = vshrl.u32 %v5592, 16
      %v5616 = vor.u32 %v5614, %v5612
      %v5618 = vshll.u32 %v5593, 16
      %v5620 = vrot.slane %v5618, 1
      %v5621 = vsel %vm469, %v5616, %v5620
      %v5622 = vshrl.u32 %v5593, 16
      %v5624 = vor.u32 %v5622, %v5620
      %v5633 = vunpack.c.l.b16 %v5566
      %v5634 = vunpack.c.l.b16 %v5567
      %v5635 = vunpack.c.l.b16 %v5568
      %v5636 = vunpack.c.l.b16 %v5569
      %v5637 = vunpack.c.l.b16 %v5570
      %v5638 = vunpack.c.l.b16 %v5571
      %v5639 = vunpack.c.l.b16 %v5572
      %v5640 = vunpack.c.l.b16 %v5573
      %v5641 = vpack.c.b16 %v5634, %v5633
      %v5642 = vpack.c.b16 %v5636, %v5635
      %v5643 = vpack.c.b16 %v5638, %v5637
      %v5644 = vpack.c.b16 %v5640, %v5639
      %v5650 = vsel %vm3577, %v5605, 0
      %v5653 = vsel %vm3577, %v5613, 0
      %v5656 = vsel %vm3577, %v5621, 0
      %v5659 = vsel %vm3577, %v5624, 0
      %5661 = vmatprep.subr.bf16.mxu0 0
      %5662 = vmatpush1.bf16.msra.mxu0 %v5641
      %5663 = vmatprep.subr.bf16.mxu0 0
      %5664 = vmatpush1.bf16.msra.mxu0 %v5642
      %5665 = vmatprep.subr.bf16.mxu0 0
      %5666 = vmatpush1.bf16.msra.mxu0 %v5643
      %5667 = vmatprep.subr.bf16.mxu0 0
      %5668 = vmatpush1.bf16.msra.mxu0 %v5644
      %5669 = vmatprep.subr.bf16.mxu0 0
      %5670 = vmatpush1.bf16.msra.mxu0 0
      %5671 = vmatprep.subr.bf16.mxu0 0
      %5672 = vmatpush1.bf16.msra.mxu0 0
      %5673 = vmatprep.subr.bf16.mxu0 0
      %5674 = vmatpush1.bf16.msra.mxu0 0
      %5675 = vmatprep.subr.bf16.mxu0 0
      %5676 = vmatpush1.bf16.msra.mxu0 0
      %5677 = vmatprep.subr.bf16.mxu0 0
      %5678 = vmatpush1.bf16.msra.mxu0 0
      %5679 = vmatprep.subr.bf16.mxu0 0
      %5680 = vmatpush1.bf16.msra.mxu0 0
      %5681 = vmatprep.subr.bf16.mxu0 0
      %5682 = vmatpush1.bf16.msra.mxu0 0
      %5683 = vmatprep.subr.bf16.mxu0 0
      %5684 = vmatpush1.bf16.msra.mxu0 0
      %5685 = vmatprep.subr.bf16.mxu0 0
      %5686 = vmatpush1.bf16.msra.mxu0 0
      %5687 = vmatprep.subr.bf16.mxu0 0
      %5688 = vmatpush1.bf16.msra.mxu0 0
      %5689 = vmatprep.subr.bf16.mxu0 0
      %5690 = vmatpush1.bf16.msra.mxu0 0
      %5691 = vmatprep.subr.bf16.mxu0 0
      %5692 = vmatpush1.bf16.msra.mxu0 0
      %5693 = vmatprep.mubr.bf16.mxu0 0
      %5694 = vmatmul.mubr.bf16.gmra.mrb[0].mxu0 %v5650
      %v5695 = vpop.f32.mrb[0].mxu0
      %v5696 = vadd.f32 0.0, %v5695
      %v5697 = vpop.f32.mrb[0].mxu0
      %v5698 = vpop.f32.mrb[0].mxu0
      %v5699 = vadd.f32 0.0, %v5698
      %v5700 = vpop.f32.mrb[0].mxu0
      %5701 = vmatprep.mubr.bf16.mxu0 0
      %5702 = vmatmul.mubr.bf16.gmra.mrb[0].mxu0 %v5653
      %v5703 = vpop.f32.mrb[0].mxu0
      %v5704 = vadd.f32 0.0, %v5703
      %v5705 = vpop.f32.mrb[0].mxu0
      %v5706 = vpop.f32.mrb[0].mxu0
      %v5707 = vadd.f32 0.0, %v5706
      %v5708 = vpop.f32.mrb[0].mxu0
      %5709 = vmatprep.mubr.bf16.mxu0 0
      %5710 = vmatmul.mubr.bf16.gmra.mrb[0].mxu0 %v5656
      %v5711 = vpop.f32.mrb[0].mxu0
      %v5712 = vadd.f32 0.0, %v5711
      %v5713 = vpop.f32.mrb[0].mxu0
      %v5714 = vpop.f32.mrb[0].mxu0
      %v5715 = vadd.f32 0.0, %v5714
      %v5716 = vpop.f32.mrb[0].mxu0
      %5717 = vmatprep.mubr.bf16.mxu0 0
      %5718 = vmatmul.mubr.bf16.gmra.mrb[0].mxu0 %v5659
      %v5719 = vpop.f32.mrb[0].mxu0
      %v5720 = vadd.f32 0.0, %v5719
      %v5721 = vpop.f32.mrb[0].mxu0
      %v5722 = vpop.f32.mrb[0].mxu0
      %v5723 = vadd.f32 0.0, %v5722
      %v5724 = vpop.f32.mrb[0].mxu0
      %5725 = vdwg.mxu0
      %v5734 = vunpack.c.l.b16 %v5558
      %v5735 = vunpack.c.l.b16 %v5559
      %v5736 = vunpack.c.l.b16 %v5560
      %v5737 = vunpack.c.l.b16 %v5561
      %v5738 = vunpack.c.l.b16 %v5562
      %v5739 = vunpack.c.l.b16 %v5563
      %v5740 = vunpack.c.l.b16 %v5564
      %v5741 = vunpack.c.l.b16 %v5565
      %v5742 = vpack.c.b16 %v5735, %v5734
      %v5743 = vpack.c.b16 %v5737, %v5736
      %v5744 = vpack.c.b16 %v5739, %v5738
      %v5745 = vpack.c.b16 %v5741, %v5740
      %v5750 = vsel %vm3577, %v5590, 0
      %v5752 = vsel %vm3577, %v5591, 0
      %v5754 = vsel %vm3577, %v5592, 0
      %v5756 = vsel %vm3577, %v5593, 0
      %5758 = vmatprep.subr.bf16.mxu0 0
      %5759 = vmatpush1.bf16.msra.mxu0 %v5742
      %5760 = vmatprep.subr.bf16.mxu0 0
      %5761 = vmatpush1.bf16.msra.mxu0 %v5743
      %5762 = vmatprep.subr.bf16.mxu0 0
      %5763 = vmatpush1.bf16.msra.mxu0 %v5744
      %5764 = vmatprep.subr.bf16.mxu0 0
      %5765 = vmatpush1.bf16.msra.mxu0 %v5745
      %5766 = vmatprep.subr.bf16.mxu0 0
      %5767 = vmatpush1.bf16.msra.mxu0 0
      %5768 = vmatprep.subr.bf16.mxu0 0
      %5769 = vmatpush1.bf16.msra.mxu0 0
      %5770 = vmatprep.subr.bf16.mxu0 0
      %5771 = vmatpush1.bf16.msra.mxu0 0
      %5772 = vmatprep.subr.bf16.mxu0 0
      %5773 = vmatpush1.bf16.msra.mxu0 0
      %5774 = vmatprep.subr.bf16.mxu0 0
      %5775 = vmatpush1.bf16.msra.mxu0 0
      %5776 = vmatprep.subr.bf16.mxu0 0
      %5777 = vmatpush1.bf16.msra.mxu0 0
      %5778 = vmatprep.subr.bf16.mxu0 0
      %5779 = vmatpush1.bf16.msra.mxu0 0
      %5780 = vmatprep.subr.bf16.mxu0 0
      %5781 = vmatpush1.bf16.msra.mxu0 0
      %5782 = vmatprep.subr.bf16.mxu0 0
      %5783 = vmatpush1.bf16.msra.mxu0 0
      %5784 = vmatprep.subr.bf16.mxu0 0
      %5785 = vmatpush1.bf16.msra.mxu0 0
      %5786 = vmatprep.subr.bf16.mxu0 0
      %5787 = vmatpush1.bf16.msra.mxu0 0
      %5788 = vmatprep.subr.bf16.mxu0 0
      %5789 = vmatpush1.bf16.msra.mxu0 0
      %5790 = vmatprep.mubr.bf16.mxu0 0
      %5791 = vmatmul.mubr.bf16.gmra.mrb[0].mxu0 %v5750
      %v5792 = vpop.f32.mrb[0].mxu0
      %v5793 = vadd.f32 %v5696, %v5792
      %v5794 = vpop.f32.mrb[0].mxu0
      %v5795 = vpop.f32.mrb[0].mxu0
      %v5796 = vadd.f32 %v5699, %v5795
      %v5797 = vpop.f32.mrb[0].mxu0
      %5798 = vmatprep.mubr.bf16.mxu0 0
      %5799 = vmatmul.mubr.bf16.gmra.mrb[0].mxu0 %v5752
      %v5800 = vpop.f32.mrb[0].mxu0
      %v5801 = vadd.f32 %v5704, %v5800
      %v5802 = vpop.f32.mrb[0].mxu0
      %v5803 = vpop.f32.mrb[0].mxu0
      %v5804 = vadd.f32 %v5707, %v5803
      %v5805 = vpop.f32.mrb[0].mxu0
      %5806 = vmatprep.mubr.bf16.mxu0 0
      %5807 = vmatmul.mubr.bf16.gmra.mrb[0].mxu0 %v5754
      %v5808 = vpop.f32.mrb[0].mxu0
      %v5809 = vadd.f32 %v5712, %v5808
      %v5810 = vpop.f32.mrb[0].mxu0
      %v5811 = vpop.f32.mrb[0].mxu0
      %v5812 = vadd.f32 %v5715, %v5811
      %v5813 = vpop.f32.mrb[0].mxu0
      %5814 = vmatprep.mubr.bf16.mxu0 0
      %5815 = vmatmul.mubr.bf16.gmra.mrb[0].mxu0 %v5756
      %v5816 = vpop.f32.mrb[0].mxu0
      %v5817 = vadd.f32 %v5720, %v5816
      %v5818 = vpop.f32.mrb[0].mxu0
      %v5819 = vpop.f32.mrb[0].mxu0
      %v5820 = vadd.f32 %v5723, %v5819
      %v5821 = vpop.f32.mrb[0].mxu0
      %5822 = vdwg.mxu0
      %v5823 = vld [vmem:[#allocation2] sm:$0xe]
      %v5824 = vld [vmem:[#allocation2 + $0x1c] sm:$0xf]
      %v5825 = vld [vmem:[%s3 + $0x40] sm:$0xf]
      %v5826 = vld [vmem:[%s3 + $0x44] sm:$0xf]
      %v5827 = vld [vmem:[%s3 + $0x48] sm:$0xf]
      %v5828 = vld [vmem:[%s3 + $0x4c] sm:$0xf]
      %v5829 = vld [vmem:[%s3 + $0x50] sm:$0xf]
      %v5830 = vld [vmem:[%s3 + $0x54] sm:$0xf]
      %v5831 = vld [vmem:[%s3 + $0x58] sm:$0xf]
      %v5832 = vld [vmem:[%s3 + $0x5c] sm:$0xf]
      %v5835 = vunpack.c.l.b16 %v5823
      %v5836 = vunpack.c.l.b16 %v5824
      %v5837 = vpack.c.b16 %v5583, %v5835
      %v5838 = vpack.c.b16 %v5836, %v5588
      %v5839 = vrot.slane %v5837, 1
      %v5840 = vrot.slane %v5591, 1
      %v5841 = vsel %vm1017, %v5839, %v5840
      %v5842 = vrot.slane %v5592, 1
      %v5843 = vsel %vm1017, %v5840, %v5842
      %v5844 = vrot.slane %v5838, 1
      %v5845 = vsel %vm1017, %v5842, %v5844
      %v5854 = vunpack.c.l.b16 %v5825
      %v5855 = vunpack.c.l.b16 %v5826
      %v5856 = vunpack.c.l.b16 %v5827
      %v5857 = vunpack.c.l.b16 %v5828
      %v5858 = vunpack.c.l.b16 %v5829
      %v5859 = vunpack.c.l.b16 %v5830
      %v5860 = vunpack.c.l.b16 %v5831
      %v5861 = vunpack.c.l.b16 %v5832
      %v5862 = vpack.c.b16 %v5855, %v5854
      %v5863 = vpack.c.b16 %v5857, %v5856
      %v5864 = vpack.c.b16 %v5859, %v5858
      %v5865 = vpack.c.b16 %v5861, %v5860
      %v5871 = vsel %vm3577, %v5841, 0
      %v5874 = vsel %vm3577, %v5843, 0
      %v5877 = vsel %vm3577, %v5845, 0
      %v5880 = vsel %vm3577, %v5844, 0
      %5882 = vmatprep.subr.bf16.mxu0 0
      %5883 = vmatpush1.bf16.msra.mxu0 %v5862
      %5884 = vmatprep.subr.bf16.mxu0 0
      %5885 = vmatpush1.bf16.msra.mxu0 %v5863
      %5886 = vmatprep.subr.bf16.mxu0 0
      %5887 = vmatpush1.bf16.msra.mxu0 %v5864
      %5888 = vmatprep.subr.bf16.mxu0 0
      %5889 = vmatpush1.bf16.msra.mxu0 %v5865
      %5890 = vmatprep.subr.bf16.mxu0 0
      %5891 = vmatpush1.bf16.msra.mxu0 0
      %5892 = vmatprep.subr.bf16.mxu0 0
      %5893 = vmatpush1.bf16.msra.mxu0 0
      %5894 = vmatprep.subr.bf16.mxu0 0
      %5895 = vmatpush1.bf16.msra.mxu0 0
      %5896 = vmatprep.subr.bf16.mxu0 0
      %5897 = vmatpush1.bf16.msra.mxu0 0
      %5898 = vmatprep.subr.bf16.mxu0 0
      %5899 = vmatpush1.bf16.msra.mxu0 0
      %5900 = vmatprep.subr.bf16.mxu0 0
      %5901 = vmatpush1.bf16.msra.mxu0 0
      %5902 = vmatprep.subr.bf16.mxu0 0
      %5903 = vmatpush1.bf16.msra.mxu0 0
      %5904 = vmatprep.subr.bf16.mxu0 0
      %5905 = vmatpush1.bf16.msra.mxu0 0
      %5906 = vmatprep.subr.bf16.mxu0 0
      %5907 = vmatpush1.bf16.msra.mxu0 0
      %5908 = vmatprep.subr.bf16.mxu0 0
      %5909 = vmatpush1.bf16.msra.mxu0 0
      %5910 = vmatprep.subr.bf16.mxu0 0
      %5911 = vmatpush1.bf16.msra.mxu0 0
      %5912 = vmatprep.subr.bf16.mxu0 0
      %5913 = vmatpush1.bf16.msra.mxu0 0
      %5914 = vmatprep.mubr.bf16.mxu0 0
      %5915 = vmatmul.mubr.bf16.gmra.mrb[0].mxu0 %v5871
      %v5916 = vpop.f32.mrb[0].mxu0
      %v5917 = vadd.f32 0.0, %v5916
      %v5918 = vpop.f32.mrb[0].mxu0
      %v5919 = vpop.f32.mrb[0].mxu0
      %v5920 = vadd.f32 0.0, %v5919
      %v5921 = vpop.f32.mrb[0].mxu0
      %5922 = vmatprep.mubr.bf16.mxu0 0
      %5923 = vmatmul.mubr.bf16.gmra.mrb[0].mxu0 %v5874
      %v5924 = vpop.f32.mrb[0].mxu0
      %v5925 = vadd.f32 0.0, %v5924
      %v5926 = vpop.f32.mrb[0].mxu0
      %v5927 = vpop.f32.mrb[0].mxu0
      %v5928 = vadd.f32 0.0, %v5927
      %v5929 = vpop.f32.mrb[0].mxu0
      %5930 = vmatprep.mubr.bf16.mxu0 0
      %5931 = vmatmul.mubr.bf16.gmra.mrb[0].mxu0 %v5877
      %v5932 = vpop.f32.mrb[0].mxu0
      %v5933 = vadd.f32 0.0, %v5932
      %v5934 = vpop.f32.mrb[0].mxu0
      %v5935 = vpop.f32.mrb[0].mxu0
      %v5936 = vadd.f32 0.0, %v5935
      %v5937 = vpop.f32.mrb[0].mxu0
      %5938 = vmatprep.mubr.bf16.mxu0 0
      %5939 = vmatmul.mubr.bf16.gmra.mrb[0].mxu0 %v5880
      %v5940 = vpop.f32.mrb[0].mxu0
      %v5941 = vadd.f32 0.0, %v5940
      %v5942 = vpop.f32.mrb[0].mxu0
      %v5943 = vpop.f32.mrb[0].mxu0
      %v5944 = vadd.f32 0.0, %v5943
      %v5945 = vpop.f32.mrb[0].mxu0
      %5946 = vdwg.mxu0
      %v5947 = vadd.f32 %v5793, %v5917
      %v5948 = vadd.f32 %v5796, %v5920
      %v5949 = vadd.f32 %v5801, %v5925
      %v5950 = vadd.f32 %v5804, %v5928
      %v5951 = vadd.f32 %v5809, %v5933
      %v5952 = vadd.f32 %v5812, %v5936
      %v5953 = vadd.f32 %v5817, %v5941
      %v5954 = vadd.f32 %v5820, %v5944
      %v5955 = vld [vmem:[#allocation2 + $0x4] sm:$0xf]
      %v5956 = vld [vmem:[#allocation2 + $0x8] sm:$0xf]
      %v5957 = vld [vmem:[#allocation2 + $0xc] sm:$0xf]
      %v5958 = vld [vmem:[#allocation2 + $0x10] sm:$0xf]
      %v5959 = vld [vmem:[#allocation2 + $0x14] sm:$0xf]
      %v5960 = vld [vmem:[#allocation2 + $0x18] sm:$0xf]
      %v5961 = vld [vmem:[#allocation2 + $0x1c] sm:$0xf]
      %v5962 = vld [vmem:[#allocation2 + $0x20] sm:$0x7]
      %v5963 = vld [vmem:[%s3 + $0x60] sm:$0xf]
      %v5964 = vld [vmem:[%s3 + $0x64] sm:$0xf]
      %v5965 = vld [vmem:[%s3 + $0x68] sm:$0xf]
      %v5966 = vld [vmem:[%s3 + $0x6c] sm:$0xf]
      %v5967 = vld [vmem:[%s3 + $0x70] sm:$0xf]
      %v5968 = vld [vmem:[%s3 + $0x74] sm:$0xf]
      %v5969 = vld [vmem:[%s3 + $0x78] sm:$0xf]
      %v5970 = vld [vmem:[%s3 + $0x7c] sm:$0xf]
      %v5979 = vunpack.c.l.b16 %v5955
      %v5980 = vunpack.c.l.b16 %v5956
      %v5981 = vunpack.c.l.b16 %v5957
      %v5982 = vunpack.c.l.b16 %v5958
      %v5983 = vunpack.c.l.b16 %v5959
      %v5984 = vunpack.c.l.b16 %v5960
      %v5985 = vunpack.c.l.b16 %v5961
      %v5986 = vunpack.c.l.b16 %v5962
      %v5987 = vpack.c.b16 %v5980, %v5979
      %v5988 = vpack.c.b16 %v5982, %v5981
      %v5989 = vpack.c.b16 %v5984, %v5983
      %v5990 = vpack.c.b16 %v5986, %v5985
      %v5992 = vshrl.u32 %v5987, 16
      %v5994 = vshll.u32 %v5987, 16
      %v5996 = vrot.slane %v5994, 1
      %v5997 = vor.u32 %v5992, %v5996
      %v5999 = vshll.u32 %v5988, 16
      %v6001 = vrot.slane %v5999, 1
      %v6002 = vsel %vm469, %v5997, %v6001
      %v6003 = vshrl.u32 %v5988, 16
      %v6005 = vor.u32 %v6003, %v6001
      %v6007 = vshll.u32 %v5989, 16
      %v6009 = vrot.slane %v6007, 1
      %v6010 = vsel %vm469, %v6005, %v6009
      %v6011 = vshrl.u32 %v5989, 16
      %v6013 = vor.u32 %v6011, %v6009
      %v6015 = vshll.u32 %v5990, 16
      %v6017 = vrot.slane %v6015, 1
      %v6018 = vsel %vm469, %v6013, %v6017
      %v6019 = vshrl.u32 %v5990, 16
      %v6021 = vor.u32 %v6019, %v6017
      %v6030 = vunpack.c.l.b16 %v5963
      %v6031 = vunpack.c.l.b16 %v5964
      %v6032 = vunpack.c.l.b16 %v5965
      %v6033 = vunpack.c.l.b16 %v5966
      %v6034 = vunpack.c.l.b16 %v5967
      %v6035 = vunpack.c.l.b16 %v5968
      %v6036 = vunpack.c.l.b16 %v5969
      %v6037 = vunpack.c.l.b16 %v5970
      %v6038 = vpack.c.b16 %v6031, %v6030
      %v6039 = vpack.c.b16 %v6033, %v6032
      %v6040 = vpack.c.b16 %v6035, %v6034
      %v6041 = vpack.c.b16 %v6037, %v6036
      %v6047 = vsel %vm3577, %v6002, 0
      %v6050 = vsel %vm3577, %v6010, 0
      %v6053 = vsel %vm3577, %v6018, 0
      %v6056 = vsel %vm3577, %v6021, 0
      %6058 = vmatprep.subr.bf16.mxu0 0
      %6059 = vmatpush1.bf16.msra.mxu0 %v6038
      %6060 = vmatprep.subr.bf16.mxu0 0
      %6061 = vmatpush1.bf16.msra.mxu0 %v6039
      %6062 = vmatprep.subr.bf16.mxu0 0
      %6063 = vmatpush1.bf16.msra.mxu0 %v6040
      %6064 = vmatprep.subr.bf16.mxu0 0
      %6065 = vmatpush1.bf16.msra.mxu0 %v6041
      %6066 = vmatprep.subr.bf16.mxu0 0
      %6067 = vmatpush1.bf16.msra.mxu0 0
      %6068 = vmatprep.subr.bf16.mxu0 0
      %6069 = vmatpush1.bf16.msra.mxu0 0
      %6070 = vmatprep.subr.bf16.mxu0 0
      %6071 = vmatpush1.bf16.msra.mxu0 0
      %6072 = vmatprep.subr.bf16.mxu0 0
      %6073 = vmatpush1.bf16.msra.mxu0 0
      %6074 = vmatprep.subr.bf16.mxu0 0
      %6075 = vmatpush1.bf16.msra.mxu0 0
      %6076 = vmatprep.subr.bf16.mxu0 0
      %6077 = vmatpush1.bf16.msra.mxu0 0
      %6078 = vmatprep.subr.bf16.mxu0 0
      %6079 = vmatpush1.bf16.msra.mxu0 0
      %6080 = vmatprep.subr.bf16.mxu0 0
      %6081 = vmatpush1.bf16.msra.mxu0 0
      %6082 = vmatprep.subr.bf16.mxu0 0
      %6083 = vmatpush1.bf16.msra.mxu0 0
      %6084 = vmatprep.subr.bf16.mxu0 0
      %6085 = vmatpush1.bf16.msra.mxu0 0
      %6086 = vmatprep.subr.bf16.mxu0 0
      %6087 = vmatpush1.bf16.msra.mxu0 0
      %6088 = vmatprep.subr.bf16.mxu0 0
      %6089 = vmatpush1.bf16.msra.mxu0 0
      %6090 = vmatprep.mubr.bf16.mxu0 0
      %6091 = vmatmul.mubr.bf16.gmra.mrb[0].mxu0 %v6047
      %v6092 = vpop.f32.mrb[0].mxu0
      %v6093 = vadd.f32 0.0, %v6092
      %v6094 = vpop.f32.mrb[0].mxu0
      %v6095 = vpop.f32.mrb[0].mxu0
      %v6096 = vadd.f32 0.0, %v6095
      %v6097 = vpop.f32.mrb[0].mxu0
      %6098 = vmatprep.mubr.bf16.mxu0 0
      %6099 = vmatmul.mubr.bf16.gmra.mrb[0].mxu0 %v6050
      %v6100 = vpop.f32.mrb[0].mxu0
      %v6101 = vadd.f32 0.0, %v6100
      %v6102 = vpop.f32.mrb[0].mxu0
      %v6103 = vpop.f32.mrb[0].mxu0
      %v6104 = vadd.f32 0.0, %v6103
      %v6105 = vpop.f32.mrb[0].mxu0
      %6106 = vmatprep.mubr.bf16.mxu0 0
      %6107 = vmatmul.mubr.bf16.gmra.mrb[0].mxu0 %v6053
      %v6108 = vpop.f32.mrb[0].mxu0
      %v6109 = vadd.f32 0.0, %v6108
      %v6110 = vpop.f32.mrb[0].mxu0
      %v6111 = vpop.f32.mrb[0].mxu0
      %v6112 = vadd.f32 0.0, %v6111
      %v6113 = vpop.f32.mrb[0].mxu0
      %6114 = vmatprep.mubr.bf16.mxu0 0
      %6115 = vmatmul.mubr.bf16.gmra.mrb[0].mxu0 %v6056
      %v6116 = vpop.f32.mrb[0].mxu0
      %v6117 = vadd.f32 0.0, %v6116
      %v6118 = vpop.f32.mrb[0].mxu0
      %v6119 = vpop.f32.mrb[0].mxu0
      %v6120 = vadd.f32 0.0, %v6119
      %v6121 = vpop.f32.mrb[0].mxu0
      %6122 = vdwg.mxu0
      %v6123 = vadd.f32 %v5947, %v6093
      %v6124 = vadd.f32 %v5948, %v6096
      %v6125 = vadd.f32 %v5949, %v6101
      %v6126 = vadd.f32 %v5950, %v6104
      %v6127 = vadd.f32 %v5951, %v6109
      %v6128 = vadd.f32 %v5952, %v6112
      %v6129 = vadd.f32 %v5953, %v6117
      %v6130 = vadd.f32 %v5954, %v6120
      %v6131 = vld [vmem:[#allocation2 + $0x4] sm:$0xe]
      %v6132 = vld [vmem:[#allocation2 + $0x20] sm:$0xf]
      %v6133 = vld [vmem:[%s3 + $0x80] sm:$0xf]
      %v6134 = vld [vmem:[%s3 + $0x84] sm:$0xf]
      %v6135 = vld [vmem:[%s3 + $0x88] sm:$0xf]
      %v6136 = vld [vmem:[%s3 + $0x8c] sm:$0xf]
      %v6137 = vld [vmem:[%s3 + $0x90] sm:$0xf]
      %v6138 = vld [vmem:[%s3 + $0x94] sm:$0xf]
      %v6139 = vld [vmem:[%s3 + $0x98] sm:$0xf]
      %v6140 = vld [vmem:[%s3 + $0x9c] sm:$0xf]
      %v6143 = vunpack.c.l.b16 %v6131
      %v6144 = vunpack.c.l.b16 %v6132
      %v6145 = vpack.c.b16 %v5980, %v6143
      %v6146 = vpack.c.b16 %v6144, %v5985
      %v6147 = vrot.slane %v6145, 1
      %v6148 = vrot.slane %v5988, 1
      %v6149 = vsel %vm1017, %v6147, %v6148
      %v6150 = vrot.slane %v5989, 1
      %v6151 = vsel %vm1017, %v6148, %v6150
      %v6152 = vrot.slane %v6146, 1
      %v6153 = vsel %vm1017, %v6150, %v6152
      %v6162 = vunpack.c.l.b16 %v6133
      %v6163 = vunpack.c.l.b16 %v6134
      %v6164 = vunpack.c.l.b16 %v6135
      %v6165 = vunpack.c.l.b16 %v6136
      %v6166 = vunpack.c.l.b16 %v6137
      %v6167 = vunpack.c.l.b16 %v6138
      %v6168 = vunpack.c.l.b16 %v6139
      %v6169 = vunpack.c.l.b16 %v6140
      %v6170 = vpack.c.b16 %v6163, %v6162
      %v6171 = vpack.c.b16 %v6165, %v6164
      %v6172 = vpack.c.b16 %v6167, %v6166
      %v6173 = vpack.c.b16 %v6169, %v6168
      %v6179 = vsel %vm3577, %v6149, 0
      %v6182 = vsel %vm3577, %v6151, 0
      %v6185 = vsel %vm3577, %v6153, 0
      %v6188 = vsel %vm3577, %v6152, 0
      %6190 = vmatprep.subr.bf16.mxu0 0
      %6191 = vmatpush1.bf16.msra.mxu0 %v6170
      %6192 = vmatprep.subr.bf16.mxu0 0
      %6193 = vmatpush1.bf16.msra.mxu0 %v6171
      %6194 = vmatprep.subr.bf16.mxu0 0
      %6195 = vmatpush1.bf16.msra.mxu0 %v6172
      %6196 = vmatprep.subr.bf16.mxu0 0
      %6197 = vmatpush1.bf16.msra.mxu0 %v6173
      %6198 = vmatprep.subr.bf16.mxu0 0
      %6199 = vmatpush1.bf16.msra.mxu0 0
      %6200 = vmatprep.subr.bf16.mxu0 0
      %6201 = vmatpush1.bf16.msra.mxu0 0
      %6202 = vmatprep.subr.bf16.mxu0 0
      %6203 = vmatpush1.bf16.msra.mxu0 0
      %6204 = vmatprep.subr.bf16.mxu0 0
      %6205 = vmatpush1.bf16.msra.mxu0 0
      %6206 = vmatprep.subr.bf16.mxu0 0
      %6207 = vmatpush1.bf16.msra.mxu0 0
      %6208 = vmatprep.subr.bf16.mxu0 0
      %6209 = vmatpush1.bf16.msra.mxu0 0
      %6210 = vmatprep.subr.bf16.mxu0 0
      %6211 = vmatpush1.bf16.msra.mxu0 0
      %6212 = vmatprep.subr.bf16.mxu0 0
      %6213 = vmatpush1.bf16.msra.mxu0 0
      %6214 = vmatprep.subr.bf16.mxu0 0
      %6215 = vmatpush1.bf16.msra.mxu0 0
      %6216 = vmatprep.subr.bf16.mxu0 0
      %6217 = vmatpush1.bf16.msra.mxu0 0
      %6218 = vmatprep.subr.bf16.mxu0 0
      %6219 = vmatpush1.bf16.msra.mxu0 0
      %6220 = vmatprep.subr.bf16.mxu0 0
      %6221 = vmatpush1.bf16.msra.mxu0 0
      %6222 = vmatprep.mubr.bf16.mxu0 0
      %6223 = vmatmul.mubr.bf16.gmra.mrb[0].mxu0 %v6179
      %v6224 = vpop.f32.mrb[0].mxu0
      %v6225 = vadd.f32 0.0, %v6224
      %v6226 = vpop.f32.mrb[0].mxu0
      %v6227 = vpop.f32.mrb[0].mxu0
      %v6228 = vadd.f32 0.0, %v6227
      %v6229 = vpop.f32.mrb[0].mxu0
      %6230 = vmatprep.mubr.bf16.mxu0 0
      %6231 = vmatmul.mubr.bf16.gmra.mrb[0].mxu0 %v6182
      %v6232 = vpop.f32.mrb[0].mxu0
      %v6233 = vadd.f32 0.0, %v6232
      %v6234 = vpop.f32.mrb[0].mxu0
      %v6235 = vpop.f32.mrb[0].mxu0
      %v6236 = vadd.f32 0.0, %v6235
      %v6237 = vpop.f32.mrb[0].mxu0
      %6238 = vmatprep.mubr.bf16.mxu0 0
      %6239 = vmatmul.mubr.bf16.gmra.mrb[0].mxu0 %v6185
      %v6240 = vpop.f32.mrb[0].mxu0
      %v6241 = vadd.f32 0.0, %v6240
      %v6242 = vpop.f32.mrb[0].mxu0
      %v6243 = vpop.f32.mrb[0].mxu0
      %v6244 = vadd.f32 0.0, %v6243
      %v6245 = vpop.f32.mrb[0].mxu0
      %6246 = vmatprep.mubr.bf16.mxu0 0
      %6247 = vmatmul.mubr.bf16.gmra.mrb[0].mxu0 %v6188
      %v6248 = vpop.f32.mrb[0].mxu0
      %v6249 = vadd.f32 0.0, %v6248
      %v6250 = vpop.f32.mrb[0].mxu0
      %v6251 = vpop.f32.mrb[0].mxu0
      %v6252 = vadd.f32 0.0, %v6251
      %v6253 = vpop.f32.mrb[0].mxu0
      %6254 = vdwg.mxu0
      %v6255 = vadd.f32 %v6123, %v6225
      %v6256 = vadd.f32 %v6124, %v6228
      %v6257 = vadd.f32 %v6125, %v6233
      %v6258 = vadd.f32 %v6126, %v6236
      %v6259 = vadd.f32 %v6127, %v6241
      %v6260 = vadd.f32 %v6128, %v6244
      %v6261 = vadd.f32 %v6129, %v6249
      %v6262 = vadd.f32 %v6130, %v6252
      %v6263 = vld [vmem:[%s3 + $0xa0] sm:$0xf]
      %v6264 = vld [vmem:[%s3 + $0xa4] sm:$0xf]
      %v6265 = vld [vmem:[%s3 + $0xa8] sm:$0xf]
      %v6266 = vld [vmem:[%s3 + $0xac] sm:$0xf]
      %v6267 = vld [vmem:[%s3 + $0xb0] sm:$0xf]
      %v6268 = vld [vmem:[%s3 + $0xb4] sm:$0xf]
      %v6269 = vld [vmem:[%s3 + $0xb8] sm:$0xf]
      %v6270 = vld [vmem:[%s3 + $0xbc] sm:$0xf]
      %vm6271 = vsmask.f32 6400
      %v6273 = vshrl.u32 %v6145, 16
      %v6275 = vrot.slane %v6273, 1
      %v6276 = vshll.u32 %v6145, 16
      %v6278 = vrot.slane %v6276, 2
      %v6279 = vor.u32 %v6275, %v6278
      %v6280 = vrot.slane %v6003, 1
      %v6281 = vrot.slane %v5999, 2
      %v6282 = vor.u32 %v6280, %v6281
      %v6283 = vsel %vm6271, %v6279, %v6282
      %v6284 = vrot.slane %v6011, 1
      %v6285 = vrot.slane %v6007, 2
      %v6286 = vor.u32 %v6284, %v6285
      %v6287 = vsel %vm6271, %v6282, %v6286
      %v6289 = vshrl.u32 %v6146, 16
      %v6291 = vrot.slane %v6289, 1
      %v6292 = vshll.u32 %v6146, 16
      %v6294 = vrot.slane %v6292, 2
      %v6295 = vor.u32 %v6291, %v6294
      %v6296 = vsel %vm6271, %v6286, %v6295
      %v6305 = vunpack.c.l.b16 %v6263
      %v6306 = vunpack.c.l.b16 %v6264
      %v6307 = vunpack.c.l.b16 %v6265
      %v6308 = vunpack.c.l.b16 %v6266
      %v6309 = vunpack.c.l.b16 %v6267
      %v6310 = vunpack.c.l.b16 %v6268
      %v6311 = vunpack.c.l.b16 %v6269
      %v6312 = vunpack.c.l.b16 %v6270
      %v6313 = vpack.c.b16 %v6306, %v6305
      %v6314 = vpack.c.b16 %v6308, %v6307
      %v6315 = vpack.c.b16 %v6310, %v6309
      %v6316 = vpack.c.b16 %v6312, %v6311
      %v6322 = vsel %vm3577, %v6283, 0
      %v6325 = vsel %vm3577, %v6287, 0
      %v6328 = vsel %vm3577, %v6296, 0
      %v6331 = vsel %vm3577, %v6295, 0
      %6333 = vmatprep.subr.bf16.mxu0 0
      %6334 = vmatpush1.bf16.msra.mxu0 %v6313
      %6335 = vmatprep.subr.bf16.mxu0 0
      %6336 = vmatpush1.bf16.msra.mxu0 %v6314
      %6337 = vmatprep.subr.bf16.mxu0 0
      %6338 = vmatpush1.bf16.msra.mxu0 %v6315
      %6339 = vmatprep.subr.bf16.mxu0 0
      %6340 = vmatpush1.bf16.msra.mxu0 %v6316
      %6341 = vmatprep.subr.bf16.mxu0 0
      %6342 = vmatpush1.bf16.msra.mxu0 0
      %6343 = vmatprep.subr.bf16.mxu0 0
      %6344 = vmatpush1.bf16.msra.mxu0 0
      %6345 = vmatprep.subr.bf16.mxu0 0
      %6346 = vmatpush1.bf16.msra.mxu0 0
      %6347 = vmatprep.subr.bf16.mxu0 0
      %6348 = vmatpush1.bf16.msra.mxu0 0
      %6349 = vmatprep.subr.bf16.mxu0 0
      %6350 = vmatpush1.bf16.msra.mxu0 0
      %6351 = vmatprep.subr.bf16.mxu0 0
      %6352 = vmatpush1.bf16.msra.mxu0 0
      %6353 = vmatprep.subr.bf16.mxu0 0
      %6354 = vmatpush1.bf16.msra.mxu0 0
      %6355 = vmatprep.subr.bf16.mxu0 0
      %6356 = vmatpush1.bf16.msra.mxu0 0
      %6357 = vmatprep.subr.bf16.mxu0 0
      %6358 = vmatpush1.bf16.msra.mxu0 0
      %6359 = vmatprep.subr.bf16.mxu0 0
      %6360 = vmatpush1.bf16.msra.mxu0 0
      %6361 = vmatprep.subr.bf16.mxu0 0
      %6362 = vmatpush1.bf16.msra.mxu0 0
      %6363 = vmatprep.subr.bf16.mxu0 0
      %6364 = vmatpush1.bf16.msra.mxu0 0
      %6365 = vmatprep.mubr.bf16.mxu0 0
      %6366 = vmatmul.mubr.bf16.gmra.mrb[0].mxu0 %v6322
      %v6367 = vpop.f32.mrb[0].mxu0
      %v6368 = vadd.f32 0.0, %v6367
      %v6369 = vpop.f32.mrb[0].mxu0
      %v6370 = vpop.f32.mrb[0].mxu0
      %v6371 = vadd.f32 0.0, %v6370
      %v6372 = vpop.f32.mrb[0].mxu0
      %6373 = vmatprep.mubr.bf16.mxu0 0
      %6374 = vmatmul.mubr.bf16.gmra.mrb[0].mxu0 %v6325
      %v6375 = vpop.f32.mrb[0].mxu0
      %v6376 = vadd.f32 0.0, %v6375
      %v6377 = vpop.f32.mrb[0].mxu0
      %v6378 = vpop.f32.mrb[0].mxu0
      %v6379 = vadd.f32 0.0, %v6378
      %v6380 = vpop.f32.mrb[0].mxu0
      %6381 = vmatprep.mubr.bf16.mxu0 0
      %6382 = vmatmul.mubr.bf16.gmra.mrb[0].mxu0 %v6328
      %v6383 = vpop.f32.mrb[0].mxu0
      %v6384 = vadd.f32 0.0, %v6383
      %v6385 = vpop.f32.mrb[0].mxu0
      %v6386 = vpop.f32.mrb[0].mxu0
      %v6387 = vadd.f32 0.0, %v6386
      %v6388 = vpop.f32.mrb[0].mxu0
      %6389 = vmatprep.mubr.bf16.mxu0 0
      %6390 = vmatmul.mubr.bf16.gmra.mrb[0].mxu0 %v6331
      %v6391 = vpop.f32.mrb[0].mxu0
      %v6392 = vadd.f32 0.0, %v6391
      %v6393 = vpop.f32.mrb[0].mxu0
      %v6394 = vpop.f32.mrb[0].mxu0
      %v6395 = vadd.f32 0.0, %v6394
      %v6396 = vpop.f32.mrb[0].mxu0
      %6397 = vdwg.mxu0
      %v6398 = vadd.f32 %v6255, %v6368
      %v6399 = vadd.f32 %v6256, %v6371
      %v6400 = vadd.f32 %v6257, %v6376
      %v6401 = vadd.f32 %v6258, %v6379
      %v6402 = vadd.f32 %v6259, %v6384
      %v6403 = vadd.f32 %v6260, %v6387
      %v6404 = vadd.f32 %v6261, %v6392
      %v6405 = vadd.f32 %v6262, %v6395
      %v6406 = vld [vmem:[#allocation2 + $0x8] sm:$0xe]
      %v6407 = vld [vmem:[#allocation2 + $0xc] sm:$0xf]
      %v6408 = vld [vmem:[#allocation2 + $0x10] sm:$0xf]
      %v6409 = vld [vmem:[#allocation2 + $0x14] sm:$0xf]
      %v6410 = vld [vmem:[#allocation2 + $0x18] sm:$0xf]
      %v6411 = vld [vmem:[#allocation2 + $0x1c] sm:$0xf]
      %v6412 = vld [vmem:[#allocation2 + $0x20] sm:$0xf]
      %v6413 = vld [vmem:[#allocation2 + $0x24] sm:$0xf]
      %v6414 = vld [vmem:[%s3 + $0xc0] sm:$0xf]
      %v6415 = vld [vmem:[%s3 + $0xc4] sm:$0xf]
      %v6416 = vld [vmem:[%s3 + $0xc8] sm:$0xf]
      %v6417 = vld [vmem:[%s3 + $0xcc] sm:$0xf]
      %v6418 = vld [vmem:[%s3 + $0xd0] sm:$0xf]
      %v6419 = vld [vmem:[%s3 + $0xd4] sm:$0xf]
      %v6420 = vld [vmem:[%s3 + $0xd8] sm:$0xf]
      %v6421 = vld [vmem:[%s3 + $0xdc] sm:$0xf]
      %v6430 = vunpack.c.l.b16 %v6406
      %v6431 = vunpack.c.l.b16 %v6407
      %v6432 = vunpack.c.l.b16 %v6408
      %v6433 = vunpack.c.l.b16 %v6409
      %v6434 = vunpack.c.l.b16 %v6410
      %v6435 = vunpack.c.l.b16 %v6411
      %v6436 = vunpack.c.l.b16 %v6412
      %v6437 = vunpack.c.l.b16 %v6413
      %v6438 = vpack.c.b16 %v6431, %v6430
      %v6439 = vpack.c.b16 %v6433, %v6432
      %v6440 = vpack.c.b16 %v6435, %v6434
      %v6441 = vpack.c.b16 %v6437, %v6436
      %v6442 = vrot.slane %v6438, 1
      %v6443 = vrot.slane %v6439, 1
      %v6444 = vsel %vm1017, %v6442, %v6443
      %v6445 = vrot.slane %v6440, 1
      %v6446 = vsel %vm1017, %v6443, %v6445
      %v6447 = vrot.slane %v6441, 1
      %v6448 = vsel %vm1017, %v6445, %v6447
      %v6457 = vunpack.c.l.b16 %v6414
      %v6458 = vunpack.c.l.b16 %v6415
      %v6459 = vunpack.c.l.b16 %v6416
      %v6460 = vunpack.c.l.b16 %v6417
      %v6461 = vunpack.c.l.b16 %v6418
      %v6462 = vunpack.c.l.b16 %v6419
      %v6463 = vunpack.c.l.b16 %v6420
      %v6464 = vunpack.c.l.b16 %v6421
      %v6465 = vpack.c.b16 %v6458, %v6457
      %v6466 = vpack.c.b16 %v6460, %v6459
      %v6467 = vpack.c.b16 %v6462, %v6461
      %v6468 = vpack.c.b16 %v6464, %v6463
      %v6474 = vsel %vm3577, %v6444, 0
      %v6477 = vsel %vm3577, %v6446, 0
      %v6480 = vsel %vm3577, %v6448, 0
      %v6483 = vsel %vm3577, %v6447, 0
      %6485 = vmatprep.subr.bf16.mxu0 0
      %6486 = vmatpush1.bf16.msra.mxu0 %v6465
      %6487 = vmatprep.subr.bf16.mxu0 0
      %6488 = vmatpush1.bf16.msra.mxu0 %v6466
      %6489 = vmatprep.subr.bf16.mxu0 0
      %6490 = vmatpush1.bf16.msra.mxu0 %v6467
      %6491 = vmatprep.subr.bf16.mxu0 0
      %6492 = vmatpush1.bf16.msra.mxu0 %v6468
      %6493 = vmatprep.subr.bf16.mxu0 0
      %6494 = vmatpush1.bf16.msra.mxu0 0
      %6495 = vmatprep.subr.bf16.mxu0 0
      %6496 = vmatpush1.bf16.msra.mxu0 0
      %6497 = vmatprep.subr.bf16.mxu0 0
      %6498 = vmatpush1.bf16.msra.mxu0 0
      %6499 = vmatprep.subr.bf16.mxu0 0
      %6500 = vmatpush1.bf16.msra.mxu0 0
      %6501 = vmatprep.subr.bf16.mxu0 0
      %6502 = vmatpush1.bf16.msra.mxu0 0
      %6503 = vmatprep.subr.bf16.mxu0 0
      %6504 = vmatpush1.bf16.msra.mxu0 0
      %6505 = vmatprep.subr.bf16.mxu0 0
      %6506 = vmatpush1.bf16.msra.mxu0 0
      %6507 = vmatprep.subr.bf16.mxu0 0
      %6508 = vmatpush1.bf16.msra.mxu0 0
      %6509 = vmatprep.subr.bf16.mxu0 0
      %6510 = vmatpush1.bf16.msra.mxu0 0
      %6511 = vmatprep.subr.bf16.mxu0 0
      %6512 = vmatpush1.bf16.msra.mxu0 0
      %6513 = vmatprep.subr.bf16.mxu0 0
      %6514 = vmatpush1.bf16.msra.mxu0 0
      %6515 = vmatprep.subr.bf16.mxu0 0
      %6516 = vmatpush1.bf16.msra.mxu0 0
      %6517 = vmatprep.mubr.bf16.mxu0 0
      %6518 = vmatmul.mubr.bf16.gmra.mrb[0].mxu0 %v6474
      %v6519 = vpop.f32.mrb[0].mxu0
      %v6520 = vadd.f32 0.0, %v6519
      %v6521 = vpop.f32.mrb[0].mxu0
      %v6522 = vpop.f32.mrb[0].mxu0
      %v6523 = vadd.f32 0.0, %v6522
      %v6524 = vpop.f32.mrb[0].mxu0
      %6525 = vmatprep.mubr.bf16.mxu0 0
      %6526 = vmatmul.mubr.bf16.gmra.mrb[0].mxu0 %v6477
      %v6527 = vpop.f32.mrb[0].mxu0
      %v6528 = vadd.f32 0.0, %v6527
      %v6529 = vpop.f32.mrb[0].mxu0
      %v6530 = vpop.f32.mrb[0].mxu0
      %v6531 = vadd.f32 0.0, %v6530
      %v6532 = vpop.f32.mrb[0].mxu0
      %6533 = vmatprep.mubr.bf16.mxu0 0
      %6534 = vmatmul.mubr.bf16.gmra.mrb[0].mxu0 %v6480
      %v6535 = vpop.f32.mrb[0].mxu0
      %v6536 = vadd.f32 0.0, %v6535
      %v6537 = vpop.f32.mrb[0].mxu0
      %v6538 = vpop.f32.mrb[0].mxu0
      %v6539 = vadd.f32 0.0, %v6538
      %v6540 = vpop.f32.mrb[0].mxu0
      %6541 = vmatprep.mubr.bf16.mxu0 0
      %6542 = vmatmul.mubr.bf16.gmra.mrb[0].mxu0 %v6483
      %v6543 = vpop.f32.mrb[0].mxu0
      %v6544 = vadd.f32 0.0, %v6543
      %v6545 = vpop.f32.mrb[0].mxu0
      %v6546 = vpop.f32.mrb[0].mxu0
      %v6547 = vadd.f32 0.0, %v6546
      %v6548 = vpop.f32.mrb[0].mxu0
      %6549 = vdwg.mxu0
      %v6550 = vadd.f32 %v6398, %v6520
      %v6551 = vadd.f32 %v6399, %v6523
      %v6552 = vadd.f32 %v6400, %v6528
      %v6553 = vadd.f32 %v6401, %v6531
      %v6554 = vadd.f32 %v6402, %v6536
      %v6555 = vadd.f32 %v6403, %v6539
      %v6556 = vadd.f32 %v6404, %v6544
      %v6557 = vadd.f32 %v6405, %v6547
      %v6558 = vld [vmem:[%s3 + $0xe0] sm:$0xf]
      %v6559 = vld [vmem:[%s3 + $0xe4] sm:$0xf]
      %v6560 = vld [vmem:[%s3 + $0xe8] sm:$0xf]
      %v6561 = vld [vmem:[%s3 + $0xec] sm:$0xf]
      %v6562 = vld [vmem:[%s3 + $0xf0] sm:$0xf]
      %v6563 = vld [vmem:[%s3 + $0xf4] sm:$0xf]
      %v6564 = vld [vmem:[%s3 + $0xf8] sm:$0xf]
      %v6565 = vld [vmem:[%s3 + $0xfc] sm:$0xf]
      %v6567 = vshrl.u32 %v6438, 16
      %v6569 = vrot.slane %v6567, 1
      %v6570 = vshll.u32 %v6438, 16
      %v6572 = vrot.slane %v6570, 2
      %v6573 = vor.u32 %v6569, %v6572
      %v6575 = vshrl.u32 %v6439, 16
      %v6577 = vrot.slane %v6575, 1
      %v6578 = vshll.u32 %v6439, 16
      %v6580 = vrot.slane %v6578, 2
      %v6581 = vor.u32 %v6577, %v6580
      %v6582 = vsel %vm6271, %v6573, %v6581
      %v6584 = vshrl.u32 %v6440, 16
      %v6586 = vrot.slane %v6584, 1
      %v6587 = vshll.u32 %v6440, 16
      %v6589 = vrot.slane %v6587, 2
      %v6590 = vor.u32 %v6586, %v6589
      %v6591 = vsel %vm6271, %v6581, %v6590
      %v6593 = vshrl.u32 %v6441, 16
      %v6595 = vrot.slane %v6593, 1
      %v6596 = vshll.u32 %v6441, 16
      %v6598 = vrot.slane %v6596, 2
      %v6599 = vor.u32 %v6595, %v6598
      %v6600 = vsel %vm6271, %v6590, %v6599
      %v6609 = vunpack.c.l.b16 %v6558
      %v6610 = vunpack.c.l.b16 %v6559
      %v6611 = vunpack.c.l.b16 %v6560
      %v6612 = vunpack.c.l.b16 %v6561
      %v6613 = vunpack.c.l.b16 %v6562
      %v6614 = vunpack.c.l.b16 %v6563
      %v6615 = vunpack.c.l.b16 %v6564
      %v6616 = vunpack.c.l.b16 %v6565
      %v6617 = vpack.c.b16 %v6610, %v6609
      %v6618 = vpack.c.b16 %v6612, %v6611
      %v6619 = vpack.c.b16 %v6614, %v6613
      %v6620 = vpack.c.b16 %v6616, %v6615
      %v6626 = vsel %vm3577, %v6582, 0
      %v6629 = vsel %vm3577, %v6591, 0
      %v6632 = vsel %vm3577, %v6600, 0
      %v6635 = vsel %vm3577, %v6599, 0
      %6637 = vmatprep.subr.bf16.mxu0 0
      %6638 = vmatpush1.bf16.msra.mxu0 %v6617
      %6639 = vmatprep.subr.bf16.mxu0 0
      %6640 = vmatpush1.bf16.msra.mxu0 %v6618
      %6641 = vmatprep.subr.bf16.mxu0 0
      %6642 = vmatpush1.bf16.msra.mxu0 %v6619
      %6643 = vmatprep.subr.bf16.mxu0 0
      %6644 = vmatpush1.bf16.msra.mxu0 %v6620
      %6645 = vmatprep.subr.bf16.mxu0 0
      %6646 = vmatpush1.bf16.msra.mxu0 0
      %6647 = vmatprep.subr.bf16.mxu0 0
      %6648 = vmatpush1.bf16.msra.mxu0 0
      %6649 = vmatprep.subr.bf16.mxu0 0
      %6650 = vmatpush1.bf16.msra.mxu0 0
      %6651 = vmatprep.subr.bf16.mxu0 0
      %6652 = vmatpush1.bf16.msra.mxu0 0
      %6653 = vmatprep.subr.bf16.mxu0 0
      %6654 = vmatpush1.bf16.msra.mxu0 0
      %6655 = vmatprep.subr.bf16.mxu0 0
      %6656 = vmatpush1.bf16.msra.mxu0 0
      %6657 = vmatprep.subr.bf16.mxu0 0
      %6658 = vmatpush1.bf16.msra.mxu0 0
      %6659 = vmatprep.subr.bf16.mxu0 0
      %6660 = vmatpush1.bf16.msra.mxu0 0
      %6661 = vmatprep.subr.bf16.mxu0 0
      %6662 = vmatpush1.bf16.msra.mxu0 0
      %6663 = vmatprep.subr.bf16.mxu0 0
      %6664 = vmatpush1.bf16.msra.mxu0 0
      %6665 = vmatprep.subr.bf16.mxu0 0
      %6666 = vmatpush1.bf16.msra.mxu0 0
      %6667 = vmatprep.subr.bf16.mxu0 0
      %6668 = vmatpush1.bf16.msra.mxu0 0
      %6669 = vmatprep.mubr.bf16.mxu0 0
      %6670 = vmatmul.mubr.bf16.gmra.mrb[0].mxu0 %v6626
      %v6671 = vpop.f32.mrb[0].mxu0
      %v6672 = vadd.f32 0.0, %v6671
      %v6673 = vpop.f32.mrb[0].mxu0
      %v6674 = vpop.f32.mrb[0].mxu0
      %v6675 = vadd.f32 0.0, %v6674
      %v6676 = vpop.f32.mrb[0].mxu0
      %6677 = vmatprep.mubr.bf16.mxu0 0
      %6678 = vmatmul.mubr.bf16.gmra.mrb[0].mxu0 %v6629
      %v6679 = vpop.f32.mrb[0].mxu0
      %v6680 = vadd.f32 0.0, %v6679
      %v6681 = vpop.f32.mrb[0].mxu0
      %v6682 = vpop.f32.mrb[0].mxu0
      %v6683 = vadd.f32 0.0, %v6682
      %v6684 = vpop.f32.mrb[0].mxu0
      %6685 = vmatprep.mubr.bf16.mxu0 0
      %6686 = vmatmul.mubr.bf16.gmra.mrb[0].mxu0 %v6632
      %v6687 = vpop.f32.mrb[0].mxu0
      %v6688 = vadd.f32 0.0, %v6687
      %v6689 = vpop.f32.mrb[0].mxu0
      %v6690 = vpop.f32.mrb[0].mxu0
      %v6691 = vadd.f32 0.0, %v6690
      %v6692 = vpop.f32.mrb[0].mxu0
      %6693 = vmatprep.mubr.bf16.mxu0 0
      %6694 = vmatmul.mubr.bf16.gmra.mrb[0].mxu0 %v6635
      %v6695 = vpop.f32.mrb[0].mxu0
      %v6696 = vadd.f32 0.0, %v6695
      %v6697 = vpop.f32.mrb[0].mxu0
      %v6698 = vpop.f32.mrb[0].mxu0
      %v6699 = vadd.f32 0.0, %v6698
      %v6700 = vpop.f32.mrb[0].mxu0
      %6701 = vdwg.mxu0
      %v6702 = vadd.f32 %v6550, %v6672
      %v6703 = vadd.f32 %v6551, %v6675
      %v6704 = vadd.f32 %v6552, %v6680
      %v6705 = vadd.f32 %v6553, %v6683
      %v6706 = vadd.f32 %v6554, %v6688
      %v6707 = vadd.f32 %v6555, %v6691
      %v6708 = vadd.f32 %v6556, %v6696
      %v6709 = vadd.f32 %v6557, %v6699
      %v6710 = vld [vmem:[#allocation2 + $0x8] sm:$0xc]
      %v6711 = vld [vmem:[#allocation2 + $0xc] sm:$0xf]
      %v6712 = vld [vmem:[#allocation2 + $0x10] sm:$0xf]
      %v6713 = vld [vmem:[#allocation2 + $0x14] sm:$0xf]
      %v6714 = vld [vmem:[#allocation2 + $0x18] sm:$0xf]
      %v6715 = vld [vmem:[#allocation2 + $0x1c] sm:$0xf]
      %v6716 = vld [vmem:[#allocation2 + $0x20] sm:$0xf]
      %v6717 = vld [vmem:[#allocation2 + $0x24] sm:$0xf]
      %v6718 = vld [vmem:[#allocation2 + $0x28] sm:$0x1]
      %v6719 = vld [vmem:[%s3 + $0x100] sm:$0xf]
      %v6720 = vld [vmem:[%s3 + $0x104] sm:$0xf]
      %v6721 = vld [vmem:[%s3 + $0x108] sm:$0xf]
      %v6722 = vld [vmem:[%s3 + $0x10c] sm:$0xf]
      %v6723 = vld [vmem:[%s3 + $0x110] sm:$0xf]
      %v6724 = vld [vmem:[%s3 + $0x114] sm:$0xf]
      %v6725 = vld [vmem:[%s3 + $0x118] sm:$0xf]
      %v6726 = vld [vmem:[%s3 + $0x11c] sm:$0xf]
      %v6736 = vunpack.c.l.b16 %v6710
      %v6737 = vunpack.c.l.b16 %v6711
      %v6738 = vunpack.c.l.b16 %v6712
      %v6739 = vunpack.c.l.b16 %v6713
      %v6740 = vunpack.c.l.b16 %v6714
      %v6741 = vunpack.c.l.b16 %v6715
      %v6742 = vunpack.c.l.b16 %v6716
      %v6743 = vunpack.c.l.b16 %v6717
      %v6744 = vunpack.c.l.b16 %v6718
      %v6745 = vpack.c.b16 %v6737, %v6736
      %v6746 = vpack.c.b16 %v6739, %v6738
      %v6747 = vpack.c.b16 %v6741, %v6740
      %v6748 = vpack.c.b16 %v6743, %v6742
      %v6749 = vpack.c.b16 %v6744, %v6744
      %v6750 = vrot.slane %v6745, 2
      %v6751 = vrot.slane %v6746, 2
      %v6752 = vsel %vm1412, %v6750, %v6751
      %v6753 = vrot.slane %v6747, 2
      %v6754 = vsel %vm1412, %v6751, %v6753
      %v6755 = vrot.slane %v6748, 2
      %v6756 = vsel %vm1412, %v6753, %v6755
      %v6757 = vrot.slane %v6749, 2
      %v6758 = vsel %vm1412, %v6755, %v6757
      %v6767 = vunpack.c.l.b16 %v6719
      %v6768 = vunpack.c.l.b16 %v6720
      %v6769 = vunpack.c.l.b16 %v6721
      %v6770 = vunpack.c.l.b16 %v6722
      %v6771 = vunpack.c.l.b16 %v6723
      %v6772 = vunpack.c.l.b16 %v6724
      %v6773 = vunpack.c.l.b16 %v6725
      %v6774 = vunpack.c.l.b16 %v6726
      %v6775 = vpack.c.b16 %v6768, %v6767
      %v6776 = vpack.c.b16 %v6770, %v6769
      %v6777 = vpack.c.b16 %v6772, %v6771
      %v6778 = vpack.c.b16 %v6774, %v6773
      %v6784 = vsel %vm3577, %v6752, 0
      %v6787 = vsel %vm3577, %v6754, 0
      %v6790 = vsel %vm3577, %v6756, 0
      %v6793 = vsel %vm3577, %v6758, 0
      %6795 = vmatprep.subr.bf16.mxu0 0
      %6796 = vmatpush1.bf16.msra.mxu0 %v6775
      %6797 = vmatprep.subr.bf16.mxu0 0
      %6798 = vmatpush1.bf16.msra.mxu0 %v6776
      %6799 = vmatprep.subr.bf16.mxu0 0
      %6800 = vmatpush1.bf16.msra.mxu0 %v6777
      %6801 = vmatprep.subr.bf16.mxu0 0
      %6802 = vmatpush1.bf16.msra.mxu0 %v6778
      %6803 = vmatprep.subr.bf16.mxu0 0
      %6804 = vmatpush1.bf16.msra.mxu0 0
      %6805 = vmatprep.subr.bf16.mxu0 0
      %6806 = vmatpush1.bf16.msra.mxu0 0
      %6807 = vmatprep.subr.bf16.mxu0 0
      %6808 = vmatpush1.bf16.msra.mxu0 0
      %6809 = vmatprep.subr.bf16.mxu0 0
      %6810 = vmatpush1.bf16.msra.mxu0 0
      %6811 = vmatprep.subr.bf16.mxu0 0
      %6812 = vmatpush1.bf16.msra.mxu0 0
      %6813 = vmatprep.subr.bf16.mxu0 0
      %6814 = vmatpush1.bf16.msra.mxu0 0
      %6815 = vmatprep.subr.bf16.mxu0 0
      %6816 = vmatpush1.bf16.msra.mxu0 0
      %6817 = vmatprep.subr.bf16.mxu0 0
      %6818 = vmatpush1.bf16.msra.mxu0 0
      %6819 = vmatprep.subr.bf16.mxu0 0
      %6820 = vmatpush1.bf16.msra.mxu0 0
      %6821 = vmatprep.subr.bf16.mxu0 0
      %6822 = vmatpush1.bf16.msra.mxu0 0
      %6823 = vmatprep.subr.bf16.mxu0 0
      %6824 = vmatpush1.bf16.msra.mxu0 0
      %6825 = vmatprep.subr.bf16.mxu0 0
      %6826 = vmatpush1.bf16.msra.mxu0 0
      %6827 = vmatprep.mubr.bf16.mxu0 0
      %6828 = vmatmul.mubr.bf16.gmra.mrb[0].mxu0 %v6784
      %v6829 = vpop.f32.mrb[0].mxu0
      %v6830 = vadd.f32 0.0, %v6829
      %v6831 = vpop.f32.mrb[0].mxu0
      %v6832 = vpop.f32.mrb[0].mxu0
      %v6833 = vadd.f32 0.0, %v6832
      %v6834 = vpop.f32.mrb[0].mxu0
      %6835 = vmatprep.mubr.bf16.mxu0 0
      %6836 = vmatmul.mubr.bf16.gmra.mrb[0].mxu0 %v6787
      %v6837 = vpop.f32.mrb[0].mxu0
      %v6838 = vadd.f32 0.0, %v6837
      %v6839 = vpop.f32.mrb[0].mxu0
      %v6840 = vpop.f32.mrb[0].mxu0
      %v6841 = vadd.f32 0.0, %v6840
      %v6842 = vpop.f32.mrb[0].mxu0
      %6843 = vmatprep.mubr.bf16.mxu0 0
      %6844 = vmatmul.mubr.bf16.gmra.mrb[0].mxu0 %v6790
      %v6845 = vpop.f32.mrb[0].mxu0
      %v6846 = vadd.f32 0.0, %v6845
      %v6847 = vpop.f32.mrb[0].mxu0
      %v6848 = vpop.f32.mrb[0].mxu0
      %v6849 = vadd.f32 0.0, %v6848
      %v6850 = vpop.f32.mrb[0].mxu0
      %6851 = vmatprep.mubr.bf16.mxu0 0
      %6852 = vmatmul.mubr.bf16.gmra.mrb[0].mxu0 %v6793
      %v6853 = vpop.f32.mrb[0].mxu0
      %v6854 = vadd.f32 0.0, %v6853
      %v6855 = vpop.f32.mrb[0].mxu0
      %v6856 = vpop.f32.mrb[0].mxu0
      %v6857 = vadd.f32 0.0, %v6856
      %v6858 = vpop.f32.mrb[0].mxu0
      %6859 = vdwg.mxu0
      %v6860 = vadd.f32 %v6702, %v6830
      %v6861 = vadd.f32 %v6703, %v6833
      %v6862 = vadd.f32 %v6704, %v6838
      %v6863 = vadd.f32 %v6705, %v6841
      %v6864 = vadd.f32 %v6706, %v6846
      %v6865 = vadd.f32 %v6707, %v6849
      %v6866 = vadd.f32 %v6708, %v6854
      %v6867 = vadd.f32 %v6709, %v6857
      %v6869 = vlaneseq
      %v6870 = vshrl.u32 %v6869, 7
      %v6871 = vsub.s32 0, %v6870
      %v6872 = vrot.slane %v5549, %v6871
      %v6874 = vadd.f32 %v6860, %v6872
      %v6875 = vadd.f32 %v6861, %v6872
      %v6876 = vadd.f32 %v6862, %v6872
      %v6877 = vadd.f32 %v6863, %v6872
      %v6878 = vadd.f32 %v6864, %v6872
      %v6879 = vadd.f32 %v6865, %v6872
      %v6880 = vadd.f32 %v6866, %v6872
      %v6881 = vadd.f32 %v6867, %v6872
      %v6882 = vmax.f32 %v6874, 0.0
      %v6883 = vmax.f32 %v6875, 0.0
      %v6884 = vmax.f32 %v6876, 0.0
      %v6885 = vmax.f32 %v6877, 0.0
      %v6886 = vmax.f32 %v6878, 0.0
      %v6887 = vmax.f32 %v6879, 0.0
      %v6888 = vmax.f32 %v6880, 0.0
      %v6889 = vmax.f32 %v6881, 0.0
      %6890 = vst.msk [vmem:[#allocation5] sm:$0xff] %vm3577, %v6882
      %6891 = vst.msk [vmem:[#allocation5 + $0x8] sm:$0xff] %vm3577, %v6883
      %6892 = vst.msk [vmem:[#allocation5 + $0x10] sm:$0xff] %vm3577, %v6884
      %6893 = vst.msk [vmem:[#allocation5 + $0x18] sm:$0xff] %vm3577, %v6885
      %6894 = vst.msk [vmem:[#allocation5 + $0x20] sm:$0xff] %vm3577, %v6886
      %6895 = vst.msk [vmem:[#allocation5 + $0x28] sm:$0xff] %vm3577, %v6887
      %6896 = vst.msk [vmem:[#allocation5 + $0x30] sm:$0xff] %vm3577, %v6888
      %vm6897 = vcmask 520192
      %6898 = vst.msk [vmem:[#allocation5 + $0x38] sm:$0x1f] %vm6897, %v6889
      %v6899 = vld [vmem:[#allocation5] ss:$2 sm:$0x7]
      %v6900 = vld [vmem:[%s5138] ss:$2 sm:$0x7]
      %v6901 = vmax.f32 %v6899, %v6900
      %s6902 = scalar_lea.vmem [#allocation5], 9
      %v6903 = vld [vmem:[%s6902] ss:$2 sm:$0x7]
      %s6904 = scalar_lea.vmem [#allocation5], 10
      %v6905 = vld [vmem:[%s6904] ss:$2 sm:$0x7]
      %v6906 = vmax.f32 %v6903, %v6905
      %v6907 = vmax.f32 %v6901, %v6906
      %v6908 = vpack.c.bf16 %v6907, %v6907
      %v6910 = vunpack.c.l.b16 %v6908
      %v6911 = vpack.c.b16 %v6910, %v6910
      %v6912 = vrot.slane %v6911, 5
      %v6913 = vrot.slane %v6912, 4
      %6916 = vst.msk [vmem:[#allocation3] sm:$0x8] %vm5455, %v6912
      %v6917 = vld [vmem:[#allocation3 + $0x4] sm:$0x1]
      %v6918 = vsel %vm340, %v6913, %v6917
      %6919 = vst [vmem:[#allocation3 + $0x4] sm:$0x1] %v6918
      %s6920 = scalar_lea.vmem [#allocation5], 18
      %v6921 = vld [vmem:[%s6920] ss:$2 sm:$0x7]
      %s6922 = scalar_lea.vmem [#allocation5], 19
      %v6923 = vld [vmem:[%s6922] ss:$2 sm:$0x7]
      %v6924 = vmax.f32 %v6921, %v6923
      %s6925 = scalar_lea.vmem [#allocation5], 27
      %v6926 = vld [vmem:[%s6925] ss:$2 sm:$0x7]
      %s6927 = scalar_lea.vmem [#allocation5], 28
      %v6928 = vld [vmem:[%s6927] ss:$2 sm:$0x7]
      %v6929 = vmax.f32 %v6926, %v6928
      %v6930 = vmax.f32 %v6924, %v6929
      %v6931 = vpack.c.bf16 %v6930, %v6930
      %v6933 = vunpack.c.l.b16 %v6931
      %v6934 = vpack.c.b16 %v6933, %v6933
      %v6936 = vshrl.u32 %v6934, 16
      %v6938 = vrot.slane %v6936, 6
      %v6939 = vshll.u32 %v6934, 16
      %v6941 = vrot.slane %v6939, 7
      %v6942 = vor.u32 %v6938, %v6941
      %vm6944 = vcmask 518145
      %vm6945 = vmand %vm6944, %vm5312
      %v6946 = vld [vmem:[#allocation3 + $0x4] sm:$0x6]
      %v6947 = vsel %vm6945, %v6942, %v6946
      %6948 = vst [vmem:[#allocation3 + $0x4] sm:$0x6] %v6947
      %v6949 = vld [vmem:[%s5146] ss:$2 sm:$0x7]
      %v6950 = vld [vmem:[%s5150] ss:$2 sm:$0x7]
      %v6951 = vmax.f32 %v6949, %v6950
      %s6952 = scalar_lea.vmem [#allocation5], 45
      %v6953 = vld [vmem:[%s6952] ss:$2 sm:$0x7]
      %s6954 = scalar_lea.vmem [#allocation5], 46
      %v6955 = vld [vmem:[%s6954] ss:$2 sm:$0x7]
      %v6956 = vmax.f32 %v6953, %v6955
      %v6957 = vmax.f32 %v6951, %v6956
      %v6958 = vpack.c.bf16 %v6957, %v6957
      %v6959 = vld [vmem:[#allocation3 + $0x8] sm:$0x3]
      %v6960 = vsel %vm5261, %v6958, %v6959
      %6961 = vst [vmem:[#allocation3 + $0x8] sm:$0x3] %v6960
      %v6962 = vld [vmem:[%s6] sm:$0x1]
      %v6963 = vld [vmem:[#allocation3] sm:$0xf]
      %v6964 = vld [vmem:[#allocation3 + $0x4] sm:$0x7]
      %v6965 = vld [vmem:[%s5] sm:$0xf]
      %v6966 = vld [vmem:[%s5 + $0x4] sm:$0xf]
      %v6967 = vld [vmem:[%s5 + $0x8] sm:$0xf]
      %v6968 = vld [vmem:[%s5 + $0xc] sm:$0xf]
      %v6969 = vld [vmem:[%s5 + $0x10] sm:$0xf]
      %v6970 = vld [vmem:[%s5 + $0x14] sm:$0xf]
      %v6971 = vld [vmem:[%s5 + $0x18] sm:$0xf]
      %v6972 = vld [vmem:[%s5 + $0x1c] sm:$0xf]
      %v6973 = vld [vmem:[%s5 + $0x20] sm:$0xf]
      %v6974 = vld [vmem:[%s5 + $0x24] sm:$0xf]
      %v6975 = vld [vmem:[%s5 + $0x28] sm:$0xf]
      %v6976 = vld [vmem:[%s5 + $0x2c] sm:$0xf]
      %v6977 = vld [vmem:[%s5 + $0x30] sm:$0xf]
      %v6978 = vld [vmem:[%s5 + $0x34] sm:$0xf]
      %v6979 = vld [vmem:[%s5 + $0x38] sm:$0xf]
      %v6980 = vld [vmem:[%s5 + $0x3c] sm:$0xf]
      %v6983 = vunpack.c.l.b16 %v6963
      %v6984 = vunpack.c.l.b16 %v6964
      %v6985 = vpack.c.b16 %v6984, %v6983
      %v6987 = vshrl.u32 %v6985, 16
      %v6989 = vshll.u32 %v6985, 16
      %v6991 = vrot.slane %v6989, 1
      %v6992 = vor.u32 %v6987, %v6991
      %v7001 = vunpack.c.l.b16 %v6973
      %v7002 = vunpack.c.l.b16 %v6974
      %v7003 = vunpack.c.l.b16 %v6975
      %v7004 = vunpack.c.l.b16 %v6976
      %v7005 = vunpack.c.l.b16 %v6977
      %v7006 = vunpack.c.l.b16 %v6978
      %v7007 = vunpack.c.l.b16 %v6979
      %v7008 = vunpack.c.l.b16 %v6980
      %v7009 = vpack.c.b16 %v7002, %v7001
      %v7010 = vpack.c.b16 %v7004, %v7003
      %v7011 = vpack.c.b16 %v7006, %v7005
      %v7012 = vpack.c.b16 %v7008, %v7007
      %v7018 = vsel %vm3577, %v6992, 0
      %7020 = vmatprep.subr.bf16.mxu0 0
      %7021 = vmatpush1.bf16.msra.mxu0 %v7009
      %7022 = vmatprep.subr.bf16.mxu0 0
      %7023 = vmatpush1.bf16.msra.mxu0 %v7010
      %7024 = vmatprep.subr.bf16.mxu0 0
      %7025 = vmatpush1.bf16.msra.mxu0 %v7011
      %7026 = vmatprep.subr.bf16.mxu0 0
      %7027 = vmatpush1.bf16.msra.mxu0 %v7012
      %7028 = vmatprep.subr.bf16.mxu0 0
      %7029 = vmatpush1.bf16.msra.mxu0 0
      %7030 = vmatprep.subr.bf16.mxu0 0
      %7031 = vmatpush1.bf16.msra.mxu0 0
      %7032 = vmatprep.subr.bf16.mxu0 0
      %7033 = vmatpush1.bf16.msra.mxu0 0
      %7034 = vmatprep.subr.bf16.mxu0 0
      %7035 = vmatpush1.bf16.msra.mxu0 0
      %7036 = vmatprep.subr.bf16.mxu0 0
      %7037 = vmatpush1.bf16.msra.mxu0 0
      %7038 = vmatprep.subr.bf16.mxu0 0
      %7039 = vmatpush1.bf16.msra.mxu0 0
      %7040 = vmatprep.subr.bf16.mxu0 0
      %7041 = vmatpush1.bf16.msra.mxu0 0
      %7042 = vmatprep.subr.bf16.mxu0 0
      %7043 = vmatpush1.bf16.msra.mxu0 0
      %7044 = vmatprep.subr.bf16.mxu0 0
      %7045 = vmatpush1.bf16.msra.mxu0 0
      %7046 = vmatprep.subr.bf16.mxu0 0
      %7047 = vmatpush1.bf16.msra.mxu0 0
      %7048 = vmatprep.subr.bf16.mxu0 0
      %7049 = vmatpush1.bf16.msra.mxu0 0
      %7050 = vmatprep.subr.bf16.mxu0 0
      %7051 = vmatpush1.bf16.msra.mxu0 0
      %7052 = vmatprep.mubr.bf16.mxu0 0
      %7053 = vmatmul.mubr.bf16.gmra.mrb[0].mxu0 %v7018
      %v7054 = vpop.f32.mrb[0].mxu0
      %v7055 = vadd.f32 0.0, %v7054
      %v7056 = vpop.f32.mrb[0].mxu0
      %v7057 = vpop.f32.mrb[0].mxu0
      %v7058 = vadd.f32 0.0, %v7057
      %v7059 = vpop.f32.mrb[0].mxu0
      %7060 = vdwg.mxu0
      %v7069 = vunpack.c.l.b16 %v6965
      %v7070 = vunpack.c.l.b16 %v6966
      %v7071 = vunpack.c.l.b16 %v6967
      %v7072 = vunpack.c.l.b16 %v6968
      %v7073 = vunpack.c.l.b16 %v6969
      %v7074 = vunpack.c.l.b16 %v6970
      %v7075 = vunpack.c.l.b16 %v6971
      %v7076 = vunpack.c.l.b16 %v6972
      %v7077 = vpack.c.b16 %v7070, %v7069
      %v7078 = vpack.c.b16 %v7072, %v7071
      %v7079 = vpack.c.b16 %v7074, %v7073
      %v7080 = vpack.c.b16 %v7076, %v7075
      %v7085 = vsel %vm3577, %v6985, 0
      %7087 = vmatprep.subr.bf16.mxu0 0
      %7088 = vmatpush1.bf16.msra.mxu0 %v7077
      %7089 = vmatprep.subr.bf16.mxu0 0
      %7090 = vmatpush1.bf16.msra.mxu0 %v7078
      %7091 = vmatprep.subr.bf16.mxu0 0
      %7092 = vmatpush1.bf16.msra.mxu0 %v7079
      %7093 = vmatprep.subr.bf16.mxu0 0
      %7094 = vmatpush1.bf16.msra.mxu0 %v7080
      %7095 = vmatprep.subr.bf16.mxu0 0
      %7096 = vmatpush1.bf16.msra.mxu0 0
      %7097 = vmatprep.subr.bf16.mxu0 0
      %7098 = vmatpush1.bf16.msra.mxu0 0
      %7099 = vmatprep.subr.bf16.mxu0 0
      %7100 = vmatpush1.bf16.msra.mxu0 0
      %7101 = vmatprep.subr.bf16.mxu0 0
      %7102 = vmatpush1.bf16.msra.mxu0 0
      %7103 = vmatprep.subr.bf16.mxu0 0
      %7104 = vmatpush1.bf16.msra.mxu0 0
      %7105 = vmatprep.subr.bf16.mxu0 0
      %7106 = vmatpush1.bf16.msra.mxu0 0
      %7107 = vmatprep.subr.bf16.mxu0 0
      %7108 = vmatpush1.bf16.msra.mxu0 0
      %7109 = vmatprep.subr.bf16.mxu0 0
      %7110 = vmatpush1.bf16.msra.mxu0 0
      %7111 = vmatprep.subr.bf16.mxu0 0
      %7112 = vmatpush1.bf16.msra.mxu0 0
      %7113 = vmatprep.subr.bf16.mxu0 0
      %7114 = vmatpush1.bf16.msra.mxu0 0
      %7115 = vmatprep.subr.bf16.mxu0 0
      %7116 = vmatpush1.bf16.msra.mxu0 0
      %7117 = vmatprep.subr.bf16.mxu0 0
      %7118 = vmatpush1.bf16.msra.mxu0 0
      %7119 = vmatprep.mubr.bf16.mxu0 0
      %7120 = vmatmul.mubr.bf16.gmra.mrb[0].mxu0 %v7085
      %v7121 = vpop.f32.mrb[0].mxu0
      %v7122 = vadd.f32 %v7055, %v7121
      %v7123 = vpop.f32.mrb[0].mxu0
      %v7124 = vpop.f32.mrb[0].mxu0
      %v7125 = vadd.f32 %v7058, %v7124
      %v7126 = vpop.f32.mrb[0].mxu0
      %7127 = vdwg.mxu0
      %v7128 = vld [vmem:[#allocation3] sm:$0xe]
      %v7129 = vld [vmem:[#allocation3 + $0x4] sm:$0xf]
      %v7130 = vld [vmem:[%s5 + $0x40] sm:$0xf]
      %v7131 = vld [vmem:[%s5 + $0x44] sm:$0xf]
      %v7132 = vld [vmem:[%s5 + $0x48] sm:$0xf]
      %v7133 = vld [vmem:[%s5 + $0x4c] sm:$0xf]
      %v7134 = vld [vmem:[%s5 + $0x50] sm:$0xf]
      %v7135 = vld [vmem:[%s5 + $0x54] sm:$0xf]
      %v7136 = vld [vmem:[%s5 + $0x58] sm:$0xf]
      %v7137 = vld [vmem:[%s5 + $0x5c] sm:$0xf]
      %v7140 = vunpack.c.l.b16 %v7128
      %v7141 = vunpack.c.l.b16 %v7129
      %v7142 = vpack.c.b16 %v7141, %v7140
      %v7143 = vrot.slane %v7142, 1
      %v7152 = vunpack.c.l.b16 %v7130
      %v7153 = vunpack.c.l.b16 %v7131
      %v7154 = vunpack.c.l.b16 %v7132
      %v7155 = vunpack.c.l.b16 %v7133
      %v7156 = vunpack.c.l.b16 %v7134
      %v7157 = vunpack.c.l.b16 %v7135
      %v7158 = vunpack.c.l.b16 %v7136
      %v7159 = vunpack.c.l.b16 %v7137
      %v7160 = vpack.c.b16 %v7153, %v7152
      %v7161 = vpack.c.b16 %v7155, %v7154
      %v7162 = vpack.c.b16 %v7157, %v7156
      %v7163 = vpack.c.b16 %v7159, %v7158
      %v7169 = vsel %vm3577, %v7143, 0
      %7171 = vmatprep.subr.bf16.mxu0 0
      %7172 = vmatpush1.bf16.msra.mxu0 %v7160
      %7173 = vmatprep.subr.bf16.mxu0 0
      %7174 = vmatpush1.bf16.msra.mxu0 %v7161
      %7175 = vmatprep.subr.bf16.mxu0 0
      %7176 = vmatpush1.bf16.msra.mxu0 %v7162
      %7177 = vmatprep.subr.bf16.mxu0 0
      %7178 = vmatpush1.bf16.msra.mxu0 %v7163
      %7179 = vmatprep.subr.bf16.mxu0 0
      %7180 = vmatpush1.bf16.msra.mxu0 0
      %7181 = vmatprep.subr.bf16.mxu0 0
      %7182 = vmatpush1.bf16.msra.mxu0 0
      %7183 = vmatprep.subr.bf16.mxu0 0
      %7184 = vmatpush1.bf16.msra.mxu0 0
      %7185 = vmatprep.subr.bf16.mxu0 0
      %7186 = vmatpush1.bf16.msra.mxu0 0
      %7187 = vmatprep.subr.bf16.mxu0 0
      %7188 = vmatpush1.bf16.msra.mxu0 0
      %7189 = vmatprep.subr.bf16.mxu0 0
      %7190 = vmatpush1.bf16.msra.mxu0 0
      %7191 = vmatprep.subr.bf16.mxu0 0
      %7192 = vmatpush1.bf16.msra.mxu0 0
      %7193 = vmatprep.subr.bf16.mxu0 0
      %7194 = vmatpush1.bf16.msra.mxu0 0
      %7195 = vmatprep.subr.bf16.mxu0 0
      %7196 = vmatpush1.bf16.msra.mxu0 0
      %7197 = vmatprep.subr.bf16.mxu0 0
      %7198 = vmatpush1.bf16.msra.mxu0 0
      %7199 = vmatprep.subr.bf16.mxu0 0
      %7200 = vmatpush1.bf16.msra.mxu0 0
      %7201 = vmatprep.subr.bf16.mxu0 0
      %7202 = vmatpush1.bf16.msra.mxu0 0
      %7203 = vmatprep.mubr.bf16.mxu0 0
      %7204 = vmatmul.mubr.bf16.gmra.mrb[0].mxu0 %v7169
      %v7205 = vpop.f32.mrb[0].mxu0
      %v7206 = vadd.f32 0.0, %v7205
      %v7207 = vpop.f32.mrb[0].mxu0
      %v7208 = vpop.f32.mrb[0].mxu0
      %v7209 = vadd.f32 0.0, %v7208
      %v7210 = vpop.f32.mrb[0].mxu0
      %7211 = vdwg.mxu0
      %v7212 = vadd.f32 %v7122, %v7206
      %v7213 = vadd.f32 %v7125, %v7209
      %v7214 = vld [vmem:[#allocation3] sm:$0xc]
      %v7215 = vld [vmem:[#allocation3 + $0x4] sm:$0xf]
      %v7216 = vld [vmem:[#allocation3 + $0x8] sm:$0x1]
      %v7217 = vld [vmem:[%s5 + $0x60] sm:$0xf]
      %v7218 = vld [vmem:[%s5 + $0x64] sm:$0xf]
      %v7219 = vld [vmem:[%s5 + $0x68] sm:$0xf]
      %v7220 = vld [vmem:[%s5 + $0x6c] sm:$0xf]
      %v7221 = vld [vmem:[%s5 + $0x70] sm:$0xf]
      %v7222 = vld [vmem:[%s5 + $0x74] sm:$0xf]
      %v7223 = vld [vmem:[%s5 + $0x78] sm:$0xf]
      %v7224 = vld [vmem:[%s5 + $0x7c] sm:$0xf]
      %v7228 = vunpack.c.l.b16 %v7214
      %v7229 = vunpack.c.l.b16 %v7215
      %v7230 = vunpack.c.l.b16 %v7216
      %v7231 = vpack.c.b16 %v7229, %v7228
      %v7232 = vpack.c.b16 %v7230, %v7230
      %v7234 = vshrl.u32 %v7231, 16
      %v7236 = vrot.slane %v7234, 2
      %v7237 = vshll.u32 %v7231, 16
      %v7239 = vrot.slane %v7237, 3
      %v7240 = vor.u32 %v7236, %v7239
      %v7242 = vshrl.u32 %v7232, 16
      %v7244 = vrot.slane %v7242, 2
      %v7245 = vshll.u32 %v7232, 16
      %v7247 = vrot.slane %v7245, 3
      %v7248 = vor.u32 %v7244, %v7247
      %v7249 = vsel %vm1695, %v7240, %v7248
      %v7258 = vunpack.c.l.b16 %v7217
      %v7259 = vunpack.c.l.b16 %v7218
      %v7260 = vunpack.c.l.b16 %v7219
      %v7261 = vunpack.c.l.b16 %v7220
      %v7262 = vunpack.c.l.b16 %v7221
      %v7263 = vunpack.c.l.b16 %v7222
      %v7264 = vunpack.c.l.b16 %v7223
      %v7265 = vunpack.c.l.b16 %v7224
      %v7266 = vpack.c.b16 %v7259, %v7258
      %v7267 = vpack.c.b16 %v7261, %v7260
      %v7268 = vpack.c.b16 %v7263, %v7262
      %v7269 = vpack.c.b16 %v7265, %v7264
      %v7275 = vsel %vm3577, %v7249, 0
      %7277 = vmatprep.subr.bf16.mxu0 0
      %7278 = vmatpush1.bf16.msra.mxu0 %v7266
      %7279 = vmatprep.subr.bf16.mxu0 0
      %7280 = vmatpush1.bf16.msra.mxu0 %v7267
      %7281 = vmatprep.subr.bf16.mxu0 0
      %7282 = vmatpush1.bf16.msra.mxu0 %v7268
      %7283 = vmatprep.subr.bf16.mxu0 0
      %7284 = vmatpush1.bf16.msra.mxu0 %v7269
      %7285 = vmatprep.subr.bf16.mxu0 0
      %7286 = vmatpush1.bf16.msra.mxu0 0
      %7287 = vmatprep.subr.bf16.mxu0 0
      %7288 = vmatpush1.bf16.msra.mxu0 0
      %7289 = vmatprep.subr.bf16.mxu0 0
      %7290 = vmatpush1.bf16.msra.mxu0 0
      %7291 = vmatprep.subr.bf16.mxu0 0
      %7292 = vmatpush1.bf16.msra.mxu0 0
      %7293 = vmatprep.subr.bf16.mxu0 0
      %7294 = vmatpush1.bf16.msra.mxu0 0
      %7295 = vmatprep.subr.bf16.mxu0 0
      %7296 = vmatpush1.bf16.msra.mxu0 0
      %7297 = vmatprep.subr.bf16.mxu0 0
      %7298 = vmatpush1.bf16.msra.mxu0 0
      %7299 = vmatprep.subr.bf16.mxu0 0
      %7300 = vmatpush1.bf16.msra.mxu0 0
      %7301 = vmatprep.subr.bf16.mxu0 0
      %7302 = vmatpush1.bf16.msra.mxu0 0
      %7303 = vmatprep.subr.bf16.mxu0 0
      %7304 = vmatpush1.bf16.msra.mxu0 0
      %7305 = vmatprep.subr.bf16.mxu0 0
      %7306 = vmatpush1.bf16.msra.mxu0 0
      %7307 = vmatprep.subr.bf16.mxu0 0
      %7308 = vmatpush1.bf16.msra.mxu0 0
      %7309 = vmatprep.mubr.bf16.mxu0 0
      %7310 = vmatmul.mubr.bf16.gmra.mrb[0].mxu0 %v7275
      %v7311 = vpop.f32.mrb[0].mxu0
      %v7312 = vadd.f32 0.0, %v7311
      %v7313 = vpop.f32.mrb[0].mxu0
      %v7314 = vpop.f32.mrb[0].mxu0
      %v7315 = vadd.f32 0.0, %v7314
      %v7316 = vpop.f32.mrb[0].mxu0
      %7317 = vdwg.mxu0
      %v7318 = vadd.f32 %v7212, %v7312
      %v7319 = vadd.f32 %v7213, %v7315
      %v7320 = vld [vmem:[#allocation3] sm:$0x8]
      %v7321 = vld [vmem:[#allocation3 + $0x8] sm:$0x3]
      %v7322 = vld [vmem:[%s5 + $0x80] sm:$0xf]
      %v7323 = vld [vmem:[%s5 + $0x84] sm:$0xf]
      %v7324 = vld [vmem:[%s5 + $0x88] sm:$0xf]
      %v7325 = vld [vmem:[%s5 + $0x8c] sm:$0xf]
      %v7326 = vld [vmem:[%s5 + $0x90] sm:$0xf]
      %v7327 = vld [vmem:[%s5 + $0x94] sm:$0xf]
      %v7328 = vld [vmem:[%s5 + $0x98] sm:$0xf]
      %v7329 = vld [vmem:[%s5 + $0x9c] sm:$0xf]
      %v7332 = vunpack.c.l.b16 %v7320
      %v7333 = vunpack.c.l.b16 %v7321
      %v7334 = vpack.c.b16 %v7229, %v7332
      %v7335 = vpack.c.b16 %v7333, %v7333
      %v7336 = vrot.slane %v7334, 3
      %v7337 = vrot.slane %v7335, 3
      %v7338 = vsel %vm2097, %v7336, %v7337
      %v7347 = vunpack.c.l.b16 %v7322
      %v7348 = vunpack.c.l.b16 %v7323
      %v7349 = vunpack.c.l.b16 %v7324
      %v7350 = vunpack.c.l.b16 %v7325
      %v7351 = vunpack.c.l.b16 %v7326
      %v7352 = vunpack.c.l.b16 %v7327
      %v7353 = vunpack.c.l.b16 %v7328
      %v7354 = vunpack.c.l.b16 %v7329
      %v7355 = vpack.c.b16 %v7348, %v7347
      %v7356 = vpack.c.b16 %v7350, %v7349
      %v7357 = vpack.c.b16 %v7352, %v7351
      %v7358 = vpack.c.b16 %v7354, %v7353
      %v7364 = vsel %vm3577, %v7338, 0
      %7366 = vmatprep.subr.bf16.mxu0 0
      %7367 = vmatpush1.bf16.msra.mxu0 %v7355
      %7368 = vmatprep.subr.bf16.mxu0 0
      %7369 = vmatpush1.bf16.msra.mxu0 %v7356
      %7370 = vmatprep.subr.bf16.mxu0 0
      %7371 = vmatpush1.bf16.msra.mxu0 %v7357
      %7372 = vmatprep.subr.bf16.mxu0 0
      %7373 = vmatpush1.bf16.msra.mxu0 %v7358
      %7374 = vmatprep.subr.bf16.mxu0 0
      %7375 = vmatpush1.bf16.msra.mxu0 0
      %7376 = vmatprep.subr.bf16.mxu0 0
      %7377 = vmatpush1.bf16.msra.mxu0 0
      %7378 = vmatprep.subr.bf16.mxu0 0
      %7379 = vmatpush1.bf16.msra.mxu0 0
      %7380 = vmatprep.subr.bf16.mxu0 0
      %7381 = vmatpush1.bf16.msra.mxu0 0
      %7382 = vmatprep.subr.bf16.mxu0 0
      %7383 = vmatpush1.bf16.msra.mxu0 0
      %7384 = vmatprep.subr.bf16.mxu0 0
      %7385 = vmatpush1.bf16.msra.mxu0 0
      %7386 = vmatprep.subr.bf16.mxu0 0
      %7387 = vmatpush1.bf16.msra.mxu0 0
      %7388 = vmatprep.subr.bf16.mxu0 0
      %7389 = vmatpush1.bf16.msra.mxu0 0
      %7390 = vmatprep.subr.bf16.mxu0 0
      %7391 = vmatpush1.bf16.msra.mxu0 0
      %7392 = vmatprep.subr.bf16.mxu0 0
      %7393 = vmatpush1.bf16.msra.mxu0 0
      %7394 = vmatprep.subr.bf16.mxu0 0
      %7395 = vmatpush1.bf16.msra.mxu0 0
      %7396 = vmatprep.subr.bf16.mxu0 0
      %7397 = vmatpush1.bf16.msra.mxu0 0
      %7398 = vmatprep.mubr.bf16.mxu0 0
      %7399 = vmatmul.mubr.bf16.gmra.mrb[0].mxu0 %v7364
      %v7400 = vpop.f32.mrb[0].mxu0
      %v7401 = vadd.f32 0.0, %v7400
      %v7402 = vpop.f32.mrb[0].mxu0
      %v7403 = vpop.f32.mrb[0].mxu0
      %v7404 = vadd.f32 0.0, %v7403
      %v7405 = vpop.f32.mrb[0].mxu0
      %7406 = vdwg.mxu0
      %v7407 = vadd.f32 %v7318, %v7401
      %v7408 = vadd.f32 %v7319, %v7404
      %v7409 = vld [vmem:[%s5 + $0xa0] sm:$0xf]
      %v7410 = vld [vmem:[%s5 + $0xa4] sm:$0xf]
      %v7411 = vld [vmem:[%s5 + $0xa8] sm:$0xf]
      %v7412 = vld [vmem:[%s5 + $0xac] sm:$0xf]
      %v7413 = vld [vmem:[%s5 + $0xb0] sm:$0xf]
      %v7414 = vld [vmem:[%s5 + $0xb4] sm:$0xf]
      %v7415 = vld [vmem:[%s5 + $0xb8] sm:$0xf]
      %v7416 = vld [vmem:[%s5 + $0xbc] sm:$0xf]
      %vm7417 = vsmask.f32 4352
      %v7419 = vshrl.u32 %v7334, 16
      %v7421 = vrot.slane %v7419, 3
      %v7422 = vshll.u32 %v7334, 16
      %v7424 = vrot.slane %v7422, 4
      %v7425 = vor.u32 %v7421, %v7424
      %v7427 = vshrl.u32 %v7335, 16
      %v7429 = vrot.slane %v7427, 3
      %v7430 = vshll.u32 %v7335, 16
      %v7432 = vrot.slane %v7430, 4
      %v7433 = vor.u32 %v7429, %v7432
      %v7434 = vsel %vm7417, %v7425, %v7433
      %v7443 = vunpack.c.l.b16 %v7409
      %v7444 = vunpack.c.l.b16 %v7410
      %v7445 = vunpack.c.l.b16 %v7411
      %v7446 = vunpack.c.l.b16 %v7412
      %v7447 = vunpack.c.l.b16 %v7413
      %v7448 = vunpack.c.l.b16 %v7414
      %v7449 = vunpack.c.l.b16 %v7415
      %v7450 = vunpack.c.l.b16 %v7416
      %v7451 = vpack.c.b16 %v7444, %v7443
      %v7452 = vpack.c.b16 %v7446, %v7445
      %v7453 = vpack.c.b16 %v7448, %v7447
      %v7454 = vpack.c.b16 %v7450, %v7449
      %v7460 = vsel %vm3577, %v7434, 0
      %7462 = vmatprep.subr.bf16.mxu0 0
      %7463 = vmatpush1.bf16.msra.mxu0 %v7451
      %7464 = vmatprep.subr.bf16.mxu0 0
      %7465 = vmatpush1.bf16.msra.mxu0 %v7452
      %7466 = vmatprep.subr.bf16.mxu0 0
      %7467 = vmatpush1.bf16.msra.mxu0 %v7453
      %7468 = vmatprep.subr.bf16.mxu0 0
      %7469 = vmatpush1.bf16.msra.mxu0 %v7454
      %7470 = vmatprep.subr.bf16.mxu0 0
      %7471 = vmatpush1.bf16.msra.mxu0 0
      %7472 = vmatprep.subr.bf16.mxu0 0
      %7473 = vmatpush1.bf16.msra.mxu0 0
      %7474 = vmatprep.subr.bf16.mxu0 0
      %7475 = vmatpush1.bf16.msra.mxu0 0
      %7476 = vmatprep.subr.bf16.mxu0 0
      %7477 = vmatpush1.bf16.msra.mxu0 0
      %7478 = vmatprep.subr.bf16.mxu0 0
      %7479 = vmatpush1.bf16.msra.mxu0 0
      %7480 = vmatprep.subr.bf16.mxu0 0
      %7481 = vmatpush1.bf16.msra.mxu0 0
      %7482 = vmatprep.subr.bf16.mxu0 0
      %7483 = vmatpush1.bf16.msra.mxu0 0
      %7484 = vmatprep.subr.bf16.mxu0 0
      %7485 = vmatpush1.bf16.msra.mxu0 0
      %7486 = vmatprep.subr.bf16.mxu0 0
      %7487 = vmatpush1.bf16.msra.mxu0 0
      %7488 = vmatprep.subr.bf16.mxu0 0
      %7489 = vmatpush1.bf16.msra.mxu0 0
      %7490 = vmatprep.subr.bf16.mxu0 0
      %7491 = vmatpush1.bf16.msra.mxu0 0
      %7492 = vmatprep.subr.bf16.mxu0 0
      %7493 = vmatpush1.bf16.msra.mxu0 0
      %7494 = vmatprep.mubr.bf16.mxu0 0
      %7495 = vmatmul.mubr.bf16.gmra.mrb[0].mxu0 %v7460
      %v7496 = vpop.f32.mrb[0].mxu0
      %v7497 = vadd.f32 0.0, %v7496
      %v7498 = vpop.f32.mrb[0].mxu0
      %v7499 = vpop.f32.mrb[0].mxu0
      %v7500 = vadd.f32 0.0, %v7499
      %v7501 = vpop.f32.mrb[0].mxu0
      %7502 = vdwg.mxu0
      %v7503 = vadd.f32 %v7407, %v7497
      %v7504 = vadd.f32 %v7408, %v7500
      %v7505 = vld [vmem:[#allocation3 + $0x4] sm:$0xe]
      %v7506 = vld [vmem:[#allocation3 + $0x8] sm:$0xf]
      %v7507 = vld [vmem:[%s5 + $0xc0] sm:$0xf]
      %v7508 = vld [vmem:[%s5 + $0xc4] sm:$0xf]
      %v7509 = vld [vmem:[%s5 + $0xc8] sm:$0xf]
      %v7510 = vld [vmem:[%s5 + $0xcc] sm:$0xf]
      %v7511 = vld [vmem:[%s5 + $0xd0] sm:$0xf]
      %v7512 = vld [vmem:[%s5 + $0xd4] sm:$0xf]
      %v7513 = vld [vmem:[%s5 + $0xd8] sm:$0xf]
      %v7514 = vld [vmem:[%s5 + $0xdc] sm:$0xf]
      %v7517 = vunpack.c.l.b16 %v7505
      %v7518 = vunpack.c.l.b16 %v7506
      %v7519 = vpack.c.b16 %v7518, %v7517
      %v7520 = vrot.slane %v7519, 1
      %v7529 = vunpack.c.l.b16 %v7507
      %v7530 = vunpack.c.l.b16 %v7508
      %v7531 = vunpack.c.l.b16 %v7509
      %v7532 = vunpack.c.l.b16 %v7510
      %v7533 = vunpack.c.l.b16 %v7511
      %v7534 = vunpack.c.l.b16 %v7512
      %v7535 = vunpack.c.l.b16 %v7513
      %v7536 = vunpack.c.l.b16 %v7514
      %v7537 = vpack.c.b16 %v7530, %v7529
      %v7538 = vpack.c.b16 %v7532, %v7531
      %v7539 = vpack.c.b16 %v7534, %v7533
      %v7540 = vpack.c.b16 %v7536, %v7535
      %v7546 = vsel %vm3577, %v7520, 0
      %7548 = vmatprep.subr.bf16.mxu0 0
      %7549 = vmatpush1.bf16.msra.mxu0 %v7537
      %7550 = vmatprep.subr.bf16.mxu0 0
      %7551 = vmatpush1.bf16.msra.mxu0 %v7538
      %7552 = vmatprep.subr.bf16.mxu0 0
      %7553 = vmatpush1.bf16.msra.mxu0 %v7539
      %7554 = vmatprep.subr.bf16.mxu0 0
      %7555 = vmatpush1.bf16.msra.mxu0 %v7540
      %7556 = vmatprep.subr.bf16.mxu0 0
      %7557 = vmatpush1.bf16.msra.mxu0 0
      %7558 = vmatprep.subr.bf16.mxu0 0
      %7559 = vmatpush1.bf16.msra.mxu0 0
      %7560 = vmatprep.subr.bf16.mxu0 0
      %7561 = vmatpush1.bf16.msra.mxu0 0
      %7562 = vmatprep.subr.bf16.mxu0 0
      %7563 = vmatpush1.bf16.msra.mxu0 0
      %7564 = vmatprep.subr.bf16.mxu0 0
      %7565 = vmatpush1.bf16.msra.mxu0 0
      %7566 = vmatprep.subr.bf16.mxu0 0
      %7567 = vmatpush1.bf16.msra.mxu0 0
      %7568 = vmatprep.subr.bf16.mxu0 0
      %7569 = vmatpush1.bf16.msra.mxu0 0
      %7570 = vmatprep.subr.bf16.mxu0 0
      %7571 = vmatpush1.bf16.msra.mxu0 0
      %7572 = vmatprep.subr.bf16.mxu0 0
      %7573 = vmatpush1.bf16.msra.mxu0 0
      %7574 = vmatprep.subr.bf16.mxu0 0
      %7575 = vmatpush1.bf16.msra.mxu0 0
      %7576 = vmatprep.subr.bf16.mxu0 0
      %7577 = vmatpush1.bf16.msra.mxu0 0
      %7578 = vmatprep.subr.bf16.mxu0 0
      %7579 = vmatpush1.bf16.msra.mxu0 0
      %7580 = vmatprep.mubr.bf16.mxu0 0
      %7581 = vmatmul.mubr.bf16.gmra.mrb[0].mxu0 %v7546
      %v7582 = vpop.f32.mrb[0].mxu0
      %v7583 = vadd.f32 0.0, %v7582
      %v7584 = vpop.f32.mrb[0].mxu0
      %v7585 = vpop.f32.mrb[0].mxu0
      %v7586 = vadd.f32 0.0, %v7585
      %v7587 = vpop.f32.mrb[0].mxu0
      %7588 = vdwg.mxu0
      %v7589 = vadd.f32 %v7503, %v7583
      %v7590 = vadd.f32 %v7504, %v7586
      %v7591 = vld [vmem:[%s5 + $0xe0] sm:$0xf]
      %v7592 = vld [vmem:[%s5 + $0xe4] sm:$0xf]
      %v7593 = vld [vmem:[%s5 + $0xe8] sm:$0xf]
      %v7594 = vld [vmem:[%s5 + $0xec] sm:$0xf]
      %v7595 = vld [vmem:[%s5 + $0xf0] sm:$0xf]
      %v7596 = vld [vmem:[%s5 + $0xf4] sm:$0xf]
      %v7597 = vld [vmem:[%s5 + $0xf8] sm:$0xf]
      %v7598 = vld [vmem:[%s5 + $0xfc] sm:$0xf]
      %v7600 = vshrl.u32 %v7519, 16
      %v7602 = vrot.slane %v7600, 1
      %v7603 = vshll.u32 %v7519, 16
      %v7605 = vrot.slane %v7603, 2
      %v7606 = vor.u32 %v7602, %v7605
      %v7615 = vunpack.c.l.b16 %v7591
      %v7616 = vunpack.c.l.b16 %v7592
      %v7617 = vunpack.c.l.b16 %v7593
      %v7618 = vunpack.c.l.b16 %v7594
      %v7619 = vunpack.c.l.b16 %v7595
      %v7620 = vunpack.c.l.b16 %v7596
      %v7621 = vunpack.c.l.b16 %v7597
      %v7622 = vunpack.c.l.b16 %v7598
      %v7623 = vpack.c.b16 %v7616, %v7615
      %v7624 = vpack.c.b16 %v7618, %v7617
      %v7625 = vpack.c.b16 %v7620, %v7619
      %v7626 = vpack.c.b16 %v7622, %v7621
      %v7632 = vsel %vm3577, %v7606, 0
      %7634 = vmatprep.subr.bf16.mxu0 0
      %7635 = vmatpush1.bf16.msra.mxu0 %v7623
      %7636 = vmatprep.subr.bf16.mxu0 0
      %7637 = vmatpush1.bf16.msra.mxu0 %v7624
      %7638 = vmatprep.subr.bf16.mxu0 0
      %7639 = vmatpush1.bf16.msra.mxu0 %v7625
      %7640 = vmatprep.subr.bf16.mxu0 0
      %7641 = vmatpush1.bf16.msra.mxu0 %v7626
      %7642 = vmatprep.subr.bf16.mxu0 0
      %7643 = vmatpush1.bf16.msra.mxu0 0
      %7644 = vmatprep.subr.bf16.mxu0 0
      %7645 = vmatpush1.bf16.msra.mxu0 0
      %7646 = vmatprep.subr.bf16.mxu0 0
      %7647 = vmatpush1.bf16.msra.mxu0 0
      %7648 = vmatprep.subr.bf16.mxu0 0
      %7649 = vmatpush1.bf16.msra.mxu0 0
      %7650 = vmatprep.subr.bf16.mxu0 0
      %7651 = vmatpush1.bf16.msra.mxu0 0
      %7652 = vmatprep.subr.bf16.mxu0 0
      %7653 = vmatpush1.bf16.msra.mxu0 0
      %7654 = vmatprep.subr.bf16.mxu0 0
      %7655 = vmatpush1.bf16.msra.mxu0 0
      %7656 = vmatprep.subr.bf16.mxu0 0
      %7657 = vmatpush1.bf16.msra.mxu0 0
      %7658 = vmatprep.subr.bf16.mxu0 0
      %7659 = vmatpush1.bf16.msra.mxu0 0
      %7660 = vmatprep.subr.bf16.mxu0 0
      %7661 = vmatpush1.bf16.msra.mxu0 0
      %7662 = vmatprep.subr.bf16.mxu0 0
      %7663 = vmatpush1.bf16.msra.mxu0 0
      %7664 = vmatprep.subr.bf16.mxu0 0
      %7665 = vmatpush1.bf16.msra.mxu0 0
      %7666 = vmatprep.mubr.bf16.mxu0 0
      %7667 = vmatmul.mubr.bf16.gmra.mrb[0].mxu0 %v7632
      %v7668 = vpop.f32.mrb[0].mxu0
      %v7669 = vadd.f32 0.0, %v7668
      %v7670 = vpop.f32.mrb[0].mxu0
      %v7671 = vpop.f32.mrb[0].mxu0
      %v7672 = vadd.f32 0.0, %v7671
      %v7673 = vpop.f32.mrb[0].mxu0
      %7674 = vdwg.mxu0
      %v7675 = vadd.f32 %v7589, %v7669
      %v7676 = vadd.f32 %v7590, %v7672
      %v7677 = vld [vmem:[#allocation3 + $0x4] sm:$0xc]
      %v7678 = vld [vmem:[#allocation3 + $0x8] sm:$0xf]
      %v7679 = vld [vmem:[#allocation3 + $0xc] sm:$0x1]
      %v7680 = vld [vmem:[%s5 + $0x100] sm:$0xf]
      %v7681 = vld [vmem:[%s5 + $0x104] sm:$0xf]
      %v7682 = vld [vmem:[%s5 + $0x108] sm:$0xf]
      %v7683 = vld [vmem:[%s5 + $0x10c] sm:$0xf]
      %v7684 = vld [vmem:[%s5 + $0x110] sm:$0xf]
      %v7685 = vld [vmem:[%s5 + $0x114] sm:$0xf]
      %v7686 = vld [vmem:[%s5 + $0x118] sm:$0xf]
      %v7687 = vld [vmem:[%s5 + $0x11c] sm:$0xf]
      %v7691 = vunpack.c.l.b16 %v7677
      %v7692 = vunpack.c.l.b16 %v7678
      %v7693 = vunpack.c.l.b16 %v7679
      %v7694 = vpack.c.b16 %v7692, %v7691
      %v7695 = vpack.c.b16 %v7693, %v7693
      %v7696 = vrot.slane %v7694, 2
      %v7697 = vrot.slane %v7695, 2
      %v7698 = vsel %vm1412, %v7696, %v7697
      %v7707 = vunpack.c.l.b16 %v7680
      %v7708 = vunpack.c.l.b16 %v7681
      %v7709 = vunpack.c.l.b16 %v7682
      %v7710 = vunpack.c.l.b16 %v7683
      %v7711 = vunpack.c.l.b16 %v7684
      %v7712 = vunpack.c.l.b16 %v7685
      %v7713 = vunpack.c.l.b16 %v7686
      %v7714 = vunpack.c.l.b16 %v7687
      %v7715 = vpack.c.b16 %v7708, %v7707
      %v7716 = vpack.c.b16 %v7710, %v7709
      %v7717 = vpack.c.b16 %v7712, %v7711
      %v7718 = vpack.c.b16 %v7714, %v7713
      %v7724 = vsel %vm3577, %v7698, 0
      %7726 = vmatprep.subr.bf16.mxu0 0
      %7727 = vmatpush1.bf16.msra.mxu0 %v7715
      %7728 = vmatprep.subr.bf16.mxu0 0
      %7729 = vmatpush1.bf16.msra.mxu0 %v7716
      %7730 = vmatprep.subr.bf16.mxu0 0
      %7731 = vmatpush1.bf16.msra.mxu0 %v7717
      %7732 = vmatprep.subr.bf16.mxu0 0
      %7733 = vmatpush1.bf16.msra.mxu0 %v7718
      %7734 = vmatprep.subr.bf16.mxu0 0
      %7735 = vmatpush1.bf16.msra.mxu0 0
      %7736 = vmatprep.subr.bf16.mxu0 0
      %7737 = vmatpush1.bf16.msra.mxu0 0
      %7738 = vmatprep.subr.bf16.mxu0 0
      %7739 = vmatpush1.bf16.msra.mxu0 0
      %7740 = vmatprep.subr.bf16.mxu0 0
      %7741 = vmatpush1.bf16.msra.mxu0 0
      %7742 = vmatprep.subr.bf16.mxu0 0
      %7743 = vmatpush1.bf16.msra.mxu0 0
      %7744 = vmatprep.subr.bf16.mxu0 0
      %7745 = vmatpush1.bf16.msra.mxu0 0
      %7746 = vmatprep.subr.bf16.mxu0 0
      %7747 = vmatpush1.bf16.msra.mxu0 0
      %7748 = vmatprep.subr.bf16.mxu0 0
      %7749 = vmatpush1.bf16.msra.mxu0 0
      %7750 = vmatprep.subr.bf16.mxu0 0
      %7751 = vmatpush1.bf16.msra.mxu0 0
      %7752 = vmatprep.subr.bf16.mxu0 0
      %7753 = vmatpush1.bf16.msra.mxu0 0
      %7754 = vmatprep.subr.bf16.mxu0 0
      %7755 = vmatpush1.bf16.msra.mxu0 0
      %7756 = vmatprep.subr.bf16.mxu0 0
      %7757 = vmatpush1.bf16.msra.mxu0 0
      %7758 = vmatprep.mubr.bf16.mxu0 0
      %7759 = vmatmul.mubr.bf16.gmra.mrb[0].mxu0 %v7724
      %v7760 = vpop.f32.mrb[0].mxu0
      %v7761 = vadd.f32 0.0, %v7760
      %v7762 = vpop.f32.mrb[0].mxu0
      %v7763 = vpop.f32.mrb[0].mxu0
      %v7764 = vadd.f32 0.0, %v7763
      %v7765 = vpop.f32.mrb[0].mxu0
      %7766 = vdwg.mxu0
      %v7767 = vadd.f32 %v7675, %v7761
      %v7768 = vadd.f32 %v7676, %v7764
      %v7770 = vlaneseq
      %v7771 = vshrl.u32 %v7770, 7
      %v7772 = vsub.s32 0, %v7771
      %v7773 = vrot.slane %v6962, %v7772
      %v7775 = vadd.f32 %v7767, %v7773
      %v7776 = vadd.f32 %v7768, %v7773
      %v7777 = vmax.f32 %v7775, 0.0
      %v7778 = vmax.f32 %v7776, 0.0
      %7779 = vst.msk [vmem:[#allocation5] sm:$0xff] %vm3577, %v7777
      %7780 = vst.msk [vmem:[#allocation5 + $0x8] sm:$0x1f] %vm6897, %v7778
      %v7781 = vld [vmem:[#allocation5] sm:$0x7]
      %v7782 = vpack.c.bf16 %v7781, %v7781
      %v7784 = vunpack.c.l.b16 %v7782
      %v7785 = vpack.c.b16 %v7784, %v7784
      %v7786 = vrot.slane %v7785, 5
      %v7787 = vrot.slane %v7786, 4
      %7790 = vst.msk [vmem:[#allocation4] sm:$0x8] %vm5455, %v7786
      %v7791 = vld [vmem:[#allocation4 + $0x4] sm:$0x1]
      %v7792 = vsel %vm340, %v7787, %v7791
      %7793 = vst [vmem:[#allocation4 + $0x4] sm:$0x1] %v7792
      %v7794 = vld [vmem:[#allocation5 + $0x5] sm:$0x7]
      %v7795 = vpack.c.bf16 %v7794, %v7794
      %v7797 = vunpack.c.l.b16 %v7795
      %v7798 = vpack.c.b16 %v7797, %v7797
      %v7800 = vshrl.u32 %v7798, 16
      %v7802 = vrot.slane %v7800, 6
      %v7803 = vshll.u32 %v7798, 16
      %v7805 = vrot.slane %v7803, 7
      %v7806 = vor.u32 %v7802, %v7805
      %v7808 = vld [vmem:[#allocation4 + $0x4] sm:$0x6]
      %v7809 = vsel %vm6945, %v7806, %v7808
      %7810 = vst [vmem:[#allocation4 + $0x4] sm:$0x6] %v7809
      %v7811 = vld [vmem:[#allocation5 + $0xa] sm:$0x7]
      %v7812 = vpack.c.bf16 %v7811, %v7811
      %v7813 = vld [vmem:[#allocation4 + $0x8] sm:$0x3]
      %v7814 = vsel %vm5261, %v7812, %v7813
      %7815 = vst [vmem:[#allocation4 + $0x8] sm:$0x3] %v7814
      %v7816 = vld [vmem:[%s8] sm:$0x1]
      %v7817 = vld [vmem:[#allocation4] sm:$0xf]
      %v7818 = vld [vmem:[#allocation4 + $0x4] sm:$0x7]
      %v7819 = vld [vmem:[%s7] sm:$0xf]
      %v7820 = vld [vmem:[%s7 + $0x4] sm:$0xf]
      %v7821 = vld [vmem:[%s7 + $0x8] sm:$0xf]
      %v7822 = vld [vmem:[%s7 + $0xc] sm:$0xf]
      %v7823 = vld [vmem:[%s7 + $0x10] sm:$0xf]
      %v7824 = vld [vmem:[%s7 + $0x14] sm:$0xf]
      %v7825 = vld [vmem:[%s7 + $0x18] sm:$0xf]
      %v7826 = vld [vmem:[%s7 + $0x1c] sm:$0xf]
      %v7827 = vld [vmem:[%s7 + $0x20] sm:$0xf]
      %v7828 = vld [vmem:[%s7 + $0x24] sm:$0xf]
      %v7829 = vld [vmem:[%s7 + $0x28] sm:$0xf]
      %v7830 = vld [vmem:[%s7 + $0x2c] sm:$0xf]
      %v7831 = vld [vmem:[%s7 + $0x30] sm:$0xf]
      %v7832 = vld [vmem:[%s7 + $0x34] sm:$0xf]
      %v7833 = vld [vmem:[%s7 + $0x38] sm:$0xf]
      %v7834 = vld [vmem:[%s7 + $0x3c] sm:$0xf]
      %v7837 = vunpack.c.l.b16 %v7817
      %v7838 = vunpack.c.l.b16 %v7818
      %v7839 = vpack.c.b16 %v7838, %v7837
      %v7841 = vshrl.u32 %v7839, 16
      %v7843 = vshll.u32 %v7839, 16
      %v7845 = vrot.slane %v7843, 1
      %v7846 = vor.u32 %v7841, %v7845
      %v7855 = vunpack.c.l.b16 %v7827
      %v7856 = vunpack.c.l.b16 %v7828
      %v7857 = vunpack.c.l.b16 %v7829
      %v7858 = vunpack.c.l.b16 %v7830
      %v7859 = vunpack.c.l.b16 %v7831
      %v7860 = vunpack.c.l.b16 %v7832
      %v7861 = vunpack.c.l.b16 %v7833
      %v7862 = vunpack.c.l.b16 %v7834
      %v7863 = vpack.c.b16 %v7856, %v7855
      %v7864 = vpack.c.b16 %v7858, %v7857
      %v7865 = vpack.c.b16 %v7860, %v7859
      %v7866 = vpack.c.b16 %v7862, %v7861
      %v7872 = vsel %vm3577, %v7846, 0
      %7874 = vmatprep.subr.bf16.mxu0 0
      %7875 = vmatpush1.bf16.msra.mxu0 %v7863
      %7876 = vmatprep.subr.bf16.mxu0 0
      %7877 = vmatpush1.bf16.msra.mxu0 %v7864
      %7878 = vmatprep.subr.bf16.mxu0 0
      %7879 = vmatpush1.bf16.msra.mxu0 %v7865
      %7880 = vmatprep.subr.bf16.mxu0 0
      %7881 = vmatpush1.bf16.msra.mxu0 %v7866
      %7882 = vmatprep.subr.bf16.mxu0 0
      %7883 = vmatpush1.bf16.msra.mxu0 0
      %7884 = vmatprep.subr.bf16.mxu0 0
      %7885 = vmatpush1.bf16.msra.mxu0 0
      %7886 = vmatprep.subr.bf16.mxu0 0
      %7887 = vmatpush1.bf16.msra.mxu0 0
      %7888 = vmatprep.subr.bf16.mxu0 0
      %7889 = vmatpush1.bf16.msra.mxu0 0
      %7890 = vmatprep.subr.bf16.mxu0 0
      %7891 = vmatpush1.bf16.msra.mxu0 0
      %7892 = vmatprep.subr.bf16.mxu0 0
      %7893 = vmatpush1.bf16.msra.mxu0 0
      %7894 = vmatprep.subr.bf16.mxu0 0
      %7895 = vmatpush1.bf16.msra.mxu0 0
      %7896 = vmatprep.subr.bf16.mxu0 0
      %7897 = vmatpush1.bf16.msra.mxu0 0
      %7898 = vmatprep.subr.bf16.mxu0 0
      %7899 = vmatpush1.bf16.msra.mxu0 0
      %7900 = vmatprep.subr.bf16.mxu0 0
      %7901 = vmatpush1.bf16.msra.mxu0 0
      %7902 = vmatprep.subr.bf16.mxu0 0
      %7903 = vmatpush1.bf16.msra.mxu0 0
      %7904 = vmatprep.subr.bf16.mxu0 0
      %7905 = vmatpush1.bf16.msra.mxu0 0
      %7906 = vmatprep.mubr.bf16.mxu0 0
      %7907 = vmatmul.mubr.bf16.gmra.mrb[0].mxu0 %v7872
      %v7908 = vpop.f32.mrb[0].mxu0
      %v7909 = vadd.f32 0.0, %v7908
      %v7910 = vpop.f32.mrb[0].mxu0
      %v7911 = vpop.f32.mrb[0].mxu0
      %v7912 = vadd.f32 0.0, %v7911
      %v7913 = vpop.f32.mrb[0].mxu0
      %7914 = vdwg.mxu0
      %v7923 = vunpack.c.l.b16 %v7819
      %v7924 = vunpack.c.l.b16 %v7820
      %v7925 = vunpack.c.l.b16 %v7821
      %v7926 = vunpack.c.l.b16 %v7822
      %v7927 = vunpack.c.l.b16 %v7823
      %v7928 = vunpack.c.l.b16 %v7824
      %v7929 = vunpack.c.l.b16 %v7825
      %v7930 = vunpack.c.l.b16 %v7826
      %v7931 = vpack.c.b16 %v7924, %v7923
      %v7932 = vpack.c.b16 %v7926, %v7925
      %v7933 = vpack.c.b16 %v7928, %v7927
      %v7934 = vpack.c.b16 %v7930, %v7929
      %v7939 = vsel %vm3577, %v7839, 0
      %7941 = vmatprep.subr.bf16.mxu0 0
      %7942 = vmatpush1.bf16.msra.mxu0 %v7931
      %7943 = vmatprep.subr.bf16.mxu0 0
      %7944 = vmatpush1.bf16.msra.mxu0 %v7932
      %7945 = vmatprep.subr.bf16.mxu0 0
      %7946 = vmatpush1.bf16.msra.mxu0 %v7933
      %7947 = vmatprep.subr.bf16.mxu0 0
      %7948 = vmatpush1.bf16.msra.mxu0 %v7934
      %7949 = vmatprep.subr.bf16.mxu0 0
      %7950 = vmatpush1.bf16.msra.mxu0 0
      %7951 = vmatprep.subr.bf16.mxu0 0
      %7952 = vmatpush1.bf16.msra.mxu0 0
      %7953 = vmatprep.subr.bf16.mxu0 0
      %7954 = vmatpush1.bf16.msra.mxu0 0
      %7955 = vmatprep.subr.bf16.mxu0 0
      %7956 = vmatpush1.bf16.msra.mxu0 0
      %7957 = vmatprep.subr.bf16.mxu0 0
      %7958 = vmatpush1.bf16.msra.mxu0 0
      %7959 = vmatprep.subr.bf16.mxu0 0
      %7960 = vmatpush1.bf16.msra.mxu0 0
      %7961 = vmatprep.subr.bf16.mxu0 0
      %7962 = vmatpush1.bf16.msra.mxu0 0
      %7963 = vmatprep.subr.bf16.mxu0 0
      %7964 = vmatpush1.bf16.msra.mxu0 0
      %7965 = vmatprep.subr.bf16.mxu0 0
      %7966 = vmatpush1.bf16.msra.mxu0 0
      %7967 = vmatprep.subr.bf16.mxu0 0
      %7968 = vmatpush1.bf16.msra.mxu0 0
      %7969 = vmatprep.subr.bf16.mxu0 0
      %7970 = vmatpush1.bf16.msra.mxu0 0
      %7971 = vmatprep.subr.bf16.mxu0 0
      %7972 = vmatpush1.bf16.msra.mxu0 0
      %7973 = vmatprep.mubr.bf16.mxu0 0
      %7974 = vmatmul.mubr.bf16.gmra.mrb[0].mxu0 %v7939
      %v7975 = vpop.f32.mrb[0].mxu0
      %v7976 = vadd.f32 %v7909, %v7975
      %v7977 = vpop.f32.mrb[0].mxu0
      %v7978 = vpop.f32.mrb[0].mxu0
      %v7979 = vadd.f32 %v7912, %v7978
      %v7980 = vpop.f32.mrb[0].mxu0
      %7981 = vdwg.mxu0
      %v7982 = vld [vmem:[#allocation4] sm:$0xe]
      %v7983 = vld [vmem:[#allocation4 + $0x4] sm:$0xf]
      %v7984 = vld [vmem:[%s7 + $0x40] sm:$0xf]
      %v7985 = vld [vmem:[%s7 + $0x44] sm:$0xf]
      %v7986 = vld [vmem:[%s7 + $0x48] sm:$0xf]
      %v7987 = vld [vmem:[%s7 + $0x4c] sm:$0xf]
      %v7988 = vld [vmem:[%s7 + $0x50] sm:$0xf]
      %v7989 = vld [vmem:[%s7 + $0x54] sm:$0xf]
      %v7990 = vld [vmem:[%s7 + $0x58] sm:$0xf]
      %v7991 = vld [vmem:[%s7 + $0x5c] sm:$0xf]
      %v7994 = vunpack.c.l.b16 %v7982
      %v7995 = vunpack.c.l.b16 %v7983
      %v7996 = vpack.c.b16 %v7995, %v7994
      %v7997 = vrot.slane %v7996, 1
      %v8006 = vunpack.c.l.b16 %v7984
      %v8007 = vunpack.c.l.b16 %v7985
      %v8008 = vunpack.c.l.b16 %v7986
      %v8009 = vunpack.c.l.b16 %v7987
      %v8010 = vunpack.c.l.b16 %v7988
      %v8011 = vunpack.c.l.b16 %v7989
      %v8012 = vunpack.c.l.b16 %v7990
      %v8013 = vunpack.c.l.b16 %v7991
      %v8014 = vpack.c.b16 %v8007, %v8006
      %v8015 = vpack.c.b16 %v8009, %v8008
      %v8016 = vpack.c.b16 %v8011, %v8010
      %v8017 = vpack.c.b16 %v8013, %v8012
      %v8023 = vsel %vm3577, %v7997, 0
      %8025 = vmatprep.subr.bf16.mxu0 0
      %8026 = vmatpush1.bf16.msra.mxu0 %v8014
      %8027 = vmatprep.subr.bf16.mxu0 0
      %8028 = vmatpush1.bf16.msra.mxu0 %v8015
      %8029 = vmatprep.subr.bf16.mxu0 0
      %8030 = vmatpush1.bf16.msra.mxu0 %v8016
      %8031 = vmatprep.subr.bf16.mxu0 0
      %8032 = vmatpush1.bf16.msra.mxu0 %v8017
      %8033 = vmatprep.subr.bf16.mxu0 0
      %8034 = vmatpush1.bf16.msra.mxu0 0
      %8035 = vmatprep.subr.bf16.mxu0 0
      %8036 = vmatpush1.bf16.msra.mxu0 0
      %8037 = vmatprep.subr.bf16.mxu0 0
      %8038 = vmatpush1.bf16.msra.mxu0 0
      %8039 = vmatprep.subr.bf16.mxu0 0
      %8040 = vmatpush1.bf16.msra.mxu0 0
      %8041 = vmatprep.subr.bf16.mxu0 0
      %8042 = vmatpush1.bf16.msra.mxu0 0
      %8043 = vmatprep.subr.bf16.mxu0 0
      %8044 = vmatpush1.bf16.msra.mxu0 0
      %8045 = vmatprep.subr.bf16.mxu0 0
      %8046 = vmatpush1.bf16.msra.mxu0 0
      %8047 = vmatprep.subr.bf16.mxu0 0
      %8048 = vmatpush1.bf16.msra.mxu0 0
      %8049 = vmatprep.subr.bf16.mxu0 0
      %8050 = vmatpush1.bf16.msra.mxu0 0
      %8051 = vmatprep.subr.bf16.mxu0 0
      %8052 = vmatpush1.bf16.msra.mxu0 0
      %8053 = vmatprep.subr.bf16.mxu0 0
      %8054 = vmatpush1.bf16.msra.mxu0 0
      %8055 = vmatprep.subr.bf16.mxu0 0
      %8056 = vmatpush1.bf16.msra.mxu0 0
      %8057 = vmatprep.mubr.bf16.mxu0 0
      %8058 = vmatmul.mubr.bf16.gmra.mrb[0].mxu0 %v8023
      %v8059 = vpop.f32.mrb[0].mxu0
      %v8060 = vadd.f32 0.0, %v8059
      %v8061 = vpop.f32.mrb[0].mxu0
      %v8062 = vpop.f32.mrb[0].mxu0
      %v8063 = vadd.f32 0.0, %v8062
      %v8064 = vpop.f32.mrb[0].mxu0
      %8065 = vdwg.mxu0
      %v8066 = vadd.f32 %v7976, %v8060
      %v8067 = vadd.f32 %v7979, %v8063
      %v8068 = vld [vmem:[#allocation4] sm:$0xc]
      %v8069 = vld [vmem:[#allocation4 + $0x4] sm:$0xf]
      %v8070 = vld [vmem:[#allocation4 + $0x8] sm:$0x1]
      %v8071 = vld [vmem:[%s7 + $0x60] sm:$0xf]
      %v8072 = vld [vmem:[%s7 + $0x64] sm:$0xf]
      %v8073 = vld [vmem:[%s7 + $0x68] sm:$0xf]
      %v8074 = vld [vmem:[%s7 + $0x6c] sm:$0xf]
      %v8075 = vld [vmem:[%s7 + $0x70] sm:$0xf]
      %v8076 = vld [vmem:[%s7 + $0x74] sm:$0xf]
      %v8077 = vld [vmem:[%s7 + $0x78] sm:$0xf]
      %v8078 = vld [vmem:[%s7 + $0x7c] sm:$0xf]
      %v8082 = vunpack.c.l.b16 %v8068
      %v8083 = vunpack.c.l.b16 %v8069
      %v8084 = vunpack.c.l.b16 %v8070
      %v8085 = vpack.c.b16 %v8083, %v8082
      %v8086 = vpack.c.b16 %v8084, %v8084
      %v8088 = vshrl.u32 %v8085, 16
      %v8090 = vrot.slane %v8088, 2
      %v8091 = vshll.u32 %v8085, 16
      %v8093 = vrot.slane %v8091, 3
      %v8094 = vor.u32 %v8090, %v8093
      %v8096 = vshrl.u32 %v8086, 16
      %v8098 = vrot.slane %v8096, 2
      %v8099 = vshll.u32 %v8086, 16
      %v8101 = vrot.slane %v8099, 3
      %v8102 = vor.u32 %v8098, %v8101
      %v8103 = vsel %vm1695, %v8094, %v8102
      %v8112 = vunpack.c.l.b16 %v8071
      %v8113 = vunpack.c.l.b16 %v8072
      %v8114 = vunpack.c.l.b16 %v8073
      %v8115 = vunpack.c.l.b16 %v8074
      %v8116 = vunpack.c.l.b16 %v8075
      %v8117 = vunpack.c.l.b16 %v8076
      %v8118 = vunpack.c.l.b16 %v8077
      %v8119 = vunpack.c.l.b16 %v8078
      %v8120 = vpack.c.b16 %v8113, %v8112
      %v8121 = vpack.c.b16 %v8115, %v8114
      %v8122 = vpack.c.b16 %v8117, %v8116
      %v8123 = vpack.c.b16 %v8119, %v8118
      %v8129 = vsel %vm3577, %v8103, 0
      %8131 = vmatprep.subr.bf16.mxu0 0
      %8132 = vmatpush1.bf16.msra.mxu0 %v8120
      %8133 = vmatprep.subr.bf16.mxu0 0
      %8134 = vmatpush1.bf16.msra.mxu0 %v8121
      %8135 = vmatprep.subr.bf16.mxu0 0
      %8136 = vmatpush1.bf16.msra.mxu0 %v8122
      %8137 = vmatprep.subr.bf16.mxu0 0
      %8138 = vmatpush1.bf16.msra.mxu0 %v8123
      %8139 = vmatprep.subr.bf16.mxu0 0
      %8140 = vmatpush1.bf16.msra.mxu0 0
      %8141 = vmatprep.subr.bf16.mxu0 0
      %8142 = vmatpush1.bf16.msra.mxu0 0
      %8143 = vmatprep.subr.bf16.mxu0 0
      %8144 = vmatpush1.bf16.msra.mxu0 0
      %8145 = vmatprep.subr.bf16.mxu0 0
      %8146 = vmatpush1.bf16.msra.mxu0 0
      %8147 = vmatprep.subr.bf16.mxu0 0
      %8148 = vmatpush1.bf16.msra.mxu0 0
      %8149 = vmatprep.subr.bf16.mxu0 0
      %8150 = vmatpush1.bf16.msra.mxu0 0
      %8151 = vmatprep.subr.bf16.mxu0 0
      %8152 = vmatpush1.bf16.msra.mxu0 0
      %8153 = vmatprep.subr.bf16.mxu0 0
      %8154 = vmatpush1.bf16.msra.mxu0 0
      %8155 = vmatprep.subr.bf16.mxu0 0
      %8156 = vmatpush1.bf16.msra.mxu0 0
      %8157 = vmatprep.subr.bf16.mxu0 0
      %8158 = vmatpush1.bf16.msra.mxu0 0
      %8159 = vmatprep.subr.bf16.mxu0 0
      %8160 = vmatpush1.bf16.msra.mxu0 0
      %8161 = vmatprep.subr.bf16.mxu0 0
      %8162 = vmatpush1.bf16.msra.mxu0 0
      %8163 = vmatprep.mubr.bf16.mxu0 0
      %8164 = vmatmul.mubr.bf16.gmra.mrb[0].mxu0 %v8129
      %v8165 = vpop.f32.mrb[0].mxu0
      %v8166 = vadd.f32 0.0, %v8165
      %v8167 = vpop.f32.mrb[0].mxu0
      %v8168 = vpop.f32.mrb[0].mxu0
      %v8169 = vadd.f32 0.0, %v8168
      %v8170 = vpop.f32.mrb[0].mxu0
      %8171 = vdwg.mxu0
      %v8172 = vadd.f32 %v8066, %v8166
      %v8173 = vadd.f32 %v8067, %v8169
      %v8174 = vld [vmem:[#allocation4] sm:$0x8]
      %v8175 = vld [vmem:[#allocation4 + $0x8] sm:$0x3]
      %v8176 = vld [vmem:[%s7 + $0x80] sm:$0xf]
      %v8177 = vld [vmem:[%s7 + $0x84] sm:$0xf]
      %v8178 = vld [vmem:[%s7 + $0x88] sm:$0xf]
      %v8179 = vld [vmem:[%s7 + $0x8c] sm:$0xf]
      %v8180 = vld [vmem:[%s7 + $0x90] sm:$0xf]
      %v8181 = vld [vmem:[%s7 + $0x94] sm:$0xf]
      %v8182 = vld [vmem:[%s7 + $0x98] sm:$0xf]
      %v8183 = vld [vmem:[%s7 + $0x9c] sm:$0xf]
      %v8186 = vunpack.c.l.b16 %v8174
      %v8187 = vunpack.c.l.b16 %v8175
      %v8188 = vpack.c.b16 %v8083, %v8186
      %v8189 = vpack.c.b16 %v8187, %v8187
      %v8190 = vrot.slane %v8188, 3
      %v8191 = vrot.slane %v8189, 3
      %v8192 = vsel %vm2097, %v8190, %v8191
      %v8201 = vunpack.c.l.b16 %v8176
      %v8202 = vunpack.c.l.b16 %v8177
      %v8203 = vunpack.c.l.b16 %v8178
      %v8204 = vunpack.c.l.b16 %v8179
      %v8205 = vunpack.c.l.b16 %v8180
      %v8206 = vunpack.c.l.b16 %v8181
      %v8207 = vunpack.c.l.b16 %v8182
      %v8208 = vunpack.c.l.b16 %v8183
      %v8209 = vpack.c.b16 %v8202, %v8201
      %v8210 = vpack.c.b16 %v8204, %v8203
      %v8211 = vpack.c.b16 %v8206, %v8205
      %v8212 = vpack.c.b16 %v8208, %v8207
      %v8218 = vsel %vm3577, %v8192, 0
      %8220 = vmatprep.subr.bf16.mxu0 0
      %8221 = vmatpush1.bf16.msra.mxu0 %v8209
      %8222 = vmatprep.subr.bf16.mxu0 0
      %8223 = vmatpush1.bf16.msra.mxu0 %v8210
      %8224 = vmatprep.subr.bf16.mxu0 0
      %8225 = vmatpush1.bf16.msra.mxu0 %v8211
      %8226 = vmatprep.subr.bf16.mxu0 0
      %8227 = vmatpush1.bf16.msra.mxu0 %v8212
      %8228 = vmatprep.subr.bf16.mxu0 0
      %8229 = vmatpush1.bf16.msra.mxu0 0
      %8230 = vmatprep.subr.bf16.mxu0 0
      %8231 = vmatpush1.bf16.msra.mxu0 0
      %8232 = vmatprep.subr.bf16.mxu0 0
      %8233 = vmatpush1.bf16.msra.mxu0 0
      %8234 = vmatprep.subr.bf16.mxu0 0
      %8235 = vmatpush1.bf16.msra.mxu0 0
      %8236 = vmatprep.subr.bf16.mxu0 0
      %8237 = vmatpush1.bf16.msra.mxu0 0
      %8238 = vmatprep.subr.bf16.mxu0 0
      %8239 = vmatpush1.bf16.msra.mxu0 0
      %8240 = vmatprep.subr.bf16.mxu0 0
      %8241 = vmatpush1.bf16.msra.mxu0 0
      %8242 = vmatprep.subr.bf16.mxu0 0
      %8243 = vmatpush1.bf16.msra.mxu0 0
      %8244 = vmatprep.subr.bf16.mxu0 0
      %8245 = vmatpush1.bf16.msra.mxu0 0
      %8246 = vmatprep.subr.bf16.mxu0 0
      %8247 = vmatpush1.bf16.msra.mxu0 0
      %8248 = vmatprep.subr.bf16.mxu0 0
      %8249 = vmatpush1.bf16.msra.mxu0 0
      %8250 = vmatprep.subr.bf16.mxu0 0
      %8251 = vmatpush1.bf16.msra.mxu0 0
      %8252 = vmatprep.mubr.bf16.mxu0 0
      %8253 = vmatmul.mubr.bf16.gmra.mrb[0].mxu0 %v8218
      %v8254 = vpop.f32.mrb[0].mxu0
      %v8255 = vadd.f32 0.0, %v8254
      %v8256 = vpop.f32.mrb[0].mxu0
      %v8257 = vpop.f32.mrb[0].mxu0
      %v8258 = vadd.f32 0.0, %v8257
      %v8259 = vpop.f32.mrb[0].mxu0
      %8260 = vdwg.mxu0
      %v8261 = vadd.f32 %v8172, %v8255
      %v8262 = vadd.f32 %v8173, %v8258
      %v8263 = vld [vmem:[%s7 + $0xa0] sm:$0xf]
      %v8264 = vld [vmem:[%s7 + $0xa4] sm:$0xf]
      %v8265 = vld [vmem:[%s7 + $0xa8] sm:$0xf]
      %v8266 = vld [vmem:[%s7 + $0xac] sm:$0xf]
      %v8267 = vld [vmem:[%s7 + $0xb0] sm:$0xf]
      %v8268 = vld [vmem:[%s7 + $0xb4] sm:$0xf]
      %v8269 = vld [vmem:[%s7 + $0xb8] sm:$0xf]
      %v8270 = vld [vmem:[%s7 + $0xbc] sm:$0xf]
      %v8272 = vshrl.u32 %v8188, 16
      %v8274 = vrot.slane %v8272, 3
      %v8275 = vshll.u32 %v8188, 16
      %v8277 = vrot.slane %v8275, 4
      %v8278 = vor.u32 %v8274, %v8277
      %v8280 = vshrl.u32 %v8189, 16
      %v8282 = vrot.slane %v8280, 3
      %v8283 = vshll.u32 %v8189, 16
      %v8285 = vrot.slane %v8283, 4
      %v8286 = vor.u32 %v8282, %v8285
      %v8287 = vsel %vm7417, %v8278, %v8286
      %v8296 = vunpack.c.l.b16 %v8263
      %v8297 = vunpack.c.l.b16 %v8264
      %v8298 = vunpack.c.l.b16 %v8265
      %v8299 = vunpack.c.l.b16 %v8266
      %v8300 = vunpack.c.l.b16 %v8267
      %v8301 = vunpack.c.l.b16 %v8268
      %v8302 = vunpack.c.l.b16 %v8269
      %v8303 = vunpack.c.l.b16 %v8270
      %v8304 = vpack.c.b16 %v8297, %v8296
      %v8305 = vpack.c.b16 %v8299, %v8298
      %v8306 = vpack.c.b16 %v8301, %v8300
      %v8307 = vpack.c.b16 %v8303, %v8302
      %v8313 = vsel %vm3577, %v8287, 0
      %8315 = vmatprep.subr.bf16.mxu0 0
      %8316 = vmatpush1.bf16.msra.mxu0 %v8304
      %8317 = vmatprep.subr.bf16.mxu0 0
      %8318 = vmatpush1.bf16.msra.mxu0 %v8305
      %8319 = vmatprep.subr.bf16.mxu0 0
      %8320 = vmatpush1.bf16.msra.mxu0 %v8306
      %8321 = vmatprep.subr.bf16.mxu0 0
      %8322 = vmatpush1.bf16.msra.mxu0 %v8307
      %8323 = vmatprep.subr.bf16.mxu0 0
      %8324 = vmatpush1.bf16.msra.mxu0 0
      %8325 = vmatprep.subr.bf16.mxu0 0
      %8326 = vmatpush1.bf16.msra.mxu0 0
      %8327 = vmatprep.subr.bf16.mxu0 0
      %8328 = vmatpush1.bf16.msra.mxu0 0
      %8329 = vmatprep.subr.bf16.mxu0 0
      %8330 = vmatpush1.bf16.msra.mxu0 0
      %8331 = vmatprep.subr.bf16.mxu0 0
      %8332 = vmatpush1.bf16.msra.mxu0 0
      %8333 = vmatprep.subr.bf16.mxu0 0
      %8334 = vmatpush1.bf16.msra.mxu0 0
      %8335 = vmatprep.subr.bf16.mxu0 0
      %8336 = vmatpush1.bf16.msra.mxu0 0
      %8337 = vmatprep.subr.bf16.mxu0 0
      %8338 = vmatpush1.bf16.msra.mxu0 0
      %8339 = vmatprep.subr.bf16.mxu0 0
      %8340 = vmatpush1.bf16.msra.mxu0 0
      %8341 = vmatprep.subr.bf16.mxu0 0
      %8342 = vmatpush1.bf16.msra.mxu0 0
      %8343 = vmatprep.subr.bf16.mxu0 0
      %8344 = vmatpush1.bf16.msra.mxu0 0
      %8345 = vmatprep.subr.bf16.mxu0 0
      %8346 = vmatpush1.bf16.msra.mxu0 0
      %8347 = vmatprep.mubr.bf16.mxu0 0
      %8348 = vmatmul.mubr.bf16.gmra.mrb[0].mxu0 %v8313
      %v8349 = vpop.f32.mrb[0].mxu0
      %v8350 = vadd.f32 0.0, %v8349
      %v8351 = vpop.f32.mrb[0].mxu0
      %v8352 = vpop.f32.mrb[0].mxu0
      %v8353 = vadd.f32 0.0, %v8352
      %v8354 = vpop.f32.mrb[0].mxu0
      %8355 = vdwg.mxu0
      %v8356 = vadd.f32 %v8261, %v8350
      %v8357 = vadd.f32 %v8262, %v8353
      %v8358 = vld [vmem:[#allocation4 + $0x4] sm:$0xe]
      %v8359 = vld [vmem:[#allocation4 + $0x8] sm:$0xf]
      %v8360 = vld [vmem:[%s7 + $0xc0] sm:$0xf]
      %v8361 = vld [vmem:[%s7 + $0xc4] sm:$0xf]
      %v8362 = vld [vmem:[%s7 + $0xc8] sm:$0xf]
      %v8363 = vld [vmem:[%s7 + $0xcc] sm:$0xf]
      %v8364 = vld [vmem:[%s7 + $0xd0] sm:$0xf]
      %v8365 = vld [vmem:[%s7 + $0xd4] sm:$0xf]
      %v8366 = vld [vmem:[%s7 + $0xd8] sm:$0xf]
      %v8367 = vld [vmem:[%s7 + $0xdc] sm:$0xf]
      %v8370 = vunpack.c.l.b16 %v8358
      %v8371 = vunpack.c.l.b16 %v8359
      %v8372 = vpack.c.b16 %v8371, %v8370
      %v8373 = vrot.slane %v8372, 1
      %v8382 = vunpack.c.l.b16 %v8360
      %v8383 = vunpack.c.l.b16 %v8361
      %v8384 = vunpack.c.l.b16 %v8362
      %v8385 = vunpack.c.l.b16 %v8363
      %v8386 = vunpack.c.l.b16 %v8364
      %v8387 = vunpack.c.l.b16 %v8365
      %v8388 = vunpack.c.l.b16 %v8366
      %v8389 = vunpack.c.l.b16 %v8367
      %v8390 = vpack.c.b16 %v8383, %v8382
      %v8391 = vpack.c.b16 %v8385, %v8384
      %v8392 = vpack.c.b16 %v8387, %v8386
      %v8393 = vpack.c.b16 %v8389, %v8388
      %v8399 = vsel %vm3577, %v8373, 0
      %8401 = vmatprep.subr.bf16.mxu0 0
      %8402 = vmatpush1.bf16.msra.mxu0 %v8390
      %8403 = vmatprep.subr.bf16.mxu0 0
      %8404 = vmatpush1.bf16.msra.mxu0 %v8391
      %8405 = vmatprep.subr.bf16.mxu0 0
      %8406 = vmatpush1.bf16.msra.mxu0 %v8392
      %8407 = vmatprep.subr.bf16.mxu0 0
      %8408 = vmatpush1.bf16.msra.mxu0 %v8393
      %8409 = vmatprep.subr.bf16.mxu0 0
      %8410 = vmatpush1.bf16.msra.mxu0 0
      %8411 = vmatprep.subr.bf16.mxu0 0
      %8412 = vmatpush1.bf16.msra.mxu0 0
      %8413 = vmatprep.subr.bf16.mxu0 0
      %8414 = vmatpush1.bf16.msra.mxu0 0
      %8415 = vmatprep.subr.bf16.mxu0 0
      %8416 = vmatpush1.bf16.msra.mxu0 0
      %8417 = vmatprep.subr.bf16.mxu0 0
      %8418 = vmatpush1.bf16.msra.mxu0 0
      %8419 = vmatprep.subr.bf16.mxu0 0
      %8420 = vmatpush1.bf16.msra.mxu0 0
      %8421 = vmatprep.subr.bf16.mxu0 0
      %8422 = vmatpush1.bf16.msra.mxu0 0
      %8423 = vmatprep.subr.bf16.mxu0 0
      %8424 = vmatpush1.bf16.msra.mxu0 0
      %8425 = vmatprep.subr.bf16.mxu0 0
      %8426 = vmatpush1.bf16.msra.mxu0 0
      %8427 = vmatprep.subr.bf16.mxu0 0
      %8428 = vmatpush1.bf16.msra.mxu0 0
      %8429 = vmatprep.subr.bf16.mxu0 0
      %8430 = vmatpush1.bf16.msra.mxu0 0
      %8431 = vmatprep.subr.bf16.mxu0 0
      %8432 = vmatpush1.bf16.msra.mxu0 0
      %8433 = vmatprep.mubr.bf16.mxu0 0
      %8434 = vmatmul.mubr.bf16.gmra.mrb[0].mxu0 %v8399
      %v8435 = vpop.f32.mrb[0].mxu0
      %v8436 = vadd.f32 0.0, %v8435
      %v8437 = vpop.f32.mrb[0].mxu0
      %v8438 = vpop.f32.mrb[0].mxu0
      %v8439 = vadd.f32 0.0, %v8438
      %v8440 = vpop.f32.mrb[0].mxu0
      %8441 = vdwg.mxu0
      %v8442 = vadd.f32 %v8356, %v8436
      %v8443 = vadd.f32 %v8357, %v8439
      %v8444 = vld [vmem:[%s7 + $0xe0] sm:$0xf]
      %v8445 = vld [vmem:[%s7 + $0xe4] sm:$0xf]
      %v8446 = vld [vmem:[%s7 + $0xe8] sm:$0xf]
      %v8447 = vld [vmem:[%s7 + $0xec] sm:$0xf]
      %v8448 = vld [vmem:[%s7 + $0xf0] sm:$0xf]
      %v8449 = vld [vmem:[%s7 + $0xf4] sm:$0xf]
      %v8450 = vld [vmem:[%s7 + $0xf8] sm:$0xf]
      %v8451 = vld [vmem:[%s7 + $0xfc] sm:$0xf]
      %v8453 = vshrl.u32 %v8372, 16
      %v8455 = vrot.slane %v8453, 1
      %v8456 = vshll.u32 %v8372, 16
      %v8458 = vrot.slane %v8456, 2
      %v8459 = vor.u32 %v8455, %v8458
      %v8468 = vunpack.c.l.b16 %v8444
      %v8469 = vunpack.c.l.b16 %v8445
      %v8470 = vunpack.c.l.b16 %v8446
      %v8471 = vunpack.c.l.b16 %v8447
      %v8472 = vunpack.c.l.b16 %v8448
      %v8473 = vunpack.c.l.b16 %v8449
      %v8474 = vunpack.c.l.b16 %v8450
      %v8475 = vunpack.c.l.b16 %v8451
      %v8476 = vpack.c.b16 %v8469, %v8468
      %v8477 = vpack.c.b16 %v8471, %v8470
      %v8478 = vpack.c.b16 %v8473, %v8472
      %v8479 = vpack.c.b16 %v8475, %v8474
      %v8485 = vsel %vm3577, %v8459, 0
      %8487 = vmatprep.subr.bf16.mxu0 0
      %8488 = vmatpush1.bf16.msra.mxu0 %v8476
      %8489 = vmatprep.subr.bf16.mxu0 0
      %8490 = vmatpush1.bf16.msra.mxu0 %v8477
      %8491 = vmatprep.subr.bf16.mxu0 0
      %8492 = vmatpush1.bf16.msra.mxu0 %v8478
      %8493 = vmatprep.subr.bf16.mxu0 0
      %8494 = vmatpush1.bf16.msra.mxu0 %v8479
      %8495 = vmatprep.subr.bf16.mxu0 0
      %8496 = vmatpush1.bf16.msra.mxu0 0
      %8497 = vmatprep.subr.bf16.mxu0 0
      %8498 = vmatpush1.bf16.msra.mxu0 0
      %8499 = vmatprep.subr.bf16.mxu0 0
      %8500 = vmatpush1.bf16.msra.mxu0 0
      %8501 = vmatprep.subr.bf16.mxu0 0
      %8502 = vmatpush1.bf16.msra.mxu0 0
      %8503 = vmatprep.subr.bf16.mxu0 0
      %8504 = vmatpush1.bf16.msra.mxu0 0
      %8505 = vmatprep.subr.bf16.mxu0 0
      %8506 = vmatpush1.bf16.msra.mxu0 0
      %8507 = vmatprep.subr.bf16.mxu0 0
      %8508 = vmatpush1.bf16.msra.mxu0 0
      %8509 = vmatprep.subr.bf16.mxu0 0
      %8510 = vmatpush1.bf16.msra.mxu0 0
      %8511 = vmatprep.subr.bf16.mxu0 0
      %8512 = vmatpush1.bf16.msra.mxu0 0
      %8513 = vmatprep.subr.bf16.mxu0 0
      %8514 = vmatpush1.bf16.msra.mxu0 0
      %8515 = vmatprep.subr.bf16.mxu0 0
      %8516 = vmatpush1.bf16.msra.mxu0 0
      %8517 = vmatprep.subr.bf16.mxu0 0
      %8518 = vmatpush1.bf16.msra.mxu0 0
      %8519 = vmatprep.mubr.bf16.mxu0 0
      %8520 = vmatmul.mubr.bf16.gmra.mrb[0].mxu0 %v8485
      %v8521 = vpop.f32.mrb[0].mxu0
      %v8522 = vadd.f32 0.0, %v8521
      %v8523 = vpop.f32.mrb[0].mxu0
      %v8524 = vpop.f32.mrb[0].mxu0
      %v8525 = vadd.f32 0.0, %v8524
      %v8526 = vpop.f32.mrb[0].mxu0
      %8527 = vdwg.mxu0
      %v8528 = vadd.f32 %v8442, %v8522
      %v8529 = vadd.f32 %v8443, %v8525
      %v8530 = vld [vmem:[#allocation4 + $0x4] sm:$0xc]
      %v8531 = vld [vmem:[#allocation4 + $0x8] sm:$0xf]
      %v8532 = vld [vmem:[#allocation4 + $0xc] sm:$0x1]
      %v8533 = vld [vmem:[%s7 + $0x100] sm:$0xf]
      %v8534 = vld [vmem:[%s7 + $0x104] sm:$0xf]
      %v8535 = vld [vmem:[%s7 + $0x108] sm:$0xf]
      %v8536 = vld [vmem:[%s7 + $0x10c] sm:$0xf]
      %v8537 = vld [vmem:[%s7 + $0x110] sm:$0xf]
      %v8538 = vld [vmem:[%s7 + $0x114] sm:$0xf]
      %v8539 = vld [vmem:[%s7 + $0x118] sm:$0xf]
      %v8540 = vld [vmem:[%s7 + $0x11c] sm:$0xf]
      %v8544 = vunpack.c.l.b16 %v8530
      %v8545 = vunpack.c.l.b16 %v8531
      %v8546 = vunpack.c.l.b16 %v8532
      %v8547 = vpack.c.b16 %v8545, %v8544
      %v8548 = vpack.c.b16 %v8546, %v8546
      %v8549 = vrot.slane %v8547, 2
      %v8550 = vrot.slane %v8548, 2
      %v8551 = vsel %vm1412, %v8549, %v8550
      %v8560 = vunpack.c.l.b16 %v8533
      %v8561 = vunpack.c.l.b16 %v8534
      %v8562 = vunpack.c.l.b16 %v8535
      %v8563 = vunpack.c.l.b16 %v8536
      %v8564 = vunpack.c.l.b16 %v8537
      %v8565 = vunpack.c.l.b16 %v8538
      %v8566 = vunpack.c.l.b16 %v8539
      %v8567 = vunpack.c.l.b16 %v8540
      %v8568 = vpack.c.b16 %v8561, %v8560
      %v8569 = vpack.c.b16 %v8563, %v8562
      %v8570 = vpack.c.b16 %v8565, %v8564
      %v8571 = vpack.c.b16 %v8567, %v8566
      %v8577 = vsel %vm3577, %v8551, 0
      %8579 = vmatprep.subr.bf16.mxu0 0
      %8580 = vmatpush1.bf16.msra.mxu0 %v8568
      %8581 = vmatprep.subr.bf16.mxu0 0
      %8582 = vmatpush1.bf16.msra.mxu0 %v8569
      %8583 = vmatprep.subr.bf16.mxu0 0
      %8584 = vmatpush1.bf16.msra.mxu0 %v8570
      %8585 = vmatprep.subr.bf16.mxu0 0
      %8586 = vmatpush1.bf16.msra.mxu0 %v8571
      %8587 = vmatprep.subr.bf16.mxu0 0
      %8588 = vmatpush1.bf16.msra.mxu0 0
      %8589 = vmatprep.subr.bf16.mxu0 0
      %8590 = vmatpush1.bf16.msra.mxu0 0
      %8591 = vmatprep.subr.bf16.mxu0 0
      %8592 = vmatpush1.bf16.msra.mxu0 0
      %8593 = vmatprep.subr.bf16.mxu0 0
      %8594 = vmatpush1.bf16.msra.mxu0 0
      %8595 = vmatprep.subr.bf16.mxu0 0
      %8596 = vmatpush1.bf16.msra.mxu0 0
      %8597 = vmatprep.subr.bf16.mxu0 0
      %8598 = vmatpush1.bf16.msra.mxu0 0
      %8599 = vmatprep.subr.bf16.mxu0 0
      %8600 = vmatpush1.bf16.msra.mxu0 0
      %8601 = vmatprep.subr.bf16.mxu0 0
      %8602 = vmatpush1.bf16.msra.mxu0 0
      %8603 = vmatprep.subr.bf16.mxu0 0
      %8604 = vmatpush1.bf16.msra.mxu0 0
      %8605 = vmatprep.subr.bf16.mxu0 0
      %8606 = vmatpush1.bf16.msra.mxu0 0
      %8607 = vmatprep.subr.bf16.mxu0 0
      %8608 = vmatpush1.bf16.msra.mxu0 0
      %8609 = vmatprep.subr.bf16.mxu0 0
      %8610 = vmatpush1.bf16.msra.mxu0 0
      %8611 = vmatprep.mubr.bf16.mxu0 0
      %8612 = vmatmul.mubr.bf16.gmra.mrb[0].mxu0 %v8577
      %v8613 = vpop.f32.mrb[0].mxu0
      %v8614 = vadd.f32 0.0, %v8613
      %v8615 = vpop.f32.mrb[0].mxu0
      %v8616 = vpop.f32.mrb[0].mxu0
      %v8617 = vadd.f32 0.0, %v8616
      %v8618 = vpop.f32.mrb[0].mxu0
      %8619 = vdwg.mxu0
      %v8620 = vadd.f32 %v8528, %v8614
      %v8621 = vadd.f32 %v8529, %v8617
      %v8623 = vlaneseq
      %v8624 = vshrl.u32 %v8623, 7
      %v8625 = vsub.s32 0, %v8624
      %v8626 = vrot.slane %v7816, %v8625
      %v8628 = vadd.f32 %v8620, %v8626
      %v8629 = vadd.f32 %v8621, %v8626
      %v8630 = vmax.f32 %v8628, 0.0
      %v8631 = vmax.f32 %v8629, 0.0
      %8632 = vst.msk [vmem:[#allocation5] sm:$0xff] %vm3577, %v8630
      %8633 = vst.msk [vmem:[#allocation5 + $0x8] sm:$0x1f] %vm6897, %v8631
      %v8634 = vld [vmem:[#allocation5] sm:$0x7]
      %8635 = vst.msk [vmem:[%s332] sm:$0x7] %vm5416, %v8634
      %v8636 = vld [vmem:[#allocation5 + $0x5] sm:$0x7]
      %8637 = vst.msk [vmem:[%s332 + $0x3] sm:$0x7] %vm5416, %v8636
      %v8638 = vld [vmem:[#allocation5 + $0xa] sm:$0x7]
      %8639 = vst.msk [vmem:[%s332 + $0x6] sm:$0x7] %vm5416, %v8638
      %p8640 = scmp.lt.s32.totalorder %s20, 1
      %s8641 = scalar_select %p8640, %s20, 1
      %s8642 = smul.addr %s8641, 2
      %s8643 = smul.addr %s8642, 8
      %s8644 = scalar_lea.vmem %s9, %s8643
      // Predicated region
      $region57: #{convnet_nopool_forward.1} parent=55 // pred_check
        %p8645 = pneg %p232
      $region58: #{convnet_nopool_forward.1} parent=55 // pred_check_branch
        %8647 = sbr.rel (%p8645) target = $region60
      $region59: #{convnet_nopool_forward.1} parent=55 // pred_region
        _
      $region60: #{convnet_nopool_forward.1} parent=55 // pred_fallthru
        _
    $region56: #{convnet_nopool_forward.1} parent=5 // pred_fallthru
      _
    %p8648 = scmp.le.s32.totalorder 2, %s15
    // Predicated region
    $region61: #{convnet_nopool_forward.1} parent=5 // pred_check
      %p8649 = pneg %p8648
    $region62: #{convnet_nopool_forward.1} parent=5 // pred_check_branch
      %8651 = sbr.rel (%p8649) target = $region64
    $region63: #{convnet_nopool_forward.1} parent=5 // pred_region
      %s8652 = ssub.s32 %s15, 2
      // Predicated region
      $region65: #{convnet_nopool_forward.1} parent=63 // pred_check
        %p8653 = pneg %p238
      $region66: #{convnet_nopool_forward.1} parent=63 // pred_check_branch
        %8655 = sbr.rel (%p8653) target = $region68
      $region67: #{convnet_nopool_forward.1} parent=63 // pred_region
        %p8656 = scmp.lt.s32.totalorder %s21, 1
        %s8657 = scalar_select %p8656, %s21, 1
        %s8658 = smul.addr %s8657, 2
        %s8659 = smul.addr %s8658, 8
        %s8660 = scalar_lea.vmem %s9, %s8659
      $region68: #{convnet_nopool_forward.1} parent=63 // pred_fallthru
        _
    $region64: #{convnet_nopool_forward.1} parent=5 // pred_fallthru
      _
  $region6: #{convnet_nopool_forward.1} parent=0 // loop_footer
    %s19 = sadd.s32 1, %s15
  $region7: #{convnet_nopool_forward.1} parent=0 // loop_footer_branch
    %14 = sbr.rel target = $region3
  $region8: #{convnet_nopool_forward.1} parent=0 // loop_exit
    _

</llo_original>
